<compile_context>
chip_gen: v5e
topology: v5e:2x2
jax: 0.10.0
libtpu: 0.0.40
codegen_flags: <defaults>
</compile_context>

<pallas_src>
import functools

import jax
import jax.numpy as jnp
from jax import lax
from jax.experimental import pallas as pl
from jax.experimental.pallas import tpu as pltpu

EPS = 1e-5          # nn.BatchNorm2d default
LANE = 128          # channel dims padded to multiples of this


def _round_up(x, mult):
    return ((x + mult - 1) // mult) * mult


def _hw_budgets():
    """Generation-aware VMEM limit and row-tile target (queried once, off-jit)."""
    try:
        cap = int(getattr(pltpu.get_tpu_info(), "vmem_capacity_bytes",
                          64 * 1024 * 1024))
    except Exception:  # pragma: no cover - conservative fallback
        cap = 64 * 1024 * 1024
    vmem_limit = max(32 * 1024 * 1024, min((cap * 5) // 8, 100 * 1024 * 1024))
    tile_target = 1024 if cap >= 96 * 1024 * 1024 else 512
    return vmem_limit, tile_target


_VMEM_LIMIT, _TILE_M_TARGET = _hw_budgets()


def _cparams():
    return pltpu.CompilerParams(
        dimension_semantics=("parallel",),     # every grid axis here is per-tile independent
        vmem_limit_bytes=_VMEM_LIMIT,
    )


def _tile_rows(m):
    """Row-tile size, number of tiles, padded row count (cdiv-based, no fallback)."""
    tm = min(_TILE_M_TARGET, _round_up(m, 8))
    nt = pl.cdiv(m, tm)
    return tm, nt, nt * tm


def _pad_axis(x, axis, mult=LANE):
    pad = (-x.shape[axis]) % mult
    if pad == 0:
        return x
    widths = [(0, 0)] * x.ndim
    widths[axis] = (0, pad)
    return jnp.pad(x, widths)


# ---------------------------------------------------------------------------
# Kernels
# ---------------------------------------------------------------------------
def _write_stats(y_f32, ps_ref, pss_ref):
    """Per-tile partial BN statistics from the f32 accumulator (pre bf16 cast).

    The (1, C) sums are broadcast over the whole (8, C) block so the wrapper
    can reduce the full stats array with a plain sum (result / 8)."""
    c = y_f32.shape[-1]
    s = jnp.sum(y_f32, axis=0, keepdims=True)
    ss = jnp.sum(y_f32 * y_f32, axis=0, keepdims=True)
    ps_ref[...] = jnp.broadcast_to(s, (8, c))
    pss_ref[...] = jnp.broadcast_to(ss, (8, c))


def _mm_stats_kernel(x_ref, w_ref, y_ref, ps_ref, pss_ref):
    # conv1: bf16 x bf16 matmul on the MXU, f32 accumulation, bf16 output.
    y = jnp.dot(x_ref[...], w_ref[...], preferred_element_type=jnp.float32)
    y_ref[...] = y.astype(y_ref.dtype)
    _write_stats(y, ps_ref, pss_ref)


def _norm_mm_stats_kernel(m_valid, tm, x_ref, scale_ref, shift_ref, w_ref,
                          y_ref, ps_ref, pss_ref):
    # conv3: fused BN2-normalize + ReLU of the previous stage's raw bf16 output,
    # then matmul.  Optional row mask keeps zero-padded tail rows at zero so
    # they never pollute BN3 statistics.
    a = jnp.maximum(
        x_ref[...].astype(jnp.float32) * scale_ref[...] + shift_ref[...], 0.0)
    if m_valid is not None:
        row = (pl.program_id(0) * tm
               + lax.broadcasted_iota(jnp.int32, a.shape, 0))
        a = jnp.where(row < m_valid, a, 0.0)
    y = jnp.dot(a.astype(jnp.bfloat16), w_ref[...],
                preferred_element_type=jnp.float32)
    y_ref[...] = y.astype(y_ref.dtype)
    _write_stats(y, ps_ref, pss_ref)


def _conv3x3_stats_kernel(a_ref, w_ref, y_ref, ps_ref, pss_ref):
    # Direct 3x3 conv (stride=1) for one image.
    #   a_ref: (H+2, W+2, C1) bf16, spatially zero-padded activations
    #   w_ref: (9, C1, C2) bf16 with tap index k = dy*3 + dx
    #   y_ref: (H, W, C2) bf16 raw conv output
    hh, ww, c2 = y_ref.shape
    c1 = a_ref.shape[-1]
    acc = jnp.zeros((hh * ww, c2), jnp.float32)
    for dy in range(3):
        for dx in range(3):
            tap = a_ref[dy:dy + hh, dx:dx + ww, :].reshape(hh * ww, c1)
            acc = acc + jnp.dot(tap, w_ref[dy * 3 + dx],
                                preferred_element_type=jnp.float32)
    y_ref[...] = acc.reshape(hh, ww, c2).astype(y_ref.dtype)
    _write_stats(acc, ps_ref, pss_ref)


def _norm_add_relu_kernel(y_ref, scale_ref, shift_ref, res_ref, o_ref):
    out = (y_ref[...].astype(jnp.float32) * scale_ref[...] + shift_ref[...]
           + res_ref[...].astype(jnp.float32))
    o_ref[...] = jnp.maximum(out, 0.0)


# ---------------------------------------------------------------------------
# Tiled pallas_call wrappers
# ---------------------------------------------------------------------------
def _matmul_stats(x2d, w, *, tm, norm_in=None, m_valid=None):
    """Row-tiled matmul + per-channel partial BN statistics.

    x2d: (m_pad, K) bf16 with m_pad % tm == 0 (padded rows are zero).
    w:   (K, C)    bf16.
    norm_in: optional (scale, shift), each (1, K) f32, fused (with ReLU) onto
             x2d before the matmul.  m_valid masks padded rows on that path.
    Returns y (m_pad, C) bf16, sum (C,) f32, sumsq (C,) f32 over real rows."""
    mp, k = x2d.shape
    c = w.shape[1]
    nt = mp // tm

    row_spec = pl.BlockSpec((tm, k), lambda i: (i, 0))
    w_spec = pl.BlockSpec((k, c), lambda i: (0, 0))     # grid-invariant weight
    vec_spec = pl.BlockSpec((1, k), lambda i: (0, 0))
    stat_spec = pl.BlockSpec((8, c), lambda i: (i, 0))

    if norm_in is None:
        kernel = _mm_stats_kernel
        in_specs = [row_spec, w_spec]
        args = (x2d, w)
    else:
        scale, shift = norm_in
        kernel = functools.partial(_norm_mm_stats_kernel, m_valid, tm)
        in_specs = [row_spec, vec_spec, vec_spec, w_spec]
        args = (x2d, scale, shift, w)

    y, psum, psumsq = pl.pallas_call(
        kernel,
        grid=(nt,),
        in_specs=in_specs,
        out_specs=[pl.BlockSpec((tm, c), lambda i: (i, 0)), stat_spec, stat_spec],
        out_shape=[
            jax.ShapeDtypeStruct((mp, c), jnp.bfloat16),
            jax.ShapeDtypeStruct((nt * 8, c), jnp.float32),
            jax.ShapeDtypeStruct((nt * 8, c), jnp.float32),
        ],
        compiler_params=_cparams(),
    )(*args)

    s = psum.sum(axis=0) * 0.125        # each tile wrote its sum on 8 rows
    ss = psumsq.sum(axis=0) * 0.125
    return y, s, ss


def _conv3x3_stats(a1p, w2, out_hw):
    """Direct 3x3 conv (stride=1), one image per grid step, + BN statistics.

    a1p: (N, H+2, W+2, C1) bf16 (zero spatial border); w2: (9, C1, C2) bf16.
    Returns y2 (N, H, W, C2) bf16, sum (C2,) f32, sumsq (C2,) f32."""
    n, hp, wp, c1 = a1p.shape
    hh, ww = out_hw
    c2 = w2.shape[-1]

    y, psum, psumsq = pl.pallas_call(
        _conv3x3_stats_kernel,
        grid=(n,),
        in_specs=[
            pl.BlockSpec((None, hp, wp, c1), lambda b: (b, 0, 0, 0)),
            pl.BlockSpec((9, c1, c2), lambda b: (0, 0, 0)),
        ],
        out_specs=[
            pl.BlockSpec((None, hh, ww, c2), lambda b: (b, 0, 0, 0)),
            pl.BlockSpec((8, c2), lambda b: (b, 0)),
            pl.BlockSpec((8, c2), lambda b: (b, 0)),
        ],
        out_shape=[
            jax.ShapeDtypeStruct((n, hh, ww, c2), jnp.bfloat16),
            jax.ShapeDtypeStruct((n * 8, c2), jnp.float32),
            jax.ShapeDtypeStruct((n * 8, c2), jnp.float32),
        ],
        compiler_params=_cparams(),
    )(a1p, w2)

    return y, psum.sum(axis=0) * 0.125, psumsq.sum(axis=0) * 0.125


def _norm_add_relu(y, scale, shift, res, *, tm):
    mp, c = y.shape
    nt = mp // tm
    return pl.pallas_call(
        _norm_add_relu_kernel,
        grid=(nt,),
        in_specs=[pl.BlockSpec((tm, c), lambda i: (i, 0)),
                  pl.BlockSpec((1, c), lambda i: (0, 0)),
                  pl.BlockSpec((1, c), lambda i: (0, 0)),
                  pl.BlockSpec((tm, c), lambda i: (i, 0))],
        out_specs=pl.BlockSpec((tm, c), lambda i: (i, 0)),
        out_shape=jax.ShapeDtypeStruct((mp, c), jnp.float32),
        compiler_params=_cparams(),
    )(y, scale, shift, res)


def _bn_scale_shift(s, ss, m, gamma, beta):
    """Per-channel scale/shift from global sum / sum-of-squares (batch BN)."""
    # TODO(synk): single-pass variance; for very large M a Welford-style merge
    #             of per-tile partials would be more robust to cancellation.
    mean = s / m
    var = jnp.maximum(ss / m - mean * mean, 0.0)
    inv = lax.rsqrt(var + EPS)
    scale = gamma.reshape(-1) * inv
    shift = beta.reshape(-1) - mean * scale
    return (scale.reshape(1, -1).astype(jnp.float32),
            shift.reshape(1, -1).astype(jnp.float32))


# ---------------------------------------------------------------------------
# Bottleneck forward (stride=1, downsample=None -> inplanes == planes*4)
# ---------------------------------------------------------------------------
@functools.partial(jax.jit, static_argnames=("stride",))
def bottleneck_forward(x_nchw, params, stride=1):
    if stride != 1:
        raise NotImplementedError("identity-shortcut bottleneck requires stride=1")
    n, cin, h, w = x_nchw.shape
    planes = params["w1"].shape[0]
    cout = planes * 4
    assert cin == cout, "downsample=None requires inplanes == planes * 4"

    m = n * h * w
    tm, _, m_pad = _tile_rows(m)

    # Input: bf16 cast (first, so the transpose moves half the bytes) ->
    # NCHW->NHWC -> (M, Cin) -> channel pad -> row pad.  One fused XLA pass.
    xb = x_nchw.astype(jnp.bfloat16)
    x2d = jnp.transpose(xb, (0, 2, 3, 1)).reshape(m, cin)
    x2d_p = _pad_axis(x2d, 1)                                    # (m, Cinp) bf16
    if m_pad != m:
        x2d_p = jnp.pad(x2d_p, ((0, m_pad - m), (0, 0)))

    # Weights: pad channel dims to lane multiples, bf16 for the MXU.
    w1 = _pad_axis(_pad_axis(params["w1"][:, :, 0, 0].T, 0), 1).astype(jnp.bfloat16)
    c1p = w1.shape[1]
    w2t = _pad_axis(_pad_axis(jnp.transpose(params["w2"], (2, 3, 1, 0)), 2), 3)
    c2p = w2t.shape[3]
    w2 = w2t.reshape(9, w2t.shape[2], c2p).astype(jnp.bfloat16)  # (9, C1p, C2p)
    w3 = _pad_axis(_pad_axis(params["w3"][:, :, 0, 0].T, 0), 1).astype(jnp.bfloat16)

    g1, b1 = _pad_axis(params["g1"], 1), _pad_axis(params["b1"], 1)
    g2, b2 = _pad_axis(params["g2"], 1), _pad_axis(params["b2"], 1)
    g3, b3 = _pad_axis(params["g3"], 1), _pad_axis(params["b3"], 1)

    # conv1 (1x1) + BN1 batch statistics.
    y1, s1, ss1 = _matmul_stats(x2d_p, w1, tm=tm)
    scale1, shift1 = _bn_scale_shift(s1, ss1, m, g1, b1)

    # BN1-normalize + ReLU + bf16 cast + spatial zero-pad: one fused XLA pass
    # feeding the direct 3x3 kernel (replaces the old norm_relu + im2col).
    y1v = y1 if m_pad == m else y1[:m]
    a1 = jnp.maximum(y1v.astype(jnp.float32) * scale1 + shift1, 0.0)
    a1p = jnp.pad(a1.astype(jnp.bfloat16).reshape(n, h, w, c1p),
                  ((0, 0), (1, 1), (1, 1), (0, 0)))

    # conv2 (3x3, pad=1, stride=1) read directly (no HBM im2col) + BN2 stats.
    y2_4d, s2, ss2 = _conv3x3_stats(a1p, w2, (h, w))
    scale2, shift2 = _bn_scale_shift(s2, ss2, m, g2, b2)

    y2 = y2_4d.reshape(m, c2p)
    m_valid = None
    if m_pad != m:
        y2 = jnp.pad(y2, ((0, m_pad - m), (0, 0)))
        m_valid = m

    # conv3 (1x1): BN2-normalize + ReLU fused into the matmul; BN3 stats.
    y3, s3, ss3 = _matmul_stats(y2, w3, tm=tm, norm_in=(scale2, shift2),
                                m_valid=m_valid)
    scale3, shift3 = _bn_scale_shift(s3, ss3, m, g3, b3)

    # BN3-normalize + residual add + ReLU (identity shortcut).
    out = _norm_add_relu(y3, scale3, shift3, x2d_p, tm=tm)
    out = out[:m, :cout].reshape(n, h, w, cout)
    return jnp.transpose(out, (0, 3, 1, 2))                      # back to NCHW


# ---------------------------------------------------------------------------
# Pure-JAX reference (unpadded, f32) for a sanity check
# ---------------------------------------------------------------------------
def _im2col_3x3(x_nhwc, stride=1):
    n, h, w, c = x_nhwc.shape
    xp = jnp.pad(x_nhwc, ((0, 0), (1, 1), (1, 1), (0, 0)))
    h_out = (h + 2 - 3) // stride + 1
    w_out = (w + 2 - 3) // stride + 1
    patches = []
    for dy in range(3):
        for dx in range(3):
            patches.append(
                xp[:, dy:dy + (h_out - 1) * stride + 1:stride,
                      dx:dx + (w_out - 1) * stride + 1:stride, :])
    pat = jnp.concatenate(patches, axis=-1)
    return pat.reshape(n * h_out * w_out, 9 * c), (n, h_out, w_out)


def _ref_conv_bn(x2d, w2d, gamma, beta, relu, res=None):
    y = x2d @ w2d
    mean = y.mean(axis=0, keepdims=True)
    var = ((y - mean) ** 2).mean(axis=0, keepdims=True)
    out = (y - mean) / jnp.sqrt(var + EPS) * gamma + beta
    if res is not None:
        out = out + res
    return jnp.maximum(out, 0.0) if relu else out


def bottleneck_reference(x_nchw, params, stride=1):
    n, cin, h, w = x_nchw.shape
    x2d = jnp.transpose(x_nchw, (0, 2, 3, 1)).reshape(n * h * w, cin)
    w1 = params["w1"][:, :, 0, 0].T
    o1 = _ref_conv_bn(x2d, w1, params["g1"], params["b1"], True)
    planes = o1.shape[-1]
    patches, (n2, h2, w2) = _im2col_3x3(o1.reshape(n, h, w, planes), stride)
    w2m = jnp.transpose(params["w2"], (2, 3, 1, 0)).reshape(9 * planes, planes)
    o2 = _ref_conv_bn(patches, w2m, params["g2"], params["b2"], True)
    w3 = params["w3"][:, :, 0, 0].T
    o3 = _ref_conv_bn(o2, w3, params["g3"], params["b3"], True, res=x2d)
    return jnp.transpose(o3.reshape(n2, h2, w2, -1), (0, 3, 1, 2))


# ---------------------------------------------------------------------------
if __name__ == "__main__":
    # planes=8 -> 32 output channels; inplanes=32 so the identity shortcut
    # (downsample=None, stride=1) is shape-compatible, as in PyTorch.
    N, PLANES, H, W = 4, 8, 16, 16
    INPLANES = PLANES * 4

    key = jax.random.PRNGKey(0)
    kx, k1, k2, k3, kg1, kg2, kg3 = jax.random.split(key, 7)

    x = jax.random.normal(kx, (N, INPLANES, H, W), dtype=jnp.float32)

    params = {
        # conv weights in PyTorch layout (Cout, Cin, kH, kW), bias=False
        "w1": 0.1 * jax.random.normal(k1, (PLANES, INPLANES, 1, 1), jnp.float32),
        "w2": 0.1 * jax.random.normal(k2, (PLANES, PLANES, 3, 3), jnp.float32),
        "w3": 0.1 * jax.random.normal(k3, (PLANES * 4, PLANES, 1, 1), jnp.float32),
        # BN affine params, kept 2D (1, C) for TPU-friendly layout
        "g1": 1.0 + 0.1 * jax.random.normal(kg1, (1, PLANES), jnp.float32),
        "b1": jnp.zeros((1, PLANES), jnp.float32),
        "g2": 1.0 + 0.1 * jax.random.normal(kg2, (1, PLANES), jnp.float32),
        "b2": jnp.zeros((1, PLANES), jnp.float32),
        "g3": 1.0 + 0.1 * jax.random.normal(kg3, (1, PLANES * 4), jnp.float32),
        "b3": jnp.zeros((1, PLANES * 4), jnp.float32),
    }

    out = jax.block_until_ready(bottleneck_forward(x, params, stride=1))
    ref = jax.block_until_ready(bottleneck_reference(x, params, stride=1))

    assert out.shape == (N, PLANES * 4, H, W), out.shape
    assert bool(jnp.all(jnp.isfinite(out)))
    # bf16 weights / activations / intermediates -> slightly loose tolerances.
    max_abs = float(jnp.max(jnp.abs(out - ref)))
    rel_l2 = float(jnp.linalg.norm(out - ref) /
                   (jnp.linalg.norm(ref) + 1e-12))
    assert max_abs < 2.5e-1, max_abs
    assert rel_l2 < 3e-2, rel_l2

    print("KERNEL_OK")
</pallas_src>

<mosaic_0001>
module attributes {stable_mosaic.version = 11 : i64} {
  func.func @_mm_stats_kernel(%arg0: i32, %arg1: memref<512x128xbf16, #tpu.memory_space<vmem>>, %arg2: memref<128x128xbf16, #tpu.memory_space<vmem>>, %arg3: memref<512x128xbf16, #tpu.memory_space<vmem>>, %arg4: memref<8x128xf32, #tpu.memory_space<vmem>>, %arg5: memref<8x128xf32, #tpu.memory_space<vmem>>) attributes {dimension_semantics = [#tpu.dimension_semantics<parallel>], iteration_bounds = array<i64: 2>, scalar_prefetch = 0 : i64, scratch_operands = 0 : i64, tpu.core_type = #tpu.core_type<tc>, window_params = [{transform_indices = @transform_0, window_bounds = array<i64: 512, 128>}, {pipeline_mode = #tpu.pipeline_mode<synchronous>, transform_indices = @transform_1, window_bounds = array<i64: 128, 128>}, {transform_indices = @transform_2, window_bounds = array<i64: 512, 128>}, {transform_indices = @transform_3, window_bounds = array<i64: 8, 128>}, {transform_indices = @transform_4, window_bounds = array<i64: 8, 128>}]} {
    %c0 = arith.constant 0 : index
    %c0_0 = arith.constant 0 : index
    %0 = vector.load %arg1[%c0, %c0_0] : memref<512x128xbf16, #tpu.memory_space<vmem>>, vector<512x128xbf16>
    %c0_1 = arith.constant 0 : index
    %c0_2 = arith.constant 0 : index
    %1 = vector.load %arg2[%c0_1, %c0_2] : memref<128x128xbf16, #tpu.memory_space<vmem>>, vector<128x128xbf16>
    %cst = arith.constant dense<0.000000e+00> : vector<512x128xf32>
    %2 = tpu.matmul %0, %1, %cst {dimension_numbers = #tpu.dot_dimension_numbers<[1], [0], [0], [1], [0, 0, 1, 1], [], []>} : vector<512x128xbf16>, vector<128x128xbf16>, vector<512x128xf32> -> vector<512x128xf32>
    %3 = arith.truncf %2 : vector<512x128xf32> to vector<512x128xbf16>
    %c0_3 = arith.constant 0 : index
    %c0_4 = arith.constant 0 : index
    %4 = vector.load %arg3[%c0_3, %c0_4] : memref<512x128xbf16, #tpu.memory_space<vmem>>, vector<512x128xbf16>
    tpu.vector_store %arg3[%c0_3, %c0_4], %3 {strides = array<i32>} : memref<512x128xbf16, #tpu.memory_space<vmem>>, vector<512x128xbf16>,
    %cst_5 = arith.constant dense<0.000000e+00> : vector<128xf32>
    %5 = vector.multi_reduction <add>, %2, %cst_5 [0] : vector<512x128xf32> to vector<128xf32>
    %6 = vector.shape_cast %5 : vector<128xf32> to vector<1x128xf32>
    %7 = arith.mulf %2, %2 : vector<512x128xf32>
    %cst_6 = arith.constant dense<0.000000e+00> : vector<128xf32>
    %8 = vector.multi_reduction <add>, %7, %cst_6 [0] : vector<512x128xf32> to vector<128xf32>
    %9 = vector.shape_cast %8 : vector<128xf32> to vector<1x128xf32>
    %10 = vector.shape_cast %6 : vector<1x128xf32> to vector<1x128xf32>
    %11 = vector.broadcast %10 : vector<1x128xf32> to vector<8x128xf32>
    %c0_7 = arith.constant 0 : index
    %c0_8 = arith.constant 0 : index
    %12 = vector.load %arg4[%c0_7, %c0_8] : memref<8x128xf32, #tpu.memory_space<vmem>>, vector<8x128xf32>
    tpu.vector_store %arg4[%c0_7, %c0_8], %11 {strides = array<i32>} : memref<8x128xf32, #tpu.memory_space<vmem>>, vector<8x128xf32>,
    %13 = vector.shape_cast %9 : vector<1x128xf32> to vector<1x128xf32>
    %14 = vector.broadcast %13 : vector<1x128xf32> to vector<8x128xf32>
    %c0_9 = arith.constant 0 : index
    %c0_10 = arith.constant 0 : index
    %15 = vector.load %arg5[%c0_9, %c0_10] : memref<8x128xf32, #tpu.memory_space<vmem>>, vector<8x128xf32>
    tpu.vector_store %arg5[%c0_9, %c0_10], %14 {strides = array<i32>} : memref<8x128xf32, #tpu.memory_space<vmem>>, vector<8x128xf32>,
    return
  }
  func.func @transform_0(%arg0: i32) -> (i32, i32) {
    %c0_i32 = arith.constant 0 : i32
    %c0_i32_0 = arith.constant 0 : i32
    return %arg0, %c0_i32 : i32, i32
  }
  func.func @transform_1(%arg0: i32) -> (i32, i32) {
    %c0_i32 = arith.constant 0 : i32
    %c0_i32_0 = arith.constant 0 : i32
    %c0_i32_1 = arith.constant 0 : i32
    return %c0_i32, %c0_i32_0 : i32, i32
  }
  func.func @transform_2(%arg0: i32) -> (i32, i32) {
    %c0_i32 = arith.constant 0 : i32
    %c0_i32_0 = arith.constant 0 : i32
    return %arg0, %c0_i32 : i32, i32
  }
  func.func @transform_3(%arg0: i32) -> (i32, i32) {
    %c0_i32 = arith.constant 0 : i32
    %c0_i32_0 = arith.constant 0 : i32
    return %arg0, %c0_i32 : i32, i32
  }
  func.func @transform_4(%arg0: i32) -> (i32, i32) {
    %c0_i32 = arith.constant 0 : i32
    %c0_i32_0 = arith.constant 0 : i32
    return %arg0, %c0_i32 : i32, i32
  }
}

module attributes {stable_mosaic.version = 11 : i64} {
  func.func @_conv3x3_stats_kernel(%arg0: i32, %arg1: memref<1x18x18x128xbf16, #tpu.memory_space<vmem>>, %arg2: memref<9x128x128xbf16, #tpu.memory_space<vmem>>, %arg3: memref<1x16x16x128xbf16, #tpu.memory_space<vmem>>, %arg4: memref<8x128xf32, #tpu.memory_space<vmem>>, %arg5: memref<8x128xf32, #tpu.memory_space<vmem>>) attributes {dimension_semantics = [#tpu.dimension_semantics<parallel>], iteration_bounds = array<i64: 4>, scalar_prefetch = 0 : i64, scratch_operands = 0 : i64, tpu.core_type = #tpu.core_type<tc>, window_params = [{transform_indices = @transform_0, window_bounds = array<i64: 1, 18, 18, 128>}, {pipeline_mode = #tpu.pipeline_mode<synchronous>, transform_indices = @transform_1, window_bounds = array<i64: 9, 128, 128>}, {transform_indices = @transform_2, window_bounds = array<i64: 1, 16, 16, 128>}, {transform_indices = @transform_3, window_bounds = array<i64: 8, 128>}, {transform_indices = @transform_4, window_bounds = array<i64: 8, 128>}]} {
    %cst = arith.constant 0.000000e+00 : f32
    %0 = vector.broadcast %cst : f32 to vector<256x128xf32>
    %c0 = arith.constant 0 : index
    %c0_0 = arith.constant 0 : index
    %c0_1 = arith.constant 0 : index
    %c0_2 = arith.constant 0 : index
    %1 = vector.load %arg1[%c0, %c0_0, %c0_1, %c0_2] : memref<1x18x18x128xbf16, #tpu.memory_space<vmem>>, vector<1x16x16x128xbf16>
    %2 = vector.shape_cast %1 : vector<1x16x16x128xbf16> to vector<16x16x128xbf16>
    %3 = vector.shape_cast %2 : vector<16x16x128xbf16> to vector<256x128xbf16>
    %c0_3 = arith.constant 0 : index
    %c0_4 = arith.constant 0 : index
    %c0_5 = arith.constant 0 : index
    %4 = vector.load %arg2[%c0_3, %c0_4, %c0_5] : memref<9x128x128xbf16, #tpu.memory_space<vmem>>, vector<1x128x128xbf16>
    %5 = vector.shape_cast %4 : vector<1x128x128xbf16> to vector<128x128xbf16>
    %cst_6 = arith.constant dense<0.000000e+00> : vector<256x128xf32>
    %6 = tpu.matmul %3, %5, %cst_6 {dimension_numbers = #tpu.dot_dimension_numbers<[1], [0], [0], [1], [0, 0, 1, 1], [], []>} : vector<256x128xbf16>, vector<128x128xbf16>, vector<256x128xf32> -> vector<256x128xf32>
    %7 = arith.addf %0, %6 : vector<256x128xf32>
    %c0_7 = arith.constant 0 : index
    %c0_8 = arith.constant 0 : index
    %c1 = arith.constant 1 : index
    %c0_9 = arith.constant 0 : index
    %8 = vector.load %arg1[%c0_7, %c0_8, %c1, %c0_9] : memref<1x18x18x128xbf16, #tpu.memory_space<vmem>>, vector<1x16x16x128xbf16>
    %9 = vector.shape_cast %8 : vector<1x16x16x128xbf16> to vector<16x16x128xbf16>
    %10 = vector.shape_cast %9 : vector<16x16x128xbf16> to vector<256x128xbf16>
    %c1_10 = arith.constant 1 : index
    %c0_11 = arith.constant 0 : index
    %c0_12 = arith.constant 0 : index
    %11 = vector.load %arg2[%c1_10, %c0_11, %c0_12] : memref<9x128x128xbf16, #tpu.memory_space<vmem>>, vector<1x128x128xbf16>
    %12 = vector.shape_cast %11 : vector<1x128x128xbf16> to vector<128x128xbf16>
    %cst_13 = arith.constant dense<0.000000e+00> : vector<256x128xf32>
    %13 = tpu.matmul %10, %12, %cst_13 {dimension_numbers = #tpu.dot_dimension_numbers<[1], [0], [0], [1], [0, 0, 1, 1], [], []>} : vector<256x128xbf16>, vector<128x128xbf16>, vector<256x128xf32> -> vector<256x128xf32>
    %14 = arith.addf %7, %13 : vector<256x128xf32>
    %c0_14 = arith.constant 0 : index
    %c0_15 = arith.constant 0 : index
    %c2 = arith.constant 2 : index
    %c0_16 = arith.constant 0 : index
    %15 = vector.load %arg1[%c0_14, %c0_15, %c2, %c0_16] : memref<1x18x18x128xbf16, #tpu.memory_space<vmem>>, vector<1x16x16x128xbf16>
    %16 = vector.shape_cast %15 : vector<1x16x16x128xbf16> to vector<16x16x128xbf16>
    %17 = vector.shape_cast %16 : vector<16x16x128xbf16> to vector<256x128xbf16>
    %c2_17 = arith.constant 2 : index
    %c0_18 = arith.constant 0 : index
    %c0_19 = arith.constant 0 : index
    %18 = vector.load %arg2[%c2_17, %c0_18, %c0_19] : memref<9x128x128xbf16, #tpu.memory_space<vmem>>, vector<1x128x128xbf16>
    %19 = vector.shape_cast %18 : vector<1x128x128xbf16> to vector<128x128xbf16>
    %cst_20 = arith.constant dense<0.000000e+00> : vector<256x128xf32>
    %20 = tpu.matmul %17, %19, %cst_20 {dimension_numbers = #tpu.dot_dimension_numbers<[1], [0], [0], [1], [0, 0, 1, 1], [], []>} : vector<256x128xbf16>, vector<128x128xbf16>, vector<256x128xf32> -> vector<256x128xf32>
    %21 = arith.addf %14, %20 : vector<256x128xf32>
    %c0_21 = arith.constant 0 : index
    %c1_22 = arith.constant 1 : index
    %c0_23 = arith.constant 0 : index
    %c0_24 = arith.constant 0 : index
    %22 = vector.load %arg1[%c0_21, %c1_22, %c0_23, %c0_24] : memref<1x18x18x128xbf16, #tpu.memory_space<vmem>>, vector<1x16x16x128xbf16>
    %23 = vector.shape_cast %22 : vector<1x16x16x128xbf16> to vector<16x16x128xbf16>
    %24 = vector.shape_cast %23 : vector<16x16x128xbf16> to vector<256x128xbf16>
    %c3 = arith.constant 3 : index
    %c0_25 = arith.constant 0 : index
    %c0_26 = arith.constant 0 : index
    %25 = vector.load %arg2[%c3, %c0_25, %c0_26] : memref<9x128x128xbf16, #tpu.memory_space<vmem>>, vector<1x128x128xbf16>
    %26 = vector.shape_cast %25 : vector<1x128x128xbf16> to vector<128x128xbf16>
    %cst_27 = arith.constant dense<0.000000e+00> : vector<256x128xf32>
    %27 = tpu.matmul %24, %26, %cst_27 {dimension_numbers = #tpu.dot_dimension_numbers<[1], [0], [0], [1], [0, 0, 1, 1], [], []>} : vector<256x128xbf16>, vector<128x128xbf16>, vector<256x128xf32> -> vector<256x128xf32>
    %28 = arith.addf %21, %27 : vector<256x128xf32>
    %c0_28 = arith.constant 0 : index
    %c1_29 = arith.constant 1 : index
    %c1_30 = arith.constant 1 : index
    %c0_31 = arith.constant 0 : index
    %29 = vector.load %arg1[%c0_28, %c1_29, %c1_30, %c0_31] : memref<1x18x18x128xbf16, #tpu.memory_space<vmem>>, vector<1x16x16x128xbf16>
    %30 = vector.shape_cast %29 : vector<1x16x16x128xbf16> to vector<16x16x128xbf16>
    %31 = vector.shape_cast %30 : vector<16x16x128xbf16> to vector<256x128xbf16>
    %c4 = arith.constant 4 : index
    %c0_32 = arith.constant 0 : index
    %c0_33 = arith.constant 0 : index
    %32 = vector.load %arg2[%c4, %c0_32, %c0_33] : memref<9x128x128xbf16, #tpu.memory_space<vmem>>, vector<1x128x128xbf16>
    %33 = vector.shape_cast %32 : vector<1x128x128xbf16> to vector<128x128xbf16>
    %cst_34 = arith.constant dense<0.000000e+00> : vector<256x128xf32>
    %34 = tpu.matmul %31, %33, %cst_34 {dimension_numbers = #tpu.dot_dimension_numbers<[1], [0], [0], [1], [0, 0, 1, 1], [], []>} : vector<256x128xbf16>, vector<128x128xbf16>, vector<256x128xf32> -> vector<256x128xf32>
    %35 = arith.addf %28, %34 : vector<256x128xf32>
    %c0_35 = arith.constant 0 : index
    %c1_36 = arith.constant 1 : index
    %c2_37 = arith.constant 2 : index
    %c0_38 = arith.constant 0 : index
    %36 = vector.load %arg1[%c0_35, %c1_36, %c2_37, %c0_38] : memref<1x18x18x128xbf16, #tpu.memory_space<vmem>>, vector<1x16x16x128xbf16>
    %37 = vector.shape_cast %36 : vector<1x16x16x128xbf16> to vector<16x16x128xbf16>
    %38 = vector.shape_cast %37 : vector<16x16x128xbf16> to vector<256x128xbf16>
    %c5 = arith.constant 5 : index
    %c0_39 = arith.constant 0 : index
    %c0_40 = arith.constant 0 : index
    %39 = vector.load %arg2[%c5, %c0_39, %c0_40] : memref<9x128x128xbf16, #tpu.memory_space<vmem>>, vector<1x128x128xbf16>
    %40 = vector.shape_cast %39 : vector<1x128x128xbf16> to vector<128x128xbf16>
    %cst_41 = arith.constant dense<0.000000e+00> : vector<256x128xf32>
    %41 = tpu.matmul %38, %40, %cst_41 {dimension_numbers = #tpu.dot_dimension_numbers<[1], [0], [0], [1], [0, 0, 1, 1], [], []>} : vector<256x128xbf16>, vector<128x128xbf16>, vector<256x128xf32> -> vector<256x128xf32>
    %42 = arith.addf %35, %41 : vector<256x128xf32>
    %c0_42 = arith.constant 0 : index
    %c2_43 = arith.constant 2 : index
    %c0_44 = arith.constant 0 : index
    %c0_45 = arith.constant 0 : index
    %43 = vector.load %arg1[%c0_42, %c2_43, %c0_44, %c0_45] : memref<1x18x18x128xbf16, #tpu.memory_space<vmem>>, vector<1x16x16x128xbf16>
    %44 = vector.shape_cast %43 : vector<1x16x16x128xbf16> to vector<16x16x128xbf16>
    %45 = vector.shape_cast %44 : vector<16x16x128xbf16> to vector<256x128xbf16>
    %c6 = arith.constant 6 : index
    %c0_46 = arith.constant 0 : index
    %c0_47 = arith.constant 0 : index
    %46 = vector.load %arg2[%c6, %c0_46, %c0_47] : memref<9x128x128xbf16, #tpu.memory_space<vmem>>, vector<1x128x128xbf16>
    %47 = vector.shape_cast %46 : vector<1x128x128xbf16> to vector<128x128xbf16>
    %cst_48 = arith.constant dense<0.000000e+00> : vector<256x128xf32>
    %48 = tpu.matmul %45, %47, %cst_48 {dimension_numbers = #tpu.dot_dimension_numbers<[1], [0], [0], [1], [0, 0, 1, 1], [], []>} : vector<256x128xbf16>, vector<128x128xbf16>, vector<256x128xf32> -> vector<256x128xf32>
    %49 = arith.addf %42, %48 : vector<256x128xf32>
    %c0_49 = arith.constant 0 : index
    %c2_50 = arith.constant 2 : index
    %c1_51 = arith.constant 1 : index
    %c0_52 = arith.constant 0 : index
    %50 = vector.load %arg1[%c0_49, %c2_50, %c1_51, %c0_52] : memref<1x18x18x128xbf16, #tpu.memory_space<vmem>>, vector<1x16x16x128xbf16>
    %51 = vector.shape_cast %50 : vector<1x16x16x128xbf16> to vector<16x16x128xbf16>
    %52 = vector.shape_cast %51 : vector<16x16x128xbf16> to vector<256x128xbf16>
    %c7 = arith.constant 7 : index
    %c0_53 = arith.constant 0 : index
    %c0_54 = arith.constant 0 : index
    %53 = vector.load %arg2[%c7, %c0_53, %c0_54] : memref<9x128x128xbf16, #tpu.memory_space<vmem>>, vector<1x128x128xbf16>
    %54 = vector.shape_cast %53 : vector<1x128x128xbf16> to vector<128x128xbf16>
    %cst_55 = arith.constant dense<0.000000e+00> : vector<256x128xf32>
    %55 = tpu.matmul %52, %54, %cst_55 {dimension_numbers = #tpu.dot_dimension_numbers<[1], [0], [0], [1], [0, 0, 1, 1], [], []>} : vector<256x128xbf16>, vector<128x128xbf16>, vector<256x128xf32> -> vector<256x128xf32>
    %56 = arith.addf %49, %55 : vector<256x128xf32>
    %c0_56 = arith.constant 0 : index
    %c2_57 = arith.constant 2 : index
    %c2_58 = arith.constant 2 : index
    %c0_59 = arith.constant 0 : index
    %57 = vector.load %arg1[%c0_56, %c2_57, %c2_58, %c0_59] : memref<1x18x18x128xbf16, #tpu.memory_space<vmem>>, vector<1x16x16x128xbf16>
    %58 = vector.shape_cast %57 : vector<1x16x16x128xbf16> to vector<16x16x128xbf16>
    %59 = vector.shape_cast %58 : vector<16x16x128xbf16> to vector<256x128xbf16>
    %c8 = arith.constant 8 : index
    %c0_60 = arith.constant 0 : index
    %c0_61 = arith.constant 0 : index
    %60 = vector.load %arg2[%c8, %c0_60, %c0_61] : memref<9x128x128xbf16, #tpu.memory_space<vmem>>, vector<1x128x128xbf16>
    %61 = vector.shape_cast %60 : vector<1x128x128xbf16> to vector<128x128xbf16>
    %cst_62 = arith.constant dense<0.000000e+00> : vector<256x128xf32>
    %62 = tpu.matmul %59, %61, %cst_62 {dimension_numbers = #tpu.dot_dimension_numbers<[1], [0], [0], [1], [0, 0, 1, 1], [], []>} : vector<256x128xbf16>, vector<128x128xbf16>, vector<256x128xf32> -> vector<256x128xf32>
    %63 = arith.addf %56, %62 : vector<256x128xf32>
    %64 = vector.shape_cast %63 : vector<256x128xf32> to vector<16x16x128xf32>
    %65 = arith.truncf %64 : vector<16x16x128xf32> to vector<16x16x128xbf16>
    %c0_63 = arith.constant 0 : index
    %c0_64 = arith.constant 0 : index
    %c0_65 = arith.constant 0 : index
    %c0_66 = arith.constant 0 : index
    %66 = vector.load %arg3[%c0_63, %c0_64, %c0_65, %c0_66] : memref<1x16x16x128xbf16, #tpu.memory_space<vmem>>, vector<1x16x16x128xbf16>
    %67 = vector.shape_cast %66 : vector<1x16x16x128xbf16> to vector<16x16x128xbf16>
    %68 = vector.shape_cast %65 : vector<16x16x128xbf16> to vector<1x16x16x128xbf16>
    tpu.vector_store %arg3[%c0_63, %c0_64, %c0_65, %c0_66], %68 {strides = array<i32>} : memref<1x16x16x128xbf16, #tpu.memory_space<vmem>>, vector<1x16x16x128xbf16>,
    %cst_67 = arith.constant dense<0.000000e+00> : vector<128xf32>
    %69 = vector.multi_reduction <add>, %63, %cst_67 [0] : vector<256x128xf32> to vector<128xf32>
    %70 = vector.shape_cast %69 : vector<128xf32> to vector<1x128xf32>
    %71 = arith.mulf %63, %63 : vector<256x128xf32>
    %cst_68 = arith.constant dense<0.000000e+00> : vector<128xf32>
    %72 = vector.multi_reduction <add>, %71, %cst_68 [0] : vector<256x128xf32> to vector<128xf32>
    %73 = vector.shape_cast %72 : vector<128xf32> to vector<1x128xf32>
    %74 = vector.shape_cast %70 : vector<1x128xf32> to vector<1x128xf32>
    %75 = vector.broadcast %74 : vector<1x128xf32> to vector<8x128xf32>
    %c0_69 = arith.constant 0 : index
    %c0_70 = arith.constant 0 : index
    %76 = vector.load %arg4[%c0_69, %c0_70] : memref<8x128xf32, #tpu.memory_space<vmem>>, vector<8x128xf32>
    tpu.vector_store %arg4[%c0_69, %c0_70], %75 {strides = array<i32>} : memref<8x128xf32, #tpu.memory_space<vmem>>, vector<8x128xf32>,
    %77 = vector.shape_cast %73 : vector<1x128xf32> to vector<1x128xf32>
    %78 = vector.broadcast %77 : vector<1x128xf32> to vector<8x128xf32>
    %c0_71 = arith.constant 0 : index
    %c0_72 = arith.constant 0 : index
    %79 = vector.load %arg5[%c0_71, %c0_72] : memref<8x128xf32, #tpu.memory_space<vmem>>, vector<8x128xf32>
    tpu.vector_store %arg5[%c0_71, %c0_72], %78 {strides = array<i32>} : memref<8x128xf32, #tpu.memory_space<vmem>>, vector<8x128xf32>,
    return
  }
  func.func @transform_0(%arg0: i32) -> (i32, i32, i32, i32) {
    %c0_i32 = arith.constant 0 : i32
    %c0_i32_0 = arith.constant 0 : i32
    %c0_i32_1 = arith.constant 0 : i32
    %c0_i32_2 = arith.constant 0 : i32
    return %arg0, %c0_i32, %c0_i32_0, %c0_i32_1 : i32, i32, i32, i32
  }
  func.func @transform_1(%arg0: i32) -> (i32, i32, i32) {
    %c0_i32 = arith.constant 0 : i32
    %c0_i32_0 = arith.constant 0 : i32
    %c0_i32_1 = arith.constant 0 : i32
    %c0_i32_2 = arith.constant 0 : i32
    return %c0_i32, %c0_i32_0, %c0_i32_1 : i32, i32, i32
  }
  func.func @transform_2(%arg0: i32) -> (i32, i32, i32, i32) {
    %c0_i32 = arith.constant 0 : i32
    %c0_i32_0 = arith.constant 0 : i32
    %c0_i32_1 = arith.constant 0 : i32
    %c0_i32_2 = arith.constant 0 : i32
    return %arg0, %c0_i32, %c0_i32_0, %c0_i32_1 : i32, i32, i32, i32
  }
  func.func @transform_3(%arg0: i32) -> (i32, i32) {
    %c0_i32 = arith.constant 0 : i32
    %c0_i32_0 = arith.constant 0 : i32
    return %arg0, %c0_i32 : i32, i32
  }
  func.func @transform_4(%arg0: i32) -> (i32, i32) {
    %c0_i32 = arith.constant 0 : i32
    %c0_i32_0 = arith.constant 0 : i32
    return %arg0, %c0_i32 : i32, i32
  }
}

module attributes {stable_mosaic.version = 11 : i64} {
  func.func @_norm_mm_stats_kernel(%arg0: i32, %arg1: memref<512x128xbf16, #tpu.memory_space<vmem>>, %arg2: memref<1x128xf32, #tpu.memory_space<vmem>>, %arg3: memref<1x128xf32, #tpu.memory_space<vmem>>, %arg4: memref<128x128xbf16, #tpu.memory_space<vmem>>, %arg5: memref<512x128xbf16, #tpu.memory_space<vmem>>, %arg6: memref<8x128xf32, #tpu.memory_space<vmem>>, %arg7: memref<8x128xf32, #tpu.memory_space<vmem>>) attributes {dimension_semantics = [#tpu.dimension_semantics<parallel>], iteration_bounds = array<i64: 2>, scalar_prefetch = 0 : i64, scratch_operands = 0 : i64, tpu.core_type = #tpu.core_type<tc>, window_params = [{transform_indices = @transform_0, window_bounds = array<i64: 512, 128>}, {pipeline_mode = #tpu.pipeline_mode<synchronous>, transform_indices = @transform_1, window_bounds = array<i64: 1, 128>}, {pipeline_mode = #tpu.pipeline_mode<synchronous>, transform_indices = @transform_2, window_bounds = array<i64: 1, 128>}, {pipeline_mode = #tpu.pipeline_mode<synchronous>, transform_indices = @transform_3, window_bounds = array<i64: 128, 128>}, {transform_indices = @transform_4, window_bounds = array<i64: 512, 128>}, {transform_indices = @transform_5, window_bounds = array<i64: 8, 128>}, {transform_indices = @transform_6, window_bounds = array<i64: 8, 128>}]} {
    %c0 = arith.constant 0 : index
    %c0_0 = arith.constant 0 : index
    %0 = vector.load %arg1[%c0, %c0_0] : memref<512x128xbf16, #tpu.memory_space<vmem>>, vector<512x128xbf16>
    %1 = arith.extf %0 : vector<512x128xbf16> to vector<512x128xf32>
    %c0_1 = arith.constant 0 : index
    %c0_2 = arith.constant 0 : index
    %2 = vector.load %arg2[%c0_1, %c0_2] : memref<1x128xf32, #tpu.memory_space<vmem>>, vector<1x128xf32>
    %3 = vector.broadcast %2 : vector<1x128xf32> to vector<512x128xf32>
    %4 = arith.mulf %1, %3 : vector<512x128xf32>
    %c0_3 = arith.constant 0 : index
    %c0_4 = arith.constant 0 : index
    %5 = vector.load %arg3[%c0_3, %c0_4] : memref<1x128xf32, #tpu.memory_space<vmem>>, vector<1x128xf32>
    %6 = vector.broadcast %5 : vector<1x128xf32> to vector<512x128xf32>
    %7 = arith.addf %4, %6 : vector<512x128xf32>
    %cst = arith.constant 0.000000e+00 : f32
    %8 = vector.broadcast %cst : f32 to vector<512x128xf32>
    %9 = arith.maximumf %7, %8 : vector<512x128xf32>
    %10 = arith.truncf %9 : vector<512x128xf32> to vector<512x128xbf16>
    %c0_5 = arith.constant 0 : index
    %c0_6 = arith.constant 0 : index
    %11 = vector.load %arg4[%c0_5, %c0_6] : memref<128x128xbf16, #tpu.memory_space<vmem>>, vector<128x128xbf16>
    %cst_7 = arith.constant dense<0.000000e+00> : vector<512x128xf32>
    %12 = tpu.matmul %10, %11, %cst_7 {dimension_numbers = #tpu.dot_dimension_numbers<[1], [0], [0], [1], [0, 0, 1, 1], [], []>} : vector<512x128xbf16>, vector<128x128xbf16>, vector<512x128xf32> -> vector<512x128xf32>
    %13 = arith.truncf %12 : vector<512x128xf32> to vector<512x128xbf16>
    %c0_8 = arith.constant 0 : index
    %c0_9 = arith.constant 0 : index
    %14 = vector.load %arg5[%c0_8, %c0_9] : memref<512x128xbf16, #tpu.memory_space<vmem>>, vector<512x128xbf16>
    tpu.vector_store %arg5[%c0_8, %c0_9], %13 {strides = array<i32>} : memref<512x128xbf16, #tpu.memory_space<vmem>>, vector<512x128xbf16>,
    %cst_10 = arith.constant dense<0.000000e+00> : vector<128xf32>
    %15 = vector.multi_reduction <add>, %12, %cst_10 [0] : vector<512x128xf32> to vector<128xf32>
    %16 = vector.shape_cast %15 : vector<128xf32> to vector<1x128xf32>
    %17 = arith.mulf %12, %12 : vector<512x128xf32>
    %cst_11 = arith.constant dense<0.000000e+00> : vector<128xf32>
    %18 = vector.multi_reduction <add>, %17, %cst_11 [0] : vector<512x128xf32> to vector<128xf32>
    %19 = vector.shape_cast %18 : vector<128xf32> to vector<1x128xf32>
    %20 = vector.shape_cast %16 : vector<1x128xf32> to vector<1x128xf32>
    %21 = vector.broadcast %20 : vector<1x128xf32> to vector<8x128xf32>
    %c0_12 = arith.constant 0 : index
    %c0_13 = arith.constant 0 : index
    %22 = vector.load %arg6[%c0_12, %c0_13] : memref<8x128xf32, #tpu.memory_space<vmem>>, vector<8x128xf32>
    tpu.vector_store %arg6[%c0_12, %c0_13], %21 {strides = array<i32>} : memref<8x128xf32, #tpu.memory_space<vmem>>, vector<8x128xf32>,
    %23 = vector.shape_cast %19 : vector<1x128xf32> to vector<1x128xf32>
    %24 = vector.broadcast %23 : vector<1x128xf32> to vector<8x128xf32>
    %c0_14 = arith.constant 0 : index
    %c0_15 = arith.constant 0 : index
    %25 = vector.load %arg7[%c0_14, %c0_15] : memref<8x128xf32, #tpu.memory_space<vmem>>, vector<8x128xf32>
    tpu.vector_store %arg7[%c0_14, %c0_15], %24 {strides = array<i32>} : memref<8x128xf32, #tpu.memory_space<vmem>>, vector<8x128xf32>,
    return
  }
  func.func @transform_0(%arg0: i32) -> (i32, i32) {
    %c0_i32 = arith.constant 0 : i32
    %c0_i32_0 = arith.constant 0 : i32
    return %arg0, %c0_i32 : i32, i32
  }
  func.func @transform_1(%arg0: i32) -> (i32, i32) {
    %c0_i32 = arith.constant 0 : i32
    %c0_i32_0 = arith.constant 0 : i32
    %c0_i32_1 = arith.constant 0 : i32
    return %c0_i32, %c0_i32_0 : i32, i32
  }
  func.func @transform_2(%arg0: i32) -> (i32, i32) {
    %c0_i32 = arith.constant 0 : i32
    %c0_i32_0 = arith.constant 0 : i32
    %c0_i32_1 = arith.constant 0 : i32
    return %c0_i32, %c0_i32_0 : i32, i32
  }
  func.func @transform_3(%arg0: i32) -> (i32, i32) {
    %c0_i32 = arith.constant 0 : i32
    %c0_i32_0 = arith.constant 0 : i32
    %c0_i32_1 = arith.constant 0 : i32
    return %c0_i32, %c0_i32_0 : i32, i32
  }
  func.func @transform_4(%arg0: i32) -> (i32, i32) {
    %c0_i32 = arith.constant 0 : i32
    %c0_i32_0 = arith.constant 0 : i32
    return %arg0, %c0_i32 : i32, i32
  }
  func.func @transform_5(%arg0: i32) -> (i32, i32) {
    %c0_i32 = arith.constant 0 : i32
    %c0_i32_0 = arith.constant 0 : i32
    return %arg0, %c0_i32 : i32, i32
  }
  func.func @transform_6(%arg0: i32) -> (i32, i32) {
    %c0_i32 = arith.constant 0 : i32
    %c0_i32_0 = arith.constant 0 : i32
    return %arg0, %c0_i32 : i32, i32
  }
}

module attributes {stable_mosaic.version = 11 : i64} {
  func.func @_norm_add_relu_kernel(%arg0: i32, %arg1: memref<512x128xbf16, #tpu.memory_space<vmem>>, %arg2: memref<1x128xf32, #tpu.memory_space<vmem>>, %arg3: memref<1x128xf32, #tpu.memory_space<vmem>>, %arg4: memref<512x128xbf16, #tpu.memory_space<vmem>>, %arg5: memref<512x128xf32, #tpu.memory_space<vmem>>) attributes {dimension_semantics = [#tpu.dimension_semantics<parallel>], iteration_bounds = array<i64: 2>, scalar_prefetch = 0 : i64, scratch_operands = 0 : i64, tpu.core_type = #tpu.core_type<tc>, window_params = [{transform_indices = @transform_0, window_bounds = array<i64: 512, 128>}, {pipeline_mode = #tpu.pipeline_mode<synchronous>, transform_indices = @transform_1, window_bounds = array<i64: 1, 128>}, {pipeline_mode = #tpu.pipeline_mode<synchronous>, transform_indices = @transform_2, window_bounds = array<i64: 1, 128>}, {transform_indices = @transform_3, window_bounds = array<i64: 512, 128>}, {transform_indices = @transform_4, window_bounds = array<i64: 512, 128>}]} {
    %c0 = arith.constant 0 : index
    %c0_0 = arith.constant 0 : index
    %0 = vector.load %arg1[%c0, %c0_0] : memref<512x128xbf16, #tpu.memory_space<vmem>>, vector<512x128xbf16>
    %1 = arith.extf %0 : vector<512x128xbf16> to vector<512x128xf32>
    %c0_1 = arith.constant 0 : index
    %c0_2 = arith.constant 0 : index
    %2 = vector.load %arg2[%c0_1, %c0_2] : memref<1x128xf32, #tpu.memory_space<vmem>>, vector<1x128xf32>
    %3 = vector.broadcast %2 : vector<1x128xf32> to vector<512x128xf32>
    %4 = arith.mulf %1, %3 : vector<512x128xf32>
    %c0_3 = arith.constant 0 : index
    %c0_4 = arith.constant 0 : index
    %5 = vector.load %arg3[%c0_3, %c0_4] : memref<1x128xf32, #tpu.memory_space<vmem>>, vector<1x128xf32>
    %6 = vector.broadcast %5 : vector<1x128xf32> to vector<512x128xf32>
    %7 = arith.addf %4, %6 : vector<512x128xf32>
    %c0_5 = arith.constant 0 : index
    %c0_6 = arith.constant 0 : index
    %8 = vector.load %arg4[%c0_5, %c0_6] : memref<512x128xbf16, #tpu.memory_space<vmem>>, vector<512x128xbf16>
    %9 = arith.extf %8 : vector<512x128xbf16> to vector<512x128xf32>
    %10 = arith.addf %7, %9 : vector<512x128xf32>
    %cst = arith.constant 0.000000e+00 : f32
    %11 = vector.broadcast %cst : f32 to vector<512x128xf32>
    %12 = arith.maximumf %10, %11 : vector<512x128xf32>
    %c0_7 = arith.constant 0 : index
    %c0_8 = arith.constant 0 : index
    %13 = vector.load %arg5[%c0_7, %c0_8] : memref<512x128xf32, #tpu.memory_space<vmem>>, vector<512x128xf32>
    tpu.vector_store %arg5[%c0_7, %c0_8], %12 {strides = array<i32>} : memref<512x128xf32, #tpu.memory_space<vmem>>, vector<512x128xf32>,
    return
  }
  func.func @transform_0(%arg0: i32) -> (i32, i32) {
    %c0_i32 = arith.constant 0 : i32
    %c0_i32_0 = arith.constant 0 : i32
    return %arg0, %c0_i32 : i32, i32
  }
  func.func @transform_1(%arg0: i32) -> (i32, i32) {
    %c0_i32 = arith.constant 0 : i32
    %c0_i32_0 = arith.constant 0 : i32
    %c0_i32_1 = arith.constant 0 : i32
    return %c0_i32, %c0_i32_0 : i32, i32
  }
  func.func @transform_2(%arg0: i32) -> (i32, i32) {
    %c0_i32 = arith.constant 0 : i32
    %c0_i32_0 = arith.constant 0 : i32
    %c0_i32_1 = arith.constant 0 : i32
    return %c0_i32, %c0_i32_0 : i32, i32
  }
  func.func @transform_3(%arg0: i32) -> (i32, i32) {
    %c0_i32 = arith.constant 0 : i32
    %c0_i32_0 = arith.constant 0 : i32
    return %arg0, %c0_i32 : i32, i32
  }
  func.func @transform_4(%arg0: i32) -> (i32, i32) {
    %c0_i32 = arith.constant 0 : i32
    %c0_i32_0 = arith.constant 0 : i32
    return %arg0, %c0_i32 : i32, i32
  }
}

</mosaic_0001>

<llo_original>
// kernel: bottleneck_forward.4
$region0: #{bottleneck_forward.4}
  #allocation0 [shape = 'u32[]', space=smem, size = 0x4, offset = 0x4, fixed_abs, tag = 'smem constant byte address 0x4 - core index']
  #allocation1 [shape = 'u32[72,128]{1,0:T(1,128)}', space=vmem, size = 0x9000, scoped, tag = 'internal scratch']
  %s0 = inlined_call_operand.vmem [shape: bf16[1024,128], index: 0, kind: input, shape index: {}]
  %s1 = inlined_call_operand.vmem [shape: bf16[128,128], index: 1, kind: input, shape index: {}]
  %s2 = inlined_call_operand.vmem [shape: bf16[1024,128], index: 2, kind: output, shape index: {0}]
  %s3 = inlined_call_operand.vmem [shape: f32[16,128], index: 3, kind: output, shape index: {1}]
  %s4 = inlined_call_operand.vmem [shape: f32[16,128], index: 4, kind: output, shape index: {2}]
  %5 = xla_tuple %s2, %s3, %s4
  %s6 = sld [smem:[#allocation0]]
  $region57: #{bottleneck_forward.4} parent=0
    _
  %s8 = ssub.s32 1, %s6
  %s9 = scalar_select 0, %s8, %s6
  loop: start=0, step=1, limit=4
  $region2: #{bottleneck_forward.4} parent=0 // loop_pre_header
    _
  $region3: #{bottleneck_forward.4} parent=0 // loop_header
    %s11 = sphi 0, %s15
    %p12 = scmp.ge.s32.totalorder %s11, 4
    %s21 = sphi 0, %s23
    %s24 = sphi 0, %s21
    %s25 = sphi 0, %s24
    %s41 = sphi 0, %s25
    %s45 = sphi 0, %s45
    %s47 = sphi 0, %s45
    %s48 = sphi 0, %s47
    %s62 = sphi 0, %s48
    %s68 = sphi 0, %s70
    %s71 = sphi 0, %s68
    %s72 = sphi 0, %s71
    %s88 = sphi 0, %s72
    %s94 = sphi 0, %s96
    %s97 = sphi 0, %s94
    %s98 = sphi 0, %s97
    %s114 = sphi 0, %s98
    %s120 = sphi 0, %s122
    %s123 = sphi 0, %s120
    %s124 = sphi 0, %s123
    %s140 = sphi 0, %s124
  $region4: #{bottleneck_forward.4} parent=0 // loop_header_branch
    %14 = sbr.rel (%p12) target = $region8
  $region5: #{bottleneck_forward.4} parent=0 // loop_body
    %s16 = ssub.s32 %s11, 1
    %s17 = ssub.s32 %s11, 2
    %s18 = sadd.s32 %s11, 1
    %s19 = ssub.s32 %s11, %s18
    %p20 = scmp.eq.s32.totalorder %s19, 0
    %s22 = sadd.s32 %s21, 1
    %s23 = scalar_select %p20, %s21, %s22
    %p26 = pneg %p20
    %p27 = scmp.eq.s32.totalorder %s11, 1
    %p28 = por %p26, %p27
    %p29 = scmp.ne.s32.totalorder %s21, %s24
    %p30 = scmp.eq.s32.totalorder %s11, 0
    %p31 = por %p29, %p30
    %p32 = scmp.ne.s32.totalorder %s21, %s24
    %p33 = scmp.eq.s32.totalorder %s16, 1
    %p34 = por %p32, %p33
    %p35 = scmp.ne.s32.totalorder %s24, %s25
    %p36 = scmp.eq.s32.totalorder %s16, 0
    %p37 = por %p35, %p36
    %p38 = scmp.ne.s32.totalorder %s24, %s25
    %p39 = scmp.eq.s32.totalorder %s17, 1
    %p40 = por %p38, %p39
    %p42 = scmp.ne.s32.totalorder %s25, %s41
    %p43 = scmp.eq.s32.totalorder %s17, 0
    %p44 = por %p42, %p43
    %s46 = sadd.s32 %s45, 1
    %p49 = scmp.eq.s32.totalorder %s11, 1
    %p50 = scmp.ne.s32.totalorder %s45, %s47
    %p51 = scmp.eq.s32.totalorder %s11, 0
    %p52 = por %p50, %p51
    %p53 = scmp.ne.s32.totalorder %s45, %s47
    %p54 = scmp.eq.s32.totalorder %s16, 1
    %p55 = por %p53, %p54
    %p56 = scmp.ne.s32.totalorder %s47, %s48
    %p57 = scmp.eq.s32.totalorder %s16, 0
    %p58 = por %p56, %p57
    %p59 = scmp.ne.s32.totalorder %s47, %s48
    %p60 = scmp.eq.s32.totalorder %s17, 1
    %p61 = por %p59, %p60
    %p63 = scmp.ne.s32.totalorder %s48, %s62
    %p64 = scmp.eq.s32.totalorder %s17, 0
    %p65 = por %p63, %p64
    %s66 = ssub.s32 %s11, %s18
    %p67 = scmp.eq.s32.totalorder %s66, 0
    %s69 = sadd.s32 %s68, 1
    %s70 = scalar_select %p67, %s68, %s69
    %p73 = pneg %p67
    %p74 = scmp.eq.s32.totalorder %s11, 1
    %p75 = por %p73, %p74
    %p76 = scmp.ne.s32.totalorder %s68, %s71
    %p77 = scmp.eq.s32.totalorder %s11, 0
    %p78 = por %p76, %p77
    %p79 = scmp.ne.s32.totalorder %s68, %s71
    %p80 = scmp.eq.s32.totalorder %s16, 1
    %p81 = por %p79, %p80
    %p82 = scmp.ne.s32.totalorder %s71, %s72
    %p83 = scmp.eq.s32.totalorder %s16, 0
    %p84 = por %p82, %p83
    %p85 = scmp.ne.s32.totalorder %s71, %s72
    %p86 = scmp.eq.s32.totalorder %s17, 1
    %p87 = por %p85, %p86
    %p89 = scmp.ne.s32.totalorder %s72, %s88
    %p90 = scmp.eq.s32.totalorder %s17, 0
    %p91 = por %p89, %p90
    %s92 = ssub.s32 %s11, %s18
    %p93 = scmp.eq.s32.totalorder %s92, 0
    %s95 = sadd.s32 %s94, 1
    %s96 = scalar_select %p93, %s94, %s95
    %p99 = pneg %p93
    %p100 = scmp.eq.s32.totalorder %s11, 1
    %p101 = por %p99, %p100
    %p102 = scmp.ne.s32.totalorder %s94, %s97
    %p103 = scmp.eq.s32.totalorder %s11, 0
    %p104 = por %p102, %p103
    %p105 = scmp.ne.s32.totalorder %s94, %s97
    %p106 = scmp.eq.s32.totalorder %s16, 1
    %p107 = por %p105, %p106
    %p108 = scmp.ne.s32.totalorder %s97, %s98
    %p109 = scmp.eq.s32.totalorder %s16, 0
    %p110 = por %p108, %p109
    %p111 = scmp.ne.s32.totalorder %s97, %s98
    %p112 = scmp.eq.s32.totalorder %s17, 1
    %p113 = por %p111, %p112
    %p115 = scmp.ne.s32.totalorder %s98, %s114
    %p116 = scmp.eq.s32.totalorder %s17, 0
    %p117 = por %p115, %p116
    %s118 = ssub.s32 %s11, %s18
    %p119 = scmp.eq.s32.totalorder %s118, 0
    %s121 = sadd.s32 %s120, 1
    %s122 = scalar_select %p119, %s120, %s121
    %p125 = pneg %p119
    %p126 = scmp.eq.s32.totalorder %s11, 1
    %p127 = por %p125, %p126
    %p128 = scmp.ne.s32.totalorder %s120, %s123
    %p129 = scmp.eq.s32.totalorder %s11, 0
    %p130 = por %p128, %p129
    %p131 = scmp.ne.s32.totalorder %s120, %s123
    %p132 = scmp.eq.s32.totalorder %s16, 1
    %p133 = por %p131, %p132
    %p134 = scmp.ne.s32.totalorder %s123, %s124
    %p135 = scmp.eq.s32.totalorder %s16, 0
    %p136 = por %p134, %p135
    %p137 = scmp.ne.s32.totalorder %s123, %s124
    %p138 = scmp.eq.s32.totalorder %s17, 1
    %p139 = por %p137, %p138
    %p141 = scmp.ne.s32.totalorder %s124, %s140
    %p142 = scmp.eq.s32.totalorder %s17, 0
    %p143 = por %p141, %p142
    %p144 = scmp.le.s32.totalorder 1, %s11
    %p145 = scmp.lt.s32.totalorder %s11, 3
    %p146 = pnand %p144, %p145
    %p147 = pneg %p146
    // Predicated region
    $region9: #{bottleneck_forward.4} parent=5 // pred_check
      _
    $region10: #{bottleneck_forward.4} parent=5 // pred_check_branch
      %149 = sbr.rel (%p146) target = $region12
    $region11: #{bottleneck_forward.4} parent=5 // pred_region
      %s150 = ssub.s32 %s11, 1
      // Predicated region
      $region13: #{bottleneck_forward.4} parent=11 // pred_check
        %p151 = pneg %p58
      $region14: #{bottleneck_forward.4} parent=11 // pred_check_branch
        %153 = sbr.rel (%p151) target = $region16
      $region15: #{bottleneck_forward.4} parent=11 // pred_region
        _
      $region16: #{bottleneck_forward.4} parent=11 // pred_fallthru
        _
    $region12: #{bottleneck_forward.4} parent=5 // pred_fallthru
      _
    %p154 = scmp.lt.s32.totalorder %s11, 2
    // Predicated region
    $region17: #{bottleneck_forward.4} parent=5 // pred_check
      %p155 = pneg %p154
    $region18: #{bottleneck_forward.4} parent=5 // pred_check_branch
      %157 = sbr.rel (%p155) target = $region20
    $region19: #{bottleneck_forward.4} parent=5 // pred_region
      // Predicated region
      $region21: #{bottleneck_forward.4} parent=19 // pred_check
        %p158 = pneg %p31
      $region22: #{bottleneck_forward.4} parent=19 // pred_check_branch
        %160 = sbr.rel (%p158) target = $region24
      $region23: #{bottleneck_forward.4} parent=19 // pred_region
        %s161 = smul.u32 64, %s11
        %p162 = scmp.lt.s32.totalorder %s161, 127
        %s163 = scalar_select %p162, %s161, 127
        %s164 = smul.addr %s163, 4
        %s165 = scalar_lea.vmem %s0, %s164
        %s166 = smul.u32 64, %s11
      $region24: #{bottleneck_forward.4} parent=19 // pred_fallthru
        _
    $region20: #{bottleneck_forward.4} parent=5 // pred_fallthru
      _
    %p167 = scmp.le.s32.totalorder 1, %s11
    %p168 = scmp.lt.s32.totalorder %s11, 3
    %p169 = pnand %p167, %p168
    %p170 = pneg %p169
    // Predicated region
    $region25: #{bottleneck_forward.4} parent=5 // pred_check
      _
    $region26: #{bottleneck_forward.4} parent=5 // pred_check_branch
      %172 = sbr.rel (%p169) target = $region28
    $region27: #{bottleneck_forward.4} parent=5 // pred_region
      %s173 = ssub.s32 %s11, 1
      %s174 = smul.u32 64, %s16
      %p175 = scmp.lt.s32.totalorder %s174, 127
      %s176 = scalar_select %p175, %s174, 127
      %s177 = smul.addr %s176, 4
      %s178 = scalar_lea.vmem %s0, %s177
      %p179 = pneg %p37
      %p180 = pneg %p34
      %p181 = pneg %p58
      %p182 = pneg %p55
      %p183 = pneg %p84
      %p184 = pneg %p81
      %s185 = smul.u32 64, %s16
      %p186 = scmp.lt.s32.totalorder %s185, 127
      %s187 = scalar_select %p186, %s185, 127
      %s188 = smul.addr %s187, 4
      %s189 = scalar_lea.vmem %s2, %s188
      %p190 = pneg %p110
      %p191 = pneg %p107
      %p192 = scmp.lt.s32.totalorder %s16, 1
      %s193 = scalar_select %p192, %s16, 1
      %s194 = smul.addr %s193, 8
      %s195 = scalar_lea.vmem %s3, %s194
      %p196 = pneg %p136
      %p197 = pneg %p133
      %p198 = scmp.lt.s32.totalorder %s16, 1
      %s199 = scalar_select %p198, %s16, 1
      %s200 = smul.addr %s199, 8
      %s201 = scalar_lea.vmem %s4, %s200
      %s202 = smul.u32 64, %s16
      %p203 = scmp.lt.s32.totalorder %s202, 127
      %s204 = scalar_select %p203, %s202, 127
      %s205 = smul.addr %s204, 4
      %s206 = scalar_lea.vmem %s0, %s205
      %s207 = smul.u32 64, %s16
      %s208 = smul.u32 64, %s16
      %p209 = scmp.lt.s32.totalorder %s208, 127
      %s210 = scalar_select %p209, %s208, 127
      %s211 = smul.addr %s210, 4
      %s212 = scalar_lea.vmem %s2, %s211
      %s213 = smul.u32 64, %s16
      %p214 = scmp.lt.s32.totalorder %s16, 1
      %s215 = scalar_select %p214, %s16, 1
      %s216 = smul.addr %s215, 8
      %s217 = scalar_lea.vmem %s3, %s216
      %p218 = scmp.lt.s32.totalorder %s16, 1
      %s219 = scalar_select %p218, %s16, 1
      %s220 = smul.addr %s219, 8
      %s221 = scalar_lea.vmem %s4, %s220
      %v222 = vld [vmem:[%s206] sm:$0xf]
      %v223 = vld [vmem:[%s206 + $0x4] sm:$0xf]
      %v224 = vld [vmem:[%s206 + $0x8] sm:$0xf]
      %v225 = vld [vmem:[%s206 + $0xc] sm:$0xf]
      %v226 = vld [vmem:[%s206 + $0x10] sm:$0xf]
      %v227 = vld [vmem:[%s206 + $0x14] sm:$0xf]
      %v228 = vld [vmem:[%s206 + $0x18] sm:$0xf]
      %v229 = vld [vmem:[%s206 + $0x1c] sm:$0xf]
      %v230 = vld [vmem:[%s206 + $0x20] sm:$0xf]
      %v231 = vld [vmem:[%s206 + $0x24] sm:$0xf]
      %v232 = vld [vmem:[%s206 + $0x28] sm:$0xf]
      %v233 = vld [vmem:[%s206 + $0x2c] sm:$0xf]
      %v234 = vld [vmem:[%s206 + $0x30] sm:$0xf]
      %v235 = vld [vmem:[%s206 + $0x34] sm:$0xf]
      %v236 = vld [vmem:[%s206 + $0x38] sm:$0xf]
      %v237 = vld [vmem:[%s206 + $0x3c] sm:$0xf]
      %v238 = vld [vmem:[%s206 + $0x40] sm:$0xf]
      %v239 = vld [vmem:[%s206 + $0x44] sm:$0xf]
      %v240 = vld [vmem:[%s206 + $0x48] sm:$0xf]
      %v241 = vld [vmem:[%s206 + $0x4c] sm:$0xf]
      %v242 = vld [vmem:[%s206 + $0x50] sm:$0xf]
      %v243 = vld [vmem:[%s206 + $0x54] sm:$0xf]
      %v244 = vld [vmem:[%s206 + $0x58] sm:$0xf]
      %v245 = vld [vmem:[%s206 + $0x5c] sm:$0xf]
      %v246 = vld [vmem:[%s206 + $0x60] sm:$0xf]
      %v247 = vld [vmem:[%s206 + $0x64] sm:$0xf]
      %v248 = vld [vmem:[%s206 + $0x68] sm:$0xf]
      %v249 = vld [vmem:[%s206 + $0x6c] sm:$0xf]
      %v250 = vld [vmem:[%s206 + $0x70] sm:$0xf]
      %v251 = vld [vmem:[%s206 + $0x74] sm:$0xf]
      %v252 = vld [vmem:[%s206 + $0x78] sm:$0xf]
      %v253 = vld [vmem:[%s206 + $0x7c] sm:$0xf]
      %v254 = vld [vmem:[%s206 + $0x80] sm:$0xf]
      %v255 = vld [vmem:[%s206 + $0x84] sm:$0xf]
      %v256 = vld [vmem:[%s206 + $0x88] sm:$0xf]
      %v257 = vld [vmem:[%s206 + $0x8c] sm:$0xf]
      %v258 = vld [vmem:[%s206 + $0x90] sm:$0xf]
      %v259 = vld [vmem:[%s206 + $0x94] sm:$0xf]
      %v260 = vld [vmem:[%s206 + $0x98] sm:$0xf]
      %v261 = vld [vmem:[%s206 + $0x9c] sm:$0xf]
      %v262 = vld [vmem:[%s206 + $0xa0] sm:$0xf]
      %v263 = vld [vmem:[%s206 + $0xa4] sm:$0xf]
      %v264 = vld [vmem:[%s206 + $0xa8] sm:$0xf]
      %v265 = vld [vmem:[%s206 + $0xac] sm:$0xf]
      %v266 = vld [vmem:[%s206 + $0xb0] sm:$0xf]
      %v267 = vld [vmem:[%s206 + $0xb4] sm:$0xf]
      %v268 = vld [vmem:[%s206 + $0xb8] sm:$0xf]
      %v269 = vld [vmem:[%s206 + $0xbc] sm:$0xf]
      %v270 = vld [vmem:[%s206 + $0xc0] sm:$0xf]
      %v271 = vld [vmem:[%s206 + $0xc4] sm:$0xf]
      %v272 = vld [vmem:[%s206 + $0xc8] sm:$0xf]
      %v273 = vld [vmem:[%s206 + $0xcc] sm:$0xf]
      %v274 = vld [vmem:[%s206 + $0xd0] sm:$0xf]
      %v275 = vld [vmem:[%s206 + $0xd4] sm:$0xf]
      %v276 = vld [vmem:[%s206 + $0xd8] sm:$0xf]
      %v277 = vld [vmem:[%s206 + $0xdc] sm:$0xf]
      %v278 = vld [vmem:[%s206 + $0xe0] sm:$0xf]
      %v279 = vld [vmem:[%s206 + $0xe4] sm:$0xf]
      %v280 = vld [vmem:[%s206 + $0xe8] sm:$0xf]
      %v281 = vld [vmem:[%s206 + $0xec] sm:$0xf]
      %v282 = vld [vmem:[%s206 + $0xf0] sm:$0xf]
      %v283 = vld [vmem:[%s206 + $0xf4] sm:$0xf]
      %v284 = vld [vmem:[%s206 + $0xf8] sm:$0xf]
      %v285 = vld [vmem:[%s206 + $0xfc] sm:$0xf]
      %v286 = vld [vmem:[%s1] sm:$0xf]
      %v287 = vld [vmem:[%s1 + $0x4] sm:$0xf]
      %v288 = vld [vmem:[%s1 + $0x8] sm:$0xf]
      %v289 = vld [vmem:[%s1 + $0xc] sm:$0xf]
      %v290 = vld [vmem:[%s1 + $0x10] sm:$0xf]
      %v291 = vld [vmem:[%s1 + $0x14] sm:$0xf]
      %v292 = vld [vmem:[%s1 + $0x18] sm:$0xf]
      %v293 = vld [vmem:[%s1 + $0x1c] sm:$0xf]
      %v294 = vld [vmem:[%s1 + $0x20] sm:$0xf]
      %v295 = vld [vmem:[%s1 + $0x24] sm:$0xf]
      %v296 = vld [vmem:[%s1 + $0x28] sm:$0xf]
      %v297 = vld [vmem:[%s1 + $0x2c] sm:$0xf]
      %v298 = vld [vmem:[%s1 + $0x30] sm:$0xf]
      %v299 = vld [vmem:[%s1 + $0x34] sm:$0xf]
      %v300 = vld [vmem:[%s1 + $0x38] sm:$0xf]
      %v301 = vld [vmem:[%s1 + $0x3c] sm:$0xf]
      %v366 = vunpack.c.l.b16 %v222
      %v367 = vunpack.c.l.b16 %v223
      %v368 = vunpack.c.l.b16 %v224
      %v369 = vunpack.c.l.b16 %v225
      %v370 = vunpack.c.l.b16 %v226
      %v371 = vunpack.c.l.b16 %v227
      %v372 = vunpack.c.l.b16 %v228
      %v373 = vunpack.c.l.b16 %v229
      %v374 = vunpack.c.l.b16 %v230
      %v375 = vunpack.c.l.b16 %v231
      %v376 = vunpack.c.l.b16 %v232
      %v377 = vunpack.c.l.b16 %v233
      %v378 = vunpack.c.l.b16 %v234
      %v379 = vunpack.c.l.b16 %v235
      %v380 = vunpack.c.l.b16 %v236
      %v381 = vunpack.c.l.b16 %v237
      %v382 = vunpack.c.l.b16 %v238
      %v383 = vunpack.c.l.b16 %v239
      %v384 = vunpack.c.l.b16 %v240
      %v385 = vunpack.c.l.b16 %v241
      %v386 = vunpack.c.l.b16 %v242
      %v387 = vunpack.c.l.b16 %v243
      %v388 = vunpack.c.l.b16 %v244
      %v389 = vunpack.c.l.b16 %v245
      %v390 = vunpack.c.l.b16 %v246
      %v391 = vunpack.c.l.b16 %v247
      %v392 = vunpack.c.l.b16 %v248
      %v393 = vunpack.c.l.b16 %v249
      %v394 = vunpack.c.l.b16 %v250
      %v395 = vunpack.c.l.b16 %v251
      %v396 = vunpack.c.l.b16 %v252
      %v397 = vunpack.c.l.b16 %v253
      %v398 = vunpack.c.l.b16 %v254
      %v399 = vunpack.c.l.b16 %v255
      %v400 = vunpack.c.l.b16 %v256
      %v401 = vunpack.c.l.b16 %v257
      %v402 = vunpack.c.l.b16 %v258
      %v403 = vunpack.c.l.b16 %v259
      %v404 = vunpack.c.l.b16 %v260
      %v405 = vunpack.c.l.b16 %v261
      %v406 = vunpack.c.l.b16 %v262
      %v407 = vunpack.c.l.b16 %v263
      %v408 = vunpack.c.l.b16 %v264
      %v409 = vunpack.c.l.b16 %v265
      %v410 = vunpack.c.l.b16 %v266
      %v411 = vunpack.c.l.b16 %v267
      %v412 = vunpack.c.l.b16 %v268
      %v413 = vunpack.c.l.b16 %v269
      %v414 = vunpack.c.l.b16 %v270
      %v415 = vunpack.c.l.b16 %v271
      %v416 = vunpack.c.l.b16 %v272
      %v417 = vunpack.c.l.b16 %v273
      %v418 = vunpack.c.l.b16 %v274
      %v419 = vunpack.c.l.b16 %v275
      %v420 = vunpack.c.l.b16 %v276
      %v421 = vunpack.c.l.b16 %v277
      %v422 = vunpack.c.l.b16 %v278
      %v423 = vunpack.c.l.b16 %v279
      %v424 = vunpack.c.l.b16 %v280
      %v425 = vunpack.c.l.b16 %v281
      %v426 = vunpack.c.l.b16 %v282
      %v427 = vunpack.c.l.b16 %v283
      %v428 = vunpack.c.l.b16 %v284
      %v429 = vunpack.c.l.b16 %v285
      %v430 = vpack.c.b16 %v367, %v366
      %v431 = vpack.c.b16 %v369, %v368
      %v432 = vpack.c.b16 %v371, %v370
      %v433 = vpack.c.b16 %v373, %v372
      %v434 = vpack.c.b16 %v375, %v374
      %v435 = vpack.c.b16 %v377, %v376
      %v436 = vpack.c.b16 %v379, %v378
      %v437 = vpack.c.b16 %v381, %v380
      %v438 = vpack.c.b16 %v383, %v382
      %v439 = vpack.c.b16 %v385, %v384
      %v440 = vpack.c.b16 %v387, %v386
      %v441 = vpack.c.b16 %v389, %v388
      %v442 = vpack.c.b16 %v391, %v390
      %v443 = vpack.c.b16 %v393, %v392
      %v444 = vpack.c.b16 %v395, %v394
      %v445 = vpack.c.b16 %v397, %v396
      %v446 = vpack.c.b16 %v399, %v398
      %v447 = vpack.c.b16 %v401, %v400
      %v448 = vpack.c.b16 %v403, %v402
      %v449 = vpack.c.b16 %v405, %v404
      %v450 = vpack.c.b16 %v407, %v406
      %v451 = vpack.c.b16 %v409, %v408
      %v452 = vpack.c.b16 %v411, %v410
      %v453 = vpack.c.b16 %v413, %v412
      %v454 = vpack.c.b16 %v415, %v414
      %v455 = vpack.c.b16 %v417, %v416
      %v456 = vpack.c.b16 %v419, %v418
      %v457 = vpack.c.b16 %v421, %v420
      %v458 = vpack.c.b16 %v423, %v422
      %v459 = vpack.c.b16 %v425, %v424
      %v460 = vpack.c.b16 %v427, %v426
      %v461 = vpack.c.b16 %v429, %v428
      %v510 = vunpack.c.l.b16 %v286
      %v511 = vunpack.c.l.b16 %v287
      %v512 = vunpack.c.l.b16 %v288
      %v513 = vunpack.c.l.b16 %v289
      %v514 = vunpack.c.l.b16 %v290
      %v515 = vunpack.c.l.b16 %v291
      %v516 = vunpack.c.l.b16 %v292
      %v517 = vunpack.c.l.b16 %v293
      %v518 = vunpack.c.l.b16 %v294
      %v519 = vunpack.c.l.b16 %v295
      %v520 = vunpack.c.l.b16 %v296
      %v521 = vunpack.c.l.b16 %v297
      %v522 = vunpack.c.l.b16 %v298
      %v523 = vunpack.c.l.b16 %v299
      %v524 = vunpack.c.l.b16 %v300
      %v525 = vunpack.c.l.b16 %v301
      %v526 = vpack.c.b16 %v511, %v510
      %v527 = vpack.c.b16 %v513, %v512
      %v528 = vpack.c.b16 %v515, %v514
      %v529 = vpack.c.b16 %v517, %v516
      %v530 = vpack.c.b16 %v519, %v518
      %v531 = vpack.c.b16 %v521, %v520
      %v532 = vpack.c.b16 %v523, %v522
      %v533 = vpack.c.b16 %v525, %v524
      %542 = vmatpush.bf16.msra.mxu0 %v533
      %543 = vmatpush.bf16.msra.mxu0 %v532
      %544 = vmatpush.bf16.msra.mxu0 %v531
      %545 = vmatpush.bf16.msra.mxu0 %v530
      %546 = vmatpush.bf16.msra.mxu0 %v529
      %547 = vmatpush.bf16.msra.mxu0 %v528
      %548 = vmatpush.bf16.msra.mxu0 %v527
      %549 = vmatpush.bf16.msra.mxu0 %v526
      %550 = vmatmul.bf16.gmra.mxu0 %v430
      %v551 = vpop.f32.mrf.mxu0
      %v552 = vadd.f32 0.0, %v551
      %v553 = vpop.f32.mrf.mxu0
      %v554 = vadd.f32 0.0, %v553
      %555 = vmatmul.bf16.gmra.mxu0 %v431
      %v556 = vpop.f32.mrf.mxu0
      %v557 = vadd.f32 0.0, %v556
      %v558 = vpop.f32.mrf.mxu0
      %v559 = vadd.f32 0.0, %v558
      %560 = vmatmul.bf16.gmra.mxu0 %v432
      %v561 = vpop.f32.mrf.mxu0
      %v562 = vadd.f32 0.0, %v561
      %v563 = vpop.f32.mrf.mxu0
      %v564 = vadd.f32 0.0, %v563
      %565 = vmatmul.bf16.gmra.mxu0 %v433
      %v566 = vpop.f32.mrf.mxu0
      %v567 = vadd.f32 0.0, %v566
      %v568 = vpop.f32.mrf.mxu0
      %v569 = vadd.f32 0.0, %v568
      %570 = vmatmul.bf16.gmra.mxu0 %v434
      %v571 = vpop.f32.mrf.mxu0
      %v572 = vadd.f32 0.0, %v571
      %v573 = vpop.f32.mrf.mxu0
      %v574 = vadd.f32 0.0, %v573
      %575 = vmatmul.bf16.gmra.mxu0 %v435
      %v576 = vpop.f32.mrf.mxu0
      %v577 = vadd.f32 0.0, %v576
      %v578 = vpop.f32.mrf.mxu0
      %v579 = vadd.f32 0.0, %v578
      %580 = vmatmul.bf16.gmra.mxu0 %v436
      %v581 = vpop.f32.mrf.mxu0
      %v582 = vadd.f32 0.0, %v581
      %v583 = vpop.f32.mrf.mxu0
      %v584 = vadd.f32 0.0, %v583
      %585 = vmatmul.bf16.gmra.mxu0 %v437
      %v586 = vpop.f32.mrf.mxu0
      %v587 = vadd.f32 0.0, %v586
      %v588 = vpop.f32.mrf.mxu0
      %v589 = vadd.f32 0.0, %v588
      %590 = vmatmul.bf16.gmra.mxu0 %v438
      %v591 = vpop.f32.mrf.mxu0
      %v592 = vadd.f32 0.0, %v591
      %v593 = vpop.f32.mrf.mxu0
      %v594 = vadd.f32 0.0, %v593
      %595 = vmatmul.bf16.gmra.mxu0 %v439
      %v596 = vpop.f32.mrf.mxu0
      %v597 = vadd.f32 0.0, %v596
      %v598 = vpop.f32.mrf.mxu0
      %v599 = vadd.f32 0.0, %v598
      %600 = vmatmul.bf16.gmra.mxu0 %v440
      %v601 = vpop.f32.mrf.mxu0
      %v602 = vadd.f32 0.0, %v601
      %v603 = vpop.f32.mrf.mxu0
      %v604 = vadd.f32 0.0, %v603
      %605 = vmatmul.bf16.gmra.mxu0 %v441
      %v606 = vpop.f32.mrf.mxu0
      %v607 = vadd.f32 0.0, %v606
      %v608 = vpop.f32.mrf.mxu0
      %v609 = vadd.f32 0.0, %v608
      %610 = vmatmul.bf16.gmra.mxu0 %v442
      %v611 = vpop.f32.mrf.mxu0
      %v612 = vadd.f32 0.0, %v611
      %v613 = vpop.f32.mrf.mxu0
      %v614 = vadd.f32 0.0, %v613
      %615 = vmatmul.bf16.gmra.mxu0 %v443
      %v616 = vpop.f32.mrf.mxu0
      %v617 = vadd.f32 0.0, %v616
      %v618 = vpop.f32.mrf.mxu0
      %v619 = vadd.f32 0.0, %v618
      %620 = vmatmul.bf16.gmra.mxu0 %v444
      %v621 = vpop.f32.mrf.mxu0
      %v622 = vadd.f32 0.0, %v621
      %v623 = vpop.f32.mrf.mxu0
      %v624 = vadd.f32 0.0, %v623
      %625 = vmatmul.bf16.gmra.mxu0 %v445
      %v626 = vpop.f32.mrf.mxu0
      %v627 = vadd.f32 0.0, %v626
      %v628 = vpop.f32.mrf.mxu0
      %v629 = vadd.f32 0.0, %v628
      %630 = vmatmul.bf16.gmra.mxu0 %v446
      %v631 = vpop.f32.mrf.mxu0
      %v632 = vadd.f32 0.0, %v631
      %v633 = vpop.f32.mrf.mxu0
      %v634 = vadd.f32 0.0, %v633
      %635 = vmatmul.bf16.gmra.mxu0 %v447
      %v636 = vpop.f32.mrf.mxu0
      %v637 = vadd.f32 0.0, %v636
      %v638 = vpop.f32.mrf.mxu0
      %v639 = vadd.f32 0.0, %v638
      %640 = vmatmul.bf16.gmra.mxu0 %v448
      %v641 = vpop.f32.mrf.mxu0
      %v642 = vadd.f32 0.0, %v641
      %v643 = vpop.f32.mrf.mxu0
      %v644 = vadd.f32 0.0, %v643
      %645 = vmatmul.bf16.gmra.mxu0 %v449
      %v646 = vpop.f32.mrf.mxu0
      %v647 = vadd.f32 0.0, %v646
      %v648 = vpop.f32.mrf.mxu0
      %v649 = vadd.f32 0.0, %v648
      %650 = vmatmul.bf16.gmra.mxu0 %v450
      %v651 = vpop.f32.mrf.mxu0
      %v652 = vadd.f32 0.0, %v651
      %v653 = vpop.f32.mrf.mxu0
      %v654 = vadd.f32 0.0, %v653
      %655 = vmatmul.bf16.gmra.mxu0 %v451
      %v656 = vpop.f32.mrf.mxu0
      %v657 = vadd.f32 0.0, %v656
      %v658 = vpop.f32.mrf.mxu0
      %v659 = vadd.f32 0.0, %v658
      %660 = vmatmul.bf16.gmra.mxu0 %v452
      %v661 = vpop.f32.mrf.mxu0
      %v662 = vadd.f32 0.0, %v661
      %v663 = vpop.f32.mrf.mxu0
      %v664 = vadd.f32 0.0, %v663
      %665 = vmatmul.bf16.gmra.mxu0 %v453
      %v666 = vpop.f32.mrf.mxu0
      %v667 = vadd.f32 0.0, %v666
      %v668 = vpop.f32.mrf.mxu0
      %v669 = vadd.f32 0.0, %v668
      %670 = vmatmul.bf16.gmra.mxu0 %v454
      %v671 = vpop.f32.mrf.mxu0
      %v672 = vadd.f32 0.0, %v671
      %v673 = vpop.f32.mrf.mxu0
      %v674 = vadd.f32 0.0, %v673
      %675 = vmatmul.bf16.gmra.mxu0 %v455
      %v676 = vpop.f32.mrf.mxu0
      %v677 = vadd.f32 0.0, %v676
      %v678 = vpop.f32.mrf.mxu0
      %v679 = vadd.f32 0.0, %v678
      %680 = vmatmul.bf16.gmra.mxu0 %v456
      %v681 = vpop.f32.mrf.mxu0
      %v682 = vadd.f32 0.0, %v681
      %v683 = vpop.f32.mrf.mxu0
      %v684 = vadd.f32 0.0, %v683
      %685 = vmatmul.bf16.gmra.mxu0 %v457
      %v686 = vpop.f32.mrf.mxu0
      %v687 = vadd.f32 0.0, %v686
      %v688 = vpop.f32.mrf.mxu0
      %v689 = vadd.f32 0.0, %v688
      %690 = vmatmul.bf16.gmra.mxu0 %v458
      %v691 = vpop.f32.mrf.mxu0
      %v692 = vadd.f32 0.0, %v691
      %v693 = vpop.f32.mrf.mxu0
      %v694 = vadd.f32 0.0, %v693
      %695 = vmatmul.bf16.gmra.mxu0 %v459
      %v696 = vpop.f32.mrf.mxu0
      %v697 = vadd.f32 0.0, %v696
      %v698 = vpop.f32.mrf.mxu0
      %v699 = vadd.f32 0.0, %v698
      %700 = vmatmul.bf16.gmra.mxu0 %v460
      %v701 = vpop.f32.mrf.mxu0
      %v702 = vadd.f32 0.0, %v701
      %v703 = vpop.f32.mrf.mxu0
      %v704 = vadd.f32 0.0, %v703
      %705 = vmatmul.bf16.gmra.mxu0 %v461
      %v706 = vpop.f32.mrf.mxu0
      %v707 = vadd.f32 0.0, %v706
      %v708 = vpop.f32.mrf.mxu0
      %v709 = vadd.f32 0.0, %v708
      %710 = vdwg.mxu0
      %v711 = vpack.c.bf16 %v552, %v552
      %v712 = vpack.c.bf16 %v554, %v554
      %v713 = vpack.c.bf16 %v557, %v557
      %v714 = vpack.c.bf16 %v559, %v559
      %v715 = vpack.c.bf16 %v562, %v562
      %v716 = vpack.c.bf16 %v564, %v564
      %v717 = vpack.c.bf16 %v567, %v567
      %v718 = vpack.c.bf16 %v569, %v569
      %v719 = vpack.c.bf16 %v572, %v572
      %v720 = vpack.c.bf16 %v574, %v574
      %v721 = vpack.c.bf16 %v577, %v577
      %v722 = vpack.c.bf16 %v579, %v579
      %v723 = vpack.c.bf16 %v582, %v582
      %v724 = vpack.c.bf16 %v584, %v584
      %v725 = vpack.c.bf16 %v587, %v587
      %v726 = vpack.c.bf16 %v589, %v589
      %v727 = vpack.c.bf16 %v592, %v592
      %v728 = vpack.c.bf16 %v594, %v594
      %v729 = vpack.c.bf16 %v597, %v597
      %v730 = vpack.c.bf16 %v599, %v599
      %v731 = vpack.c.bf16 %v602, %v602
      %v732 = vpack.c.bf16 %v604, %v604
      %v733 = vpack.c.bf16 %v607, %v607
      %v734 = vpack.c.bf16 %v609, %v609
      %v735 = vpack.c.bf16 %v612, %v612
      %v736 = vpack.c.bf16 %v614, %v614
      %v737 = vpack.c.bf16 %v617, %v617
      %v738 = vpack.c.bf16 %v619, %v619
      %v739 = vpack.c.bf16 %v622, %v622
      %v740 = vpack.c.bf16 %v624, %v624
      %v741 = vpack.c.bf16 %v627, %v627
      %v742 = vpack.c.bf16 %v629, %v629
      %v743 = vpack.c.bf16 %v632, %v632
      %v744 = vpack.c.bf16 %v634, %v634
      %v745 = vpack.c.bf16 %v637, %v637
      %v746 = vpack.c.bf16 %v639, %v639
      %v747 = vpack.c.bf16 %v642, %v642
      %v748 = vpack.c.bf16 %v644, %v644
      %v749 = vpack.c.bf16 %v647, %v647
      %v750 = vpack.c.bf16 %v649, %v649
      %v751 = vpack.c.bf16 %v652, %v652
      %v752 = vpack.c.bf16 %v654, %v654
      %v753 = vpack.c.bf16 %v657, %v657
      %v754 = vpack.c.bf16 %v659, %v659
      %v755 = vpack.c.bf16 %v662, %v662
      %v756 = vpack.c.bf16 %v664, %v664
      %v757 = vpack.c.bf16 %v667, %v667
      %v758 = vpack.c.bf16 %v669, %v669
      %v759 = vpack.c.bf16 %v672, %v672
      %v760 = vpack.c.bf16 %v674, %v674
      %v761 = vpack.c.bf16 %v677, %v677
      %v762 = vpack.c.bf16 %v679, %v679
      %v763 = vpack.c.bf16 %v682, %v682
      %v764 = vpack.c.bf16 %v684, %v684
      %v765 = vpack.c.bf16 %v687, %v687
      %v766 = vpack.c.bf16 %v689, %v689
      %v767 = vpack.c.bf16 %v692, %v692
      %v768 = vpack.c.bf16 %v694, %v694
      %v769 = vpack.c.bf16 %v697, %v697
      %v770 = vpack.c.bf16 %v699, %v699
      %v771 = vpack.c.bf16 %v702, %v702
      %v772 = vpack.c.bf16 %v704, %v704
      %v773 = vpack.c.bf16 %v707, %v707
      %v774 = vpack.c.bf16 %v709, %v709
      %775 = vst [vmem:[%s212] sm:$0xf] %v711
      %776 = vst [vmem:[%s212 + $0x4] sm:$0xf] %v712
      %777 = vst [vmem:[%s212 + $0x8] sm:$0xf] %v713
      %778 = vst [vmem:[%s212 + $0xc] sm:$0xf] %v714
      %779 = vst [vmem:[%s212 + $0x10] sm:$0xf] %v715
      %780 = vst [vmem:[%s212 + $0x14] sm:$0xf] %v716
      %781 = vst [vmem:[%s212 + $0x18] sm:$0xf] %v717
      %782 = vst [vmem:[%s212 + $0x1c] sm:$0xf] %v718
      %783 = vst [vmem:[%s212 + $0x20] sm:$0xf] %v719
      %784 = vst [vmem:[%s212 + $0x24] sm:$0xf] %v720
      %785 = vst [vmem:[%s212 + $0x28] sm:$0xf] %v721
      %786 = vst [vmem:[%s212 + $0x2c] sm:$0xf] %v722
      %787 = vst [vmem:[%s212 + $0x30] sm:$0xf] %v723
      %788 = vst [vmem:[%s212 + $0x34] sm:$0xf] %v724
      %789 = vst [vmem:[%s212 + $0x38] sm:$0xf] %v725
      %790 = vst [vmem:[%s212 + $0x3c] sm:$0xf] %v726
      %791 = vst [vmem:[%s212 + $0x40] sm:$0xf] %v727
      %792 = vst [vmem:[%s212 + $0x44] sm:$0xf] %v728
      %793 = vst [vmem:[%s212 + $0x48] sm:$0xf] %v729
      %794 = vst [vmem:[%s212 + $0x4c] sm:$0xf] %v730
      %795 = vst [vmem:[%s212 + $0x50] sm:$0xf] %v731
      %796 = vst [vmem:[%s212 + $0x54] sm:$0xf] %v732
      %797 = vst [vmem:[%s212 + $0x58] sm:$0xf] %v733
      %798 = vst [vmem:[%s212 + $0x5c] sm:$0xf] %v734
      %799 = vst [vmem:[%s212 + $0x60] sm:$0xf] %v735
      %800 = vst [vmem:[%s212 + $0x64] sm:$0xf] %v736
      %801 = vst [vmem:[%s212 + $0x68] sm:$0xf] %v737
      %802 = vst [vmem:[%s212 + $0x6c] sm:$0xf] %v738
      %803 = vst [vmem:[%s212 + $0x70] sm:$0xf] %v739
      %804 = vst [vmem:[%s212 + $0x74] sm:$0xf] %v740
      %805 = vst [vmem:[%s212 + $0x78] sm:$0xf] %v741
      %806 = vst [vmem:[%s212 + $0x7c] sm:$0xf] %v742
      %807 = vst [vmem:[%s212 + $0x80] sm:$0xf] %v743
      %808 = vst [vmem:[%s212 + $0x84] sm:$0xf] %v744
      %809 = vst [vmem:[%s212 + $0x88] sm:$0xf] %v745
      %810 = vst [vmem:[%s212 + $0x8c] sm:$0xf] %v746
      %811 = vst [vmem:[%s212 + $0x90] sm:$0xf] %v747
      %812 = vst [vmem:[%s212 + $0x94] sm:$0xf] %v748
      %813 = vst [vmem:[%s212 + $0x98] sm:$0xf] %v749
      %814 = vst [vmem:[%s212 + $0x9c] sm:$0xf] %v750
      %815 = vst [vmem:[%s212 + $0xa0] sm:$0xf] %v751
      %816 = vst [vmem:[%s212 + $0xa4] sm:$0xf] %v752
      %817 = vst [vmem:[%s212 + $0xa8] sm:$0xf] %v753
      %818 = vst [vmem:[%s212 + $0xac] sm:$0xf] %v754
      %819 = vst [vmem:[%s212 + $0xb0] sm:$0xf] %v755
      %820 = vst [vmem:[%s212 + $0xb4] sm:$0xf] %v756
      %821 = vst [vmem:[%s212 + $0xb8] sm:$0xf] %v757
      %822 = vst [vmem:[%s212 + $0xbc] sm:$0xf] %v758
      %823 = vst [vmem:[%s212 + $0xc0] sm:$0xf] %v759
      %824 = vst [vmem:[%s212 + $0xc4] sm:$0xf] %v760
      %825 = vst [vmem:[%s212 + $0xc8] sm:$0xf] %v761
      %826 = vst [vmem:[%s212 + $0xcc] sm:$0xf] %v762
      %827 = vst [vmem:[%s212 + $0xd0] sm:$0xf] %v763
      %828 = vst [vmem:[%s212 + $0xd4] sm:$0xf] %v764
      %829 = vst [vmem:[%s212 + $0xd8] sm:$0xf] %v765
      %830 = vst [vmem:[%s212 + $0xdc] sm:$0xf] %v766
      %831 = vst [vmem:[%s212 + $0xe0] sm:$0xf] %v767
      %832 = vst [vmem:[%s212 + $0xe4] sm:$0xf] %v768
      %833 = vst [vmem:[%s212 + $0xe8] sm:$0xf] %v769
      %834 = vst [vmem:[%s212 + $0xec] sm:$0xf] %v770
      %835 = vst [vmem:[%s212 + $0xf0] sm:$0xf] %v771
      %836 = vst [vmem:[%s212 + $0xf4] sm:$0xf] %v772
      %837 = vst [vmem:[%s212 + $0xf8] sm:$0xf] %v773
      %838 = vst [vmem:[%s212 + $0xfc] sm:$0xf] %v774
      %v839 = vadd.f32 %v552, %v554
      %v840 = vadd.f32 %v839, %v557
      %v841 = vadd.f32 %v840, %v559
      %v842 = vadd.f32 %v841, %v562
      %v843 = vadd.f32 %v842, %v564
      %v844 = vadd.f32 %v843, %v567
      %v845 = vadd.f32 %v844, %v569
      %v846 = vadd.f32 %v845, %v572
      %v847 = vadd.f32 %v846, %v574
      %v848 = vadd.f32 %v847, %v577
      %v849 = vadd.f32 %v848, %v579
      %v850 = vadd.f32 %v849, %v582
      %v851 = vadd.f32 %v850, %v584
      %v852 = vadd.f32 %v851, %v587
      %v853 = vadd.f32 %v852, %v589
      %v854 = vadd.f32 %v853, %v592
      %v855 = vadd.f32 %v854, %v594
      %v856 = vadd.f32 %v855, %v597
      %v857 = vadd.f32 %v856, %v599
      %v858 = vadd.f32 %v857, %v602
      %v859 = vadd.f32 %v858, %v604
      %v860 = vadd.f32 %v859, %v607
      %v861 = vadd.f32 %v860, %v609
      %v862 = vadd.f32 %v861, %v612
      %v863 = vadd.f32 %v862, %v614
      %v864 = vadd.f32 %v863, %v617
      %v865 = vadd.f32 %v864, %v619
      %v866 = vadd.f32 %v865, %v622
      %v867 = vadd.f32 %v866, %v624
      %v868 = vadd.f32 %v867, %v627
      %v869 = vadd.f32 %v868, %v629
      %v870 = vadd.f32 %v869, %v632
      %v871 = vadd.f32 %v870, %v634
      %v872 = vadd.f32 %v871, %v637
      %v873 = vadd.f32 %v872, %v639
      %v874 = vadd.f32 %v873, %v642
      %v875 = vadd.f32 %v874, %v644
      %v876 = vadd.f32 %v875, %v647
      %v877 = vadd.f32 %v876, %v649
      %v878 = vadd.f32 %v877, %v652
      %v879 = vadd.f32 %v878, %v654
      %v880 = vadd.f32 %v879, %v657
      %v881 = vadd.f32 %v880, %v659
      %v882 = vadd.f32 %v881, %v662
      %v883 = vadd.f32 %v882, %v664
      %v884 = vadd.f32 %v883, %v667
      %v885 = vadd.f32 %v884, %v669
      %v886 = vadd.f32 %v885, %v672
      %v887 = vadd.f32 %v886, %v674
      %v888 = vadd.f32 %v887, %v677
      %v889 = vadd.f32 %v888, %v679
      %v890 = vadd.f32 %v889, %v682
      %v891 = vadd.f32 %v890, %v684
      %v892 = vadd.f32 %v891, %v687
      %v893 = vadd.f32 %v892, %v689
      %v894 = vadd.f32 %v893, %v692
      %v895 = vadd.f32 %v894, %v694
      %v896 = vadd.f32 %v895, %v697
      %v897 = vadd.f32 %v896, %v699
      %v898 = vadd.f32 %v897, %v702
      %v899 = vadd.f32 %v898, %v704
      %v900 = vadd.f32 %v899, %v707
      %v901 = vadd.f32 %v900, %v709
      %v902 = vrot.slane %v901, 4
      %v903 = vadd.f32 %v901, %v902
      %v904 = vrot.slane %v903, 2
      %v905 = vadd.f32 %v903, %v904
      %v906 = vrot.slane %v905, 1
      %v907 = vadd.f32 %v905, %v906
      %v908 = vmul.f32 %v552, %v552
      %v909 = vmul.f32 %v554, %v554
      %v910 = vmul.f32 %v557, %v557
      %v911 = vmul.f32 %v559, %v559
      %v912 = vmul.f32 %v562, %v562
      %v913 = vmul.f32 %v564, %v564
      %v914 = vmul.f32 %v567, %v567
      %v915 = vmul.f32 %v569, %v569
      %v916 = vmul.f32 %v572, %v572
      %v917 = vmul.f32 %v574, %v574
      %v918 = vmul.f32 %v577, %v577
      %v919 = vmul.f32 %v579, %v579
      %v920 = vmul.f32 %v582, %v582
      %v921 = vmul.f32 %v584, %v584
      %v922 = vmul.f32 %v587, %v587
      %v923 = vmul.f32 %v589, %v589
      %v924 = vmul.f32 %v592, %v592
      %v925 = vmul.f32 %v594, %v594
      %v926 = vmul.f32 %v597, %v597
      %v927 = vmul.f32 %v599, %v599
      %v928 = vmul.f32 %v602, %v602
      %v929 = vmul.f32 %v604, %v604
      %v930 = vmul.f32 %v607, %v607
      %v931 = vmul.f32 %v609, %v609
      %v932 = vmul.f32 %v612, %v612
      %v933 = vmul.f32 %v614, %v614
      %v934 = vmul.f32 %v617, %v617
      %v935 = vmul.f32 %v619, %v619
      %v936 = vmul.f32 %v622, %v622
      %v937 = vmul.f32 %v624, %v624
      %v938 = vmul.f32 %v627, %v627
      %v939 = vmul.f32 %v629, %v629
      %v940 = vmul.f32 %v632, %v632
      %v941 = vmul.f32 %v634, %v634
      %v942 = vmul.f32 %v637, %v637
      %v943 = vmul.f32 %v639, %v639
      %v944 = vmul.f32 %v642, %v642
      %v945 = vmul.f32 %v644, %v644
      %v946 = vmul.f32 %v647, %v647
      %v947 = vmul.f32 %v649, %v649
      %v948 = vmul.f32 %v652, %v652
      %v949 = vmul.f32 %v654, %v654
      %v950 = vmul.f32 %v657, %v657
      %v951 = vmul.f32 %v659, %v659
      %v952 = vmul.f32 %v662, %v662
      %v953 = vmul.f32 %v664, %v664
      %v954 = vmul.f32 %v667, %v667
      %v955 = vmul.f32 %v669, %v669
      %v956 = vmul.f32 %v672, %v672
      %v957 = vmul.f32 %v674, %v674
      %v958 = vmul.f32 %v677, %v677
      %v959 = vmul.f32 %v679, %v679
      %v960 = vmul.f32 %v682, %v682
      %v961 = vmul.f32 %v684, %v684
      %v962 = vmul.f32 %v687, %v687
      %v963 = vmul.f32 %v689, %v689
      %v964 = vmul.f32 %v692, %v692
      %v965 = vmul.f32 %v694, %v694
      %v966 = vmul.f32 %v697, %v697
      %v967 = vmul.f32 %v699, %v699
      %v968 = vmul.f32 %v702, %v702
      %v969 = vmul.f32 %v704, %v704
      %v970 = vmul.f32 %v707, %v707
      %v971 = vmul.f32 %v709, %v709
      %v972 = vadd.f32 %v908, %v909
      %v973 = vadd.f32 %v972, %v910
      %v974 = vadd.f32 %v973, %v911
      %v975 = vadd.f32 %v974, %v912
      %v976 = vadd.f32 %v975, %v913
      %v977 = vadd.f32 %v976, %v914
      %v978 = vadd.f32 %v977, %v915
      %v979 = vadd.f32 %v978, %v916
      %v980 = vadd.f32 %v979, %v917
      %v981 = vadd.f32 %v980, %v918
      %v982 = vadd.f32 %v981, %v919
      %v983 = vadd.f32 %v982, %v920
      %v984 = vadd.f32 %v983, %v921
      %v985 = vadd.f32 %v984, %v922
      %v986 = vadd.f32 %v985, %v923
      %v987 = vadd.f32 %v986, %v924
      %v988 = vadd.f32 %v987, %v925
      %v989 = vadd.f32 %v988, %v926
      %v990 = vadd.f32 %v989, %v927
      %v991 = vadd.f32 %v990, %v928
      %v992 = vadd.f32 %v991, %v929
      %v993 = vadd.f32 %v992, %v930
      %v994 = vadd.f32 %v993, %v931
      %v995 = vadd.f32 %v994, %v932
      %v996 = vadd.f32 %v995, %v933
      %v997 = vadd.f32 %v996, %v934
      %v998 = vadd.f32 %v997, %v935
      %v999 = vadd.f32 %v998, %v936
      %v1000 = vadd.f32 %v999, %v937
      %v1001 = vadd.f32 %v1000, %v938
      %v1002 = vadd.f32 %v1001, %v939
      %v1003 = vadd.f32 %v1002, %v940
      %v1004 = vadd.f32 %v1003, %v941
      %v1005 = vadd.f32 %v1004, %v942
      %v1006 = vadd.f32 %v1005, %v943
      %v1007 = vadd.f32 %v1006, %v944
      %v1008 = vadd.f32 %v1007, %v945
      %v1009 = vadd.f32 %v1008, %v946
      %v1010 = vadd.f32 %v1009, %v947
      %v1011 = vadd.f32 %v1010, %v948
      %v1012 = vadd.f32 %v1011, %v949
      %v1013 = vadd.f32 %v1012, %v950
      %v1014 = vadd.f32 %v1013, %v951
      %v1015 = vadd.f32 %v1014, %v952
      %v1016 = vadd.f32 %v1015, %v953
      %v1017 = vadd.f32 %v1016, %v954
      %v1018 = vadd.f32 %v1017, %v955
      %v1019 = vadd.f32 %v1018, %v956
      %v1020 = vadd.f32 %v1019, %v957
      %v1021 = vadd.f32 %v1020, %v958
      %v1022 = vadd.f32 %v1021, %v959
      %v1023 = vadd.f32 %v1022, %v960
      %v1024 = vadd.f32 %v1023, %v961
      %v1025 = vadd.f32 %v1024, %v962
      %v1026 = vadd.f32 %v1025, %v963
      %v1027 = vadd.f32 %v1026, %v964
      %v1028 = vadd.f32 %v1027, %v965
      %v1029 = vadd.f32 %v1028, %v966
      %v1030 = vadd.f32 %v1029, %v967
      %v1031 = vadd.f32 %v1030, %v968
      %v1032 = vadd.f32 %v1031, %v969
      %v1033 = vadd.f32 %v1032, %v970
      %v1034 = vadd.f32 %v1033, %v971
      %v1035 = vrot.slane %v1034, 4
      %v1036 = vadd.f32 %v1034, %v1035
      %v1037 = vrot.slane %v1036, 2
      %v1038 = vadd.f32 %v1036, %v1037
      %v1039 = vrot.slane %v1038, 1
      %v1040 = vadd.f32 %v1038, %v1039
      %1041 = vst [vmem:[%s217] sm:$0xff] %v907
      %1042 = vst [vmem:[%s221] sm:$0xff] %v1040
      %s1043 = smul.u32 64, %s16
      %p1044 = scmp.lt.s32.totalorder %s1043, 127
      %s1045 = scalar_select %p1044, %s1043, 127
      %s1046 = smul.addr %s1045, 4
      %s1047 = scalar_lea.vmem %s2, %s1046
      %p1048 = scmp.lt.s32.totalorder %s16, 1
      %s1049 = scalar_select %p1048, %s16, 1
      %s1050 = smul.addr %s1049, 8
      %s1051 = scalar_lea.vmem %s3, %s1050
      %p1052 = scmp.lt.s32.totalorder %s16, 1
      %s1053 = scalar_select %p1052, %s16, 1
      %s1054 = smul.addr %s1053, 8
      %s1055 = scalar_lea.vmem %s4, %s1054
      // Predicated region
      $region29: #{bottleneck_forward.4} parent=27 // pred_check
        %p1056 = pneg %p81
      $region30: #{bottleneck_forward.4} parent=27 // pred_check_branch
        %1058 = sbr.rel (%p1056) target = $region32
      $region31: #{bottleneck_forward.4} parent=27 // pred_region
        %s1059 = smul.u32 64, %s16
      $region32: #{bottleneck_forward.4} parent=27 // pred_fallthru
        _
      // Predicated region
      $region33: #{bottleneck_forward.4} parent=27 // pred_check
        %p1060 = pneg %p107
      $region34: #{bottleneck_forward.4} parent=27 // pred_check_branch
        %1062 = sbr.rel (%p1060) target = $region36
      $region35: #{bottleneck_forward.4} parent=27 // pred_region
        _
      $region36: #{bottleneck_forward.4} parent=27 // pred_fallthru
        _
      // Predicated region
      $region37: #{bottleneck_forward.4} parent=27 // pred_check
        %p1063 = pneg %p133
      $region38: #{bottleneck_forward.4} parent=27 // pred_check_branch
        %1065 = sbr.rel (%p1063) target = $region40
      $region39: #{bottleneck_forward.4} parent=27 // pred_region
        _
      $region40: #{bottleneck_forward.4} parent=27 // pred_fallthru
        _
    $region28: #{bottleneck_forward.4} parent=5 // pred_fallthru
      _
    %p1066 = scmp.le.s32.totalorder 2, %s11
    // Predicated region
    $region41: #{bottleneck_forward.4} parent=5 // pred_check
      %p1067 = pneg %p1066
    $region42: #{bottleneck_forward.4} parent=5 // pred_check_branch
      %1069 = sbr.rel (%p1067) target = $region44
    $region43: #{bottleneck_forward.4} parent=5 // pred_region
      %s1070 = ssub.s32 %s11, 2
      // Predicated region
      $region45: #{bottleneck_forward.4} parent=43 // pred_check
        %p1071 = pneg %p87
      $region46: #{bottleneck_forward.4} parent=43 // pred_check_branch
        %1073 = sbr.rel (%p1071) target = $region48
      $region47: #{bottleneck_forward.4} parent=43 // pred_region
        %s1074 = smul.u32 64, %s17
        %p1075 = scmp.lt.s32.totalorder %s1074, 127
        %s1076 = scalar_select %p1075, %s1074, 127
        %s1077 = smul.addr %s1076, 4
        %s1078 = scalar_lea.vmem %s2, %s1077
      $region48: #{bottleneck_forward.4} parent=43 // pred_fallthru
        _
      // Predicated region
      $region49: #{bottleneck_forward.4} parent=43 // pred_check
        %p1079 = pneg %p113
      $region50: #{bottleneck_forward.4} parent=43 // pred_check_branch
        %1081 = sbr.rel (%p1079) target = $region52
      $region51: #{bottleneck_forward.4} parent=43 // pred_region
        %p1082 = scmp.lt.s32.totalorder %s17, 1
        %s1083 = scalar_select %p1082, %s17, 1
        %s1084 = smul.addr %s1083, 8
        %s1085 = scalar_lea.vmem %s3, %s1084
      $region52: #{bottleneck_forward.4} parent=43 // pred_fallthru
        _
      // Predicated region
      $region53: #{bottleneck_forward.4} parent=43 // pred_check
        %p1086 = pneg %p139
      $region54: #{bottleneck_forward.4} parent=43 // pred_check_branch
        %1088 = sbr.rel (%p1086) target = $region56
      $region55: #{bottleneck_forward.4} parent=43 // pred_region
        %p1089 = scmp.lt.s32.totalorder %s17, 1
        %s1090 = scalar_select %p1089, %s17, 1
        %s1091 = smul.addr %s1090, 8
        %s1092 = scalar_lea.vmem %s4, %s1091
      $region56: #{bottleneck_forward.4} parent=43 // pred_fallthru
        _
    $region44: #{bottleneck_forward.4} parent=5 // pred_fallthru
      _
  $region6: #{bottleneck_forward.4} parent=0 // loop_footer
    %s15 = sadd.s32 1, %s11
  $region7: #{bottleneck_forward.4} parent=0 // loop_footer_branch
    %10 = sbr.rel target = $region3
  $region8: #{bottleneck_forward.4} parent=0 // loop_exit
    _

// kernel: bottleneck_forward.6
$region0: #{bottleneck_forward.6}
  #allocation0 [shape = 'u32[]', space=smem, size = 0x4, offset = 0x4, fixed_abs, tag = 'smem constant byte address 0x4 - core index']
  #allocation1 [shape = 'u32[72,128]{1,0:T(1,128)}', space=vmem, size = 0x9000, scoped, tag = 'internal scratch']
  %s0 = inlined_call_operand.vmem [shape: bf16[1024,128], index: 0, kind: input, shape index: {}]
  %s1 = inlined_call_operand.vmem [shape: f32[1,128], index: 1, kind: input, shape index: {}]
  %s2 = inlined_call_operand.vmem [shape: f32[1,128], index: 2, kind: input, shape index: {}]
  %s3 = inlined_call_operand.vmem [shape: bf16[128,128], index: 3, kind: input, shape index: {}]
  %s4 = inlined_call_operand.vmem [shape: bf16[1024,128], index: 4, kind: output, shape index: {0}]
  %s5 = inlined_call_operand.vmem [shape: f32[16,128], index: 5, kind: output, shape index: {1}]
  %s6 = inlined_call_operand.vmem [shape: f32[16,128], index: 6, kind: output, shape index: {2}]
  %7 = xla_tuple %s4, %s5, %s6
  %s8 = sld [smem:[#allocation0]]
  $region65: #{bottleneck_forward.6} parent=0
    _
  %s10 = ssub.s32 1, %s8
  %s11 = scalar_select 0, %s10, %s8
  loop: start=0, step=1, limit=4
  $region2: #{bottleneck_forward.6} parent=0 // loop_pre_header
    _
  $region3: #{bottleneck_forward.6} parent=0 // loop_header
    %s13 = sphi 0, %s17
    %p14 = scmp.ge.s32.totalorder %s13, 4
    %s23 = sphi 0, %s25
    %s26 = sphi 0, %s23
    %s27 = sphi 0, %s26
    %s43 = sphi 0, %s27
    %s47 = sphi 0, %s47
    %s49 = sphi 0, %s47
    %s50 = sphi 0, %s49
    %s64 = sphi 0, %s50
    %s68 = sphi 0, %s68
    %s70 = sphi 0, %s68
    %s71 = sphi 0, %s70
    %s85 = sphi 0, %s71
    %s89 = sphi 0, %s89
    %s91 = sphi 0, %s89
    %s92 = sphi 0, %s91
    %s106 = sphi 0, %s92
    %s112 = sphi 0, %s114
    %s115 = sphi 0, %s112
    %s116 = sphi 0, %s115
    %s132 = sphi 0, %s116
    %s138 = sphi 0, %s140
    %s141 = sphi 0, %s138
    %s142 = sphi 0, %s141
    %s158 = sphi 0, %s142
    %s164 = sphi 0, %s166
    %s167 = sphi 0, %s164
    %s168 = sphi 0, %s167
    %s184 = sphi 0, %s168
  $region4: #{bottleneck_forward.6} parent=0 // loop_header_branch
    %16 = sbr.rel (%p14) target = $region8
  $region5: #{bottleneck_forward.6} parent=0 // loop_body
    %s18 = ssub.s32 %s13, 1
    %s19 = ssub.s32 %s13, 2
    %s20 = sadd.s32 %s13, 1
    %s21 = ssub.s32 %s13, %s20
    %p22 = scmp.eq.s32.totalorder %s21, 0
    %s24 = sadd.s32 %s23, 1
    %s25 = scalar_select %p22, %s23, %s24
    %p28 = pneg %p22
    %p29 = scmp.eq.s32.totalorder %s13, 1
    %p30 = por %p28, %p29
    %p31 = scmp.ne.s32.totalorder %s23, %s26
    %p32 = scmp.eq.s32.totalorder %s13, 0
    %p33 = por %p31, %p32
    %p34 = scmp.ne.s32.totalorder %s23, %s26
    %p35 = scmp.eq.s32.totalorder %s18, 1
    %p36 = por %p34, %p35
    %p37 = scmp.ne.s32.totalorder %s26, %s27
    %p38 = scmp.eq.s32.totalorder %s18, 0
    %p39 = por %p37, %p38
    %p40 = scmp.ne.s32.totalorder %s26, %s27
    %p41 = scmp.eq.s32.totalorder %s19, 1
    %p42 = por %p40, %p41
    %p44 = scmp.ne.s32.totalorder %s27, %s43
    %p45 = scmp.eq.s32.totalorder %s19, 0
    %p46 = por %p44, %p45
    %s48 = sadd.s32 %s47, 1
    %p51 = scmp.eq.s32.totalorder %s13, 1
    %p52 = scmp.ne.s32.totalorder %s47, %s49
    %p53 = scmp.eq.s32.totalorder %s13, 0
    %p54 = por %p52, %p53
    %p55 = scmp.ne.s32.totalorder %s47, %s49
    %p56 = scmp.eq.s32.totalorder %s18, 1
    %p57 = por %p55, %p56
    %p58 = scmp.ne.s32.totalorder %s49, %s50
    %p59 = scmp.eq.s32.totalorder %s18, 0
    %p60 = por %p58, %p59
    %p61 = scmp.ne.s32.totalorder %s49, %s50
    %p62 = scmp.eq.s32.totalorder %s19, 1
    %p63 = por %p61, %p62
    %p65 = scmp.ne.s32.totalorder %s50, %s64
    %p66 = scmp.eq.s32.totalorder %s19, 0
    %p67 = por %p65, %p66
    %s69 = sadd.s32 %s68, 1
    %p72 = scmp.eq.s32.totalorder %s13, 1
    %p73 = scmp.ne.s32.totalorder %s68, %s70
    %p74 = scmp.eq.s32.totalorder %s13, 0
    %p75 = por %p73, %p74
    %p76 = scmp.ne.s32.totalorder %s68, %s70
    %p77 = scmp.eq.s32.totalorder %s18, 1
    %p78 = por %p76, %p77
    %p79 = scmp.ne.s32.totalorder %s70, %s71
    %p80 = scmp.eq.s32.totalorder %s18, 0
    %p81 = por %p79, %p80
    %p82 = scmp.ne.s32.totalorder %s70, %s71
    %p83 = scmp.eq.s32.totalorder %s19, 1
    %p84 = por %p82, %p83
    %p86 = scmp.ne.s32.totalorder %s71, %s85
    %p87 = scmp.eq.s32.totalorder %s19, 0
    %p88 = por %p86, %p87
    %s90 = sadd.s32 %s89, 1
    %p93 = scmp.eq.s32.totalorder %s13, 1
    %p94 = scmp.ne.s32.totalorder %s89, %s91
    %p95 = scmp.eq.s32.totalorder %s13, 0
    %p96 = por %p94, %p95
    %p97 = scmp.ne.s32.totalorder %s89, %s91
    %p98 = scmp.eq.s32.totalorder %s18, 1
    %p99 = por %p97, %p98
    %p100 = scmp.ne.s32.totalorder %s91, %s92
    %p101 = scmp.eq.s32.totalorder %s18, 0
    %p102 = por %p100, %p101
    %p103 = scmp.ne.s32.totalorder %s91, %s92
    %p104 = scmp.eq.s32.totalorder %s19, 1
    %p105 = por %p103, %p104
    %p107 = scmp.ne.s32.totalorder %s92, %s106
    %p108 = scmp.eq.s32.totalorder %s19, 0
    %p109 = por %p107, %p108
    %s110 = ssub.s32 %s13, %s20
    %p111 = scmp.eq.s32.totalorder %s110, 0
    %s113 = sadd.s32 %s112, 1
    %s114 = scalar_select %p111, %s112, %s113
    %p117 = pneg %p111
    %p118 = scmp.eq.s32.totalorder %s13, 1
    %p119 = por %p117, %p118
    %p120 = scmp.ne.s32.totalorder %s112, %s115
    %p121 = scmp.eq.s32.totalorder %s13, 0
    %p122 = por %p120, %p121
    %p123 = scmp.ne.s32.totalorder %s112, %s115
    %p124 = scmp.eq.s32.totalorder %s18, 1
    %p125 = por %p123, %p124
    %p126 = scmp.ne.s32.totalorder %s115, %s116
    %p127 = scmp.eq.s32.totalorder %s18, 0
    %p128 = por %p126, %p127
    %p129 = scmp.ne.s32.totalorder %s115, %s116
    %p130 = scmp.eq.s32.totalorder %s19, 1
    %p131 = por %p129, %p130
    %p133 = scmp.ne.s32.totalorder %s116, %s132
    %p134 = scmp.eq.s32.totalorder %s19, 0
    %p135 = por %p133, %p134
    %s136 = ssub.s32 %s13, %s20
    %p137 = scmp.eq.s32.totalorder %s136, 0
    %s139 = sadd.s32 %s138, 1
    %s140 = scalar_select %p137, %s138, %s139
    %p143 = pneg %p137
    %p144 = scmp.eq.s32.totalorder %s13, 1
    %p145 = por %p143, %p144
    %p146 = scmp.ne.s32.totalorder %s138, %s141
    %p147 = scmp.eq.s32.totalorder %s13, 0
    %p148 = por %p146, %p147
    %p149 = scmp.ne.s32.totalorder %s138, %s141
    %p150 = scmp.eq.s32.totalorder %s18, 1
    %p151 = por %p149, %p150
    %p152 = scmp.ne.s32.totalorder %s141, %s142
    %p153 = scmp.eq.s32.totalorder %s18, 0
    %p154 = por %p152, %p153
    %p155 = scmp.ne.s32.totalorder %s141, %s142
    %p156 = scmp.eq.s32.totalorder %s19, 1
    %p157 = por %p155, %p156
    %p159 = scmp.ne.s32.totalorder %s142, %s158
    %p160 = scmp.eq.s32.totalorder %s19, 0
    %p161 = por %p159, %p160
    %s162 = ssub.s32 %s13, %s20
    %p163 = scmp.eq.s32.totalorder %s162, 0
    %s165 = sadd.s32 %s164, 1
    %s166 = scalar_select %p163, %s164, %s165
    %p169 = pneg %p163
    %p170 = scmp.eq.s32.totalorder %s13, 1
    %p171 = por %p169, %p170
    %p172 = scmp.ne.s32.totalorder %s164, %s167
    %p173 = scmp.eq.s32.totalorder %s13, 0
    %p174 = por %p172, %p173
    %p175 = scmp.ne.s32.totalorder %s164, %s167
    %p176 = scmp.eq.s32.totalorder %s18, 1
    %p177 = por %p175, %p176
    %p178 = scmp.ne.s32.totalorder %s167, %s168
    %p179 = scmp.eq.s32.totalorder %s18, 0
    %p180 = por %p178, %p179
    %p181 = scmp.ne.s32.totalorder %s167, %s168
    %p182 = scmp.eq.s32.totalorder %s19, 1
    %p183 = por %p181, %p182
    %p185 = scmp.ne.s32.totalorder %s168, %s184
    %p186 = scmp.eq.s32.totalorder %s19, 0
    %p187 = por %p185, %p186
    %p188 = scmp.le.s32.totalorder 1, %s13
    %p189 = scmp.lt.s32.totalorder %s13, 3
    %p190 = pnand %p188, %p189
    %p191 = pneg %p190
    // Predicated region
    $region9: #{bottleneck_forward.6} parent=5 // pred_check
      _
    $region10: #{bottleneck_forward.6} parent=5 // pred_check_branch
      %193 = sbr.rel (%p190) target = $region12
    $region11: #{bottleneck_forward.6} parent=5 // pred_region
      %s194 = ssub.s32 %s13, 1
      // Predicated region
      $region13: #{bottleneck_forward.6} parent=11 // pred_check
        %p195 = pneg %p60
      $region14: #{bottleneck_forward.6} parent=11 // pred_check_branch
        %197 = sbr.rel (%p195) target = $region16
      $region15: #{bottleneck_forward.6} parent=11 // pred_region
        _
      $region16: #{bottleneck_forward.6} parent=11 // pred_fallthru
        _
      // Predicated region
      $region17: #{bottleneck_forward.6} parent=11 // pred_check
        %p198 = pneg %p81
      $region18: #{bottleneck_forward.6} parent=11 // pred_check_branch
        %200 = sbr.rel (%p198) target = $region20
      $region19: #{bottleneck_forward.6} parent=11 // pred_region
        _
      $region20: #{bottleneck_forward.6} parent=11 // pred_fallthru
        _
      // Predicated region
      $region21: #{bottleneck_forward.6} parent=11 // pred_check
        %p201 = pneg %p102
      $region22: #{bottleneck_forward.6} parent=11 // pred_check_branch
        %203 = sbr.rel (%p201) target = $region24
      $region23: #{bottleneck_forward.6} parent=11 // pred_region
        _
      $region24: #{bottleneck_forward.6} parent=11 // pred_fallthru
        _
    $region12: #{bottleneck_forward.6} parent=5 // pred_fallthru
      _
    %p204 = scmp.lt.s32.totalorder %s13, 2
    // Predicated region
    $region25: #{bottleneck_forward.6} parent=5 // pred_check
      %p205 = pneg %p204
    $region26: #{bottleneck_forward.6} parent=5 // pred_check_branch
      %207 = sbr.rel (%p205) target = $region28
    $region27: #{bottleneck_forward.6} parent=5 // pred_region
      // Predicated region
      $region29: #{bottleneck_forward.6} parent=27 // pred_check
        %p208 = pneg %p33
      $region30: #{bottleneck_forward.6} parent=27 // pred_check_branch
        %210 = sbr.rel (%p208) target = $region32
      $region31: #{bottleneck_forward.6} parent=27 // pred_region
        %s211 = smul.u32 64, %s13
        %p212 = scmp.lt.s32.totalorder %s211, 127
        %s213 = scalar_select %p212, %s211, 127
        %s214 = smul.addr %s213, 4
        %s215 = scalar_lea.vmem %s0, %s214
        %s216 = smul.u32 64, %s13
      $region32: #{bottleneck_forward.6} parent=27 // pred_fallthru
        _
    $region28: #{bottleneck_forward.6} parent=5 // pred_fallthru
      _
    %p217 = scmp.le.s32.totalorder 1, %s13
    %p218 = scmp.lt.s32.totalorder %s13, 3
    %p219 = pnand %p217, %p218
    %p220 = pneg %p219
    // Predicated region
    $region33: #{bottleneck_forward.6} parent=5 // pred_check
      _
    $region34: #{bottleneck_forward.6} parent=5 // pred_check_branch
      %222 = sbr.rel (%p219) target = $region36
    $region35: #{bottleneck_forward.6} parent=5 // pred_region
      %s223 = ssub.s32 %s13, 1
      %s224 = smul.u32 64, %s18
      %p225 = scmp.lt.s32.totalorder %s224, 127
      %s226 = scalar_select %p225, %s224, 127
      %s227 = smul.addr %s226, 4
      %s228 = scalar_lea.vmem %s0, %s227
      %p229 = pneg %p39
      %p230 = pneg %p36
      %p231 = pneg %p60
      %p232 = pneg %p57
      %p233 = pneg %p81
      %p234 = pneg %p78
      %p235 = pneg %p102
      %p236 = pneg %p99
      %p237 = pneg %p128
      %p238 = pneg %p125
      %s239 = smul.u32 64, %s18
      %p240 = scmp.lt.s32.totalorder %s239, 127
      %s241 = scalar_select %p240, %s239, 127
      %s242 = smul.addr %s241, 4
      %s243 = scalar_lea.vmem %s4, %s242
      %p244 = pneg %p154
      %p245 = pneg %p151
      %p246 = scmp.lt.s32.totalorder %s18, 1
      %s247 = scalar_select %p246, %s18, 1
      %s248 = smul.addr %s247, 8
      %s249 = scalar_lea.vmem %s5, %s248
      %p250 = pneg %p180
      %p251 = pneg %p177
      %p252 = scmp.lt.s32.totalorder %s18, 1
      %s253 = scalar_select %p252, %s18, 1
      %s254 = smul.addr %s253, 8
      %s255 = scalar_lea.vmem %s6, %s254
      %s256 = smul.u32 64, %s18
      %p257 = scmp.lt.s32.totalorder %s256, 127
      %s258 = scalar_select %p257, %s256, 127
      %s259 = smul.addr %s258, 4
      %s260 = scalar_lea.vmem %s0, %s259
      %s261 = smul.u32 64, %s18
      %s262 = smul.u32 64, %s18
      %p263 = scmp.lt.s32.totalorder %s262, 127
      %s264 = scalar_select %p263, %s262, 127
      %s265 = smul.addr %s264, 4
      %s266 = scalar_lea.vmem %s4, %s265
      %s267 = smul.u32 64, %s18
      %p268 = scmp.lt.s32.totalorder %s18, 1
      %s269 = scalar_select %p268, %s18, 1
      %s270 = smul.addr %s269, 8
      %s271 = scalar_lea.vmem %s5, %s270
      %p272 = scmp.lt.s32.totalorder %s18, 1
      %s273 = scalar_select %p272, %s18, 1
      %s274 = smul.addr %s273, 8
      %s275 = scalar_lea.vmem %s6, %s274
      %v276 = vld [vmem:[%s260] sm:$0xf]
      %v277 = vld [vmem:[%s260 + $0x4] sm:$0xf]
      %v278 = vld [vmem:[%s260 + $0x8] sm:$0xf]
      %v279 = vld [vmem:[%s260 + $0xc] sm:$0xf]
      %v280 = vld [vmem:[%s260 + $0x10] sm:$0xf]
      %v281 = vld [vmem:[%s260 + $0x14] sm:$0xf]
      %v282 = vld [vmem:[%s260 + $0x18] sm:$0xf]
      %v283 = vld [vmem:[%s260 + $0x1c] sm:$0xf]
      %v284 = vld [vmem:[%s260 + $0x20] sm:$0xf]
      %v285 = vld [vmem:[%s260 + $0x24] sm:$0xf]
      %v286 = vld [vmem:[%s260 + $0x28] sm:$0xf]
      %v287 = vld [vmem:[%s260 + $0x2c] sm:$0xf]
      %v288 = vld [vmem:[%s260 + $0x30] sm:$0xf]
      %v289 = vld [vmem:[%s260 + $0x34] sm:$0xf]
      %v290 = vld [vmem:[%s260 + $0x38] sm:$0xf]
      %v291 = vld [vmem:[%s260 + $0x3c] sm:$0xf]
      %v292 = vld [vmem:[%s260 + $0x40] sm:$0xf]
      %v293 = vld [vmem:[%s260 + $0x44] sm:$0xf]
      %v294 = vld [vmem:[%s260 + $0x48] sm:$0xf]
      %v295 = vld [vmem:[%s260 + $0x4c] sm:$0xf]
      %v296 = vld [vmem:[%s260 + $0x50] sm:$0xf]
      %v297 = vld [vmem:[%s260 + $0x54] sm:$0xf]
      %v298 = vld [vmem:[%s260 + $0x58] sm:$0xf]
      %v299 = vld [vmem:[%s260 + $0x5c] sm:$0xf]
      %v300 = vld [vmem:[%s260 + $0x60] sm:$0xf]
      %v301 = vld [vmem:[%s260 + $0x64] sm:$0xf]
      %v302 = vld [vmem:[%s260 + $0x68] sm:$0xf]
      %v303 = vld [vmem:[%s260 + $0x6c] sm:$0xf]
      %v304 = vld [vmem:[%s260 + $0x70] sm:$0xf]
      %v305 = vld [vmem:[%s260 + $0x74] sm:$0xf]
      %v306 = vld [vmem:[%s260 + $0x78] sm:$0xf]
      %v307 = vld [vmem:[%s260 + $0x7c] sm:$0xf]
      %v308 = vld [vmem:[%s260 + $0x80] sm:$0xf]
      %v309 = vld [vmem:[%s260 + $0x84] sm:$0xf]
      %v310 = vld [vmem:[%s260 + $0x88] sm:$0xf]
      %v311 = vld [vmem:[%s260 + $0x8c] sm:$0xf]
      %v312 = vld [vmem:[%s260 + $0x90] sm:$0xf]
      %v313 = vld [vmem:[%s260 + $0x94] sm:$0xf]
      %v314 = vld [vmem:[%s260 + $0x98] sm:$0xf]
      %v315 = vld [vmem:[%s260 + $0x9c] sm:$0xf]
      %v316 = vld [vmem:[%s260 + $0xa0] sm:$0xf]
      %v317 = vld [vmem:[%s260 + $0xa4] sm:$0xf]
      %v318 = vld [vmem:[%s260 + $0xa8] sm:$0xf]
      %v319 = vld [vmem:[%s260 + $0xac] sm:$0xf]
      %v320 = vld [vmem:[%s260 + $0xb0] sm:$0xf]
      %v321 = vld [vmem:[%s260 + $0xb4] sm:$0xf]
      %v322 = vld [vmem:[%s260 + $0xb8] sm:$0xf]
      %v323 = vld [vmem:[%s260 + $0xbc] sm:$0xf]
      %v324 = vld [vmem:[%s260 + $0xc0] sm:$0xf]
      %v325 = vld [vmem:[%s260 + $0xc4] sm:$0xf]
      %v326 = vld [vmem:[%s260 + $0xc8] sm:$0xf]
      %v327 = vld [vmem:[%s260 + $0xcc] sm:$0xf]
      %v328 = vld [vmem:[%s260 + $0xd0] sm:$0xf]
      %v329 = vld [vmem:[%s260 + $0xd4] sm:$0xf]
      %v330 = vld [vmem:[%s260 + $0xd8] sm:$0xf]
      %v331 = vld [vmem:[%s260 + $0xdc] sm:$0xf]
      %v332 = vld [vmem:[%s260 + $0xe0] sm:$0xf]
      %v333 = vld [vmem:[%s260 + $0xe4] sm:$0xf]
      %v334 = vld [vmem:[%s260 + $0xe8] sm:$0xf]
      %v335 = vld [vmem:[%s260 + $0xec] sm:$0xf]
      %v336 = vld [vmem:[%s260 + $0xf0] sm:$0xf]
      %v337 = vld [vmem:[%s260 + $0xf4] sm:$0xf]
      %v338 = vld [vmem:[%s260 + $0xf8] sm:$0xf]
      %v339 = vld [vmem:[%s260 + $0xfc] sm:$0xf]
      %v340 = vunpack.c.l.bf16 %v276
      %v341 = vunpack.c.l.bf16 %v277
      %v342 = vunpack.c.l.bf16 %v278
      %v343 = vunpack.c.l.bf16 %v279
      %v344 = vunpack.c.l.bf16 %v280
      %v345 = vunpack.c.l.bf16 %v281
      %v346 = vunpack.c.l.bf16 %v282
      %v347 = vunpack.c.l.bf16 %v283
      %v348 = vunpack.c.l.bf16 %v284
      %v349 = vunpack.c.l.bf16 %v285
      %v350 = vunpack.c.l.bf16 %v286
      %v351 = vunpack.c.l.bf16 %v287
      %v352 = vunpack.c.l.bf16 %v288
      %v353 = vunpack.c.l.bf16 %v289
      %v354 = vunpack.c.l.bf16 %v290
      %v355 = vunpack.c.l.bf16 %v291
      %v356 = vunpack.c.l.bf16 %v292
      %v357 = vunpack.c.l.bf16 %v293
      %v358 = vunpack.c.l.bf16 %v294
      %v359 = vunpack.c.l.bf16 %v295
      %v360 = vunpack.c.l.bf16 %v296
      %v361 = vunpack.c.l.bf16 %v297
      %v362 = vunpack.c.l.bf16 %v298
      %v363 = vunpack.c.l.bf16 %v299
      %v364 = vunpack.c.l.bf16 %v300
      %v365 = vunpack.c.l.bf16 %v301
      %v366 = vunpack.c.l.bf16 %v302
      %v367 = vunpack.c.l.bf16 %v303
      %v368 = vunpack.c.l.bf16 %v304
      %v369 = vunpack.c.l.bf16 %v305
      %v370 = vunpack.c.l.bf16 %v306
      %v371 = vunpack.c.l.bf16 %v307
      %v372 = vunpack.c.l.bf16 %v308
      %v373 = vunpack.c.l.bf16 %v309
      %v374 = vunpack.c.l.bf16 %v310
      %v375 = vunpack.c.l.bf16 %v311
      %v376 = vunpack.c.l.bf16 %v312
      %v377 = vunpack.c.l.bf16 %v313
      %v378 = vunpack.c.l.bf16 %v314
      %v379 = vunpack.c.l.bf16 %v315
      %v380 = vunpack.c.l.bf16 %v316
      %v381 = vunpack.c.l.bf16 %v317
      %v382 = vunpack.c.l.bf16 %v318
      %v383 = vunpack.c.l.bf16 %v319
      %v384 = vunpack.c.l.bf16 %v320
      %v385 = vunpack.c.l.bf16 %v321
      %v386 = vunpack.c.l.bf16 %v322
      %v387 = vunpack.c.l.bf16 %v323
      %v388 = vunpack.c.l.bf16 %v324
      %v389 = vunpack.c.l.bf16 %v325
      %v390 = vunpack.c.l.bf16 %v326
      %v391 = vunpack.c.l.bf16 %v327
      %v392 = vunpack.c.l.bf16 %v328
      %v393 = vunpack.c.l.bf16 %v329
      %v394 = vunpack.c.l.bf16 %v330
      %v395 = vunpack.c.l.bf16 %v331
      %v396 = vunpack.c.l.bf16 %v332
      %v397 = vunpack.c.l.bf16 %v333
      %v398 = vunpack.c.l.bf16 %v334
      %v399 = vunpack.c.l.bf16 %v335
      %v400 = vunpack.c.l.bf16 %v336
      %v401 = vunpack.c.l.bf16 %v337
      %v402 = vunpack.c.l.bf16 %v338
      %v403 = vunpack.c.l.bf16 %v339
      %v404 = vld [vmem:[%s1] sm:$0x1]
      %v406 = vperm.slane %v404, 0
      %v408 = vmul.f32 %v340, %v406
      %v409 = vmul.f32 %v341, %v406
      %v410 = vmul.f32 %v342, %v406
      %v411 = vmul.f32 %v343, %v406
      %v412 = vmul.f32 %v344, %v406
      %v413 = vmul.f32 %v345, %v406
      %v414 = vmul.f32 %v346, %v406
      %v415 = vmul.f32 %v347, %v406
      %v416 = vmul.f32 %v348, %v406
      %v417 = vmul.f32 %v349, %v406
      %v418 = vmul.f32 %v350, %v406
      %v419 = vmul.f32 %v351, %v406
      %v420 = vmul.f32 %v352, %v406
      %v421 = vmul.f32 %v353, %v406
      %v422 = vmul.f32 %v354, %v406
      %v423 = vmul.f32 %v355, %v406
      %v424 = vmul.f32 %v356, %v406
      %v425 = vmul.f32 %v357, %v406
      %v426 = vmul.f32 %v358, %v406
      %v427 = vmul.f32 %v359, %v406
      %v428 = vmul.f32 %v360, %v406
      %v429 = vmul.f32 %v361, %v406
      %v430 = vmul.f32 %v362, %v406
      %v431 = vmul.f32 %v363, %v406
      %v432 = vmul.f32 %v364, %v406
      %v433 = vmul.f32 %v365, %v406
      %v434 = vmul.f32 %v366, %v406
      %v435 = vmul.f32 %v367, %v406
      %v436 = vmul.f32 %v368, %v406
      %v437 = vmul.f32 %v369, %v406
      %v438 = vmul.f32 %v370, %v406
      %v439 = vmul.f32 %v371, %v406
      %v440 = vmul.f32 %v372, %v406
      %v441 = vmul.f32 %v373, %v406
      %v442 = vmul.f32 %v374, %v406
      %v443 = vmul.f32 %v375, %v406
      %v444 = vmul.f32 %v376, %v406
      %v445 = vmul.f32 %v377, %v406
      %v446 = vmul.f32 %v378, %v406
      %v447 = vmul.f32 %v379, %v406
      %v448 = vmul.f32 %v380, %v406
      %v449 = vmul.f32 %v381, %v406
      %v450 = vmul.f32 %v382, %v406
      %v451 = vmul.f32 %v383, %v406
      %v452 = vmul.f32 %v384, %v406
      %v453 = vmul.f32 %v385, %v406
      %v454 = vmul.f32 %v386, %v406
      %v455 = vmul.f32 %v387, %v406
      %v456 = vmul.f32 %v388, %v406
      %v457 = vmul.f32 %v389, %v406
      %v458 = vmul.f32 %v390, %v406
      %v459 = vmul.f32 %v391, %v406
      %v460 = vmul.f32 %v392, %v406
      %v461 = vmul.f32 %v393, %v406
      %v462 = vmul.f32 %v394, %v406
      %v463 = vmul.f32 %v395, %v406
      %v464 = vmul.f32 %v396, %v406
      %v465 = vmul.f32 %v397, %v406
      %v466 = vmul.f32 %v398, %v406
      %v467 = vmul.f32 %v399, %v406
      %v468 = vmul.f32 %v400, %v406
      %v469 = vmul.f32 %v401, %v406
      %v470 = vmul.f32 %v402, %v406
      %v471 = vmul.f32 %v403, %v406
      %v472 = vld [vmem:[%s2] sm:$0x1]
      %v474 = vperm.slane %v472, 0
      %v476 = vadd.f32 %v408, %v474
      %v477 = vadd.f32 %v409, %v474
      %v478 = vadd.f32 %v410, %v474
      %v479 = vadd.f32 %v411, %v474
      %v480 = vadd.f32 %v412, %v474
      %v481 = vadd.f32 %v413, %v474
      %v482 = vadd.f32 %v414, %v474
      %v483 = vadd.f32 %v415, %v474
      %v484 = vadd.f32 %v416, %v474
      %v485 = vadd.f32 %v417, %v474
      %v486 = vadd.f32 %v418, %v474
      %v487 = vadd.f32 %v419, %v474
      %v488 = vadd.f32 %v420, %v474
      %v489 = vadd.f32 %v421, %v474
      %v490 = vadd.f32 %v422, %v474
      %v491 = vadd.f32 %v423, %v474
      %v492 = vadd.f32 %v424, %v474
      %v493 = vadd.f32 %v425, %v474
      %v494 = vadd.f32 %v426, %v474
      %v495 = vadd.f32 %v427, %v474
      %v496 = vadd.f32 %v428, %v474
      %v497 = vadd.f32 %v429, %v474
      %v498 = vadd.f32 %v430, %v474
      %v499 = vadd.f32 %v431, %v474
      %v500 = vadd.f32 %v432, %v474
      %v501 = vadd.f32 %v433, %v474
      %v502 = vadd.f32 %v434, %v474
      %v503 = vadd.f32 %v435, %v474
      %v504 = vadd.f32 %v436, %v474
      %v505 = vadd.f32 %v437, %v474
      %v506 = vadd.f32 %v438, %v474
      %v507 = vadd.f32 %v439, %v474
      %v508 = vadd.f32 %v440, %v474
      %v509 = vadd.f32 %v441, %v474
      %v510 = vadd.f32 %v442, %v474
      %v511 = vadd.f32 %v443, %v474
      %v512 = vadd.f32 %v444, %v474
      %v513 = vadd.f32 %v445, %v474
      %v514 = vadd.f32 %v446, %v474
      %v515 = vadd.f32 %v447, %v474
      %v516 = vadd.f32 %v448, %v474
      %v517 = vadd.f32 %v449, %v474
      %v518 = vadd.f32 %v450, %v474
      %v519 = vadd.f32 %v451, %v474
      %v520 = vadd.f32 %v452, %v474
      %v521 = vadd.f32 %v453, %v474
      %v522 = vadd.f32 %v454, %v474
      %v523 = vadd.f32 %v455, %v474
      %v524 = vadd.f32 %v456, %v474
      %v525 = vadd.f32 %v457, %v474
      %v526 = vadd.f32 %v458, %v474
      %v527 = vadd.f32 %v459, %v474
      %v528 = vadd.f32 %v460, %v474
      %v529 = vadd.f32 %v461, %v474
      %v530 = vadd.f32 %v462, %v474
      %v531 = vadd.f32 %v463, %v474
      %v532 = vadd.f32 %v464, %v474
      %v533 = vadd.f32 %v465, %v474
      %v534 = vadd.f32 %v466, %v474
      %v535 = vadd.f32 %v467, %v474
      %v536 = vadd.f32 %v468, %v474
      %v537 = vadd.f32 %v469, %v474
      %v538 = vadd.f32 %v470, %v474
      %v539 = vadd.f32 %v471, %v474
      %v540 = vmax.f32 %v476, 0.0
      %v541 = vmax.f32 %v477, 0.0
      %v542 = vmax.f32 %v478, 0.0
      %v543 = vmax.f32 %v479, 0.0
      %v544 = vmax.f32 %v480, 0.0
      %v545 = vmax.f32 %v481, 0.0
      %v546 = vmax.f32 %v482, 0.0
      %v547 = vmax.f32 %v483, 0.0
      %v548 = vmax.f32 %v484, 0.0
      %v549 = vmax.f32 %v485, 0.0
      %v550 = vmax.f32 %v486, 0.0
      %v551 = vmax.f32 %v487, 0.0
      %v552 = vmax.f32 %v488, 0.0
      %v553 = vmax.f32 %v489, 0.0
      %v554 = vmax.f32 %v490, 0.0
      %v555 = vmax.f32 %v491, 0.0
      %v556 = vmax.f32 %v492, 0.0
      %v557 = vmax.f32 %v493, 0.0
      %v558 = vmax.f32 %v494, 0.0
      %v559 = vmax.f32 %v495, 0.0
      %v560 = vmax.f32 %v496, 0.0
      %v561 = vmax.f32 %v497, 0.0
      %v562 = vmax.f32 %v498, 0.0
      %v563 = vmax.f32 %v499, 0.0
      %v564 = vmax.f32 %v500, 0.0
      %v565 = vmax.f32 %v501, 0.0
      %v566 = vmax.f32 %v502, 0.0
      %v567 = vmax.f32 %v503, 0.0
      %v568 = vmax.f32 %v504, 0.0
      %v569 = vmax.f32 %v505, 0.0
      %v570 = vmax.f32 %v506, 0.0
      %v571 = vmax.f32 %v507, 0.0
      %v572 = vmax.f32 %v508, 0.0
      %v573 = vmax.f32 %v509, 0.0
      %v574 = vmax.f32 %v510, 0.0
      %v575 = vmax.f32 %v511, 0.0
      %v576 = vmax.f32 %v512, 0.0
      %v577 = vmax.f32 %v513, 0.0
      %v578 = vmax.f32 %v514, 0.0
      %v579 = vmax.f32 %v515, 0.0
      %v580 = vmax.f32 %v516, 0.0
      %v581 = vmax.f32 %v517, 0.0
      %v582 = vmax.f32 %v518, 0.0
      %v583 = vmax.f32 %v519, 0.0
      %v584 = vmax.f32 %v520, 0.0
      %v585 = vmax.f32 %v521, 0.0
      %v586 = vmax.f32 %v522, 0.0
      %v587 = vmax.f32 %v523, 0.0
      %v588 = vmax.f32 %v524, 0.0
      %v589 = vmax.f32 %v525, 0.0
      %v590 = vmax.f32 %v526, 0.0
      %v591 = vmax.f32 %v527, 0.0
      %v592 = vmax.f32 %v528, 0.0
      %v593 = vmax.f32 %v529, 0.0
      %v594 = vmax.f32 %v530, 0.0
      %v595 = vmax.f32 %v531, 0.0
      %v596 = vmax.f32 %v532, 0.0
      %v597 = vmax.f32 %v533, 0.0
      %v598 = vmax.f32 %v534, 0.0
      %v599 = vmax.f32 %v535, 0.0
      %v600 = vmax.f32 %v536, 0.0
      %v601 = vmax.f32 %v537, 0.0
      %v602 = vmax.f32 %v538, 0.0
      %v603 = vmax.f32 %v539, 0.0
      %v604 = vpack.c.bf16 %v541, %v540
      %v605 = vpack.c.bf16 %v543, %v542
      %v606 = vpack.c.bf16 %v545, %v544
      %v607 = vpack.c.bf16 %v547, %v546
      %v608 = vpack.c.bf16 %v549, %v548
      %v609 = vpack.c.bf16 %v551, %v550
      %v610 = vpack.c.bf16 %v553, %v552
      %v611 = vpack.c.bf16 %v555, %v554
      %v612 = vpack.c.bf16 %v557, %v556
      %v613 = vpack.c.bf16 %v559, %v558
      %v614 = vpack.c.bf16 %v561, %v560
      %v615 = vpack.c.bf16 %v563, %v562
      %v616 = vpack.c.bf16 %v565, %v564
      %v617 = vpack.c.bf16 %v567, %v566
      %v618 = vpack.c.bf16 %v569, %v568
      %v619 = vpack.c.bf16 %v571, %v570
      %v620 = vpack.c.bf16 %v573, %v572
      %v621 = vpack.c.bf16 %v575, %v574
      %v622 = vpack.c.bf16 %v577, %v576
      %v623 = vpack.c.bf16 %v579, %v578
      %v624 = vpack.c.bf16 %v581, %v580
      %v625 = vpack.c.bf16 %v583, %v582
      %v626 = vpack.c.bf16 %v585, %v584
      %v627 = vpack.c.bf16 %v587, %v586
      %v628 = vpack.c.bf16 %v589, %v588
      %v629 = vpack.c.bf16 %v591, %v590
      %v630 = vpack.c.bf16 %v593, %v592
      %v631 = vpack.c.bf16 %v595, %v594
      %v632 = vpack.c.bf16 %v597, %v596
      %v633 = vpack.c.bf16 %v599, %v598
      %v634 = vpack.c.bf16 %v601, %v600
      %v635 = vpack.c.bf16 %v603, %v602
      %v636 = vld [vmem:[%s3] sm:$0xf]
      %v637 = vld [vmem:[%s3 + $0x4] sm:$0xf]
      %v638 = vld [vmem:[%s3 + $0x8] sm:$0xf]
      %v639 = vld [vmem:[%s3 + $0xc] sm:$0xf]
      %v640 = vld [vmem:[%s3 + $0x10] sm:$0xf]
      %v641 = vld [vmem:[%s3 + $0x14] sm:$0xf]
      %v642 = vld [vmem:[%s3 + $0x18] sm:$0xf]
      %v643 = vld [vmem:[%s3 + $0x1c] sm:$0xf]
      %v644 = vld [vmem:[%s3 + $0x20] sm:$0xf]
      %v645 = vld [vmem:[%s3 + $0x24] sm:$0xf]
      %v646 = vld [vmem:[%s3 + $0x28] sm:$0xf]
      %v647 = vld [vmem:[%s3 + $0x2c] sm:$0xf]
      %v648 = vld [vmem:[%s3 + $0x30] sm:$0xf]
      %v649 = vld [vmem:[%s3 + $0x34] sm:$0xf]
      %v650 = vld [vmem:[%s3 + $0x38] sm:$0xf]
      %v651 = vld [vmem:[%s3 + $0x3c] sm:$0xf]
      %v668 = vunpack.c.l.b16 %v636
      %v669 = vunpack.c.l.b16 %v637
      %v670 = vunpack.c.l.b16 %v638
      %v671 = vunpack.c.l.b16 %v639
      %v672 = vunpack.c.l.b16 %v640
      %v673 = vunpack.c.l.b16 %v641
      %v674 = vunpack.c.l.b16 %v642
      %v675 = vunpack.c.l.b16 %v643
      %v676 = vunpack.c.l.b16 %v644
      %v677 = vunpack.c.l.b16 %v645
      %v678 = vunpack.c.l.b16 %v646
      %v679 = vunpack.c.l.b16 %v647
      %v680 = vunpack.c.l.b16 %v648
      %v681 = vunpack.c.l.b16 %v649
      %v682 = vunpack.c.l.b16 %v650
      %v683 = vunpack.c.l.b16 %v651
      %v684 = vpack.c.b16 %v669, %v668
      %v685 = vpack.c.b16 %v671, %v670
      %v686 = vpack.c.b16 %v673, %v672
      %v687 = vpack.c.b16 %v675, %v674
      %v688 = vpack.c.b16 %v677, %v676
      %v689 = vpack.c.b16 %v679, %v678
      %v690 = vpack.c.b16 %v681, %v680
      %v691 = vpack.c.b16 %v683, %v682
      %700 = vmatpush.bf16.msra.mxu0 %v691
      %701 = vmatpush.bf16.msra.mxu0 %v690
      %702 = vmatpush.bf16.msra.mxu0 %v689
      %703 = vmatpush.bf16.msra.mxu0 %v688
      %704 = vmatpush.bf16.msra.mxu0 %v687
      %705 = vmatpush.bf16.msra.mxu0 %v686
      %706 = vmatpush.bf16.msra.mxu0 %v685
      %707 = vmatpush.bf16.msra.mxu0 %v684
      %708 = vmatmul.bf16.gmra.mxu0 %v604
      %v709 = vpop.f32.mrf.mxu0
      %v710 = vadd.f32 0.0, %v709
      %v711 = vpop.f32.mrf.mxu0
      %v712 = vadd.f32 0.0, %v711
      %713 = vmatmul.bf16.gmra.mxu0 %v605
      %v714 = vpop.f32.mrf.mxu0
      %v715 = vadd.f32 0.0, %v714
      %v716 = vpop.f32.mrf.mxu0
      %v717 = vadd.f32 0.0, %v716
      %718 = vmatmul.bf16.gmra.mxu0 %v606
      %v719 = vpop.f32.mrf.mxu0
      %v720 = vadd.f32 0.0, %v719
      %v721 = vpop.f32.mrf.mxu0
      %v722 = vadd.f32 0.0, %v721
      %723 = vmatmul.bf16.gmra.mxu0 %v607
      %v724 = vpop.f32.mrf.mxu0
      %v725 = vadd.f32 0.0, %v724
      %v726 = vpop.f32.mrf.mxu0
      %v727 = vadd.f32 0.0, %v726
      %728 = vmatmul.bf16.gmra.mxu0 %v608
      %v729 = vpop.f32.mrf.mxu0
      %v730 = vadd.f32 0.0, %v729
      %v731 = vpop.f32.mrf.mxu0
      %v732 = vadd.f32 0.0, %v731
      %733 = vmatmul.bf16.gmra.mxu0 %v609
      %v734 = vpop.f32.mrf.mxu0
      %v735 = vadd.f32 0.0, %v734
      %v736 = vpop.f32.mrf.mxu0
      %v737 = vadd.f32 0.0, %v736
      %738 = vmatmul.bf16.gmra.mxu0 %v610
      %v739 = vpop.f32.mrf.mxu0
      %v740 = vadd.f32 0.0, %v739
      %v741 = vpop.f32.mrf.mxu0
      %v742 = vadd.f32 0.0, %v741
      %743 = vmatmul.bf16.gmra.mxu0 %v611
      %v744 = vpop.f32.mrf.mxu0
      %v745 = vadd.f32 0.0, %v744
      %v746 = vpop.f32.mrf.mxu0
      %v747 = vadd.f32 0.0, %v746
      %748 = vmatmul.bf16.gmra.mxu0 %v612
      %v749 = vpop.f32.mrf.mxu0
      %v750 = vadd.f32 0.0, %v749
      %v751 = vpop.f32.mrf.mxu0
      %v752 = vadd.f32 0.0, %v751
      %753 = vmatmul.bf16.gmra.mxu0 %v613
      %v754 = vpop.f32.mrf.mxu0
      %v755 = vadd.f32 0.0, %v754
      %v756 = vpop.f32.mrf.mxu0
      %v757 = vadd.f32 0.0, %v756
      %758 = vmatmul.bf16.gmra.mxu0 %v614
      %v759 = vpop.f32.mrf.mxu0
      %v760 = vadd.f32 0.0, %v759
      %v761 = vpop.f32.mrf.mxu0
      %v762 = vadd.f32 0.0, %v761
      %763 = vmatmul.bf16.gmra.mxu0 %v615
      %v764 = vpop.f32.mrf.mxu0
      %v765 = vadd.f32 0.0, %v764
      %v766 = vpop.f32.mrf.mxu0
      %v767 = vadd.f32 0.0, %v766
      %768 = vmatmul.bf16.gmra.mxu0 %v616
      %v769 = vpop.f32.mrf.mxu0
      %v770 = vadd.f32 0.0, %v769
      %v771 = vpop.f32.mrf.mxu0
      %v772 = vadd.f32 0.0, %v771
      %773 = vmatmul.bf16.gmra.mxu0 %v617
      %v774 = vpop.f32.mrf.mxu0
      %v775 = vadd.f32 0.0, %v774
      %v776 = vpop.f32.mrf.mxu0
      %v777 = vadd.f32 0.0, %v776
      %778 = vmatmul.bf16.gmra.mxu0 %v618
      %v779 = vpop.f32.mrf.mxu0
      %v780 = vadd.f32 0.0, %v779
      %v781 = vpop.f32.mrf.mxu0
      %v782 = vadd.f32 0.0, %v781
      %783 = vmatmul.bf16.gmra.mxu0 %v619
      %v784 = vpop.f32.mrf.mxu0
      %v785 = vadd.f32 0.0, %v784
      %v786 = vpop.f32.mrf.mxu0
      %v787 = vadd.f32 0.0, %v786
      %788 = vmatmul.bf16.gmra.mxu0 %v620
      %v789 = vpop.f32.mrf.mxu0
      %v790 = vadd.f32 0.0, %v789
      %v791 = vpop.f32.mrf.mxu0
      %v792 = vadd.f32 0.0, %v791
      %793 = vmatmul.bf16.gmra.mxu0 %v621
      %v794 = vpop.f32.mrf.mxu0
      %v795 = vadd.f32 0.0, %v794
      %v796 = vpop.f32.mrf.mxu0
      %v797 = vadd.f32 0.0, %v796
      %798 = vmatmul.bf16.gmra.mxu0 %v622
      %v799 = vpop.f32.mrf.mxu0
      %v800 = vadd.f32 0.0, %v799
      %v801 = vpop.f32.mrf.mxu0
      %v802 = vadd.f32 0.0, %v801
      %803 = vmatmul.bf16.gmra.mxu0 %v623
      %v804 = vpop.f32.mrf.mxu0
      %v805 = vadd.f32 0.0, %v804
      %v806 = vpop.f32.mrf.mxu0
      %v807 = vadd.f32 0.0, %v806
      %808 = vmatmul.bf16.gmra.mxu0 %v624
      %v809 = vpop.f32.mrf.mxu0
      %v810 = vadd.f32 0.0, %v809
      %v811 = vpop.f32.mrf.mxu0
      %v812 = vadd.f32 0.0, %v811
      %813 = vmatmul.bf16.gmra.mxu0 %v625
      %v814 = vpop.f32.mrf.mxu0
      %v815 = vadd.f32 0.0, %v814
      %v816 = vpop.f32.mrf.mxu0
      %v817 = vadd.f32 0.0, %v816
      %818 = vmatmul.bf16.gmra.mxu0 %v626
      %v819 = vpop.f32.mrf.mxu0
      %v820 = vadd.f32 0.0, %v819
      %v821 = vpop.f32.mrf.mxu0
      %v822 = vadd.f32 0.0, %v821
      %823 = vmatmul.bf16.gmra.mxu0 %v627
      %v824 = vpop.f32.mrf.mxu0
      %v825 = vadd.f32 0.0, %v824
      %v826 = vpop.f32.mrf.mxu0
      %v827 = vadd.f32 0.0, %v826
      %828 = vmatmul.bf16.gmra.mxu0 %v628
      %v829 = vpop.f32.mrf.mxu0
      %v830 = vadd.f32 0.0, %v829
      %v831 = vpop.f32.mrf.mxu0
      %v832 = vadd.f32 0.0, %v831
      %833 = vmatmul.bf16.gmra.mxu0 %v629
      %v834 = vpop.f32.mrf.mxu0
      %v835 = vadd.f32 0.0, %v834
      %v836 = vpop.f32.mrf.mxu0
      %v837 = vadd.f32 0.0, %v836
      %838 = vmatmul.bf16.gmra.mxu0 %v630
      %v839 = vpop.f32.mrf.mxu0
      %v840 = vadd.f32 0.0, %v839
      %v841 = vpop.f32.mrf.mxu0
      %v842 = vadd.f32 0.0, %v841
      %843 = vmatmul.bf16.gmra.mxu0 %v631
      %v844 = vpop.f32.mrf.mxu0
      %v845 = vadd.f32 0.0, %v844
      %v846 = vpop.f32.mrf.mxu0
      %v847 = vadd.f32 0.0, %v846
      %848 = vmatmul.bf16.gmra.mxu0 %v632
      %v849 = vpop.f32.mrf.mxu0
      %v850 = vadd.f32 0.0, %v849
      %v851 = vpop.f32.mrf.mxu0
      %v852 = vadd.f32 0.0, %v851
      %853 = vmatmul.bf16.gmra.mxu0 %v633
      %v854 = vpop.f32.mrf.mxu0
      %v855 = vadd.f32 0.0, %v854
      %v856 = vpop.f32.mrf.mxu0
      %v857 = vadd.f32 0.0, %v856
      %858 = vmatmul.bf16.gmra.mxu0 %v634
      %v859 = vpop.f32.mrf.mxu0
      %v860 = vadd.f32 0.0, %v859
      %v861 = vpop.f32.mrf.mxu0
      %v862 = vadd.f32 0.0, %v861
      %863 = vmatmul.bf16.gmra.mxu0 %v635
      %v864 = vpop.f32.mrf.mxu0
      %v865 = vadd.f32 0.0, %v864
      %v866 = vpop.f32.mrf.mxu0
      %v867 = vadd.f32 0.0, %v866
      %868 = vdwg.mxu0
      %v869 = vpack.c.bf16 %v710, %v710
      %v870 = vpack.c.bf16 %v712, %v712
      %v871 = vpack.c.bf16 %v715, %v715
      %v872 = vpack.c.bf16 %v717, %v717
      %v873 = vpack.c.bf16 %v720, %v720
      %v874 = vpack.c.bf16 %v722, %v722
      %v875 = vpack.c.bf16 %v725, %v725
      %v876 = vpack.c.bf16 %v727, %v727
      %v877 = vpack.c.bf16 %v730, %v730
      %v878 = vpack.c.bf16 %v732, %v732
      %v879 = vpack.c.bf16 %v735, %v735
      %v880 = vpack.c.bf16 %v737, %v737
      %v881 = vpack.c.bf16 %v740, %v740
      %v882 = vpack.c.bf16 %v742, %v742
      %v883 = vpack.c.bf16 %v745, %v745
      %v884 = vpack.c.bf16 %v747, %v747
      %v885 = vpack.c.bf16 %v750, %v750
      %v886 = vpack.c.bf16 %v752, %v752
      %v887 = vpack.c.bf16 %v755, %v755
      %v888 = vpack.c.bf16 %v757, %v757
      %v889 = vpack.c.bf16 %v760, %v760
      %v890 = vpack.c.bf16 %v762, %v762
      %v891 = vpack.c.bf16 %v765, %v765
      %v892 = vpack.c.bf16 %v767, %v767
      %v893 = vpack.c.bf16 %v770, %v770
      %v894 = vpack.c.bf16 %v772, %v772
      %v895 = vpack.c.bf16 %v775, %v775
      %v896 = vpack.c.bf16 %v777, %v777
      %v897 = vpack.c.bf16 %v780, %v780
      %v898 = vpack.c.bf16 %v782, %v782
      %v899 = vpack.c.bf16 %v785, %v785
      %v900 = vpack.c.bf16 %v787, %v787
      %v901 = vpack.c.bf16 %v790, %v790
      %v902 = vpack.c.bf16 %v792, %v792
      %v903 = vpack.c.bf16 %v795, %v795
      %v904 = vpack.c.bf16 %v797, %v797
      %v905 = vpack.c.bf16 %v800, %v800
      %v906 = vpack.c.bf16 %v802, %v802
      %v907 = vpack.c.bf16 %v805, %v805
      %v908 = vpack.c.bf16 %v807, %v807
      %v909 = vpack.c.bf16 %v810, %v810
      %v910 = vpack.c.bf16 %v812, %v812
      %v911 = vpack.c.bf16 %v815, %v815
      %v912 = vpack.c.bf16 %v817, %v817
      %v913 = vpack.c.bf16 %v820, %v820
      %v914 = vpack.c.bf16 %v822, %v822
      %v915 = vpack.c.bf16 %v825, %v825
      %v916 = vpack.c.bf16 %v827, %v827
      %v917 = vpack.c.bf16 %v830, %v830
      %v918 = vpack.c.bf16 %v832, %v832
      %v919 = vpack.c.bf16 %v835, %v835
      %v920 = vpack.c.bf16 %v837, %v837
      %v921 = vpack.c.bf16 %v840, %v840
      %v922 = vpack.c.bf16 %v842, %v842
      %v923 = vpack.c.bf16 %v845, %v845
      %v924 = vpack.c.bf16 %v847, %v847
      %v925 = vpack.c.bf16 %v850, %v850
      %v926 = vpack.c.bf16 %v852, %v852
      %v927 = vpack.c.bf16 %v855, %v855
      %v928 = vpack.c.bf16 %v857, %v857
      %v929 = vpack.c.bf16 %v860, %v860
      %v930 = vpack.c.bf16 %v862, %v862
      %v931 = vpack.c.bf16 %v865, %v865
      %v932 = vpack.c.bf16 %v867, %v867
      %933 = vst [vmem:[%s266] sm:$0xf] %v869
      %934 = vst [vmem:[%s266 + $0x4] sm:$0xf] %v870
      %935 = vst [vmem:[%s266 + $0x8] sm:$0xf] %v871
      %936 = vst [vmem:[%s266 + $0xc] sm:$0xf] %v872
      %937 = vst [vmem:[%s266 + $0x10] sm:$0xf] %v873
      %938 = vst [vmem:[%s266 + $0x14] sm:$0xf] %v874
      %939 = vst [vmem:[%s266 + $0x18] sm:$0xf] %v875
      %940 = vst [vmem:[%s266 + $0x1c] sm:$0xf] %v876
      %941 = vst [vmem:[%s266 + $0x20] sm:$0xf] %v877
      %942 = vst [vmem:[%s266 + $0x24] sm:$0xf] %v878
      %943 = vst [vmem:[%s266 + $0x28] sm:$0xf] %v879
      %944 = vst [vmem:[%s266 + $0x2c] sm:$0xf] %v880
      %945 = vst [vmem:[%s266 + $0x30] sm:$0xf] %v881
      %946 = vst [vmem:[%s266 + $0x34] sm:$0xf] %v882
      %947 = vst [vmem:[%s266 + $0x38] sm:$0xf] %v883
      %948 = vst [vmem:[%s266 + $0x3c] sm:$0xf] %v884
      %949 = vst [vmem:[%s266 + $0x40] sm:$0xf] %v885
      %950 = vst [vmem:[%s266 + $0x44] sm:$0xf] %v886
      %951 = vst [vmem:[%s266 + $0x48] sm:$0xf] %v887
      %952 = vst [vmem:[%s266 + $0x4c] sm:$0xf] %v888
      %953 = vst [vmem:[%s266 + $0x50] sm:$0xf] %v889
      %954 = vst [vmem:[%s266 + $0x54] sm:$0xf] %v890
      %955 = vst [vmem:[%s266 + $0x58] sm:$0xf] %v891
      %956 = vst [vmem:[%s266 + $0x5c] sm:$0xf] %v892
      %957 = vst [vmem:[%s266 + $0x60] sm:$0xf] %v893
      %958 = vst [vmem:[%s266 + $0x64] sm:$0xf] %v894
      %959 = vst [vmem:[%s266 + $0x68] sm:$0xf] %v895
      %960 = vst [vmem:[%s266 + $0x6c] sm:$0xf] %v896
      %961 = vst [vmem:[%s266 + $0x70] sm:$0xf] %v897
      %962 = vst [vmem:[%s266 + $0x74] sm:$0xf] %v898
      %963 = vst [vmem:[%s266 + $0x78] sm:$0xf] %v899
      %964 = vst [vmem:[%s266 + $0x7c] sm:$0xf] %v900
      %965 = vst [vmem:[%s266 + $0x80] sm:$0xf] %v901
      %966 = vst [vmem:[%s266 + $0x84] sm:$0xf] %v902
      %967 = vst [vmem:[%s266 + $0x88] sm:$0xf] %v903
      %968 = vst [vmem:[%s266 + $0x8c] sm:$0xf] %v904
      %969 = vst [vmem:[%s266 + $0x90] sm:$0xf] %v905
      %970 = vst [vmem:[%s266 + $0x94] sm:$0xf] %v906
      %971 = vst [vmem:[%s266 + $0x98] sm:$0xf] %v907
      %972 = vst [vmem:[%s266 + $0x9c] sm:$0xf] %v908
      %973 = vst [vmem:[%s266 + $0xa0] sm:$0xf] %v909
      %974 = vst [vmem:[%s266 + $0xa4] sm:$0xf] %v910
      %975 = vst [vmem:[%s266 + $0xa8] sm:$0xf] %v911
      %976 = vst [vmem:[%s266 + $0xac] sm:$0xf] %v912
      %977 = vst [vmem:[%s266 + $0xb0] sm:$0xf] %v913
      %978 = vst [vmem:[%s266 + $0xb4] sm:$0xf] %v914
      %979 = vst [vmem:[%s266 + $0xb8] sm:$0xf] %v915
      %980 = vst [vmem:[%s266 + $0xbc] sm:$0xf] %v916
      %981 = vst [vmem:[%s266 + $0xc0] sm:$0xf] %v917
      %982 = vst [vmem:[%s266 + $0xc4] sm:$0xf] %v918
      %983 = vst [vmem:[%s266 + $0xc8] sm:$0xf] %v919
      %984 = vst [vmem:[%s266 + $0xcc] sm:$0xf] %v920
      %985 = vst [vmem:[%s266 + $0xd0] sm:$0xf] %v921
      %986 = vst [vmem:[%s266 + $0xd4] sm:$0xf] %v922
      %987 = vst [vmem:[%s266 + $0xd8] sm:$0xf] %v923
      %988 = vst [vmem:[%s266 + $0xdc] sm:$0xf] %v924
      %989 = vst [vmem:[%s266 + $0xe0] sm:$0xf] %v925
      %990 = vst [vmem:[%s266 + $0xe4] sm:$0xf] %v926
      %991 = vst [vmem:[%s266 + $0xe8] sm:$0xf] %v927
      %992 = vst [vmem:[%s266 + $0xec] sm:$0xf] %v928
      %993 = vst [vmem:[%s266 + $0xf0] sm:$0xf] %v929
      %994 = vst [vmem:[%s266 + $0xf4] sm:$0xf] %v930
      %995 = vst [vmem:[%s266 + $0xf8] sm:$0xf] %v931
      %996 = vst [vmem:[%s266 + $0xfc] sm:$0xf] %v932
      %v997 = vadd.f32 %v710, %v712
      %v998 = vadd.f32 %v997, %v715
      %v999 = vadd.f32 %v998, %v717
      %v1000 = vadd.f32 %v999, %v720
      %v1001 = vadd.f32 %v1000, %v722
      %v1002 = vadd.f32 %v1001, %v725
      %v1003 = vadd.f32 %v1002, %v727
      %v1004 = vadd.f32 %v1003, %v730
      %v1005 = vadd.f32 %v1004, %v732
      %v1006 = vadd.f32 %v1005, %v735
      %v1007 = vadd.f32 %v1006, %v737
      %v1008 = vadd.f32 %v1007, %v740
      %v1009 = vadd.f32 %v1008, %v742
      %v1010 = vadd.f32 %v1009, %v745
      %v1011 = vadd.f32 %v1010, %v747
      %v1012 = vadd.f32 %v1011, %v750
      %v1013 = vadd.f32 %v1012, %v752
      %v1014 = vadd.f32 %v1013, %v755
      %v1015 = vadd.f32 %v1014, %v757
      %v1016 = vadd.f32 %v1015, %v760
      %v1017 = vadd.f32 %v1016, %v762
      %v1018 = vadd.f32 %v1017, %v765
      %v1019 = vadd.f32 %v1018, %v767
      %v1020 = vadd.f32 %v1019, %v770
      %v1021 = vadd.f32 %v1020, %v772
      %v1022 = vadd.f32 %v1021, %v775
      %v1023 = vadd.f32 %v1022, %v777
      %v1024 = vadd.f32 %v1023, %v780
      %v1025 = vadd.f32 %v1024, %v782
      %v1026 = vadd.f32 %v1025, %v785
      %v1027 = vadd.f32 %v1026, %v787
      %v1028 = vadd.f32 %v1027, %v790
      %v1029 = vadd.f32 %v1028, %v792
      %v1030 = vadd.f32 %v1029, %v795
      %v1031 = vadd.f32 %v1030, %v797
      %v1032 = vadd.f32 %v1031, %v800
      %v1033 = vadd.f32 %v1032, %v802
      %v1034 = vadd.f32 %v1033, %v805
      %v1035 = vadd.f32 %v1034, %v807
      %v1036 = vadd.f32 %v1035, %v810
      %v1037 = vadd.f32 %v1036, %v812
      %v1038 = vadd.f32 %v1037, %v815
      %v1039 = vadd.f32 %v1038, %v817
      %v1040 = vadd.f32 %v1039, %v820
      %v1041 = vadd.f32 %v1040, %v822
      %v1042 = vadd.f32 %v1041, %v825
      %v1043 = vadd.f32 %v1042, %v827
      %v1044 = vadd.f32 %v1043, %v830
      %v1045 = vadd.f32 %v1044, %v832
      %v1046 = vadd.f32 %v1045, %v835
      %v1047 = vadd.f32 %v1046, %v837
      %v1048 = vadd.f32 %v1047, %v840
      %v1049 = vadd.f32 %v1048, %v842
      %v1050 = vadd.f32 %v1049, %v845
      %v1051 = vadd.f32 %v1050, %v847
      %v1052 = vadd.f32 %v1051, %v850
      %v1053 = vadd.f32 %v1052, %v852
      %v1054 = vadd.f32 %v1053, %v855
      %v1055 = vadd.f32 %v1054, %v857
      %v1056 = vadd.f32 %v1055, %v860
      %v1057 = vadd.f32 %v1056, %v862
      %v1058 = vadd.f32 %v1057, %v865
      %v1059 = vadd.f32 %v1058, %v867
      %v1060 = vrot.slane %v1059, 4
      %v1061 = vadd.f32 %v1059, %v1060
      %v1062 = vrot.slane %v1061, 2
      %v1063 = vadd.f32 %v1061, %v1062
      %v1064 = vrot.slane %v1063, 1
      %v1065 = vadd.f32 %v1063, %v1064
      %v1066 = vmul.f32 %v710, %v710
      %v1067 = vmul.f32 %v712, %v712
      %v1068 = vmul.f32 %v715, %v715
      %v1069 = vmul.f32 %v717, %v717
      %v1070 = vmul.f32 %v720, %v720
      %v1071 = vmul.f32 %v722, %v722
      %v1072 = vmul.f32 %v725, %v725
      %v1073 = vmul.f32 %v727, %v727
      %v1074 = vmul.f32 %v730, %v730
      %v1075 = vmul.f32 %v732, %v732
      %v1076 = vmul.f32 %v735, %v735
      %v1077 = vmul.f32 %v737, %v737
      %v1078 = vmul.f32 %v740, %v740
      %v1079 = vmul.f32 %v742, %v742
      %v1080 = vmul.f32 %v745, %v745
      %v1081 = vmul.f32 %v747, %v747
      %v1082 = vmul.f32 %v750, %v750
      %v1083 = vmul.f32 %v752, %v752
      %v1084 = vmul.f32 %v755, %v755
      %v1085 = vmul.f32 %v757, %v757
      %v1086 = vmul.f32 %v760, %v760
      %v1087 = vmul.f32 %v762, %v762
      %v1088 = vmul.f32 %v765, %v765
      %v1089 = vmul.f32 %v767, %v767
      %v1090 = vmul.f32 %v770, %v770
      %v1091 = vmul.f32 %v772, %v772
      %v1092 = vmul.f32 %v775, %v775
      %v1093 = vmul.f32 %v777, %v777
      %v1094 = vmul.f32 %v780, %v780
      %v1095 = vmul.f32 %v782, %v782
      %v1096 = vmul.f32 %v785, %v785
      %v1097 = vmul.f32 %v787, %v787
      %v1098 = vmul.f32 %v790, %v790
      %v1099 = vmul.f32 %v792, %v792
      %v1100 = vmul.f32 %v795, %v795
      %v1101 = vmul.f32 %v797, %v797
      %v1102 = vmul.f32 %v800, %v800
      %v1103 = vmul.f32 %v802, %v802
      %v1104 = vmul.f32 %v805, %v805
      %v1105 = vmul.f32 %v807, %v807
      %v1106 = vmul.f32 %v810, %v810
      %v1107 = vmul.f32 %v812, %v812
      %v1108 = vmul.f32 %v815, %v815
      %v1109 = vmul.f32 %v817, %v817
      %v1110 = vmul.f32 %v820, %v820
      %v1111 = vmul.f32 %v822, %v822
      %v1112 = vmul.f32 %v825, %v825
      %v1113 = vmul.f32 %v827, %v827
      %v1114 = vmul.f32 %v830, %v830
      %v1115 = vmul.f32 %v832, %v832
      %v1116 = vmul.f32 %v835, %v835
      %v1117 = vmul.f32 %v837, %v837
      %v1118 = vmul.f32 %v840, %v840
      %v1119 = vmul.f32 %v842, %v842
      %v1120 = vmul.f32 %v845, %v845
      %v1121 = vmul.f32 %v847, %v847
      %v1122 = vmul.f32 %v850, %v850
      %v1123 = vmul.f32 %v852, %v852
      %v1124 = vmul.f32 %v855, %v855
      %v1125 = vmul.f32 %v857, %v857
      %v1126 = vmul.f32 %v860, %v860
      %v1127 = vmul.f32 %v862, %v862
      %v1128 = vmul.f32 %v865, %v865
      %v1129 = vmul.f32 %v867, %v867
      %v1130 = vadd.f32 %v1066, %v1067
      %v1131 = vadd.f32 %v1130, %v1068
      %v1132 = vadd.f32 %v1131, %v1069
      %v1133 = vadd.f32 %v1132, %v1070
      %v1134 = vadd.f32 %v1133, %v1071
      %v1135 = vadd.f32 %v1134, %v1072
      %v1136 = vadd.f32 %v1135, %v1073
      %v1137 = vadd.f32 %v1136, %v1074
      %v1138 = vadd.f32 %v1137, %v1075
      %v1139 = vadd.f32 %v1138, %v1076
      %v1140 = vadd.f32 %v1139, %v1077
      %v1141 = vadd.f32 %v1140, %v1078
      %v1142 = vadd.f32 %v1141, %v1079
      %v1143 = vadd.f32 %v1142, %v1080
      %v1144 = vadd.f32 %v1143, %v1081
      %v1145 = vadd.f32 %v1144, %v1082
      %v1146 = vadd.f32 %v1145, %v1083
      %v1147 = vadd.f32 %v1146, %v1084
      %v1148 = vadd.f32 %v1147, %v1085
      %v1149 = vadd.f32 %v1148, %v1086
      %v1150 = vadd.f32 %v1149, %v1087
      %v1151 = vadd.f32 %v1150, %v1088
      %v1152 = vadd.f32 %v1151, %v1089
      %v1153 = vadd.f32 %v1152, %v1090
      %v1154 = vadd.f32 %v1153, %v1091
      %v1155 = vadd.f32 %v1154, %v1092
      %v1156 = vadd.f32 %v1155, %v1093
      %v1157 = vadd.f32 %v1156, %v1094
      %v1158 = vadd.f32 %v1157, %v1095
      %v1159 = vadd.f32 %v1158, %v1096
      %v1160 = vadd.f32 %v1159, %v1097
      %v1161 = vadd.f32 %v1160, %v1098
      %v1162 = vadd.f32 %v1161, %v1099
      %v1163 = vadd.f32 %v1162, %v1100
      %v1164 = vadd.f32 %v1163, %v1101
      %v1165 = vadd.f32 %v1164, %v1102
      %v1166 = vadd.f32 %v1165, %v1103
      %v1167 = vadd.f32 %v1166, %v1104
      %v1168 = vadd.f32 %v1167, %v1105
      %v1169 = vadd.f32 %v1168, %v1106
      %v1170 = vadd.f32 %v1169, %v1107
      %v1171 = vadd.f32 %v1170, %v1108
      %v1172 = vadd.f32 %v1171, %v1109
      %v1173 = vadd.f32 %v1172, %v1110
      %v1174 = vadd.f32 %v1173, %v1111
      %v1175 = vadd.f32 %v1174, %v1112
      %v1176 = vadd.f32 %v1175, %v1113
      %v1177 = vadd.f32 %v1176, %v1114
      %v1178 = vadd.f32 %v1177, %v1115
      %v1179 = vadd.f32 %v1178, %v1116
      %v1180 = vadd.f32 %v1179, %v1117
      %v1181 = vadd.f32 %v1180, %v1118
      %v1182 = vadd.f32 %v1181, %v1119
      %v1183 = vadd.f32 %v1182, %v1120
      %v1184 = vadd.f32 %v1183, %v1121
      %v1185 = vadd.f32 %v1184, %v1122
      %v1186 = vadd.f32 %v1185, %v1123
      %v1187 = vadd.f32 %v1186, %v1124
      %v1188 = vadd.f32 %v1187, %v1125
      %v1189 = vadd.f32 %v1188, %v1126
      %v1190 = vadd.f32 %v1189, %v1127
      %v1191 = vadd.f32 %v1190, %v1128
      %v1192 = vadd.f32 %v1191, %v1129
      %v1193 = vrot.slane %v1192, 4
      %v1194 = vadd.f32 %v1192, %v1193
      %v1195 = vrot.slane %v1194, 2
      %v1196 = vadd.f32 %v1194, %v1195
      %v1197 = vrot.slane %v1196, 1
      %v1198 = vadd.f32 %v1196, %v1197
      %1199 = vst [vmem:[%s271] sm:$0xff] %v1065
      %1200 = vst [vmem:[%s275] sm:$0xff] %v1198
      %s1201 = smul.u32 64, %s18
      %p1202 = scmp.lt.s32.totalorder %s1201, 127
      %s1203 = scalar_select %p1202, %s1201, 127
      %s1204 = smul.addr %s1203, 4
      %s1205 = scalar_lea.vmem %s4, %s1204
      %p1206 = scmp.lt.s32.totalorder %s18, 1
      %s1207 = scalar_select %p1206, %s18, 1
      %s1208 = smul.addr %s1207, 8
      %s1209 = scalar_lea.vmem %s5, %s1208
      %p1210 = scmp.lt.s32.totalorder %s18, 1
      %s1211 = scalar_select %p1210, %s18, 1
      %s1212 = smul.addr %s1211, 8
      %s1213 = scalar_lea.vmem %s6, %s1212
      // Predicated region
      $region37: #{bottleneck_forward.6} parent=35 // pred_check
        %p1214 = pneg %p125
      $region38: #{bottleneck_forward.6} parent=35 // pred_check_branch
        %1216 = sbr.rel (%p1214) target = $region40
      $region39: #{bottleneck_forward.6} parent=35 // pred_region
        %s1217 = smul.u32 64, %s18
      $region40: #{bottleneck_forward.6} parent=35 // pred_fallthru
        _
      // Predicated region
      $region41: #{bottleneck_forward.6} parent=35 // pred_check
        %p1218 = pneg %p151
      $region42: #{bottleneck_forward.6} parent=35 // pred_check_branch
        %1220 = sbr.rel (%p1218) target = $region44
      $region43: #{bottleneck_forward.6} parent=35 // pred_region
        _
      $region44: #{bottleneck_forward.6} parent=35 // pred_fallthru
        _
      // Predicated region
      $region45: #{bottleneck_forward.6} parent=35 // pred_check
        %p1221 = pneg %p177
      $region46: #{bottleneck_forward.6} parent=35 // pred_check_branch
        %1223 = sbr.rel (%p1221) target = $region48
      $region47: #{bottleneck_forward.6} parent=35 // pred_region
        _
      $region48: #{bottleneck_forward.6} parent=35 // pred_fallthru
        _
    $region36: #{bottleneck_forward.6} parent=5 // pred_fallthru
      _
    %p1224 = scmp.le.s32.totalorder 2, %s13
    // Predicated region
    $region49: #{bottleneck_forward.6} parent=5 // pred_check
      %p1225 = pneg %p1224
    $region50: #{bottleneck_forward.6} parent=5 // pred_check_branch
      %1227 = sbr.rel (%p1225) target = $region52
    $region51: #{bottleneck_forward.6} parent=5 // pred_region
      %s1228 = ssub.s32 %s13, 2
      // Predicated region
      $region53: #{bottleneck_forward.6} parent=51 // pred_check
        %p1229 = pneg %p131
      $region54: #{bottleneck_forward.6} parent=51 // pred_check_branch
        %1231 = sbr.rel (%p1229) target = $region56
      $region55: #{bottleneck_forward.6} parent=51 // pred_region
        %s1232 = smul.u32 64, %s19
        %p1233 = scmp.lt.s32.totalorder %s1232, 127
        %s1234 = scalar_select %p1233, %s1232, 127
        %s1235 = smul.addr %s1234, 4
        %s1236 = scalar_lea.vmem %s4, %s1235
      $region56: #{bottleneck_forward.6} parent=51 // pred_fallthru
        _
      // Predicated region
      $region57: #{bottleneck_forward.6} parent=51 // pred_check
        %p1237 = pneg %p157
      $region58: #{bottleneck_forward.6} parent=51 // pred_check_branch
        %1239 = sbr.rel (%p1237) target = $region60
      $region59: #{bottleneck_forward.6} parent=51 // pred_region
        %p1240 = scmp.lt.s32.totalorder %s19, 1
        %s1241 = scalar_select %p1240, %s19, 1
        %s1242 = smul.addr %s1241, 8
        %s1243 = scalar_lea.vmem %s5, %s1242
      $region60: #{bottleneck_forward.6} parent=51 // pred_fallthru
        _
      // Predicated region
      $region61: #{bottleneck_forward.6} parent=51 // pred_check
        %p1244 = pneg %p183
      $region62: #{bottleneck_forward.6} parent=51 // pred_check_branch
        %1246 = sbr.rel (%p1244) target = $region64
      $region63: #{bottleneck_forward.6} parent=51 // pred_region
        %p1247 = scmp.lt.s32.totalorder %s19, 1
        %s1248 = scalar_select %p1247, %s19, 1
        %s1249 = smul.addr %s1248, 8
        %s1250 = scalar_lea.vmem %s6, %s1249
      $region64: #{bottleneck_forward.6} parent=51 // pred_fallthru
        _
    $region52: #{bottleneck_forward.6} parent=5 // pred_fallthru
      _
  $region6: #{bottleneck_forward.6} parent=0 // loop_footer
    %s17 = sadd.s32 1, %s13
  $region7: #{bottleneck_forward.6} parent=0 // loop_footer_branch
    %12 = sbr.rel target = $region3
  $region8: #{bottleneck_forward.6} parent=0 // loop_exit
    _

// kernel: bottleneck_forward.7
$region0: #{bottleneck_forward.7}
  #allocation0 [shape = 'u32[]', space=smem, size = 0x4, offset = 0x4, fixed_abs, tag = 'smem constant byte address 0x4 - core index']
  #allocation1 [shape = 'u32[72,128]{1,0:T(1,128)}', space=vmem, size = 0x9000, scoped, tag = 'internal scratch']
  %s0 = inlined_call_operand.vmem [shape: bf16[1024,128], index: 0, kind: input, shape index: {}]
  %s1 = inlined_call_operand.vmem [shape: f32[1,128], index: 1, kind: input, shape index: {}]
  %s2 = inlined_call_operand.vmem [shape: f32[1,128], index: 2, kind: input, shape index: {}]
  %s3 = inlined_call_operand.vmem [shape: bf16[1024,128], index: 3, kind: input, shape index: {}]
  %s4 = inlined_call_operand.hbm [shape: f32[1024,128], index: 4, kind: output, shape index: {}]
  %s5 = sld [smem:[#allocation0]]
  $region49: #{bottleneck_forward.7} parent=0
    _
  %s7 = ssub.s32 1, %s5
  %s8 = scalar_select 0, %s7, %s5
  $region1: #{bottleneck_forward.7} parent=0
    #allocation2 [shape = 'u8[524288]{0}', space=vmem, size = 0x80000, scoped, tag = 'output window, operand 0']
    #allocation3 [shape = 's32[2]{0}', space=sflag, size = 0x8, scoped, tag = 'scoped memory for bottleneck_forward.7']
    %9 = vsyncpa [#allocation3], 0
    %s10 = scalar_lea.sflag [#allocation3], 1
    %11 = vsyncpa %s10, 0
    loop: start=0, step=1, limit=4
    $region2: #{bottleneck_forward.7} parent=1 // loop_pre_header
      _
    $region3: #{bottleneck_forward.7} parent=1 // loop_header
      %s13 = sphi 0, %s17
      %p14 = scmp.ge.s32.totalorder %s13, 4
      %s23 = sphi 0, %s25
      %s26 = sphi 0, %s23
      %s27 = sphi 0, %s26
      %s43 = sphi 0, %s27
      %s47 = sphi 0, %s47
      %s49 = sphi 0, %s47
      %s50 = sphi 0, %s49
      %s64 = sphi 0, %s50
      %s68 = sphi 0, %s68
      %s70 = sphi 0, %s68
      %s71 = sphi 0, %s70
      %s85 = sphi 0, %s71
      %s91 = sphi 0, %s93
      %s94 = sphi 0, %s91
      %s95 = sphi 0, %s94
      %s111 = sphi 0, %s95
      %s117 = sphi 0, %s119
      %s120 = sphi 0, %s117
      %s121 = sphi 0, %s120
      %s137 = sphi 0, %s121
    $region4: #{bottleneck_forward.7} parent=1 // loop_header_branch
      %16 = sbr.rel (%p14) target = $region8
    $region5: #{bottleneck_forward.7} parent=1 // loop_body
      %s18 = ssub.s32 %s13, 1
      %s19 = ssub.s32 %s13, 2
      %s20 = sadd.s32 %s13, 1
      %s21 = ssub.s32 %s13, %s20
      %p22 = scmp.eq.s32.totalorder %s21, 0
      %s24 = sadd.s32 %s23, 1
      %s25 = scalar_select %p22, %s23, %s24
      %p28 = pneg %p22
      %p29 = scmp.eq.s32.totalorder %s13, 1
      %p30 = por %p28, %p29
      %p31 = scmp.ne.s32.totalorder %s23, %s26
      %p32 = scmp.eq.s32.totalorder %s13, 0
      %p33 = por %p31, %p32
      %p34 = scmp.ne.s32.totalorder %s23, %s26
      %p35 = scmp.eq.s32.totalorder %s18, 1
      %p36 = por %p34, %p35
      %p37 = scmp.ne.s32.totalorder %s26, %s27
      %p38 = scmp.eq.s32.totalorder %s18, 0
      %p39 = por %p37, %p38
      %p40 = scmp.ne.s32.totalorder %s26, %s27
      %p41 = scmp.eq.s32.totalorder %s19, 1
      %p42 = por %p40, %p41
      %p44 = scmp.ne.s32.totalorder %s27, %s43
      %p45 = scmp.eq.s32.totalorder %s19, 0
      %p46 = por %p44, %p45
      %s48 = sadd.s32 %s47, 1
      %p51 = scmp.eq.s32.totalorder %s13, 1
      %p52 = scmp.ne.s32.totalorder %s47, %s49
      %p53 = scmp.eq.s32.totalorder %s13, 0
      %p54 = por %p52, %p53
      %p55 = scmp.ne.s32.totalorder %s47, %s49
      %p56 = scmp.eq.s32.totalorder %s18, 1
      %p57 = por %p55, %p56
      %p58 = scmp.ne.s32.totalorder %s49, %s50
      %p59 = scmp.eq.s32.totalorder %s18, 0
      %p60 = por %p58, %p59
      %p61 = scmp.ne.s32.totalorder %s49, %s50
      %p62 = scmp.eq.s32.totalorder %s19, 1
      %p63 = por %p61, %p62
      %p65 = scmp.ne.s32.totalorder %s50, %s64
      %p66 = scmp.eq.s32.totalorder %s19, 0
      %p67 = por %p65, %p66
      %s69 = sadd.s32 %s68, 1
      %p72 = scmp.eq.s32.totalorder %s13, 1
      %p73 = scmp.ne.s32.totalorder %s68, %s70
      %p74 = scmp.eq.s32.totalorder %s13, 0
      %p75 = por %p73, %p74
      %p76 = scmp.ne.s32.totalorder %s68, %s70
      %p77 = scmp.eq.s32.totalorder %s18, 1
      %p78 = por %p76, %p77
      %p79 = scmp.ne.s32.totalorder %s70, %s71
      %p80 = scmp.eq.s32.totalorder %s18, 0
      %p81 = por %p79, %p80
      %p82 = scmp.ne.s32.totalorder %s70, %s71
      %p83 = scmp.eq.s32.totalorder %s19, 1
      %p84 = por %p82, %p83
      %p86 = scmp.ne.s32.totalorder %s71, %s85
      %p87 = scmp.eq.s32.totalorder %s19, 0
      %p88 = por %p86, %p87
      %s89 = ssub.s32 %s13, %s20
      %p90 = scmp.eq.s32.totalorder %s89, 0
      %s92 = sadd.s32 %s91, 1
      %s93 = scalar_select %p90, %s91, %s92
      %p96 = pneg %p90
      %p97 = scmp.eq.s32.totalorder %s13, 1
      %p98 = por %p96, %p97
      %p99 = scmp.ne.s32.totalorder %s91, %s94
      %p100 = scmp.eq.s32.totalorder %s13, 0
      %p101 = por %p99, %p100
      %p102 = scmp.ne.s32.totalorder %s91, %s94
      %p103 = scmp.eq.s32.totalorder %s18, 1
      %p104 = por %p102, %p103
      %p105 = scmp.ne.s32.totalorder %s94, %s95
      %p106 = scmp.eq.s32.totalorder %s18, 0
      %p107 = por %p105, %p106
      %p108 = scmp.ne.s32.totalorder %s94, %s95
      %p109 = scmp.eq.s32.totalorder %s19, 1
      %p110 = por %p108, %p109
      %p112 = scmp.ne.s32.totalorder %s95, %s111
      %p113 = scmp.eq.s32.totalorder %s19, 0
      %p114 = por %p112, %p113
      %s115 = ssub.s32 %s13, %s20
      %p116 = scmp.eq.s32.totalorder %s115, 0
      %s118 = sadd.s32 %s117, 1
      %s119 = scalar_select %p116, %s117, %s118
      %p122 = pneg %p116
      %p123 = scmp.eq.s32.totalorder %s13, 1
      %p124 = por %p122, %p123
      %p125 = scmp.ne.s32.totalorder %s117, %s120
      %p126 = scmp.eq.s32.totalorder %s13, 0
      %p127 = por %p125, %p126
      %p128 = scmp.ne.s32.totalorder %s117, %s120
      %p129 = scmp.eq.s32.totalorder %s18, 1
      %p130 = por %p128, %p129
      %p131 = scmp.ne.s32.totalorder %s120, %s121
      %p132 = scmp.eq.s32.totalorder %s18, 0
      %p133 = por %p131, %p132
      %p134 = scmp.ne.s32.totalorder %s120, %s121
      %p135 = scmp.eq.s32.totalorder %s19, 1
      %p136 = por %p134, %p135
      %p138 = scmp.ne.s32.totalorder %s121, %s137
      %p139 = scmp.eq.s32.totalorder %s19, 0
      %p140 = por %p138, %p139
      %p141 = scmp.le.s32.totalorder 1, %s13
      %p142 = scmp.lt.s32.totalorder %s13, 3
      %p143 = pnand %p141, %p142
      %p144 = pneg %p143
      // Predicated region
      $region9: #{bottleneck_forward.7} parent=5 // pred_check
        _
      $region10: #{bottleneck_forward.7} parent=5 // pred_check_branch
        %146 = sbr.rel (%p143) target = $region12
      $region11: #{bottleneck_forward.7} parent=5 // pred_region
        %s147 = ssub.s32 %s13, 1
        // Predicated region
        $region13: #{bottleneck_forward.7} parent=11 // pred_check
          %p148 = pneg %p60
        $region14: #{bottleneck_forward.7} parent=11 // pred_check_branch
          %150 = sbr.rel (%p148) target = $region16
        $region15: #{bottleneck_forward.7} parent=11 // pred_region
          _
        $region16: #{bottleneck_forward.7} parent=11 // pred_fallthru
          _
        // Predicated region
        $region17: #{bottleneck_forward.7} parent=11 // pred_check
          %p151 = pneg %p81
        $region18: #{bottleneck_forward.7} parent=11 // pred_check_branch
          %153 = sbr.rel (%p151) target = $region20
        $region19: #{bottleneck_forward.7} parent=11 // pred_region
          _
        $region20: #{bottleneck_forward.7} parent=11 // pred_fallthru
          _
      $region12: #{bottleneck_forward.7} parent=5 // pred_fallthru
        _
      %p154 = scmp.lt.s32.totalorder %s13, 2
      // Predicated region
      $region21: #{bottleneck_forward.7} parent=5 // pred_check
        %p155 = pneg %p154
      $region22: #{bottleneck_forward.7} parent=5 // pred_check_branch
        %157 = sbr.rel (%p155) target = $region24
      $region23: #{bottleneck_forward.7} parent=5 // pred_region
        // Predicated region
        $region25: #{bottleneck_forward.7} parent=23 // pred_check
          %p158 = pneg %p33
        $region26: #{bottleneck_forward.7} parent=23 // pred_check_branch
          %160 = sbr.rel (%p158) target = $region28
        $region27: #{bottleneck_forward.7} parent=23 // pred_region
          %s161 = smul.u32 64, %s13
          %p162 = scmp.lt.s32.totalorder %s161, 127
          %s163 = scalar_select %p162, %s161, 127
          %s164 = smul.addr %s163, 4
          %s165 = scalar_lea.vmem %s0, %s164
          %s166 = smul.u32 64, %s13
        $region28: #{bottleneck_forward.7} parent=23 // pred_fallthru
          _
        // Predicated region
        $region29: #{bottleneck_forward.7} parent=23 // pred_check
          %p167 = pneg %p101
        $region30: #{bottleneck_forward.7} parent=23 // pred_check_branch
          %169 = sbr.rel (%p167) target = $region32
        $region31: #{bottleneck_forward.7} parent=23 // pred_region
          %s170 = smul.u32 64, %s13
          %p171 = scmp.lt.s32.totalorder %s170, 127
          %s172 = scalar_select %p171, %s170, 127
          %s173 = smul.addr %s172, 4
          %s174 = scalar_lea.vmem %s3, %s173
          %s175 = smul.u32 64, %s13
        $region32: #{bottleneck_forward.7} parent=23 // pred_fallthru
          _
      $region24: #{bottleneck_forward.7} parent=5 // pred_fallthru
        _
      %p176 = scmp.le.s32.totalorder 1, %s13
      %p177 = scmp.lt.s32.totalorder %s13, 3
      %p178 = pnand %p176, %p177
      %p179 = pneg %p178
      // Predicated region
      $region33: #{bottleneck_forward.7} parent=5 // pred_check
        _
      $region34: #{bottleneck_forward.7} parent=5 // pred_check_branch
        %181 = sbr.rel (%p178) target = $region36
      $region35: #{bottleneck_forward.7} parent=5 // pred_region
        %s182 = ssub.s32 %s13, 1
        %s183 = smul.u32 64, %s18
        %p184 = scmp.lt.s32.totalorder %s183, 127
        %s185 = scalar_select %p184, %s183, 127
        %s186 = smul.addr %s185, 4
        %s187 = scalar_lea.vmem %s0, %s186
        %p188 = pneg %p39
        %p189 = pneg %p36
        %p190 = pneg %p60
        %p191 = pneg %p57
        %p192 = pneg %p81
        %p193 = pneg %p78
        %s194 = smul.u32 64, %s18
        %p195 = scmp.lt.s32.totalorder %s194, 127
        %s196 = scalar_select %p195, %s194, 127
        %s197 = smul.addr %s196, 4
        %s198 = scalar_lea.vmem %s3, %s197
        %p199 = pneg %p107
        %p200 = pneg %p104
        %p201 = pneg %p133
        %p202 = pneg %p130
        %s203 = sand.u32 %s120, 1
        %s204 = scalar_lea.sflag [#allocation3], %s203
        %s205 = sand.u32 %s120, 1
        %s206 = smul.addr %s205, 512
        %s207 = scalar_lea.vmem [#allocation2], %s206
        %s208 = smul.u32 64, %s18
        %p209 = scmp.lt.s32.totalorder %s208, 127
        %s210 = scalar_select %p209, %s208, 127
        %s211 = smul.addr %s210, 4
        %s212 = scalar_lea.vmem %s0, %s211
        %s213 = smul.u32 64, %s18
        %s214 = smul.u32 64, %s18
        %p215 = scmp.lt.s32.totalorder %s214, 127
        %s216 = scalar_select %p215, %s214, 127
        %s217 = smul.addr %s216, 4
        %s218 = scalar_lea.vmem %s3, %s217
        %s219 = smul.u32 64, %s18
        %s220 = smul.u32 64, %s18
        %v221 = vld [vmem:[%s212] sm:$0xf]
        %v222 = vld [vmem:[%s212 + $0x4] sm:$0xf]
        %v223 = vld [vmem:[%s212 + $0x8] sm:$0xf]
        %v224 = vld [vmem:[%s212 + $0xc] sm:$0xf]
        %v225 = vld [vmem:[%s212 + $0x10] sm:$0xf]
        %v226 = vld [vmem:[%s212 + $0x14] sm:$0xf]
        %v227 = vld [vmem:[%s212 + $0x18] sm:$0xf]
        %v228 = vld [vmem:[%s212 + $0x1c] sm:$0xf]
        %v229 = vld [vmem:[%s212 + $0x20] sm:$0xf]
        %v230 = vld [vmem:[%s212 + $0x24] sm:$0xf]
        %v231 = vld [vmem:[%s212 + $0x28] sm:$0xf]
        %v232 = vld [vmem:[%s212 + $0x2c] sm:$0xf]
        %v233 = vld [vmem:[%s212 + $0x30] sm:$0xf]
        %v234 = vld [vmem:[%s212 + $0x34] sm:$0xf]
        %v235 = vld [vmem:[%s212 + $0x38] sm:$0xf]
        %v236 = vld [vmem:[%s212 + $0x3c] sm:$0xf]
        %v237 = vld [vmem:[%s212 + $0x40] sm:$0xf]
        %v238 = vld [vmem:[%s212 + $0x44] sm:$0xf]
        %v239 = vld [vmem:[%s212 + $0x48] sm:$0xf]
        %v240 = vld [vmem:[%s212 + $0x4c] sm:$0xf]
        %v241 = vld [vmem:[%s212 + $0x50] sm:$0xf]
        %v242 = vld [vmem:[%s212 + $0x54] sm:$0xf]
        %v243 = vld [vmem:[%s212 + $0x58] sm:$0xf]
        %v244 = vld [vmem:[%s212 + $0x5c] sm:$0xf]
        %v245 = vld [vmem:[%s212 + $0x60] sm:$0xf]
        %v246 = vld [vmem:[%s212 + $0x64] sm:$0xf]
        %v247 = vld [vmem:[%s212 + $0x68] sm:$0xf]
        %v248 = vld [vmem:[%s212 + $0x6c] sm:$0xf]
        %v249 = vld [vmem:[%s212 + $0x70] sm:$0xf]
        %v250 = vld [vmem:[%s212 + $0x74] sm:$0xf]
        %v251 = vld [vmem:[%s212 + $0x78] sm:$0xf]
        %v252 = vld [vmem:[%s212 + $0x7c] sm:$0xf]
        %v253 = vld [vmem:[%s212 + $0x80] sm:$0xf]
        %v254 = vld [vmem:[%s212 + $0x84] sm:$0xf]
        %v255 = vld [vmem:[%s212 + $0x88] sm:$0xf]
        %v256 = vld [vmem:[%s212 + $0x8c] sm:$0xf]
        %v257 = vld [vmem:[%s212 + $0x90] sm:$0xf]
        %v258 = vld [vmem:[%s212 + $0x94] sm:$0xf]
        %v259 = vld [vmem:[%s212 + $0x98] sm:$0xf]
        %v260 = vld [vmem:[%s212 + $0x9c] sm:$0xf]
        %v261 = vld [vmem:[%s212 + $0xa0] sm:$0xf]
        %v262 = vld [vmem:[%s212 + $0xa4] sm:$0xf]
        %v263 = vld [vmem:[%s212 + $0xa8] sm:$0xf]
        %v264 = vld [vmem:[%s212 + $0xac] sm:$0xf]
        %v265 = vld [vmem:[%s212 + $0xb0] sm:$0xf]
        %v266 = vld [vmem:[%s212 + $0xb4] sm:$0xf]
        %v267 = vld [vmem:[%s212 + $0xb8] sm:$0xf]
        %v268 = vld [vmem:[%s212 + $0xbc] sm:$0xf]
        %v269 = vld [vmem:[%s212 + $0xc0] sm:$0xf]
        %v270 = vld [vmem:[%s212 + $0xc4] sm:$0xf]
        %v271 = vld [vmem:[%s212 + $0xc8] sm:$0xf]
        %v272 = vld [vmem:[%s212 + $0xcc] sm:$0xf]
        %v273 = vld [vmem:[%s212 + $0xd0] sm:$0xf]
        %v274 = vld [vmem:[%s212 + $0xd4] sm:$0xf]
        %v275 = vld [vmem:[%s212 + $0xd8] sm:$0xf]
        %v276 = vld [vmem:[%s212 + $0xdc] sm:$0xf]
        %v277 = vld [vmem:[%s212 + $0xe0] sm:$0xf]
        %v278 = vld [vmem:[%s212 + $0xe4] sm:$0xf]
        %v279 = vld [vmem:[%s212 + $0xe8] sm:$0xf]
        %v280 = vld [vmem:[%s212 + $0xec] sm:$0xf]
        %v281 = vld [vmem:[%s212 + $0xf0] sm:$0xf]
        %v282 = vld [vmem:[%s212 + $0xf4] sm:$0xf]
        %v283 = vld [vmem:[%s212 + $0xf8] sm:$0xf]
        %v284 = vld [vmem:[%s212 + $0xfc] sm:$0xf]
        %v285 = vunpack.c.l.bf16 %v221
        %v286 = vunpack.c.l.bf16 %v222
        %v287 = vunpack.c.l.bf16 %v223
        %v288 = vunpack.c.l.bf16 %v224
        %v289 = vunpack.c.l.bf16 %v225
        %v290 = vunpack.c.l.bf16 %v226
        %v291 = vunpack.c.l.bf16 %v227
        %v292 = vunpack.c.l.bf16 %v228
        %v293 = vunpack.c.l.bf16 %v229
        %v294 = vunpack.c.l.bf16 %v230
        %v295 = vunpack.c.l.bf16 %v231
        %v296 = vunpack.c.l.bf16 %v232
        %v297 = vunpack.c.l.bf16 %v233
        %v298 = vunpack.c.l.bf16 %v234
        %v299 = vunpack.c.l.bf16 %v235
        %v300 = vunpack.c.l.bf16 %v236
        %v301 = vunpack.c.l.bf16 %v237
        %v302 = vunpack.c.l.bf16 %v238
        %v303 = vunpack.c.l.bf16 %v239
        %v304 = vunpack.c.l.bf16 %v240
        %v305 = vunpack.c.l.bf16 %v241
        %v306 = vunpack.c.l.bf16 %v242
        %v307 = vunpack.c.l.bf16 %v243
        %v308 = vunpack.c.l.bf16 %v244
        %v309 = vunpack.c.l.bf16 %v245
        %v310 = vunpack.c.l.bf16 %v246
        %v311 = vunpack.c.l.bf16 %v247
        %v312 = vunpack.c.l.bf16 %v248
        %v313 = vunpack.c.l.bf16 %v249
        %v314 = vunpack.c.l.bf16 %v250
        %v315 = vunpack.c.l.bf16 %v251
        %v316 = vunpack.c.l.bf16 %v252
        %v317 = vunpack.c.l.bf16 %v253
        %v318 = vunpack.c.l.bf16 %v254
        %v319 = vunpack.c.l.bf16 %v255
        %v320 = vunpack.c.l.bf16 %v256
        %v321 = vunpack.c.l.bf16 %v257
        %v322 = vunpack.c.l.bf16 %v258
        %v323 = vunpack.c.l.bf16 %v259
        %v324 = vunpack.c.l.bf16 %v260
        %v325 = vunpack.c.l.bf16 %v261
        %v326 = vunpack.c.l.bf16 %v262
        %v327 = vunpack.c.l.bf16 %v263
        %v328 = vunpack.c.l.bf16 %v264
        %v329 = vunpack.c.l.bf16 %v265
        %v330 = vunpack.c.l.bf16 %v266
        %v331 = vunpack.c.l.bf16 %v267
        %v332 = vunpack.c.l.bf16 %v268
        %v333 = vunpack.c.l.bf16 %v269
        %v334 = vunpack.c.l.bf16 %v270
        %v335 = vunpack.c.l.bf16 %v271
        %v336 = vunpack.c.l.bf16 %v272
        %v337 = vunpack.c.l.bf16 %v273
        %v338 = vunpack.c.l.bf16 %v274
        %v339 = vunpack.c.l.bf16 %v275
        %v340 = vunpack.c.l.bf16 %v276
        %v341 = vunpack.c.l.bf16 %v277
        %v342 = vunpack.c.l.bf16 %v278
        %v343 = vunpack.c.l.bf16 %v279
        %v344 = vunpack.c.l.bf16 %v280
        %v345 = vunpack.c.l.bf16 %v281
        %v346 = vunpack.c.l.bf16 %v282
        %v347 = vunpack.c.l.bf16 %v283
        %v348 = vunpack.c.l.bf16 %v284
        %v349 = vld [vmem:[%s1] sm:$0x1]
        %v351 = vperm.slane %v349, 0
        %v353 = vmul.f32 %v285, %v351
        %v354 = vmul.f32 %v286, %v351
        %v355 = vmul.f32 %v287, %v351
        %v356 = vmul.f32 %v288, %v351
        %v357 = vmul.f32 %v289, %v351
        %v358 = vmul.f32 %v290, %v351
        %v359 = vmul.f32 %v291, %v351
        %v360 = vmul.f32 %v292, %v351
        %v361 = vmul.f32 %v293, %v351
        %v362 = vmul.f32 %v294, %v351
        %v363 = vmul.f32 %v295, %v351
        %v364 = vmul.f32 %v296, %v351
        %v365 = vmul.f32 %v297, %v351
        %v366 = vmul.f32 %v298, %v351
        %v367 = vmul.f32 %v299, %v351
        %v368 = vmul.f32 %v300, %v351
        %v369 = vmul.f32 %v301, %v351
        %v370 = vmul.f32 %v302, %v351
        %v371 = vmul.f32 %v303, %v351
        %v372 = vmul.f32 %v304, %v351
        %v373 = vmul.f32 %v305, %v351
        %v374 = vmul.f32 %v306, %v351
        %v375 = vmul.f32 %v307, %v351
        %v376 = vmul.f32 %v308, %v351
        %v377 = vmul.f32 %v309, %v351
        %v378 = vmul.f32 %v310, %v351
        %v379 = vmul.f32 %v311, %v351
        %v380 = vmul.f32 %v312, %v351
        %v381 = vmul.f32 %v313, %v351
        %v382 = vmul.f32 %v314, %v351
        %v383 = vmul.f32 %v315, %v351
        %v384 = vmul.f32 %v316, %v351
        %v385 = vmul.f32 %v317, %v351
        %v386 = vmul.f32 %v318, %v351
        %v387 = vmul.f32 %v319, %v351
        %v388 = vmul.f32 %v320, %v351
        %v389 = vmul.f32 %v321, %v351
        %v390 = vmul.f32 %v322, %v351
        %v391 = vmul.f32 %v323, %v351
        %v392 = vmul.f32 %v324, %v351
        %v393 = vmul.f32 %v325, %v351
        %v394 = vmul.f32 %v326, %v351
        %v395 = vmul.f32 %v327, %v351
        %v396 = vmul.f32 %v328, %v351
        %v397 = vmul.f32 %v329, %v351
        %v398 = vmul.f32 %v330, %v351
        %v399 = vmul.f32 %v331, %v351
        %v400 = vmul.f32 %v332, %v351
        %v401 = vmul.f32 %v333, %v351
        %v402 = vmul.f32 %v334, %v351
        %v403 = vmul.f32 %v335, %v351
        %v404 = vmul.f32 %v336, %v351
        %v405 = vmul.f32 %v337, %v351
        %v406 = vmul.f32 %v338, %v351
        %v407 = vmul.f32 %v339, %v351
        %v408 = vmul.f32 %v340, %v351
        %v409 = vmul.f32 %v341, %v351
        %v410 = vmul.f32 %v342, %v351
        %v411 = vmul.f32 %v343, %v351
        %v412 = vmul.f32 %v344, %v351
        %v413 = vmul.f32 %v345, %v351
        %v414 = vmul.f32 %v346, %v351
        %v415 = vmul.f32 %v347, %v351
        %v416 = vmul.f32 %v348, %v351
        %v417 = vld [vmem:[%s2] sm:$0x1]
        %v419 = vperm.slane %v417, 0
        %v421 = vadd.f32 %v353, %v419
        %v422 = vadd.f32 %v354, %v419
        %v423 = vadd.f32 %v355, %v419
        %v424 = vadd.f32 %v356, %v419
        %v425 = vadd.f32 %v357, %v419
        %v426 = vadd.f32 %v358, %v419
        %v427 = vadd.f32 %v359, %v419
        %v428 = vadd.f32 %v360, %v419
        %v429 = vadd.f32 %v361, %v419
        %v430 = vadd.f32 %v362, %v419
        %v431 = vadd.f32 %v363, %v419
        %v432 = vadd.f32 %v364, %v419
        %v433 = vadd.f32 %v365, %v419
        %v434 = vadd.f32 %v366, %v419
        %v435 = vadd.f32 %v367, %v419
        %v436 = vadd.f32 %v368, %v419
        %v437 = vadd.f32 %v369, %v419
        %v438 = vadd.f32 %v370, %v419
        %v439 = vadd.f32 %v371, %v419
        %v440 = vadd.f32 %v372, %v419
        %v441 = vadd.f32 %v373, %v419
        %v442 = vadd.f32 %v374, %v419
        %v443 = vadd.f32 %v375, %v419
        %v444 = vadd.f32 %v376, %v419
        %v445 = vadd.f32 %v377, %v419
        %v446 = vadd.f32 %v378, %v419
        %v447 = vadd.f32 %v379, %v419
        %v448 = vadd.f32 %v380, %v419
        %v449 = vadd.f32 %v381, %v419
        %v450 = vadd.f32 %v382, %v419
        %v451 = vadd.f32 %v383, %v419
        %v452 = vadd.f32 %v384, %v419
        %v453 = vadd.f32 %v385, %v419
        %v454 = vadd.f32 %v386, %v419
        %v455 = vadd.f32 %v387, %v419
        %v456 = vadd.f32 %v388, %v419
        %v457 = vadd.f32 %v389, %v419
        %v458 = vadd.f32 %v390, %v419
        %v459 = vadd.f32 %v391, %v419
        %v460 = vadd.f32 %v392, %v419
        %v461 = vadd.f32 %v393, %v419
        %v462 = vadd.f32 %v394, %v419
        %v463 = vadd.f32 %v395, %v419
        %v464 = vadd.f32 %v396, %v419
        %v465 = vadd.f32 %v397, %v419
        %v466 = vadd.f32 %v398, %v419
        %v467 = vadd.f32 %v399, %v419
        %v468 = vadd.f32 %v400, %v419
        %v469 = vadd.f32 %v401, %v419
        %v470 = vadd.f32 %v402, %v419
        %v471 = vadd.f32 %v403, %v419
        %v472 = vadd.f32 %v404, %v419
        %v473 = vadd.f32 %v405, %v419
        %v474 = vadd.f32 %v406, %v419
        %v475 = vadd.f32 %v407, %v419
        %v476 = vadd.f32 %v408, %v419
        %v477 = vadd.f32 %v409, %v419
        %v478 = vadd.f32 %v410, %v419
        %v479 = vadd.f32 %v411, %v419
        %v480 = vadd.f32 %v412, %v419
        %v481 = vadd.f32 %v413, %v419
        %v482 = vadd.f32 %v414, %v419
        %v483 = vadd.f32 %v415, %v419
        %v484 = vadd.f32 %v416, %v419
        %v485 = vld [vmem:[%s218] sm:$0xf]
        %v486 = vld [vmem:[%s218 + $0x4] sm:$0xf]
        %v487 = vld [vmem:[%s218 + $0x8] sm:$0xf]
        %v488 = vld [vmem:[%s218 + $0xc] sm:$0xf]
        %v489 = vld [vmem:[%s218 + $0x10] sm:$0xf]
        %v490 = vld [vmem:[%s218 + $0x14] sm:$0xf]
        %v491 = vld [vmem:[%s218 + $0x18] sm:$0xf]
        %v492 = vld [vmem:[%s218 + $0x1c] sm:$0xf]
        %v493 = vld [vmem:[%s218 + $0x20] sm:$0xf]
        %v494 = vld [vmem:[%s218 + $0x24] sm:$0xf]
        %v495 = vld [vmem:[%s218 + $0x28] sm:$0xf]
        %v496 = vld [vmem:[%s218 + $0x2c] sm:$0xf]
        %v497 = vld [vmem:[%s218 + $0x30] sm:$0xf]
        %v498 = vld [vmem:[%s218 + $0x34] sm:$0xf]
        %v499 = vld [vmem:[%s218 + $0x38] sm:$0xf]
        %v500 = vld [vmem:[%s218 + $0x3c] sm:$0xf]
        %v501 = vld [vmem:[%s218 + $0x40] sm:$0xf]
        %v502 = vld [vmem:[%s218 + $0x44] sm:$0xf]
        %v503 = vld [vmem:[%s218 + $0x48] sm:$0xf]
        %v504 = vld [vmem:[%s218 + $0x4c] sm:$0xf]
        %v505 = vld [vmem:[%s218 + $0x50] sm:$0xf]
        %v506 = vld [vmem:[%s218 + $0x54] sm:$0xf]
        %v507 = vld [vmem:[%s218 + $0x58] sm:$0xf]
        %v508 = vld [vmem:[%s218 + $0x5c] sm:$0xf]
        %v509 = vld [vmem:[%s218 + $0x60] sm:$0xf]
        %v510 = vld [vmem:[%s218 + $0x64] sm:$0xf]
        %v511 = vld [vmem:[%s218 + $0x68] sm:$0xf]
        %v512 = vld [vmem:[%s218 + $0x6c] sm:$0xf]
        %v513 = vld [vmem:[%s218 + $0x70] sm:$0xf]
        %v514 = vld [vmem:[%s218 + $0x74] sm:$0xf]
        %v515 = vld [vmem:[%s218 + $0x78] sm:$0xf]
        %v516 = vld [vmem:[%s218 + $0x7c] sm:$0xf]
        %v517 = vld [vmem:[%s218 + $0x80] sm:$0xf]
        %v518 = vld [vmem:[%s218 + $0x84] sm:$0xf]
        %v519 = vld [vmem:[%s218 + $0x88] sm:$0xf]
        %v520 = vld [vmem:[%s218 + $0x8c] sm:$0xf]
        %v521 = vld [vmem:[%s218 + $0x90] sm:$0xf]
        %v522 = vld [vmem:[%s218 + $0x94] sm:$0xf]
        %v523 = vld [vmem:[%s218 + $0x98] sm:$0xf]
        %v524 = vld [vmem:[%s218 + $0x9c] sm:$0xf]
        %v525 = vld [vmem:[%s218 + $0xa0] sm:$0xf]
        %v526 = vld [vmem:[%s218 + $0xa4] sm:$0xf]
        %v527 = vld [vmem:[%s218 + $0xa8] sm:$0xf]
        %v528 = vld [vmem:[%s218 + $0xac] sm:$0xf]
        %v529 = vld [vmem:[%s218 + $0xb0] sm:$0xf]
        %v530 = vld [vmem:[%s218 + $0xb4] sm:$0xf]
        %v531 = vld [vmem:[%s218 + $0xb8] sm:$0xf]
        %v532 = vld [vmem:[%s218 + $0xbc] sm:$0xf]
        %v533 = vld [vmem:[%s218 + $0xc0] sm:$0xf]
        %v534 = vld [vmem:[%s218 + $0xc4] sm:$0xf]
        %v535 = vld [vmem:[%s218 + $0xc8] sm:$0xf]
        %v536 = vld [vmem:[%s218 + $0xcc] sm:$0xf]
        %v537 = vld [vmem:[%s218 + $0xd0] sm:$0xf]
        %v538 = vld [vmem:[%s218 + $0xd4] sm:$0xf]
        %v539 = vld [vmem:[%s218 + $0xd8] sm:$0xf]
        %v540 = vld [vmem:[%s218 + $0xdc] sm:$0xf]
        %v541 = vld [vmem:[%s218 + $0xe0] sm:$0xf]
        %v542 = vld [vmem:[%s218 + $0xe4] sm:$0xf]
        %v543 = vld [vmem:[%s218 + $0xe8] sm:$0xf]
        %v544 = vld [vmem:[%s218 + $0xec] sm:$0xf]
        %v545 = vld [vmem:[%s218 + $0xf0] sm:$0xf]
        %v546 = vld [vmem:[%s218 + $0xf4] sm:$0xf]
        %v547 = vld [vmem:[%s218 + $0xf8] sm:$0xf]
        %v548 = vld [vmem:[%s218 + $0xfc] sm:$0xf]
        %v549 = vunpack.c.l.bf16 %v485
        %v550 = vunpack.c.l.bf16 %v486
        %v551 = vunpack.c.l.bf16 %v487
        %v552 = vunpack.c.l.bf16 %v488
        %v553 = vunpack.c.l.bf16 %v489
        %v554 = vunpack.c.l.bf16 %v490
        %v555 = vunpack.c.l.bf16 %v491
        %v556 = vunpack.c.l.bf16 %v492
        %v557 = vunpack.c.l.bf16 %v493
        %v558 = vunpack.c.l.bf16 %v494
        %v559 = vunpack.c.l.bf16 %v495
        %v560 = vunpack.c.l.bf16 %v496
        %v561 = vunpack.c.l.bf16 %v497
        %v562 = vunpack.c.l.bf16 %v498
        %v563 = vunpack.c.l.bf16 %v499
        %v564 = vunpack.c.l.bf16 %v500
        %v565 = vunpack.c.l.bf16 %v501
        %v566 = vunpack.c.l.bf16 %v502
        %v567 = vunpack.c.l.bf16 %v503
        %v568 = vunpack.c.l.bf16 %v504
        %v569 = vunpack.c.l.bf16 %v505
        %v570 = vunpack.c.l.bf16 %v506
        %v571 = vunpack.c.l.bf16 %v507
        %v572 = vunpack.c.l.bf16 %v508
        %v573 = vunpack.c.l.bf16 %v509
        %v574 = vunpack.c.l.bf16 %v510
        %v575 = vunpack.c.l.bf16 %v511
        %v576 = vunpack.c.l.bf16 %v512
        %v577 = vunpack.c.l.bf16 %v513
        %v578 = vunpack.c.l.bf16 %v514
        %v579 = vunpack.c.l.bf16 %v515
        %v580 = vunpack.c.l.bf16 %v516
        %v581 = vunpack.c.l.bf16 %v517
        %v582 = vunpack.c.l.bf16 %v518
        %v583 = vunpack.c.l.bf16 %v519
        %v584 = vunpack.c.l.bf16 %v520
        %v585 = vunpack.c.l.bf16 %v521
        %v586 = vunpack.c.l.bf16 %v522
        %v587 = vunpack.c.l.bf16 %v523
        %v588 = vunpack.c.l.bf16 %v524
        %v589 = vunpack.c.l.bf16 %v525
        %v590 = vunpack.c.l.bf16 %v526
        %v591 = vunpack.c.l.bf16 %v527
        %v592 = vunpack.c.l.bf16 %v528
        %v593 = vunpack.c.l.bf16 %v529
        %v594 = vunpack.c.l.bf16 %v530
        %v595 = vunpack.c.l.bf16 %v531
        %v596 = vunpack.c.l.bf16 %v532
        %v597 = vunpack.c.l.bf16 %v533
        %v598 = vunpack.c.l.bf16 %v534
        %v599 = vunpack.c.l.bf16 %v535
        %v600 = vunpack.c.l.bf16 %v536
        %v601 = vunpack.c.l.bf16 %v537
        %v602 = vunpack.c.l.bf16 %v538
        %v603 = vunpack.c.l.bf16 %v539
        %v604 = vunpack.c.l.bf16 %v540
        %v605 = vunpack.c.l.bf16 %v541
        %v606 = vunpack.c.l.bf16 %v542
        %v607 = vunpack.c.l.bf16 %v543
        %v608 = vunpack.c.l.bf16 %v544
        %v609 = vunpack.c.l.bf16 %v545
        %v610 = vunpack.c.l.bf16 %v546
        %v611 = vunpack.c.l.bf16 %v547
        %v612 = vunpack.c.l.bf16 %v548
        %v613 = vadd.f32 %v421, %v549
        %v614 = vadd.f32 %v422, %v550
        %v615 = vadd.f32 %v423, %v551
        %v616 = vadd.f32 %v424, %v552
        %v617 = vadd.f32 %v425, %v553
        %v618 = vadd.f32 %v426, %v554
        %v619 = vadd.f32 %v427, %v555
        %v620 = vadd.f32 %v428, %v556
        %v621 = vadd.f32 %v429, %v557
        %v622 = vadd.f32 %v430, %v558
        %v623 = vadd.f32 %v431, %v559
        %v624 = vadd.f32 %v432, %v560
        %v625 = vadd.f32 %v433, %v561
        %v626 = vadd.f32 %v434, %v562
        %v627 = vadd.f32 %v435, %v563
        %v628 = vadd.f32 %v436, %v564
        %v629 = vadd.f32 %v437, %v565
        %v630 = vadd.f32 %v438, %v566
        %v631 = vadd.f32 %v439, %v567
        %v632 = vadd.f32 %v440, %v568
        %v633 = vadd.f32 %v441, %v569
        %v634 = vadd.f32 %v442, %v570
        %v635 = vadd.f32 %v443, %v571
        %v636 = vadd.f32 %v444, %v572
        %v637 = vadd.f32 %v445, %v573
        %v638 = vadd.f32 %v446, %v574
        %v639 = vadd.f32 %v447, %v575
        %v640 = vadd.f32 %v448, %v576
        %v641 = vadd.f32 %v449, %v577
        %v642 = vadd.f32 %v450, %v578
        %v643 = vadd.f32 %v451, %v579
        %v644 = vadd.f32 %v452, %v580
        %v645 = vadd.f32 %v453, %v581
        %v646 = vadd.f32 %v454, %v582
        %v647 = vadd.f32 %v455, %v583
        %v648 = vadd.f32 %v456, %v584
        %v649 = vadd.f32 %v457, %v585
        %v650 = vadd.f32 %v458, %v586
        %v651 = vadd.f32 %v459, %v587
        %v652 = vadd.f32 %v460, %v588
        %v653 = vadd.f32 %v461, %v589
        %v654 = vadd.f32 %v462, %v590
        %v655 = vadd.f32 %v463, %v591
        %v656 = vadd.f32 %v464, %v592
        %v657 = vadd.f32 %v465, %v593
        %v658 = vadd.f32 %v466, %v594
        %v659 = vadd.f32 %v467, %v595
        %v660 = vadd.f32 %v468, %v596
        %v661 = vadd.f32 %v469, %v597
        %v662 = vadd.f32 %v470, %v598
        %v663 = vadd.f32 %v471, %v599
        %v664 = vadd.f32 %v472, %v600
        %v665 = vadd.f32 %v473, %v601
        %v666 = vadd.f32 %v474, %v602
        %v667 = vadd.f32 %v475, %v603
        %v668 = vadd.f32 %v476, %v604
        %v669 = vadd.f32 %v477, %v605
        %v670 = vadd.f32 %v478, %v606
        %v671 = vadd.f32 %v479, %v607
        %v672 = vadd.f32 %v480, %v608
        %v673 = vadd.f32 %v481, %v609
        %v674 = vadd.f32 %v482, %v610
        %v675 = vadd.f32 %v483, %v611
        %v676 = vadd.f32 %v484, %v612
        %v677 = vmax.f32 %v613, 0.0
        %v678 = vmax.f32 %v614, 0.0
        %v679 = vmax.f32 %v615, 0.0
        %v680 = vmax.f32 %v616, 0.0
        %v681 = vmax.f32 %v617, 0.0
        %v682 = vmax.f32 %v618, 0.0
        %v683 = vmax.f32 %v619, 0.0
        %v684 = vmax.f32 %v620, 0.0
        %v685 = vmax.f32 %v621, 0.0
        %v686 = vmax.f32 %v622, 0.0
        %v687 = vmax.f32 %v623, 0.0
        %v688 = vmax.f32 %v624, 0.0
        %v689 = vmax.f32 %v625, 0.0
        %v690 = vmax.f32 %v626, 0.0
        %v691 = vmax.f32 %v627, 0.0
        %v692 = vmax.f32 %v628, 0.0
        %v693 = vmax.f32 %v629, 0.0
        %v694 = vmax.f32 %v630, 0.0
        %v695 = vmax.f32 %v631, 0.0
        %v696 = vmax.f32 %v632, 0.0
        %v697 = vmax.f32 %v633, 0.0
        %v698 = vmax.f32 %v634, 0.0
        %v699 = vmax.f32 %v635, 0.0
        %v700 = vmax.f32 %v636, 0.0
        %v701 = vmax.f32 %v637, 0.0
        %v702 = vmax.f32 %v638, 0.0
        %v703 = vmax.f32 %v639, 0.0
        %v704 = vmax.f32 %v640, 0.0
        %v705 = vmax.f32 %v641, 0.0
        %v706 = vmax.f32 %v642, 0.0
        %v707 = vmax.f32 %v643, 0.0
        %v708 = vmax.f32 %v644, 0.0
        %v709 = vmax.f32 %v645, 0.0
        %v710 = vmax.f32 %v646, 0.0
        %v711 = vmax.f32 %v647, 0.0
        %v712 = vmax.f32 %v648, 0.0
        %v713 = vmax.f32 %v649, 0.0
        %v714 = vmax.f32 %v650, 0.0
        %v715 = vmax.f32 %v651, 0.0
        %v716 = vmax.f32 %v652, 0.0
        %v717 = vmax.f32 %v653, 0.0
        %v718 = vmax.f32 %v654, 0.0
        %v719 = vmax.f32 %v655, 0.0
        %v720 = vmax.f32 %v656, 0.0
        %v721 = vmax.f32 %v657, 0.0
        %v722 = vmax.f32 %v658, 0.0
        %v723 = vmax.f32 %v659, 0.0
        %v724 = vmax.f32 %v660, 0.0
        %v725 = vmax.f32 %v661, 0.0
        %v726 = vmax.f32 %v662, 0.0
        %v727 = vmax.f32 %v663, 0.0
        %v728 = vmax.f32 %v664, 0.0
        %v729 = vmax.f32 %v665, 0.0
        %v730 = vmax.f32 %v666, 0.0
        %v731 = vmax.f32 %v667, 0.0
        %v732 = vmax.f32 %v668, 0.0
        %v733 = vmax.f32 %v669, 0.0
        %v734 = vmax.f32 %v670, 0.0
        %v735 = vmax.f32 %v671, 0.0
        %v736 = vmax.f32 %v672, 0.0
        %v737 = vmax.f32 %v673, 0.0
        %v738 = vmax.f32 %v674, 0.0
        %v739 = vmax.f32 %v675, 0.0
        %v740 = vmax.f32 %v676, 0.0
        %741 = vst [vmem:[%s207] sm:$0xff] %v677
        %742 = vst [vmem:[%s207 + $0x8] sm:$0xff] %v678
        %743 = vst [vmem:[%s207 + $0x10] sm:$0xff] %v679
        %744 = vst [vmem:[%s207 + $0x18] sm:$0xff] %v680
        %745 = vst [vmem:[%s207 + $0x20] sm:$0xff] %v681
        %746 = vst [vmem:[%s207 + $0x28] sm:$0xff] %v682
        %747 = vst [vmem:[%s207 + $0x30] sm:$0xff] %v683
        %748 = vst [vmem:[%s207 + $0x38] sm:$0xff] %v684
        %749 = vst [vmem:[%s207 + $0x40] sm:$0xff] %v685
        %750 = vst [vmem:[%s207 + $0x48] sm:$0xff] %v686
        %751 = vst [vmem:[%s207 + $0x50] sm:$0xff] %v687
        %752 = vst [vmem:[%s207 + $0x58] sm:$0xff] %v688
        %753 = vst [vmem:[%s207 + $0x60] sm:$0xff] %v689
        %754 = vst [vmem:[%s207 + $0x68] sm:$0xff] %v690
        %755 = vst [vmem:[%s207 + $0x70] sm:$0xff] %v691
        %756 = vst [vmem:[%s207 + $0x78] sm:$0xff] %v692
        %757 = vst [vmem:[%s207 + $0x80] sm:$0xff] %v693
        %758 = vst [vmem:[%s207 + $0x88] sm:$0xff] %v694
        %759 = vst [vmem:[%s207 + $0x90] sm:$0xff] %v695
        %760 = vst [vmem:[%s207 + $0x98] sm:$0xff] %v696
        %761 = vst [vmem:[%s207 + $0xa0] sm:$0xff] %v697
        %762 = vst [vmem:[%s207 + $0xa8] sm:$0xff] %v698
        %763 = vst [vmem:[%s207 + $0xb0] sm:$0xff] %v699
        %764 = vst [vmem:[%s207 + $0xb8] sm:$0xff] %v700
        %765 = vst [vmem:[%s207 + $0xc0] sm:$0xff] %v701
        %766 = vst [vmem:[%s207 + $0xc8] sm:$0xff] %v702
        %767 = vst [vmem:[%s207 + $0xd0] sm:$0xff] %v703
        %768 = vst [vmem:[%s207 + $0xd8] sm:$0xff] %v704
        %769 = vst [vmem:[%s207 + $0xe0] sm:$0xff] %v705
        %770 = vst [vmem:[%s207 + $0xe8] sm:$0xff] %v706
        %771 = vst [vmem:[%s207 + $0xf0] sm:$0xff] %v707
        %772 = vst [vmem:[%s207 + $0xf8] sm:$0xff] %v708
        %773 = vst [vmem:[%s207 + $0x100] sm:$0xff] %v709
        %774 = vst [vmem:[%s207 + $0x108] sm:$0xff] %v710
        %775 = vst [vmem:[%s207 + $0x110] sm:$0xff] %v711
        %776 = vst [vmem:[%s207 + $0x118] sm:$0xff] %v712
        %777 = vst [vmem:[%s207 + $0x120] sm:$0xff] %v713
        %778 = vst [vmem:[%s207 + $0x128] sm:$0xff] %v714
        %779 = vst [vmem:[%s207 + $0x130] sm:$0xff] %v715
        %780 = vst [vmem:[%s207 + $0x138] sm:$0xff] %v716
        %781 = vst [vmem:[%s207 + $0x140] sm:$0xff] %v717
        %782 = vst [vmem:[%s207 + $0x148] sm:$0xff] %v718
        %783 = vst [vmem:[%s207 + $0x150] sm:$0xff] %v719
        %784 = vst [vmem:[%s207 + $0x158] sm:$0xff] %v720
        %785 = vst [vmem:[%s207 + $0x160] sm:$0xff] %v721
        %786 = vst [vmem:[%s207 + $0x168] sm:$0xff] %v722
        %787 = vst [vmem:[%s207 + $0x170] sm:$0xff] %v723
        %788 = vst [vmem:[%s207 + $0x178] sm:$0xff] %v724
        %789 = vst [vmem:[%s207 + $0x180] sm:$0xff] %v725
        %790 = vst [vmem:[%s207 + $0x188] sm:$0xff] %v726
        %791 = vst [vmem:[%s207 + $0x190] sm:$0xff] %v727
        %792 = vst [vmem:[%s207 + $0x198] sm:$0xff] %v728
        %793 = vst [vmem:[%s207 + $0x1a0] sm:$0xff] %v729
        %794 = vst [vmem:[%s207 + $0x1a8] sm:$0xff] %v730
        %795 = vst [vmem:[%s207 + $0x1b0] sm:$0xff] %v731
        %796 = vst [vmem:[%s207 + $0x1b8] sm:$0xff] %v732
        %797 = vst [vmem:[%s207 + $0x1c0] sm:$0xff] %v733
        %798 = vst [vmem:[%s207 + $0x1c8] sm:$0xff] %v734
        %799 = vst [vmem:[%s207 + $0x1d0] sm:$0xff] %v735
        %800 = vst [vmem:[%s207 + $0x1d8] sm:$0xff] %v736
        %801 = vst [vmem:[%s207 + $0x1e0] sm:$0xff] %v737
        %802 = vst [vmem:[%s207 + $0x1e8] sm:$0xff] %v738
        %803 = vst [vmem:[%s207 + $0x1f0] sm:$0xff] %v739
        %804 = vst [vmem:[%s207 + $0x1f8] sm:$0xff] %v740
        %s805 = sand.u32 %s120, 1
        %s806 = scalar_lea.sflag [#allocation3], %s805
        %s807 = sand.u32 %s120, 1
        %s808 = smul.addr %s807, 512
        %s809 = scalar_lea.vmem [#allocation2], %s808
        // Predicated region
        $region37: #{bottleneck_forward.7} parent=35 // pred_check
          %p810 = pneg %p130
        $region38: #{bottleneck_forward.7} parent=35 // pred_check_branch
          %812 = sbr.rel (%p810) target = $region40
        $region39: #{bottleneck_forward.7} parent=35 // pred_region
          %s813 = smul.u32 64, %s18
          %815 = vsyncadd %s806, 0
          %s816 = smul.addr %s813, 8
          %s817 = scalar_lea.hbm %s4, %s816
          %s818 = sshll.u32 %s809, 4
          %s819 = int_to_ptr.vmem [resolvable:$true] %s818
          %s820 = sshll.u32 %s817, 4
          %s821 = int_to_ptr.hbm [resolvable:$true] %s820
          %826 = dma.vmem_to_hbm [thread:$0]  %s819, 8192, %s821, %s806, 128, 128, 8
        $region40: #{bottleneck_forward.7} parent=35 // pred_fallthru
          _
      $region36: #{bottleneck_forward.7} parent=5 // pred_fallthru
        _
      %p827 = scmp.le.s32.totalorder 2, %s13
      // Predicated region
      $region41: #{bottleneck_forward.7} parent=5 // pred_check
        %p828 = pneg %p827
      $region42: #{bottleneck_forward.7} parent=5 // pred_check_branch
        %830 = sbr.rel (%p828) target = $region44
      $region43: #{bottleneck_forward.7} parent=5 // pred_region
        %s831 = ssub.s32 %s13, 2
        // Predicated region
        $region45: #{bottleneck_forward.7} parent=43 // pred_check
          %p832 = pneg %p136
        $region46: #{bottleneck_forward.7} parent=43 // pred_check_branch
          %834 = sbr.rel (%p832) target = $region48
        $region47: #{bottleneck_forward.7} parent=43 // pred_region
          %s835 = sand.u32 %s121, 1
          %s836 = scalar_lea.sflag [#allocation3], %s835
          %s837 = sand.u32 %s121, 1
          %s838 = smul.addr %s837, 512
          %s839 = scalar_lea.vmem [#allocation2], %s838
          %841 = dma.done %s836, 8192
        $region48: #{bottleneck_forward.7} parent=43 // pred_fallthru
          _
      $region44: #{bottleneck_forward.7} parent=5 // pred_fallthru
        _
    $region6: #{bottleneck_forward.7} parent=1 // loop_footer
      %s17 = sadd.s32 1, %s13
    $region7: #{bottleneck_forward.7} parent=1 // loop_footer_branch
      %12 = sbr.rel target = $region3
    $region8: #{bottleneck_forward.7} parent=1 // loop_exit
      _
    %842 = vsyncpa [#allocation3], 1
    %s843 = scalar_lea.sflag [#allocation3], 1
    %844 = vsyncpa %s843, 1

// kernel: bottleneck_forward.5
$region0: #{bottleneck_forward.5}
  #allocation0 [shape = 'u32[]', space=smem, size = 0x4, offset = 0x4, fixed_abs, tag = 'smem constant byte address 0x4 - core index']
  #allocation1 [shape = 'u32[72,128]{1,0:T(1,128)}', space=vmem, size = 0x9000, scoped, tag = 'internal scratch']
  %s0 = inlined_call_operand.vmem [shape: bf16[4,18,18,128], index: 0, kind: input, shape index: {}]
  %s1 = inlined_call_operand.vmem [shape: bf16[9,128,128], index: 1, kind: input, shape index: {}]
  %s2 = inlined_call_operand.vmem [shape: bf16[4,16,16,128], index: 2, kind: output, shape index: {0}]
  %s3 = inlined_call_operand.vmem [shape: f32[32,128], index: 3, kind: output, shape index: {1}]
  %s4 = inlined_call_operand.vmem [shape: f32[32,128], index: 4, kind: output, shape index: {2}]
  %5 = xla_tuple %s2, %s3, %s4
  %s6 = sld [smem:[#allocation0]]
  $region57: #{bottleneck_forward.5} parent=0
    _
  %s8 = ssub.s32 1, %s6
  %s9 = scalar_select 0, %s8, %s6
  loop: start=0, step=1, limit=6
  $region2: #{bottleneck_forward.5} parent=0 // loop_pre_header
    _
  $region3: #{bottleneck_forward.5} parent=0 // loop_header
    %s11 = sphi 0, %s15
    %p12 = scmp.ge.s32.totalorder %s11, 6
    %s21 = sphi 0, %s23
    %s24 = sphi 0, %s21
    %s25 = sphi 0, %s24
    %s41 = sphi 0, %s25
    %s45 = sphi 0, %s45
    %s47 = sphi 0, %s45
    %s48 = sphi 0, %s47
    %s62 = sphi 0, %s48
    %s68 = sphi 0, %s70
    %s71 = sphi 0, %s68
    %s72 = sphi 0, %s71
    %s88 = sphi 0, %s72
    %s94 = sphi 0, %s96
    %s97 = sphi 0, %s94
    %s98 = sphi 0, %s97
    %s114 = sphi 0, %s98
    %s120 = sphi 0, %s122
    %s123 = sphi 0, %s120
    %s124 = sphi 0, %s123
    %s140 = sphi 0, %s124
  $region4: #{bottleneck_forward.5} parent=0 // loop_header_branch
    %14 = sbr.rel (%p12) target = $region8
  $region5: #{bottleneck_forward.5} parent=0 // loop_body
    %s16 = ssub.s32 %s11, 1
    %s17 = ssub.s32 %s11, 2
    %s18 = sadd.s32 %s11, 1
    %s19 = ssub.s32 %s11, %s18
    %p20 = scmp.eq.s32.totalorder %s19, 0
    %s22 = sadd.s32 %s21, 1
    %s23 = scalar_select %p20, %s21, %s22
    %p26 = pneg %p20
    %p27 = scmp.eq.s32.totalorder %s11, 3
    %p28 = por %p26, %p27
    %p29 = scmp.ne.s32.totalorder %s21, %s24
    %p30 = scmp.eq.s32.totalorder %s11, 0
    %p31 = por %p29, %p30
    %p32 = scmp.ne.s32.totalorder %s21, %s24
    %p33 = scmp.eq.s32.totalorder %s16, 3
    %p34 = por %p32, %p33
    %p35 = scmp.ne.s32.totalorder %s24, %s25
    %p36 = scmp.eq.s32.totalorder %s16, 0
    %p37 = por %p35, %p36
    %p38 = scmp.ne.s32.totalorder %s24, %s25
    %p39 = scmp.eq.s32.totalorder %s17, 3
    %p40 = por %p38, %p39
    %p42 = scmp.ne.s32.totalorder %s25, %s41
    %p43 = scmp.eq.s32.totalorder %s17, 0
    %p44 = por %p42, %p43
    %s46 = sadd.s32 %s45, 1
    %p49 = scmp.eq.s32.totalorder %s11, 3
    %p50 = scmp.ne.s32.totalorder %s45, %s47
    %p51 = scmp.eq.s32.totalorder %s11, 0
    %p52 = por %p50, %p51
    %p53 = scmp.ne.s32.totalorder %s45, %s47
    %p54 = scmp.eq.s32.totalorder %s16, 3
    %p55 = por %p53, %p54
    %p56 = scmp.ne.s32.totalorder %s47, %s48
    %p57 = scmp.eq.s32.totalorder %s16, 0
    %p58 = por %p56, %p57
    %p59 = scmp.ne.s32.totalorder %s47, %s48
    %p60 = scmp.eq.s32.totalorder %s17, 3
    %p61 = por %p59, %p60
    %p63 = scmp.ne.s32.totalorder %s48, %s62
    %p64 = scmp.eq.s32.totalorder %s17, 0
    %p65 = por %p63, %p64
    %s66 = ssub.s32 %s11, %s18
    %p67 = scmp.eq.s32.totalorder %s66, 0
    %s69 = sadd.s32 %s68, 1
    %s70 = scalar_select %p67, %s68, %s69
    %p73 = pneg %p67
    %p74 = scmp.eq.s32.totalorder %s11, 3
    %p75 = por %p73, %p74
    %p76 = scmp.ne.s32.totalorder %s68, %s71
    %p77 = scmp.eq.s32.totalorder %s11, 0
    %p78 = por %p76, %p77
    %p79 = scmp.ne.s32.totalorder %s68, %s71
    %p80 = scmp.eq.s32.totalorder %s16, 3
    %p81 = por %p79, %p80
    %p82 = scmp.ne.s32.totalorder %s71, %s72
    %p83 = scmp.eq.s32.totalorder %s16, 0
    %p84 = por %p82, %p83
    %p85 = scmp.ne.s32.totalorder %s71, %s72
    %p86 = scmp.eq.s32.totalorder %s17, 3
    %p87 = por %p85, %p86
    %p89 = scmp.ne.s32.totalorder %s72, %s88
    %p90 = scmp.eq.s32.totalorder %s17, 0
    %p91 = por %p89, %p90
    %s92 = ssub.s32 %s11, %s18
    %p93 = scmp.eq.s32.totalorder %s92, 0
    %s95 = sadd.s32 %s94, 1
    %s96 = scalar_select %p93, %s94, %s95
    %p99 = pneg %p93
    %p100 = scmp.eq.s32.totalorder %s11, 3
    %p101 = por %p99, %p100
    %p102 = scmp.ne.s32.totalorder %s94, %s97
    %p103 = scmp.eq.s32.totalorder %s11, 0
    %p104 = por %p102, %p103
    %p105 = scmp.ne.s32.totalorder %s94, %s97
    %p106 = scmp.eq.s32.totalorder %s16, 3
    %p107 = por %p105, %p106
    %p108 = scmp.ne.s32.totalorder %s97, %s98
    %p109 = scmp.eq.s32.totalorder %s16, 0
    %p110 = por %p108, %p109
    %p111 = scmp.ne.s32.totalorder %s97, %s98
    %p112 = scmp.eq.s32.totalorder %s17, 3
    %p113 = por %p111, %p112
    %p115 = scmp.ne.s32.totalorder %s98, %s114
    %p116 = scmp.eq.s32.totalorder %s17, 0
    %p117 = por %p115, %p116
    %s118 = ssub.s32 %s11, %s18
    %p119 = scmp.eq.s32.totalorder %s118, 0
    %s121 = sadd.s32 %s120, 1
    %s122 = scalar_select %p119, %s120, %s121
    %p125 = pneg %p119
    %p126 = scmp.eq.s32.totalorder %s11, 3
    %p127 = por %p125, %p126
    %p128 = scmp.ne.s32.totalorder %s120, %s123
    %p129 = scmp.eq.s32.totalorder %s11, 0
    %p130 = por %p128, %p129
    %p131 = scmp.ne.s32.totalorder %s120, %s123
    %p132 = scmp.eq.s32.totalorder %s16, 3
    %p133 = por %p131, %p132
    %p134 = scmp.ne.s32.totalorder %s123, %s124
    %p135 = scmp.eq.s32.totalorder %s16, 0
    %p136 = por %p134, %p135
    %p137 = scmp.ne.s32.totalorder %s123, %s124
    %p138 = scmp.eq.s32.totalorder %s17, 3
    %p139 = por %p137, %p138
    %p141 = scmp.ne.s32.totalorder %s124, %s140
    %p142 = scmp.eq.s32.totalorder %s17, 0
    %p143 = por %p141, %p142
    %p144 = scmp.le.s32.totalorder 1, %s11
    %p145 = scmp.lt.s32.totalorder %s11, 5
    %p146 = pnand %p144, %p145
    %p147 = pneg %p146
    // Predicated region
    $region9: #{bottleneck_forward.5} parent=5 // pred_check
      _
    $region10: #{bottleneck_forward.5} parent=5 // pred_check_branch
      %149 = sbr.rel (%p146) target = $region12
    $region11: #{bottleneck_forward.5} parent=5 // pred_region
      %s150 = ssub.s32 %s11, 1
      // Predicated region
      $region13: #{bottleneck_forward.5} parent=11 // pred_check
        %p151 = pneg %p58
      $region14: #{bottleneck_forward.5} parent=11 // pred_check_branch
        %153 = sbr.rel (%p151) target = $region16
      $region15: #{bottleneck_forward.5} parent=11 // pred_region
        _
      $region16: #{bottleneck_forward.5} parent=11 // pred_fallthru
        _
    $region12: #{bottleneck_forward.5} parent=5 // pred_fallthru
      _
    %p154 = scmp.lt.s32.totalorder %s11, 4
    // Predicated region
    $region17: #{bottleneck_forward.5} parent=5 // pred_check
      %p155 = pneg %p154
    $region18: #{bottleneck_forward.5} parent=5 // pred_check_branch
      %157 = sbr.rel (%p155) target = $region20
    $region19: #{bottleneck_forward.5} parent=5 // pred_region
      // Predicated region
      $region21: #{bottleneck_forward.5} parent=19 // pred_check
        %p158 = pneg %p31
      $region22: #{bottleneck_forward.5} parent=19 // pred_check_branch
        %160 = sbr.rel (%p158) target = $region24
      $region23: #{bottleneck_forward.5} parent=19 // pred_region
        %p161 = scmp.lt.s32.totalorder %s11, 3
        %s162 = scalar_select %p161, %s11, 3
        %s163 = smul.addr %s162, 54
        %s164 = smul.addr %s163, 4
        %s165 = scalar_lea.vmem %s0, %s164
      $region24: #{bottleneck_forward.5} parent=19 // pred_fallthru
        _
    $region20: #{bottleneck_forward.5} parent=5 // pred_fallthru
      _
    %p166 = scmp.le.s32.totalorder 1, %s11
    %p167 = scmp.lt.s32.totalorder %s11, 5
    %p168 = pnand %p166, %p167
    %p169 = pneg %p168
    // Predicated region
    $region25: #{bottleneck_forward.5} parent=5 // pred_check
      _
    $region26: #{bottleneck_forward.5} parent=5 // pred_check_branch
      %171 = sbr.rel (%p168) target = $region28
    $region27: #{bottleneck_forward.5} parent=5 // pred_region
      %s172 = ssub.s32 %s11, 1
      %p173 = scmp.lt.s32.totalorder %s16, 3
      %s174 = scalar_select %p173, %s16, 3
      %s175 = smul.addr %s174, 54
      %s176 = smul.addr %s175, 4
      %s177 = scalar_lea.vmem %s0, %s176
      %p178 = pneg %p37
      %p179 = pneg %p34
      %p180 = pneg %p58
      %p181 = pneg %p55
      %p182 = pneg %p84
      %p183 = pneg %p81
      %p184 = scmp.lt.s32.totalorder %s16, 3
      %s185 = scalar_select %p184, %s16, 3
      %s186 = smul.addr %s185, 32
      %s187 = smul.addr %s186, 4
      %s188 = scalar_lea.vmem %s2, %s187
      %p189 = pneg %p110
      %p190 = pneg %p107
      %p191 = scmp.lt.s32.totalorder %s16, 3
      %s192 = scalar_select %p191, %s16, 3
      %s193 = smul.addr %s192, 8
      %s194 = scalar_lea.vmem %s3, %s193
      %p195 = pneg %p136
      %p196 = pneg %p133
      %p197 = scmp.lt.s32.totalorder %s16, 3
      %s198 = scalar_select %p197, %s16, 3
      %s199 = smul.addr %s198, 8
      %s200 = scalar_lea.vmem %s4, %s199
      %p201 = scmp.lt.s32.totalorder %s16, 3
      %s202 = scalar_select %p201, %s16, 3
      %s203 = smul.addr %s202, 54
      %s204 = smul.addr %s203, 4
      %s205 = scalar_lea.vmem %s0, %s204
      %p206 = scmp.lt.s32.totalorder %s16, 3
      %s207 = scalar_select %p206, %s16, 3
      %s208 = smul.addr %s207, 32
      %s209 = smul.addr %s208, 4
      %s210 = scalar_lea.vmem %s2, %s209
      %p211 = scmp.lt.s32.totalorder %s16, 3
      %s212 = scalar_select %p211, %s16, 3
      %s213 = smul.addr %s212, 8
      %s214 = scalar_lea.vmem %s3, %s213
      %p215 = scmp.lt.s32.totalorder %s16, 3
      %s216 = scalar_select %p215, %s16, 3
      %s217 = smul.addr %s216, 8
      %s218 = scalar_lea.vmem %s4, %s217
      %v219 = vld [vmem:[%s205] sm:$0xf]
      %v220 = vld [vmem:[%s205 + $0x4] sm:$0xf]
      %v221 = vld [vmem:[%s205 + $0xc] sm:$0xf]
      %v222 = vld [vmem:[%s205 + $0x10] sm:$0xf]
      %v223 = vld [vmem:[%s205 + $0x18] sm:$0xf]
      %v224 = vld [vmem:[%s205 + $0x1c] sm:$0xf]
      %v225 = vld [vmem:[%s205 + $0x24] sm:$0xf]
      %v226 = vld [vmem:[%s205 + $0x28] sm:$0xf]
      %v227 = vld [vmem:[%s205 + $0x30] sm:$0xf]
      %v228 = vld [vmem:[%s205 + $0x34] sm:$0xf]
      %v229 = vld [vmem:[%s205 + $0x3c] sm:$0xf]
      %v230 = vld [vmem:[%s205 + $0x40] sm:$0xf]
      %v231 = vld [vmem:[%s205 + $0x48] sm:$0xf]
      %v232 = vld [vmem:[%s205 + $0x4c] sm:$0xf]
      %v233 = vld [vmem:[%s205 + $0x54] sm:$0xf]
      %v234 = vld [vmem:[%s205 + $0x58] sm:$0xf]
      %v235 = vld [vmem:[%s205 + $0x60] sm:$0xf]
      %v236 = vld [vmem:[%s205 + $0x64] sm:$0xf]
      %v237 = vld [vmem:[%s205 + $0x6c] sm:$0xf]
      %v238 = vld [vmem:[%s205 + $0x70] sm:$0xf]
      %v239 = vld [vmem:[%s205 + $0x78] sm:$0xf]
      %v240 = vld [vmem:[%s205 + $0x7c] sm:$0xf]
      %v241 = vld [vmem:[%s205 + $0x84] sm:$0xf]
      %v242 = vld [vmem:[%s205 + $0x88] sm:$0xf]
      %v243 = vld [vmem:[%s205 + $0x90] sm:$0xf]
      %v244 = vld [vmem:[%s205 + $0x94] sm:$0xf]
      %v245 = vld [vmem:[%s205 + $0x9c] sm:$0xf]
      %v246 = vld [vmem:[%s205 + $0xa0] sm:$0xf]
      %v247 = vld [vmem:[%s205 + $0xa8] sm:$0xf]
      %v248 = vld [vmem:[%s205 + $0xac] sm:$0xf]
      %v249 = vld [vmem:[%s205 + $0xb4] sm:$0xf]
      %v250 = vld [vmem:[%s205 + $0xb8] sm:$0xf]
      %v251 = vld [vmem:[%s1] sm:$0xf]
      %v252 = vld [vmem:[%s1 + $0x4] sm:$0xf]
      %v253 = vld [vmem:[%s1 + $0x8] sm:$0xf]
      %v254 = vld [vmem:[%s1 + $0xc] sm:$0xf]
      %v255 = vld [vmem:[%s1 + $0x10] sm:$0xf]
      %v256 = vld [vmem:[%s1 + $0x14] sm:$0xf]
      %v257 = vld [vmem:[%s1 + $0x18] sm:$0xf]
      %v258 = vld [vmem:[%s1 + $0x1c] sm:$0xf]
      %v259 = vld [vmem:[%s1 + $0x20] sm:$0xf]
      %v260 = vld [vmem:[%s1 + $0x24] sm:$0xf]
      %v261 = vld [vmem:[%s1 + $0x28] sm:$0xf]
      %v262 = vld [vmem:[%s1 + $0x2c] sm:$0xf]
      %v263 = vld [vmem:[%s1 + $0x30] sm:$0xf]
      %v264 = vld [vmem:[%s1 + $0x34] sm:$0xf]
      %v265 = vld [vmem:[%s1 + $0x38] sm:$0xf]
      %v266 = vld [vmem:[%s1 + $0x3c] sm:$0xf]
      %v267 = vld [vmem:[%s205 + $0x8] sm:$0x1]
      %v268 = vld [vmem:[%s205 + $0x14] sm:$0x1]
      %v269 = vld [vmem:[%s205 + $0x20] sm:$0x1]
      %v270 = vld [vmem:[%s205 + $0x2c] sm:$0x1]
      %v271 = vld [vmem:[%s205 + $0x38] sm:$0x1]
      %v272 = vld [vmem:[%s205 + $0x44] sm:$0x1]
      %v273 = vld [vmem:[%s205 + $0x50] sm:$0x1]
      %v274 = vld [vmem:[%s205 + $0x5c] sm:$0x1]
      %v275 = vld [vmem:[%s205 + $0x68] sm:$0x1]
      %v276 = vld [vmem:[%s205 + $0x74] sm:$0x1]
      %v277 = vld [vmem:[%s205 + $0x80] sm:$0x1]
      %v278 = vld [vmem:[%s205 + $0x8c] sm:$0x1]
      %v279 = vld [vmem:[%s205 + $0x98] sm:$0x1]
      %v280 = vld [vmem:[%s205 + $0xa4] sm:$0x1]
      %v281 = vld [vmem:[%s205 + $0xb0] sm:$0x1]
      %v282 = vld [vmem:[%s205 + $0xbc] sm:$0x1]
      %vm283 = vsmask.f32 3328
      %vm284 = vsmask.f32 7440
      %vm285 = vmor %vm283, %vm284
      %v287 = vshrl.u32 %v219, 16
      %v289 = vrot.slane %v287, 4
      %v290 = vshll.u32 %v219, 16
      %v292 = vrot.slane %v290, 5
      %v293 = vor.u32 %v289, %v292
      %v294 = vrot.slane %v293, 4
      %v296 = vshll.u32 %v220, 16
      %v298 = vrot.slane %v296, 5
      %v299 = vsel %vm285, %v294, %v298
      %v300 = vshrl.u32 %v220, 16
      %v302 = vrot.slane %v300, 4
      %v303 = vor.u32 %v302, %v298
      %v304 = vrot.slane %v303, 4
      %v306 = vshll.u32 %v267, 16
      %v308 = vrot.slane %v306, 5
      %v309 = vsel %vm285, %v304, %v308
      %v311 = vshrl.u32 %v221, 16
      %v313 = vrot.slane %v311, 4
      %v314 = vshll.u32 %v221, 16
      %v316 = vrot.slane %v314, 5
      %v317 = vor.u32 %v313, %v316
      %v318 = vrot.slane %v317, 4
      %v320 = vshll.u32 %v222, 16
      %v322 = vrot.slane %v320, 5
      %v323 = vsel %vm285, %v318, %v322
      %v324 = vshrl.u32 %v222, 16
      %v326 = vrot.slane %v324, 4
      %v327 = vor.u32 %v326, %v322
      %v328 = vrot.slane %v327, 4
      %v330 = vshll.u32 %v268, 16
      %v332 = vrot.slane %v330, 5
      %v333 = vsel %vm285, %v328, %v332
      %v335 = vshrl.u32 %v223, 16
      %v337 = vrot.slane %v335, 4
      %v338 = vshll.u32 %v223, 16
      %v340 = vrot.slane %v338, 5
      %v341 = vor.u32 %v337, %v340
      %v342 = vrot.slane %v341, 4
      %v344 = vshll.u32 %v224, 16
      %v346 = vrot.slane %v344, 5
      %v347 = vsel %vm285, %v342, %v346
      %v348 = vshrl.u32 %v224, 16
      %v350 = vrot.slane %v348, 4
      %v351 = vor.u32 %v350, %v346
      %v352 = vrot.slane %v351, 4
      %v354 = vshll.u32 %v269, 16
      %v356 = vrot.slane %v354, 5
      %v357 = vsel %vm285, %v352, %v356
      %v359 = vshrl.u32 %v225, 16
      %v361 = vrot.slane %v359, 4
      %v362 = vshll.u32 %v225, 16
      %v364 = vrot.slane %v362, 5
      %v365 = vor.u32 %v361, %v364
      %v366 = vrot.slane %v365, 4
      %v368 = vshll.u32 %v226, 16
      %v370 = vrot.slane %v368, 5
      %v371 = vsel %vm285, %v366, %v370
      %v372 = vshrl.u32 %v226, 16
      %v374 = vrot.slane %v372, 4
      %v375 = vor.u32 %v374, %v370
      %v376 = vrot.slane %v375, 4
      %v378 = vshll.u32 %v270, 16
      %v380 = vrot.slane %v378, 5
      %v381 = vsel %vm285, %v376, %v380
      %v383 = vshrl.u32 %v227, 16
      %v385 = vrot.slane %v383, 4
      %v386 = vshll.u32 %v227, 16
      %v388 = vrot.slane %v386, 5
      %v389 = vor.u32 %v385, %v388
      %v390 = vrot.slane %v389, 4
      %v392 = vshll.u32 %v228, 16
      %v394 = vrot.slane %v392, 5
      %v395 = vsel %vm285, %v390, %v394
      %v396 = vshrl.u32 %v228, 16
      %v398 = vrot.slane %v396, 4
      %v399 = vor.u32 %v398, %v394
      %v400 = vrot.slane %v399, 4
      %v402 = vshll.u32 %v271, 16
      %v404 = vrot.slane %v402, 5
      %v405 = vsel %vm285, %v400, %v404
      %v407 = vshrl.u32 %v229, 16
      %v409 = vrot.slane %v407, 4
      %v410 = vshll.u32 %v229, 16
      %v412 = vrot.slane %v410, 5
      %v413 = vor.u32 %v409, %v412
      %v414 = vrot.slane %v413, 4
      %v416 = vshll.u32 %v230, 16
      %v418 = vrot.slane %v416, 5
      %v419 = vsel %vm285, %v414, %v418
      %v420 = vshrl.u32 %v230, 16
      %v422 = vrot.slane %v420, 4
      %v423 = vor.u32 %v422, %v418
      %v424 = vrot.slane %v423, 4
      %v426 = vshll.u32 %v272, 16
      %v428 = vrot.slane %v426, 5
      %v429 = vsel %vm285, %v424, %v428
      %v431 = vshrl.u32 %v231, 16
      %v433 = vrot.slane %v431, 4
      %v434 = vshll.u32 %v231, 16
      %v436 = vrot.slane %v434, 5
      %v437 = vor.u32 %v433, %v436
      %v438 = vrot.slane %v437, 4
      %v440 = vshll.u32 %v232, 16
      %v442 = vrot.slane %v440, 5
      %v443 = vsel %vm285, %v438, %v442
      %v444 = vshrl.u32 %v232, 16
      %v446 = vrot.slane %v444, 4
      %v447 = vor.u32 %v446, %v442
      %v448 = vrot.slane %v447, 4
      %v450 = vshll.u32 %v273, 16
      %v452 = vrot.slane %v450, 5
      %v453 = vsel %vm285, %v448, %v452
      %v455 = vshrl.u32 %v233, 16
      %v457 = vrot.slane %v455, 4
      %v458 = vshll.u32 %v233, 16
      %v460 = vrot.slane %v458, 5
      %v461 = vor.u32 %v457, %v460
      %v462 = vrot.slane %v461, 4
      %v464 = vshll.u32 %v234, 16
      %v466 = vrot.slane %v464, 5
      %v467 = vsel %vm285, %v462, %v466
      %v468 = vshrl.u32 %v234, 16
      %v470 = vrot.slane %v468, 4
      %v471 = vor.u32 %v470, %v466
      %v472 = vrot.slane %v471, 4
      %v474 = vshll.u32 %v274, 16
      %v476 = vrot.slane %v474, 5
      %v477 = vsel %vm285, %v472, %v476
      %v479 = vshrl.u32 %v235, 16
      %v481 = vrot.slane %v479, 4
      %v482 = vshll.u32 %v235, 16
      %v484 = vrot.slane %v482, 5
      %v485 = vor.u32 %v481, %v484
      %v486 = vrot.slane %v485, 4
      %v488 = vshll.u32 %v236, 16
      %v490 = vrot.slane %v488, 5
      %v491 = vsel %vm285, %v486, %v490
      %v492 = vshrl.u32 %v236, 16
      %v494 = vrot.slane %v492, 4
      %v495 = vor.u32 %v494, %v490
      %v496 = vrot.slane %v495, 4
      %v498 = vshll.u32 %v275, 16
      %v500 = vrot.slane %v498, 5
      %v501 = vsel %vm285, %v496, %v500
      %v503 = vshrl.u32 %v237, 16
      %v505 = vrot.slane %v503, 4
      %v506 = vshll.u32 %v237, 16
      %v508 = vrot.slane %v506, 5
      %v509 = vor.u32 %v505, %v508
      %v510 = vrot.slane %v509, 4
      %v512 = vshll.u32 %v238, 16
      %v514 = vrot.slane %v512, 5
      %v515 = vsel %vm285, %v510, %v514
      %v516 = vshrl.u32 %v238, 16
      %v518 = vrot.slane %v516, 4
      %v519 = vor.u32 %v518, %v514
      %v520 = vrot.slane %v519, 4
      %v522 = vshll.u32 %v276, 16
      %v524 = vrot.slane %v522, 5
      %v525 = vsel %vm285, %v520, %v524
      %v527 = vshrl.u32 %v239, 16
      %v529 = vrot.slane %v527, 4
      %v530 = vshll.u32 %v239, 16
      %v532 = vrot.slane %v530, 5
      %v533 = vor.u32 %v529, %v532
      %v534 = vrot.slane %v533, 4
      %v536 = vshll.u32 %v240, 16
      %v538 = vrot.slane %v536, 5
      %v539 = vsel %vm285, %v534, %v538
      %v540 = vshrl.u32 %v240, 16
      %v542 = vrot.slane %v540, 4
      %v543 = vor.u32 %v542, %v538
      %v544 = vrot.slane %v543, 4
      %v546 = vshll.u32 %v277, 16
      %v548 = vrot.slane %v546, 5
      %v549 = vsel %vm285, %v544, %v548
      %v551 = vshrl.u32 %v241, 16
      %v553 = vrot.slane %v551, 4
      %v554 = vshll.u32 %v241, 16
      %v556 = vrot.slane %v554, 5
      %v557 = vor.u32 %v553, %v556
      %v558 = vrot.slane %v557, 4
      %v560 = vshll.u32 %v242, 16
      %v562 = vrot.slane %v560, 5
      %v563 = vsel %vm285, %v558, %v562
      %v564 = vshrl.u32 %v242, 16
      %v566 = vrot.slane %v564, 4
      %v567 = vor.u32 %v566, %v562
      %v568 = vrot.slane %v567, 4
      %v570 = vshll.u32 %v278, 16
      %v572 = vrot.slane %v570, 5
      %v573 = vsel %vm285, %v568, %v572
      %v575 = vshrl.u32 %v243, 16
      %v577 = vrot.slane %v575, 4
      %v578 = vshll.u32 %v243, 16
      %v580 = vrot.slane %v578, 5
      %v581 = vor.u32 %v577, %v580
      %v582 = vrot.slane %v581, 4
      %v584 = vshll.u32 %v244, 16
      %v586 = vrot.slane %v584, 5
      %v587 = vsel %vm285, %v582, %v586
      %v588 = vshrl.u32 %v244, 16
      %v590 = vrot.slane %v588, 4
      %v591 = vor.u32 %v590, %v586
      %v592 = vrot.slane %v591, 4
      %v594 = vshll.u32 %v279, 16
      %v596 = vrot.slane %v594, 5
      %v597 = vsel %vm285, %v592, %v596
      %v599 = vshrl.u32 %v245, 16
      %v601 = vrot.slane %v599, 4
      %v602 = vshll.u32 %v245, 16
      %v604 = vrot.slane %v602, 5
      %v605 = vor.u32 %v601, %v604
      %v606 = vrot.slane %v605, 4
      %v608 = vshll.u32 %v246, 16
      %v610 = vrot.slane %v608, 5
      %v611 = vsel %vm285, %v606, %v610
      %v612 = vshrl.u32 %v246, 16
      %v614 = vrot.slane %v612, 4
      %v615 = vor.u32 %v614, %v610
      %v616 = vrot.slane %v615, 4
      %v618 = vshll.u32 %v280, 16
      %v620 = vrot.slane %v618, 5
      %v621 = vsel %vm285, %v616, %v620
      %v623 = vshrl.u32 %v247, 16
      %v625 = vrot.slane %v623, 4
      %v626 = vshll.u32 %v247, 16
      %v628 = vrot.slane %v626, 5
      %v629 = vor.u32 %v625, %v628
      %v630 = vrot.slane %v629, 4
      %v632 = vshll.u32 %v248, 16
      %v634 = vrot.slane %v632, 5
      %v635 = vsel %vm285, %v630, %v634
      %v636 = vshrl.u32 %v248, 16
      %v638 = vrot.slane %v636, 4
      %v639 = vor.u32 %v638, %v634
      %v640 = vrot.slane %v639, 4
      %v642 = vshll.u32 %v281, 16
      %v644 = vrot.slane %v642, 5
      %v645 = vsel %vm285, %v640, %v644
      %v647 = vshrl.u32 %v249, 16
      %v649 = vrot.slane %v647, 4
      %v650 = vshll.u32 %v249, 16
      %v652 = vrot.slane %v650, 5
      %v653 = vor.u32 %v649, %v652
      %v654 = vrot.slane %v653, 4
      %v656 = vshll.u32 %v250, 16
      %v658 = vrot.slane %v656, 5
      %v659 = vsel %vm285, %v654, %v658
      %v660 = vshrl.u32 %v250, 16
      %v662 = vrot.slane %v660, 4
      %v663 = vor.u32 %v662, %v658
      %v664 = vrot.slane %v663, 4
      %v666 = vshll.u32 %v282, 16
      %v668 = vrot.slane %v666, 5
      %v669 = vsel %vm285, %v664, %v668
      %s670 = scalar_lea.vmem %s1, 64
      %v671 = vld [vmem:[%s670] sm:$0xf]
      %v672 = vld [vmem:[%s670 + $0x4] sm:$0xf]
      %v673 = vld [vmem:[%s670 + $0x8] sm:$0xf]
      %v674 = vld [vmem:[%s670 + $0xc] sm:$0xf]
      %v675 = vld [vmem:[%s670 + $0x10] sm:$0xf]
      %v676 = vld [vmem:[%s670 + $0x14] sm:$0xf]
      %v677 = vld [vmem:[%s670 + $0x18] sm:$0xf]
      %v678 = vld [vmem:[%s670 + $0x1c] sm:$0xf]
      %v679 = vld [vmem:[%s670 + $0x20] sm:$0xf]
      %v680 = vld [vmem:[%s670 + $0x24] sm:$0xf]
      %v681 = vld [vmem:[%s670 + $0x28] sm:$0xf]
      %v682 = vld [vmem:[%s670 + $0x2c] sm:$0xf]
      %v683 = vld [vmem:[%s670 + $0x30] sm:$0xf]
      %v684 = vld [vmem:[%s670 + $0x34] sm:$0xf]
      %v685 = vld [vmem:[%s670 + $0x38] sm:$0xf]
      %v686 = vld [vmem:[%s670 + $0x3c] sm:$0xf]
      %v687 = vunpack.c.l.b16 %v299
      %v688 = vunpack.c.l.b16 %v309
      %v689 = vunpack.c.l.b16 %v323
      %v690 = vunpack.c.l.b16 %v333
      %v691 = vunpack.c.l.b16 %v347
      %v692 = vunpack.c.l.b16 %v357
      %v693 = vunpack.c.l.b16 %v371
      %v694 = vunpack.c.l.b16 %v381
      %v695 = vunpack.c.l.b16 %v395
      %v696 = vunpack.c.l.b16 %v405
      %v697 = vunpack.c.l.b16 %v419
      %v698 = vunpack.c.l.b16 %v429
      %v699 = vunpack.c.l.b16 %v443
      %v700 = vunpack.c.l.b16 %v453
      %v701 = vunpack.c.l.b16 %v467
      %v702 = vunpack.c.l.b16 %v477
      %v703 = vunpack.c.l.b16 %v491
      %v704 = vunpack.c.l.b16 %v501
      %v705 = vunpack.c.l.b16 %v515
      %v706 = vunpack.c.l.b16 %v525
      %v707 = vunpack.c.l.b16 %v539
      %v708 = vunpack.c.l.b16 %v549
      %v709 = vunpack.c.l.b16 %v563
      %v710 = vunpack.c.l.b16 %v573
      %v711 = vunpack.c.l.b16 %v587
      %v712 = vunpack.c.l.b16 %v597
      %v713 = vunpack.c.l.b16 %v611
      %v714 = vunpack.c.l.b16 %v621
      %v715 = vunpack.c.l.b16 %v635
      %v716 = vunpack.c.l.b16 %v645
      %v717 = vunpack.c.l.b16 %v659
      %v718 = vunpack.c.l.b16 %v669
      %v719 = vpack.c.b16 %v688, %v687
      %v720 = vpack.c.b16 %v690, %v689
      %v721 = vpack.c.b16 %v692, %v691
      %v722 = vpack.c.b16 %v694, %v693
      %v723 = vpack.c.b16 %v696, %v695
      %v724 = vpack.c.b16 %v698, %v697
      %v725 = vpack.c.b16 %v700, %v699
      %v726 = vpack.c.b16 %v702, %v701
      %v727 = vpack.c.b16 %v704, %v703
      %v728 = vpack.c.b16 %v706, %v705
      %v729 = vpack.c.b16 %v708, %v707
      %v730 = vpack.c.b16 %v710, %v709
      %v731 = vpack.c.b16 %v712, %v711
      %v732 = vpack.c.b16 %v714, %v713
      %v733 = vpack.c.b16 %v716, %v715
      %v734 = vpack.c.b16 %v718, %v717
      %v767 = vunpack.c.l.b16 %v671
      %v768 = vunpack.c.l.b16 %v672
      %v769 = vunpack.c.l.b16 %v673
      %v770 = vunpack.c.l.b16 %v674
      %v771 = vunpack.c.l.b16 %v675
      %v772 = vunpack.c.l.b16 %v676
      %v773 = vunpack.c.l.b16 %v677
      %v774 = vunpack.c.l.b16 %v678
      %v775 = vunpack.c.l.b16 %v679
      %v776 = vunpack.c.l.b16 %v680
      %v777 = vunpack.c.l.b16 %v681
      %v778 = vunpack.c.l.b16 %v682
      %v779 = vunpack.c.l.b16 %v683
      %v780 = vunpack.c.l.b16 %v684
      %v781 = vunpack.c.l.b16 %v685
      %v782 = vunpack.c.l.b16 %v686
      %v783 = vpack.c.b16 %v768, %v767
      %v784 = vpack.c.b16 %v770, %v769
      %v785 = vpack.c.b16 %v772, %v771
      %v786 = vpack.c.b16 %v774, %v773
      %v787 = vpack.c.b16 %v776, %v775
      %v788 = vpack.c.b16 %v778, %v777
      %v789 = vpack.c.b16 %v780, %v779
      %v790 = vpack.c.b16 %v782, %v781
      %799 = vmatpush.bf16.msra.mxu0 %v790
      %800 = vmatpush.bf16.msra.mxu0 %v789
      %801 = vmatpush.bf16.msra.mxu0 %v788
      %802 = vmatpush.bf16.msra.mxu0 %v787
      %803 = vmatpush.bf16.msra.mxu0 %v786
      %804 = vmatpush.bf16.msra.mxu0 %v785
      %805 = vmatpush.bf16.msra.mxu0 %v784
      %806 = vmatpush.bf16.msra.mxu0 %v783
      %807 = vmatmul.bf16.gmra.mxu0 %v719
      %v808 = vpop.f32.mrf.mxu0
      %v809 = vadd.f32 0.0, %v808
      %v810 = vpop.f32.mrf.mxu0
      %v811 = vadd.f32 0.0, %v810
      %812 = vmatmul.bf16.gmra.mxu0 %v720
      %v813 = vpop.f32.mrf.mxu0
      %v814 = vadd.f32 0.0, %v813
      %v815 = vpop.f32.mrf.mxu0
      %v816 = vadd.f32 0.0, %v815
      %817 = vmatmul.bf16.gmra.mxu0 %v721
      %v818 = vpop.f32.mrf.mxu0
      %v819 = vadd.f32 0.0, %v818
      %v820 = vpop.f32.mrf.mxu0
      %v821 = vadd.f32 0.0, %v820
      %822 = vmatmul.bf16.gmra.mxu0 %v722
      %v823 = vpop.f32.mrf.mxu0
      %v824 = vadd.f32 0.0, %v823
      %v825 = vpop.f32.mrf.mxu0
      %v826 = vadd.f32 0.0, %v825
      %827 = vmatmul.bf16.gmra.mxu0 %v723
      %v828 = vpop.f32.mrf.mxu0
      %v829 = vadd.f32 0.0, %v828
      %v830 = vpop.f32.mrf.mxu0
      %v831 = vadd.f32 0.0, %v830
      %832 = vmatmul.bf16.gmra.mxu0 %v724
      %v833 = vpop.f32.mrf.mxu0
      %v834 = vadd.f32 0.0, %v833
      %v835 = vpop.f32.mrf.mxu0
      %v836 = vadd.f32 0.0, %v835
      %837 = vmatmul.bf16.gmra.mxu0 %v725
      %v838 = vpop.f32.mrf.mxu0
      %v839 = vadd.f32 0.0, %v838
      %v840 = vpop.f32.mrf.mxu0
      %v841 = vadd.f32 0.0, %v840
      %842 = vmatmul.bf16.gmra.mxu0 %v726
      %v843 = vpop.f32.mrf.mxu0
      %v844 = vadd.f32 0.0, %v843
      %v845 = vpop.f32.mrf.mxu0
      %v846 = vadd.f32 0.0, %v845
      %847 = vmatmul.bf16.gmra.mxu0 %v727
      %v848 = vpop.f32.mrf.mxu0
      %v849 = vadd.f32 0.0, %v848
      %v850 = vpop.f32.mrf.mxu0
      %v851 = vadd.f32 0.0, %v850
      %852 = vmatmul.bf16.gmra.mxu0 %v728
      %v853 = vpop.f32.mrf.mxu0
      %v854 = vadd.f32 0.0, %v853
      %v855 = vpop.f32.mrf.mxu0
      %v856 = vadd.f32 0.0, %v855
      %857 = vmatmul.bf16.gmra.mxu0 %v729
      %v858 = vpop.f32.mrf.mxu0
      %v859 = vadd.f32 0.0, %v858
      %v860 = vpop.f32.mrf.mxu0
      %v861 = vadd.f32 0.0, %v860
      %862 = vmatmul.bf16.gmra.mxu0 %v730
      %v863 = vpop.f32.mrf.mxu0
      %v864 = vadd.f32 0.0, %v863
      %v865 = vpop.f32.mrf.mxu0
      %v866 = vadd.f32 0.0, %v865
      %867 = vmatmul.bf16.gmra.mxu0 %v731
      %v868 = vpop.f32.mrf.mxu0
      %v869 = vadd.f32 0.0, %v868
      %v870 = vpop.f32.mrf.mxu0
      %v871 = vadd.f32 0.0, %v870
      %872 = vmatmul.bf16.gmra.mxu0 %v732
      %v873 = vpop.f32.mrf.mxu0
      %v874 = vadd.f32 0.0, %v873
      %v875 = vpop.f32.mrf.mxu0
      %v876 = vadd.f32 0.0, %v875
      %877 = vmatmul.bf16.gmra.mxu0 %v733
      %v878 = vpop.f32.mrf.mxu0
      %v879 = vadd.f32 0.0, %v878
      %v880 = vpop.f32.mrf.mxu0
      %v881 = vadd.f32 0.0, %v880
      %882 = vmatmul.bf16.gmra.mxu0 %v734
      %v883 = vpop.f32.mrf.mxu0
      %v884 = vadd.f32 0.0, %v883
      %v885 = vpop.f32.mrf.mxu0
      %v886 = vadd.f32 0.0, %v885
      %887 = vdwg.mxu0
      %v920 = vunpack.c.l.b16 %v219
      %v921 = vunpack.c.l.b16 %v220
      %v922 = vunpack.c.l.b16 %v221
      %v923 = vunpack.c.l.b16 %v222
      %v924 = vunpack.c.l.b16 %v223
      %v925 = vunpack.c.l.b16 %v224
      %v926 = vunpack.c.l.b16 %v225
      %v927 = vunpack.c.l.b16 %v226
      %v928 = vunpack.c.l.b16 %v227
      %v929 = vunpack.c.l.b16 %v228
      %v930 = vunpack.c.l.b16 %v229
      %v931 = vunpack.c.l.b16 %v230
      %v932 = vunpack.c.l.b16 %v231
      %v933 = vunpack.c.l.b16 %v232
      %v934 = vunpack.c.l.b16 %v233
      %v935 = vunpack.c.l.b16 %v234
      %v936 = vunpack.c.l.b16 %v235
      %v937 = vunpack.c.l.b16 %v236
      %v938 = vunpack.c.l.b16 %v237
      %v939 = vunpack.c.l.b16 %v238
      %v940 = vunpack.c.l.b16 %v239
      %v941 = vunpack.c.l.b16 %v240
      %v942 = vunpack.c.l.b16 %v241
      %v943 = vunpack.c.l.b16 %v242
      %v944 = vunpack.c.l.b16 %v243
      %v945 = vunpack.c.l.b16 %v244
      %v946 = vunpack.c.l.b16 %v245
      %v947 = vunpack.c.l.b16 %v246
      %v948 = vunpack.c.l.b16 %v247
      %v949 = vunpack.c.l.b16 %v248
      %v950 = vunpack.c.l.b16 %v249
      %v951 = vunpack.c.l.b16 %v250
      %v952 = vpack.c.b16 %v921, %v920
      %v953 = vpack.c.b16 %v923, %v922
      %v954 = vpack.c.b16 %v925, %v924
      %v955 = vpack.c.b16 %v927, %v926
      %v956 = vpack.c.b16 %v929, %v928
      %v957 = vpack.c.b16 %v931, %v930
      %v958 = vpack.c.b16 %v933, %v932
      %v959 = vpack.c.b16 %v935, %v934
      %v960 = vpack.c.b16 %v937, %v936
      %v961 = vpack.c.b16 %v939, %v938
      %v962 = vpack.c.b16 %v941, %v940
      %v963 = vpack.c.b16 %v943, %v942
      %v964 = vpack.c.b16 %v945, %v944
      %v965 = vpack.c.b16 %v947, %v946
      %v966 = vpack.c.b16 %v949, %v948
      %v967 = vpack.c.b16 %v951, %v950
      %v1000 = vunpack.c.l.b16 %v251
      %v1001 = vunpack.c.l.b16 %v252
      %v1002 = vunpack.c.l.b16 %v253
      %v1003 = vunpack.c.l.b16 %v254
      %v1004 = vunpack.c.l.b16 %v255
      %v1005 = vunpack.c.l.b16 %v256
      %v1006 = vunpack.c.l.b16 %v257
      %v1007 = vunpack.c.l.b16 %v258
      %v1008 = vunpack.c.l.b16 %v259
      %v1009 = vunpack.c.l.b16 %v260
      %v1010 = vunpack.c.l.b16 %v261
      %v1011 = vunpack.c.l.b16 %v262
      %v1012 = vunpack.c.l.b16 %v263
      %v1013 = vunpack.c.l.b16 %v264
      %v1014 = vunpack.c.l.b16 %v265
      %v1015 = vunpack.c.l.b16 %v266
      %v1016 = vpack.c.b16 %v1001, %v1000
      %v1017 = vpack.c.b16 %v1003, %v1002
      %v1018 = vpack.c.b16 %v1005, %v1004
      %v1019 = vpack.c.b16 %v1007, %v1006
      %v1020 = vpack.c.b16 %v1009, %v1008
      %v1021 = vpack.c.b16 %v1011, %v1010
      %v1022 = vpack.c.b16 %v1013, %v1012
      %v1023 = vpack.c.b16 %v1015, %v1014
      %1032 = vmatpush.bf16.msra.mxu0 %v1023
      %1033 = vmatpush.bf16.msra.mxu0 %v1022
      %1034 = vmatpush.bf16.msra.mxu0 %v1021
      %1035 = vmatpush.bf16.msra.mxu0 %v1020
      %1036 = vmatpush.bf16.msra.mxu0 %v1019
      %1037 = vmatpush.bf16.msra.mxu0 %v1018
      %1038 = vmatpush.bf16.msra.mxu0 %v1017
      %1039 = vmatpush.bf16.msra.mxu0 %v1016
      %1040 = vmatmul.bf16.gmra.mxu0 %v952
      %v1041 = vpop.f32.mrf.mxu0
      %v1042 = vadd.f32 %v809, %v1041
      %v1043 = vpop.f32.mrf.mxu0
      %v1044 = vadd.f32 %v811, %v1043
      %1045 = vmatmul.bf16.gmra.mxu0 %v953
      %v1046 = vpop.f32.mrf.mxu0
      %v1047 = vadd.f32 %v814, %v1046
      %v1048 = vpop.f32.mrf.mxu0
      %v1049 = vadd.f32 %v816, %v1048
      %1050 = vmatmul.bf16.gmra.mxu0 %v954
      %v1051 = vpop.f32.mrf.mxu0
      %v1052 = vadd.f32 %v819, %v1051
      %v1053 = vpop.f32.mrf.mxu0
      %v1054 = vadd.f32 %v821, %v1053
      %1055 = vmatmul.bf16.gmra.mxu0 %v955
      %v1056 = vpop.f32.mrf.mxu0
      %v1057 = vadd.f32 %v824, %v1056
      %v1058 = vpop.f32.mrf.mxu0
      %v1059 = vadd.f32 %v826, %v1058
      %1060 = vmatmul.bf16.gmra.mxu0 %v956
      %v1061 = vpop.f32.mrf.mxu0
      %v1062 = vadd.f32 %v829, %v1061
      %v1063 = vpop.f32.mrf.mxu0
      %v1064 = vadd.f32 %v831, %v1063
      %1065 = vmatmul.bf16.gmra.mxu0 %v957
      %v1066 = vpop.f32.mrf.mxu0
      %v1067 = vadd.f32 %v834, %v1066
      %v1068 = vpop.f32.mrf.mxu0
      %v1069 = vadd.f32 %v836, %v1068
      %1070 = vmatmul.bf16.gmra.mxu0 %v958
      %v1071 = vpop.f32.mrf.mxu0
      %v1072 = vadd.f32 %v839, %v1071
      %v1073 = vpop.f32.mrf.mxu0
      %v1074 = vadd.f32 %v841, %v1073
      %1075 = vmatmul.bf16.gmra.mxu0 %v959
      %v1076 = vpop.f32.mrf.mxu0
      %v1077 = vadd.f32 %v844, %v1076
      %v1078 = vpop.f32.mrf.mxu0
      %v1079 = vadd.f32 %v846, %v1078
      %1080 = vmatmul.bf16.gmra.mxu0 %v960
      %v1081 = vpop.f32.mrf.mxu0
      %v1082 = vadd.f32 %v849, %v1081
      %v1083 = vpop.f32.mrf.mxu0
      %v1084 = vadd.f32 %v851, %v1083
      %1085 = vmatmul.bf16.gmra.mxu0 %v961
      %v1086 = vpop.f32.mrf.mxu0
      %v1087 = vadd.f32 %v854, %v1086
      %v1088 = vpop.f32.mrf.mxu0
      %v1089 = vadd.f32 %v856, %v1088
      %1090 = vmatmul.bf16.gmra.mxu0 %v962
      %v1091 = vpop.f32.mrf.mxu0
      %v1092 = vadd.f32 %v859, %v1091
      %v1093 = vpop.f32.mrf.mxu0
      %v1094 = vadd.f32 %v861, %v1093
      %1095 = vmatmul.bf16.gmra.mxu0 %v963
      %v1096 = vpop.f32.mrf.mxu0
      %v1097 = vadd.f32 %v864, %v1096
      %v1098 = vpop.f32.mrf.mxu0
      %v1099 = vadd.f32 %v866, %v1098
      %1100 = vmatmul.bf16.gmra.mxu0 %v964
      %v1101 = vpop.f32.mrf.mxu0
      %v1102 = vadd.f32 %v869, %v1101
      %v1103 = vpop.f32.mrf.mxu0
      %v1104 = vadd.f32 %v871, %v1103
      %1105 = vmatmul.bf16.gmra.mxu0 %v965
      %v1106 = vpop.f32.mrf.mxu0
      %v1107 = vadd.f32 %v874, %v1106
      %v1108 = vpop.f32.mrf.mxu0
      %v1109 = vadd.f32 %v876, %v1108
      %1110 = vmatmul.bf16.gmra.mxu0 %v966
      %v1111 = vpop.f32.mrf.mxu0
      %v1112 = vadd.f32 %v879, %v1111
      %v1113 = vpop.f32.mrf.mxu0
      %v1114 = vadd.f32 %v881, %v1113
      %1115 = vmatmul.bf16.gmra.mxu0 %v967
      %v1116 = vpop.f32.mrf.mxu0
      %v1117 = vadd.f32 %v884, %v1116
      %v1118 = vpop.f32.mrf.mxu0
      %v1119 = vadd.f32 %v886, %v1118
      %1120 = vdwg.mxu0
      %v1121 = vld [vmem:[%s205] sm:$0xe]
      %v1122 = vld [vmem:[%s205 + $0xc] sm:$0xe]
      %v1123 = vld [vmem:[%s205 + $0x18] sm:$0xe]
      %v1124 = vld [vmem:[%s205 + $0x24] sm:$0xe]
      %v1125 = vld [vmem:[%s205 + $0x30] sm:$0xe]
      %v1126 = vld [vmem:[%s205 + $0x3c] sm:$0xe]
      %v1127 = vld [vmem:[%s205 + $0x48] sm:$0xe]
      %v1128 = vld [vmem:[%s205 + $0x54] sm:$0xe]
      %v1129 = vld [vmem:[%s205 + $0x60] sm:$0xe]
      %v1130 = vld [vmem:[%s205 + $0x6c] sm:$0xe]
      %v1131 = vld [vmem:[%s205 + $0x78] sm:$0xe]
      %v1132 = vld [vmem:[%s205 + $0x84] sm:$0xe]
      %v1133 = vld [vmem:[%s205 + $0x90] sm:$0xe]
      %v1134 = vld [vmem:[%s205 + $0x9c] sm:$0xe]
      %v1135 = vld [vmem:[%s205 + $0xa8] sm:$0xe]
      %v1136 = vld [vmem:[%s205 + $0xb4] sm:$0xe]
      %vm1169 = vcmask 1042432
      %vm1170 = vcmask 1046532
      %vm1171 = vmor %vm1169, %vm1170
      %v1172 = vrot.slane %v1121, 5
      %v1173 = vrot.slane %v1172, 4
      %v1174 = vrot.slane %v220, 5
      %v1175 = vsel %vm1171, %v1173, %v1174
      %v1176 = vrot.slane %v1174, 4
      %v1177 = vrot.slane %v267, 5
      %v1178 = vsel %vm1171, %v1176, %v1177
      %v1179 = vrot.slane %v1122, 5
      %v1180 = vrot.slane %v1179, 4
      %v1181 = vrot.slane %v222, 5
      %v1182 = vsel %vm1171, %v1180, %v1181
      %v1183 = vrot.slane %v1181, 4
      %v1184 = vrot.slane %v268, 5
      %v1185 = vsel %vm1171, %v1183, %v1184
      %v1186 = vrot.slane %v1123, 5
      %v1187 = vrot.slane %v1186, 4
      %v1188 = vrot.slane %v224, 5
      %v1189 = vsel %vm1171, %v1187, %v1188
      %v1190 = vrot.slane %v1188, 4
      %v1191 = vrot.slane %v269, 5
      %v1192 = vsel %vm1171, %v1190, %v1191
      %v1193 = vrot.slane %v1124, 5
      %v1194 = vrot.slane %v1193, 4
      %v1195 = vrot.slane %v226, 5
      %v1196 = vsel %vm1171, %v1194, %v1195
      %v1197 = vrot.slane %v1195, 4
      %v1198 = vrot.slane %v270, 5
      %v1199 = vsel %vm1171, %v1197, %v1198
      %v1200 = vrot.slane %v1125, 5
      %v1201 = vrot.slane %v1200, 4
      %v1202 = vrot.slane %v228, 5
      %v1203 = vsel %vm1171, %v1201, %v1202
      %v1204 = vrot.slane %v1202, 4
      %v1205 = vrot.slane %v271, 5
      %v1206 = vsel %vm1171, %v1204, %v1205
      %v1207 = vrot.slane %v1126, 5
      %v1208 = vrot.slane %v1207, 4
      %v1209 = vrot.slane %v230, 5
      %v1210 = vsel %vm1171, %v1208, %v1209
      %v1211 = vrot.slane %v1209, 4
      %v1212 = vrot.slane %v272, 5
      %v1213 = vsel %vm1171, %v1211, %v1212
      %v1214 = vrot.slane %v1127, 5
      %v1215 = vrot.slane %v1214, 4
      %v1216 = vrot.slane %v232, 5
      %v1217 = vsel %vm1171, %v1215, %v1216
      %v1218 = vrot.slane %v1216, 4
      %v1219 = vrot.slane %v273, 5
      %v1220 = vsel %vm1171, %v1218, %v1219
      %v1221 = vrot.slane %v1128, 5
      %v1222 = vrot.slane %v1221, 4
      %v1223 = vrot.slane %v234, 5
      %v1224 = vsel %vm1171, %v1222, %v1223
      %v1225 = vrot.slane %v1223, 4
      %v1226 = vrot.slane %v274, 5
      %v1227 = vsel %vm1171, %v1225, %v1226
      %v1228 = vrot.slane %v1129, 5
      %v1229 = vrot.slane %v1228, 4
      %v1230 = vrot.slane %v236, 5
      %v1231 = vsel %vm1171, %v1229, %v1230
      %v1232 = vrot.slane %v1230, 4
      %v1233 = vrot.slane %v275, 5
      %v1234 = vsel %vm1171, %v1232, %v1233
      %v1235 = vrot.slane %v1130, 5
      %v1236 = vrot.slane %v1235, 4
      %v1237 = vrot.slane %v238, 5
      %v1238 = vsel %vm1171, %v1236, %v1237
      %v1239 = vrot.slane %v1237, 4
      %v1240 = vrot.slane %v276, 5
      %v1241 = vsel %vm1171, %v1239, %v1240
      %v1242 = vrot.slane %v1131, 5
      %v1243 = vrot.slane %v1242, 4
      %v1244 = vrot.slane %v240, 5
      %v1245 = vsel %vm1171, %v1243, %v1244
      %v1246 = vrot.slane %v1244, 4
      %v1247 = vrot.slane %v277, 5
      %v1248 = vsel %vm1171, %v1246, %v1247
      %v1249 = vrot.slane %v1132, 5
      %v1250 = vrot.slane %v1249, 4
      %v1251 = vrot.slane %v242, 5
      %v1252 = vsel %vm1171, %v1250, %v1251
      %v1253 = vrot.slane %v1251, 4
      %v1254 = vrot.slane %v278, 5
      %v1255 = vsel %vm1171, %v1253, %v1254
      %v1256 = vrot.slane %v1133, 5
      %v1257 = vrot.slane %v1256, 4
      %v1258 = vrot.slane %v244, 5
      %v1259 = vsel %vm1171, %v1257, %v1258
      %v1260 = vrot.slane %v1258, 4
      %v1261 = vrot.slane %v279, 5
      %v1262 = vsel %vm1171, %v1260, %v1261
      %v1263 = vrot.slane %v1134, 5
      %v1264 = vrot.slane %v1263, 4
      %v1265 = vrot.slane %v246, 5
      %v1266 = vsel %vm1171, %v1264, %v1265
      %v1267 = vrot.slane %v1265, 4
      %v1268 = vrot.slane %v280, 5
      %v1269 = vsel %vm1171, %v1267, %v1268
      %v1270 = vrot.slane %v1135, 5
      %v1271 = vrot.slane %v1270, 4
      %v1272 = vrot.slane %v248, 5
      %v1273 = vsel %vm1171, %v1271, %v1272
      %v1274 = vrot.slane %v1272, 4
      %v1275 = vrot.slane %v281, 5
      %v1276 = vsel %vm1171, %v1274, %v1275
      %v1277 = vrot.slane %v1136, 5
      %v1278 = vrot.slane %v1277, 4
      %v1279 = vrot.slane %v250, 5
      %v1280 = vsel %vm1171, %v1278, %v1279
      %v1281 = vrot.slane %v1279, 4
      %v1282 = vrot.slane %v282, 5
      %v1283 = vsel %vm1171, %v1281, %v1282
      %s1284 = scalar_lea.vmem %s1, 128
      %v1285 = vld [vmem:[%s1284] sm:$0xf]
      %v1286 = vld [vmem:[%s1284 + $0x4] sm:$0xf]
      %v1287 = vld [vmem:[%s1284 + $0x8] sm:$0xf]
      %v1288 = vld [vmem:[%s1284 + $0xc] sm:$0xf]
      %v1289 = vld [vmem:[%s1284 + $0x10] sm:$0xf]
      %v1290 = vld [vmem:[%s1284 + $0x14] sm:$0xf]
      %v1291 = vld [vmem:[%s1284 + $0x18] sm:$0xf]
      %v1292 = vld [vmem:[%s1284 + $0x1c] sm:$0xf]
      %v1293 = vld [vmem:[%s1284 + $0x20] sm:$0xf]
      %v1294 = vld [vmem:[%s1284 + $0x24] sm:$0xf]
      %v1295 = vld [vmem:[%s1284 + $0x28] sm:$0xf]
      %v1296 = vld [vmem:[%s1284 + $0x2c] sm:$0xf]
      %v1297 = vld [vmem:[%s1284 + $0x30] sm:$0xf]
      %v1298 = vld [vmem:[%s1284 + $0x34] sm:$0xf]
      %v1299 = vld [vmem:[%s1284 + $0x38] sm:$0xf]
      %v1300 = vld [vmem:[%s1284 + $0x3c] sm:$0xf]
      %v1301 = vunpack.c.l.b16 %v1175
      %v1302 = vunpack.c.l.b16 %v1178
      %v1303 = vunpack.c.l.b16 %v1182
      %v1304 = vunpack.c.l.b16 %v1185
      %v1305 = vunpack.c.l.b16 %v1189
      %v1306 = vunpack.c.l.b16 %v1192
      %v1307 = vunpack.c.l.b16 %v1196
      %v1308 = vunpack.c.l.b16 %v1199
      %v1309 = vunpack.c.l.b16 %v1203
      %v1310 = vunpack.c.l.b16 %v1206
      %v1311 = vunpack.c.l.b16 %v1210
      %v1312 = vunpack.c.l.b16 %v1213
      %v1313 = vunpack.c.l.b16 %v1217
      %v1314 = vunpack.c.l.b16 %v1220
      %v1315 = vunpack.c.l.b16 %v1224
      %v1316 = vunpack.c.l.b16 %v1227
      %v1317 = vunpack.c.l.b16 %v1231
      %v1318 = vunpack.c.l.b16 %v1234
      %v1319 = vunpack.c.l.b16 %v1238
      %v1320 = vunpack.c.l.b16 %v1241
      %v1321 = vunpack.c.l.b16 %v1245
      %v1322 = vunpack.c.l.b16 %v1248
      %v1323 = vunpack.c.l.b16 %v1252
      %v1324 = vunpack.c.l.b16 %v1255
      %v1325 = vunpack.c.l.b16 %v1259
      %v1326 = vunpack.c.l.b16 %v1262
      %v1327 = vunpack.c.l.b16 %v1266
      %v1328 = vunpack.c.l.b16 %v1269
      %v1329 = vunpack.c.l.b16 %v1273
      %v1330 = vunpack.c.l.b16 %v1276
      %v1331 = vunpack.c.l.b16 %v1280
      %v1332 = vunpack.c.l.b16 %v1283
      %v1333 = vpack.c.b16 %v1302, %v1301
      %v1334 = vpack.c.b16 %v1304, %v1303
      %v1335 = vpack.c.b16 %v1306, %v1305
      %v1336 = vpack.c.b16 %v1308, %v1307
      %v1337 = vpack.c.b16 %v1310, %v1309
      %v1338 = vpack.c.b16 %v1312, %v1311
      %v1339 = vpack.c.b16 %v1314, %v1313
      %v1340 = vpack.c.b16 %v1316, %v1315
      %v1341 = vpack.c.b16 %v1318, %v1317
      %v1342 = vpack.c.b16 %v1320, %v1319
      %v1343 = vpack.c.b16 %v1322, %v1321
      %v1344 = vpack.c.b16 %v1324, %v1323
      %v1345 = vpack.c.b16 %v1326, %v1325
      %v1346 = vpack.c.b16 %v1328, %v1327
      %v1347 = vpack.c.b16 %v1330, %v1329
      %v1348 = vpack.c.b16 %v1332, %v1331
      %v1381 = vunpack.c.l.b16 %v1285
      %v1382 = vunpack.c.l.b16 %v1286
      %v1383 = vunpack.c.l.b16 %v1287
      %v1384 = vunpack.c.l.b16 %v1288
      %v1385 = vunpack.c.l.b16 %v1289
      %v1386 = vunpack.c.l.b16 %v1290
      %v1387 = vunpack.c.l.b16 %v1291
      %v1388 = vunpack.c.l.b16 %v1292
      %v1389 = vunpack.c.l.b16 %v1293
      %v1390 = vunpack.c.l.b16 %v1294
      %v1391 = vunpack.c.l.b16 %v1295
      %v1392 = vunpack.c.l.b16 %v1296
      %v1393 = vunpack.c.l.b16 %v1297
      %v1394 = vunpack.c.l.b16 %v1298
      %v1395 = vunpack.c.l.b16 %v1299
      %v1396 = vunpack.c.l.b16 %v1300
      %v1397 = vpack.c.b16 %v1382, %v1381
      %v1398 = vpack.c.b16 %v1384, %v1383
      %v1399 = vpack.c.b16 %v1386, %v1385
      %v1400 = vpack.c.b16 %v1388, %v1387
      %v1401 = vpack.c.b16 %v1390, %v1389
      %v1402 = vpack.c.b16 %v1392, %v1391
      %v1403 = vpack.c.b16 %v1394, %v1393
      %v1404 = vpack.c.b16 %v1396, %v1395
      %1413 = vmatpush.bf16.msra.mxu0 %v1404
      %1414 = vmatpush.bf16.msra.mxu0 %v1403
      %1415 = vmatpush.bf16.msra.mxu0 %v1402
      %1416 = vmatpush.bf16.msra.mxu0 %v1401
      %1417 = vmatpush.bf16.msra.mxu0 %v1400
      %1418 = vmatpush.bf16.msra.mxu0 %v1399
      %1419 = vmatpush.bf16.msra.mxu0 %v1398
      %1420 = vmatpush.bf16.msra.mxu0 %v1397
      %1421 = vmatmul.bf16.gmra.mxu0 %v1333
      %v1422 = vpop.f32.mrf.mxu0
      %v1423 = vadd.f32 0.0, %v1422
      %v1424 = vpop.f32.mrf.mxu0
      %v1425 = vadd.f32 0.0, %v1424
      %1426 = vmatmul.bf16.gmra.mxu0 %v1334
      %v1427 = vpop.f32.mrf.mxu0
      %v1428 = vadd.f32 0.0, %v1427
      %v1429 = vpop.f32.mrf.mxu0
      %v1430 = vadd.f32 0.0, %v1429
      %1431 = vmatmul.bf16.gmra.mxu0 %v1335
      %v1432 = vpop.f32.mrf.mxu0
      %v1433 = vadd.f32 0.0, %v1432
      %v1434 = vpop.f32.mrf.mxu0
      %v1435 = vadd.f32 0.0, %v1434
      %1436 = vmatmul.bf16.gmra.mxu0 %v1336
      %v1437 = vpop.f32.mrf.mxu0
      %v1438 = vadd.f32 0.0, %v1437
      %v1439 = vpop.f32.mrf.mxu0
      %v1440 = vadd.f32 0.0, %v1439
      %1441 = vmatmul.bf16.gmra.mxu0 %v1337
      %v1442 = vpop.f32.mrf.mxu0
      %v1443 = vadd.f32 0.0, %v1442
      %v1444 = vpop.f32.mrf.mxu0
      %v1445 = vadd.f32 0.0, %v1444
      %1446 = vmatmul.bf16.gmra.mxu0 %v1338
      %v1447 = vpop.f32.mrf.mxu0
      %v1448 = vadd.f32 0.0, %v1447
      %v1449 = vpop.f32.mrf.mxu0
      %v1450 = vadd.f32 0.0, %v1449
      %1451 = vmatmul.bf16.gmra.mxu0 %v1339
      %v1452 = vpop.f32.mrf.mxu0
      %v1453 = vadd.f32 0.0, %v1452
      %v1454 = vpop.f32.mrf.mxu0
      %v1455 = vadd.f32 0.0, %v1454
      %1456 = vmatmul.bf16.gmra.mxu0 %v1340
      %v1457 = vpop.f32.mrf.mxu0
      %v1458 = vadd.f32 0.0, %v1457
      %v1459 = vpop.f32.mrf.mxu0
      %v1460 = vadd.f32 0.0, %v1459
      %1461 = vmatmul.bf16.gmra.mxu0 %v1341
      %v1462 = vpop.f32.mrf.mxu0
      %v1463 = vadd.f32 0.0, %v1462
      %v1464 = vpop.f32.mrf.mxu0
      %v1465 = vadd.f32 0.0, %v1464
      %1466 = vmatmul.bf16.gmra.mxu0 %v1342
      %v1467 = vpop.f32.mrf.mxu0
      %v1468 = vadd.f32 0.0, %v1467
      %v1469 = vpop.f32.mrf.mxu0
      %v1470 = vadd.f32 0.0, %v1469
      %1471 = vmatmul.bf16.gmra.mxu0 %v1343
      %v1472 = vpop.f32.mrf.mxu0
      %v1473 = vadd.f32 0.0, %v1472
      %v1474 = vpop.f32.mrf.mxu0
      %v1475 = vadd.f32 0.0, %v1474
      %1476 = vmatmul.bf16.gmra.mxu0 %v1344
      %v1477 = vpop.f32.mrf.mxu0
      %v1478 = vadd.f32 0.0, %v1477
      %v1479 = vpop.f32.mrf.mxu0
      %v1480 = vadd.f32 0.0, %v1479
      %1481 = vmatmul.bf16.gmra.mxu0 %v1345
      %v1482 = vpop.f32.mrf.mxu0
      %v1483 = vadd.f32 0.0, %v1482
      %v1484 = vpop.f32.mrf.mxu0
      %v1485 = vadd.f32 0.0, %v1484
      %1486 = vmatmul.bf16.gmra.mxu0 %v1346
      %v1487 = vpop.f32.mrf.mxu0
      %v1488 = vadd.f32 0.0, %v1487
      %v1489 = vpop.f32.mrf.mxu0
      %v1490 = vadd.f32 0.0, %v1489
      %1491 = vmatmul.bf16.gmra.mxu0 %v1347
      %v1492 = vpop.f32.mrf.mxu0
      %v1493 = vadd.f32 0.0, %v1492
      %v1494 = vpop.f32.mrf.mxu0
      %v1495 = vadd.f32 0.0, %v1494
      %1496 = vmatmul.bf16.gmra.mxu0 %v1348
      %v1497 = vpop.f32.mrf.mxu0
      %v1498 = vadd.f32 0.0, %v1497
      %v1499 = vpop.f32.mrf.mxu0
      %v1500 = vadd.f32 0.0, %v1499
      %1501 = vdwg.mxu0
      %v1502 = vadd.f32 %v1042, %v1423
      %v1503 = vadd.f32 %v1044, %v1425
      %v1504 = vadd.f32 %v1047, %v1428
      %v1505 = vadd.f32 %v1049, %v1430
      %v1506 = vadd.f32 %v1052, %v1433
      %v1507 = vadd.f32 %v1054, %v1435
      %v1508 = vadd.f32 %v1057, %v1438
      %v1509 = vadd.f32 %v1059, %v1440
      %v1510 = vadd.f32 %v1062, %v1443
      %v1511 = vadd.f32 %v1064, %v1445
      %v1512 = vadd.f32 %v1067, %v1448
      %v1513 = vadd.f32 %v1069, %v1450
      %v1514 = vadd.f32 %v1072, %v1453
      %v1515 = vadd.f32 %v1074, %v1455
      %v1516 = vadd.f32 %v1077, %v1458
      %v1517 = vadd.f32 %v1079, %v1460
      %v1518 = vadd.f32 %v1082, %v1463
      %v1519 = vadd.f32 %v1084, %v1465
      %v1520 = vadd.f32 %v1087, %v1468
      %v1521 = vadd.f32 %v1089, %v1470
      %v1522 = vadd.f32 %v1092, %v1473
      %v1523 = vadd.f32 %v1094, %v1475
      %v1524 = vadd.f32 %v1097, %v1478
      %v1525 = vadd.f32 %v1099, %v1480
      %v1526 = vadd.f32 %v1102, %v1483
      %v1527 = vadd.f32 %v1104, %v1485
      %v1528 = vadd.f32 %v1107, %v1488
      %v1529 = vadd.f32 %v1109, %v1490
      %v1530 = vadd.f32 %v1112, %v1493
      %v1531 = vadd.f32 %v1114, %v1495
      %v1532 = vadd.f32 %v1117, %v1498
      %v1533 = vadd.f32 %v1119, %v1500
      %s1534 = scalar_lea.vmem %s205, 12
      %v1535 = vld [vmem:[%s1534] sm:$0xf]
      %v1536 = vld [vmem:[%s1534 + $0x4] sm:$0xf]
      %v1537 = vld [vmem:[%s1534 + $0xc] sm:$0xf]
      %v1538 = vld [vmem:[%s1534 + $0x10] sm:$0xf]
      %v1539 = vld [vmem:[%s1534 + $0x18] sm:$0xf]
      %v1540 = vld [vmem:[%s1534 + $0x1c] sm:$0xf]
      %v1541 = vld [vmem:[%s1534 + $0x24] sm:$0xf]
      %v1542 = vld [vmem:[%s1534 + $0x28] sm:$0xf]
      %v1543 = vld [vmem:[%s1534 + $0x30] sm:$0xf]
      %v1544 = vld [vmem:[%s1534 + $0x34] sm:$0xf]
      %v1545 = vld [vmem:[%s1534 + $0x3c] sm:$0xf]
      %v1546 = vld [vmem:[%s1534 + $0x40] sm:$0xf]
      %v1547 = vld [vmem:[%s1534 + $0x48] sm:$0xf]
      %v1548 = vld [vmem:[%s1534 + $0x4c] sm:$0xf]
      %v1549 = vld [vmem:[%s1534 + $0x54] sm:$0xf]
      %v1550 = vld [vmem:[%s1534 + $0x58] sm:$0xf]
      %v1551 = vld [vmem:[%s1534 + $0x60] sm:$0xf]
      %v1552 = vld [vmem:[%s1534 + $0x64] sm:$0xf]
      %v1553 = vld [vmem:[%s1534 + $0x6c] sm:$0xf]
      %v1554 = vld [vmem:[%s1534 + $0x70] sm:$0xf]
      %v1555 = vld [vmem:[%s1534 + $0x78] sm:$0xf]
      %v1556 = vld [vmem:[%s1534 + $0x7c] sm:$0xf]
      %v1557 = vld [vmem:[%s1534 + $0x84] sm:$0xf]
      %v1558 = vld [vmem:[%s1534 + $0x88] sm:$0xf]
      %v1559 = vld [vmem:[%s1534 + $0x90] sm:$0xf]
      %v1560 = vld [vmem:[%s1534 + $0x94] sm:$0xf]
      %v1561 = vld [vmem:[%s1534 + $0x9c] sm:$0xf]
      %v1562 = vld [vmem:[%s1534 + $0xa0] sm:$0xf]
      %v1563 = vld [vmem:[%s1534 + $0xa8] sm:$0xf]
      %v1564 = vld [vmem:[%s1534 + $0xac] sm:$0xf]
      %v1565 = vld [vmem:[%s1534 + $0xb4] sm:$0xf]
      %v1566 = vld [vmem:[%s1534 + $0xb8] sm:$0xf]
      %s1567 = scalar_lea.vmem %s1, 192
      %v1568 = vld [vmem:[%s1567] sm:$0xf]
      %v1569 = vld [vmem:[%s1567 + $0x4] sm:$0xf]
      %v1570 = vld [vmem:[%s1567 + $0x8] sm:$0xf]
      %v1571 = vld [vmem:[%s1567 + $0xc] sm:$0xf]
      %v1572 = vld [vmem:[%s1567 + $0x10] sm:$0xf]
      %v1573 = vld [vmem:[%s1567 + $0x14] sm:$0xf]
      %v1574 = vld [vmem:[%s1567 + $0x18] sm:$0xf]
      %v1575 = vld [vmem:[%s1567 + $0x1c] sm:$0xf]
      %v1576 = vld [vmem:[%s1567 + $0x20] sm:$0xf]
      %v1577 = vld [vmem:[%s1567 + $0x24] sm:$0xf]
      %v1578 = vld [vmem:[%s1567 + $0x28] sm:$0xf]
      %v1579 = vld [vmem:[%s1567 + $0x2c] sm:$0xf]
      %v1580 = vld [vmem:[%s1567 + $0x30] sm:$0xf]
      %v1581 = vld [vmem:[%s1567 + $0x34] sm:$0xf]
      %v1582 = vld [vmem:[%s1567 + $0x38] sm:$0xf]
      %v1583 = vld [vmem:[%s1567 + $0x3c] sm:$0xf]
      %v1616 = vunpack.c.l.b16 %v1535
      %v1617 = vunpack.c.l.b16 %v1536
      %v1618 = vunpack.c.l.b16 %v1537
      %v1619 = vunpack.c.l.b16 %v1538
      %v1620 = vunpack.c.l.b16 %v1539
      %v1621 = vunpack.c.l.b16 %v1540
      %v1622 = vunpack.c.l.b16 %v1541
      %v1623 = vunpack.c.l.b16 %v1542
      %v1624 = vunpack.c.l.b16 %v1543
      %v1625 = vunpack.c.l.b16 %v1544
      %v1626 = vunpack.c.l.b16 %v1545
      %v1627 = vunpack.c.l.b16 %v1546
      %v1628 = vunpack.c.l.b16 %v1547
      %v1629 = vunpack.c.l.b16 %v1548
      %v1630 = vunpack.c.l.b16 %v1549
      %v1631 = vunpack.c.l.b16 %v1550
      %v1632 = vunpack.c.l.b16 %v1551
      %v1633 = vunpack.c.l.b16 %v1552
      %v1634 = vunpack.c.l.b16 %v1553
      %v1635 = vunpack.c.l.b16 %v1554
      %v1636 = vunpack.c.l.b16 %v1555
      %v1637 = vunpack.c.l.b16 %v1556
      %v1638 = vunpack.c.l.b16 %v1557
      %v1639 = vunpack.c.l.b16 %v1558
      %v1640 = vunpack.c.l.b16 %v1559
      %v1641 = vunpack.c.l.b16 %v1560
      %v1642 = vunpack.c.l.b16 %v1561
      %v1643 = vunpack.c.l.b16 %v1562
      %v1644 = vunpack.c.l.b16 %v1563
      %v1645 = vunpack.c.l.b16 %v1564
      %v1646 = vunpack.c.l.b16 %v1565
      %v1647 = vunpack.c.l.b16 %v1566
      %v1648 = vpack.c.b16 %v1617, %v1616
      %v1649 = vpack.c.b16 %v1619, %v1618
      %v1650 = vpack.c.b16 %v1621, %v1620
      %v1651 = vpack.c.b16 %v1623, %v1622
      %v1652 = vpack.c.b16 %v1625, %v1624
      %v1653 = vpack.c.b16 %v1627, %v1626
      %v1654 = vpack.c.b16 %v1629, %v1628
      %v1655 = vpack.c.b16 %v1631, %v1630
      %v1656 = vpack.c.b16 %v1633, %v1632
      %v1657 = vpack.c.b16 %v1635, %v1634
      %v1658 = vpack.c.b16 %v1637, %v1636
      %v1659 = vpack.c.b16 %v1639, %v1638
      %v1660 = vpack.c.b16 %v1641, %v1640
      %v1661 = vpack.c.b16 %v1643, %v1642
      %v1662 = vpack.c.b16 %v1645, %v1644
      %v1663 = vpack.c.b16 %v1647, %v1646
      %v1696 = vunpack.c.l.b16 %v1568
      %v1697 = vunpack.c.l.b16 %v1569
      %v1698 = vunpack.c.l.b16 %v1570
      %v1699 = vunpack.c.l.b16 %v1571
      %v1700 = vunpack.c.l.b16 %v1572
      %v1701 = vunpack.c.l.b16 %v1573
      %v1702 = vunpack.c.l.b16 %v1574
      %v1703 = vunpack.c.l.b16 %v1575
      %v1704 = vunpack.c.l.b16 %v1576
      %v1705 = vunpack.c.l.b16 %v1577
      %v1706 = vunpack.c.l.b16 %v1578
      %v1707 = vunpack.c.l.b16 %v1579
      %v1708 = vunpack.c.l.b16 %v1580
      %v1709 = vunpack.c.l.b16 %v1581
      %v1710 = vunpack.c.l.b16 %v1582
      %v1711 = vunpack.c.l.b16 %v1583
      %v1712 = vpack.c.b16 %v1697, %v1696
      %v1713 = vpack.c.b16 %v1699, %v1698
      %v1714 = vpack.c.b16 %v1701, %v1700
      %v1715 = vpack.c.b16 %v1703, %v1702
      %v1716 = vpack.c.b16 %v1705, %v1704
      %v1717 = vpack.c.b16 %v1707, %v1706
      %v1718 = vpack.c.b16 %v1709, %v1708
      %v1719 = vpack.c.b16 %v1711, %v1710
      %1728 = vmatpush.bf16.msra.mxu0 %v1719
      %1729 = vmatpush.bf16.msra.mxu0 %v1718
      %1730 = vmatpush.bf16.msra.mxu0 %v1717
      %1731 = vmatpush.bf16.msra.mxu0 %v1716
      %1732 = vmatpush.bf16.msra.mxu0 %v1715
      %1733 = vmatpush.bf16.msra.mxu0 %v1714
      %1734 = vmatpush.bf16.msra.mxu0 %v1713
      %1735 = vmatpush.bf16.msra.mxu0 %v1712
      %1736 = vmatmul.bf16.gmra.mxu0 %v1648
      %v1737 = vpop.f32.mrf.mxu0
      %v1738 = vadd.f32 0.0, %v1737
      %v1739 = vpop.f32.mrf.mxu0
      %v1740 = vadd.f32 0.0, %v1739
      %1741 = vmatmul.bf16.gmra.mxu0 %v1649
      %v1742 = vpop.f32.mrf.mxu0
      %v1743 = vadd.f32 0.0, %v1742
      %v1744 = vpop.f32.mrf.mxu0
      %v1745 = vadd.f32 0.0, %v1744
      %1746 = vmatmul.bf16.gmra.mxu0 %v1650
      %v1747 = vpop.f32.mrf.mxu0
      %v1748 = vadd.f32 0.0, %v1747
      %v1749 = vpop.f32.mrf.mxu0
      %v1750 = vadd.f32 0.0, %v1749
      %1751 = vmatmul.bf16.gmra.mxu0 %v1651
      %v1752 = vpop.f32.mrf.mxu0
      %v1753 = vadd.f32 0.0, %v1752
      %v1754 = vpop.f32.mrf.mxu0
      %v1755 = vadd.f32 0.0, %v1754
      %1756 = vmatmul.bf16.gmra.mxu0 %v1652
      %v1757 = vpop.f32.mrf.mxu0
      %v1758 = vadd.f32 0.0, %v1757
      %v1759 = vpop.f32.mrf.mxu0
      %v1760 = vadd.f32 0.0, %v1759
      %1761 = vmatmul.bf16.gmra.mxu0 %v1653
      %v1762 = vpop.f32.mrf.mxu0
      %v1763 = vadd.f32 0.0, %v1762
      %v1764 = vpop.f32.mrf.mxu0
      %v1765 = vadd.f32 0.0, %v1764
      %1766 = vmatmul.bf16.gmra.mxu0 %v1654
      %v1767 = vpop.f32.mrf.mxu0
      %v1768 = vadd.f32 0.0, %v1767
      %v1769 = vpop.f32.mrf.mxu0
      %v1770 = vadd.f32 0.0, %v1769
      %1771 = vmatmul.bf16.gmra.mxu0 %v1655
      %v1772 = vpop.f32.mrf.mxu0
      %v1773 = vadd.f32 0.0, %v1772
      %v1774 = vpop.f32.mrf.mxu0
      %v1775 = vadd.f32 0.0, %v1774
      %1776 = vmatmul.bf16.gmra.mxu0 %v1656
      %v1777 = vpop.f32.mrf.mxu0
      %v1778 = vadd.f32 0.0, %v1777
      %v1779 = vpop.f32.mrf.mxu0
      %v1780 = vadd.f32 0.0, %v1779
      %1781 = vmatmul.bf16.gmra.mxu0 %v1657
      %v1782 = vpop.f32.mrf.mxu0
      %v1783 = vadd.f32 0.0, %v1782
      %v1784 = vpop.f32.mrf.mxu0
      %v1785 = vadd.f32 0.0, %v1784
      %1786 = vmatmul.bf16.gmra.mxu0 %v1658
      %v1787 = vpop.f32.mrf.mxu0
      %v1788 = vadd.f32 0.0, %v1787
      %v1789 = vpop.f32.mrf.mxu0
      %v1790 = vadd.f32 0.0, %v1789
      %1791 = vmatmul.bf16.gmra.mxu0 %v1659
      %v1792 = vpop.f32.mrf.mxu0
      %v1793 = vadd.f32 0.0, %v1792
      %v1794 = vpop.f32.mrf.mxu0
      %v1795 = vadd.f32 0.0, %v1794
      %1796 = vmatmul.bf16.gmra.mxu0 %v1660
      %v1797 = vpop.f32.mrf.mxu0
      %v1798 = vadd.f32 0.0, %v1797
      %v1799 = vpop.f32.mrf.mxu0
      %v1800 = vadd.f32 0.0, %v1799
      %1801 = vmatmul.bf16.gmra.mxu0 %v1661
      %v1802 = vpop.f32.mrf.mxu0
      %v1803 = vadd.f32 0.0, %v1802
      %v1804 = vpop.f32.mrf.mxu0
      %v1805 = vadd.f32 0.0, %v1804
      %1806 = vmatmul.bf16.gmra.mxu0 %v1662
      %v1807 = vpop.f32.mrf.mxu0
      %v1808 = vadd.f32 0.0, %v1807
      %v1809 = vpop.f32.mrf.mxu0
      %v1810 = vadd.f32 0.0, %v1809
      %1811 = vmatmul.bf16.gmra.mxu0 %v1663
      %v1812 = vpop.f32.mrf.mxu0
      %v1813 = vadd.f32 0.0, %v1812
      %v1814 = vpop.f32.mrf.mxu0
      %v1815 = vadd.f32 0.0, %v1814
      %1816 = vdwg.mxu0
      %v1817 = vadd.f32 %v1502, %v1738
      %v1818 = vadd.f32 %v1503, %v1740
      %v1819 = vadd.f32 %v1504, %v1743
      %v1820 = vadd.f32 %v1505, %v1745
      %v1821 = vadd.f32 %v1506, %v1748
      %v1822 = vadd.f32 %v1507, %v1750
      %v1823 = vadd.f32 %v1508, %v1753
      %v1824 = vadd.f32 %v1509, %v1755
      %v1825 = vadd.f32 %v1510, %v1758
      %v1826 = vadd.f32 %v1511, %v1760
      %v1827 = vadd.f32 %v1512, %v1763
      %v1828 = vadd.f32 %v1513, %v1765
      %v1829 = vadd.f32 %v1514, %v1768
      %v1830 = vadd.f32 %v1515, %v1770
      %v1831 = vadd.f32 %v1516, %v1773
      %v1832 = vadd.f32 %v1517, %v1775
      %v1833 = vadd.f32 %v1518, %v1778
      %v1834 = vadd.f32 %v1519, %v1780
      %v1835 = vadd.f32 %v1520, %v1783
      %v1836 = vadd.f32 %v1521, %v1785
      %v1837 = vadd.f32 %v1522, %v1788
      %v1838 = vadd.f32 %v1523, %v1790
      %v1839 = vadd.f32 %v1524, %v1793
      %v1840 = vadd.f32 %v1525, %v1795
      %v1841 = vadd.f32 %v1526, %v1798
      %v1842 = vadd.f32 %v1527, %v1800
      %v1843 = vadd.f32 %v1528, %v1803
      %v1844 = vadd.f32 %v1529, %v1805
      %v1845 = vadd.f32 %v1530, %v1808
      %v1846 = vadd.f32 %v1531, %v1810
      %v1847 = vadd.f32 %v1532, %v1813
      %v1848 = vadd.f32 %v1533, %v1815
      %v1849 = vld [vmem:[%s1534] sm:$0xf]
      %v1850 = vld [vmem:[%s1534 + $0x4] sm:$0xf]
      %v1851 = vld [vmem:[%s1534 + $0x8] sm:$0x1]
      %v1852 = vld [vmem:[%s1534 + $0xc] sm:$0xf]
      %v1853 = vld [vmem:[%s1534 + $0x10] sm:$0xf]
      %v1854 = vld [vmem:[%s1534 + $0x14] sm:$0x1]
      %v1855 = vld [vmem:[%s1534 + $0x18] sm:$0xf]
      %v1856 = vld [vmem:[%s1534 + $0x1c] sm:$0xf]
      %v1857 = vld [vmem:[%s1534 + $0x20] sm:$0x1]
      %v1858 = vld [vmem:[%s1534 + $0x24] sm:$0xf]
      %v1859 = vld [vmem:[%s1534 + $0x28] sm:$0xf]
      %v1860 = vld [vmem:[%s1534 + $0x2c] sm:$0x1]
      %v1861 = vld [vmem:[%s1534 + $0x30] sm:$0xf]
      %v1862 = vld [vmem:[%s1534 + $0x34] sm:$0xf]
      %v1863 = vld [vmem:[%s1534 + $0x38] sm:$0x1]
      %v1864 = vld [vmem:[%s1534 + $0x3c] sm:$0xf]
      %v1865 = vld [vmem:[%s1534 + $0x40] sm:$0xf]
      %v1866 = vld [vmem:[%s1534 + $0x44] sm:$0x1]
      %v1867 = vld [vmem:[%s1534 + $0x48] sm:$0xf]
      %v1868 = vld [vmem:[%s1534 + $0x4c] sm:$0xf]
      %v1869 = vld [vmem:[%s1534 + $0x50] sm:$0x1]
      %v1870 = vld [vmem:[%s1534 + $0x54] sm:$0xf]
      %v1871 = vld [vmem:[%s1534 + $0x58] sm:$0xf]
      %v1872 = vld [vmem:[%s1534 + $0x5c] sm:$0x1]
      %v1873 = vld [vmem:[%s1534 + $0x60] sm:$0xf]
      %v1874 = vld [vmem:[%s1534 + $0x64] sm:$0xf]
      %v1875 = vld [vmem:[%s1534 + $0x68] sm:$0x1]
      %v1876 = vld [vmem:[%s1534 + $0x6c] sm:$0xf]
      %v1877 = vld [vmem:[%s1534 + $0x70] sm:$0xf]
      %v1878 = vld [vmem:[%s1534 + $0x74] sm:$0x1]
      %v1879 = vld [vmem:[%s1534 + $0x78] sm:$0xf]
      %v1880 = vld [vmem:[%s1534 + $0x7c] sm:$0xf]
      %v1881 = vld [vmem:[%s1534 + $0x80] sm:$0x1]
      %v1882 = vld [vmem:[%s1534 + $0x84] sm:$0xf]
      %v1883 = vld [vmem:[%s1534 + $0x88] sm:$0xf]
      %v1884 = vld [vmem:[%s1534 + $0x8c] sm:$0x1]
      %v1885 = vld [vmem:[%s1534 + $0x90] sm:$0xf]
      %v1886 = vld [vmem:[%s1534 + $0x94] sm:$0xf]
      %v1887 = vld [vmem:[%s1534 + $0x98] sm:$0x1]
      %v1888 = vld [vmem:[%s1534 + $0x9c] sm:$0xf]
      %v1889 = vld [vmem:[%s1534 + $0xa0] sm:$0xf]
      %v1890 = vld [vmem:[%s1534 + $0xa4] sm:$0x1]
      %v1891 = vld [vmem:[%s1534 + $0xa8] sm:$0xf]
      %v1892 = vld [vmem:[%s1534 + $0xac] sm:$0xf]
      %v1893 = vld [vmem:[%s1534 + $0xb0] sm:$0x1]
      %v1894 = vld [vmem:[%s1534 + $0xb4] sm:$0xf]
      %v1895 = vld [vmem:[%s1534 + $0xb8] sm:$0xf]
      %v1896 = vld [vmem:[%s1534 + $0xbc] sm:$0x1]
      %v1898 = vshrl.u32 %v1849, 16
      %v1900 = vrot.slane %v1898, 4
      %v1901 = vshll.u32 %v1849, 16
      %v1903 = vrot.slane %v1901, 5
      %v1904 = vor.u32 %v1900, %v1903
      %v1905 = vrot.slane %v1904, 4
      %v1907 = vshll.u32 %v1850, 16
      %v1909 = vrot.slane %v1907, 5
      %v1910 = vsel %vm285, %v1905, %v1909
      %v1911 = vshrl.u32 %v1850, 16
      %v1913 = vrot.slane %v1911, 4
      %v1914 = vor.u32 %v1913, %v1909
      %v1915 = vrot.slane %v1914, 4
      %v1917 = vshll.u32 %v1851, 16
      %v1919 = vrot.slane %v1917, 5
      %v1920 = vsel %vm285, %v1915, %v1919
      %v1922 = vshrl.u32 %v1852, 16
      %v1924 = vrot.slane %v1922, 4
      %v1925 = vshll.u32 %v1852, 16
      %v1927 = vrot.slane %v1925, 5
      %v1928 = vor.u32 %v1924, %v1927
      %v1929 = vrot.slane %v1928, 4
      %v1931 = vshll.u32 %v1853, 16
      %v1933 = vrot.slane %v1931, 5
      %v1934 = vsel %vm285, %v1929, %v1933
      %v1935 = vshrl.u32 %v1853, 16
      %v1937 = vrot.slane %v1935, 4
      %v1938 = vor.u32 %v1937, %v1933
      %v1939 = vrot.slane %v1938, 4
      %v1941 = vshll.u32 %v1854, 16
      %v1943 = vrot.slane %v1941, 5
      %v1944 = vsel %vm285, %v1939, %v1943
      %v1946 = vshrl.u32 %v1855, 16
      %v1948 = vrot.slane %v1946, 4
      %v1949 = vshll.u32 %v1855, 16
      %v1951 = vrot.slane %v1949, 5
      %v1952 = vor.u32 %v1948, %v1951
      %v1953 = vrot.slane %v1952, 4
      %v1955 = vshll.u32 %v1856, 16
      %v1957 = vrot.slane %v1955, 5
      %v1958 = vsel %vm285, %v1953, %v1957
      %v1959 = vshrl.u32 %v1856, 16
      %v1961 = vrot.slane %v1959, 4
      %v1962 = vor.u32 %v1961, %v1957
      %v1963 = vrot.slane %v1962, 4
      %v1965 = vshll.u32 %v1857, 16
      %v1967 = vrot.slane %v1965, 5
      %v1968 = vsel %vm285, %v1963, %v1967
      %v1970 = vshrl.u32 %v1858, 16
      %v1972 = vrot.slane %v1970, 4
      %v1973 = vshll.u32 %v1858, 16
      %v1975 = vrot.slane %v1973, 5
      %v1976 = vor.u32 %v1972, %v1975
      %v1977 = vrot.slane %v1976, 4
      %v1979 = vshll.u32 %v1859, 16
      %v1981 = vrot.slane %v1979, 5
      %v1982 = vsel %vm285, %v1977, %v1981
      %v1983 = vshrl.u32 %v1859, 16
      %v1985 = vrot.slane %v1983, 4
      %v1986 = vor.u32 %v1985, %v1981
      %v1987 = vrot.slane %v1986, 4
      %v1989 = vshll.u32 %v1860, 16
      %v1991 = vrot.slane %v1989, 5
      %v1992 = vsel %vm285, %v1987, %v1991
      %v1994 = vshrl.u32 %v1861, 16
      %v1996 = vrot.slane %v1994, 4
      %v1997 = vshll.u32 %v1861, 16
      %v1999 = vrot.slane %v1997, 5
      %v2000 = vor.u32 %v1996, %v1999
      %v2001 = vrot.slane %v2000, 4
      %v2003 = vshll.u32 %v1862, 16
      %v2005 = vrot.slane %v2003, 5
      %v2006 = vsel %vm285, %v2001, %v2005
      %v2007 = vshrl.u32 %v1862, 16
      %v2009 = vrot.slane %v2007, 4
      %v2010 = vor.u32 %v2009, %v2005
      %v2011 = vrot.slane %v2010, 4
      %v2013 = vshll.u32 %v1863, 16
      %v2015 = vrot.slane %v2013, 5
      %v2016 = vsel %vm285, %v2011, %v2015
      %v2018 = vshrl.u32 %v1864, 16
      %v2020 = vrot.slane %v2018, 4
      %v2021 = vshll.u32 %v1864, 16
      %v2023 = vrot.slane %v2021, 5
      %v2024 = vor.u32 %v2020, %v2023
      %v2025 = vrot.slane %v2024, 4
      %v2027 = vshll.u32 %v1865, 16
      %v2029 = vrot.slane %v2027, 5
      %v2030 = vsel %vm285, %v2025, %v2029
      %v2031 = vshrl.u32 %v1865, 16
      %v2033 = vrot.slane %v2031, 4
      %v2034 = vor.u32 %v2033, %v2029
      %v2035 = vrot.slane %v2034, 4
      %v2037 = vshll.u32 %v1866, 16
      %v2039 = vrot.slane %v2037, 5
      %v2040 = vsel %vm285, %v2035, %v2039
      %v2042 = vshrl.u32 %v1867, 16
      %v2044 = vrot.slane %v2042, 4
      %v2045 = vshll.u32 %v1867, 16
      %v2047 = vrot.slane %v2045, 5
      %v2048 = vor.u32 %v2044, %v2047
      %v2049 = vrot.slane %v2048, 4
      %v2051 = vshll.u32 %v1868, 16
      %v2053 = vrot.slane %v2051, 5
      %v2054 = vsel %vm285, %v2049, %v2053
      %v2055 = vshrl.u32 %v1868, 16
      %v2057 = vrot.slane %v2055, 4
      %v2058 = vor.u32 %v2057, %v2053
      %v2059 = vrot.slane %v2058, 4
      %v2061 = vshll.u32 %v1869, 16
      %v2063 = vrot.slane %v2061, 5
      %v2064 = vsel %vm285, %v2059, %v2063
      %v2066 = vshrl.u32 %v1870, 16
      %v2068 = vrot.slane %v2066, 4
      %v2069 = vshll.u32 %v1870, 16
      %v2071 = vrot.slane %v2069, 5
      %v2072 = vor.u32 %v2068, %v2071
      %v2073 = vrot.slane %v2072, 4
      %v2075 = vshll.u32 %v1871, 16
      %v2077 = vrot.slane %v2075, 5
      %v2078 = vsel %vm285, %v2073, %v2077
      %v2079 = vshrl.u32 %v1871, 16
      %v2081 = vrot.slane %v2079, 4
      %v2082 = vor.u32 %v2081, %v2077
      %v2083 = vrot.slane %v2082, 4
      %v2085 = vshll.u32 %v1872, 16
      %v2087 = vrot.slane %v2085, 5
      %v2088 = vsel %vm285, %v2083, %v2087
      %v2090 = vshrl.u32 %v1873, 16
      %v2092 = vrot.slane %v2090, 4
      %v2093 = vshll.u32 %v1873, 16
      %v2095 = vrot.slane %v2093, 5
      %v2096 = vor.u32 %v2092, %v2095
      %v2097 = vrot.slane %v2096, 4
      %v2099 = vshll.u32 %v1874, 16
      %v2101 = vrot.slane %v2099, 5
      %v2102 = vsel %vm285, %v2097, %v2101
      %v2103 = vshrl.u32 %v1874, 16
      %v2105 = vrot.slane %v2103, 4
      %v2106 = vor.u32 %v2105, %v2101
      %v2107 = vrot.slane %v2106, 4
      %v2109 = vshll.u32 %v1875, 16
      %v2111 = vrot.slane %v2109, 5
      %v2112 = vsel %vm285, %v2107, %v2111
      %v2114 = vshrl.u32 %v1876, 16
      %v2116 = vrot.slane %v2114, 4
      %v2117 = vshll.u32 %v1876, 16
      %v2119 = vrot.slane %v2117, 5
      %v2120 = vor.u32 %v2116, %v2119
      %v2121 = vrot.slane %v2120, 4
      %v2123 = vshll.u32 %v1877, 16
      %v2125 = vrot.slane %v2123, 5
      %v2126 = vsel %vm285, %v2121, %v2125
      %v2127 = vshrl.u32 %v1877, 16
      %v2129 = vrot.slane %v2127, 4
      %v2130 = vor.u32 %v2129, %v2125
      %v2131 = vrot.slane %v2130, 4
      %v2133 = vshll.u32 %v1878, 16
      %v2135 = vrot.slane %v2133, 5
      %v2136 = vsel %vm285, %v2131, %v2135
      %v2138 = vshrl.u32 %v1879, 16
      %v2140 = vrot.slane %v2138, 4
      %v2141 = vshll.u32 %v1879, 16
      %v2143 = vrot.slane %v2141, 5
      %v2144 = vor.u32 %v2140, %v2143
      %v2145 = vrot.slane %v2144, 4
      %v2147 = vshll.u32 %v1880, 16
      %v2149 = vrot.slane %v2147, 5
      %v2150 = vsel %vm285, %v2145, %v2149
      %v2151 = vshrl.u32 %v1880, 16
      %v2153 = vrot.slane %v2151, 4
      %v2154 = vor.u32 %v2153, %v2149
      %v2155 = vrot.slane %v2154, 4
      %v2157 = vshll.u32 %v1881, 16
      %v2159 = vrot.slane %v2157, 5
      %v2160 = vsel %vm285, %v2155, %v2159
      %v2162 = vshrl.u32 %v1882, 16
      %v2164 = vrot.slane %v2162, 4
      %v2165 = vshll.u32 %v1882, 16
      %v2167 = vrot.slane %v2165, 5
      %v2168 = vor.u32 %v2164, %v2167
      %v2169 = vrot.slane %v2168, 4
      %v2171 = vshll.u32 %v1883, 16
      %v2173 = vrot.slane %v2171, 5
      %v2174 = vsel %vm285, %v2169, %v2173
      %v2175 = vshrl.u32 %v1883, 16
      %v2177 = vrot.slane %v2175, 4
      %v2178 = vor.u32 %v2177, %v2173
      %v2179 = vrot.slane %v2178, 4
      %v2181 = vshll.u32 %v1884, 16
      %v2183 = vrot.slane %v2181, 5
      %v2184 = vsel %vm285, %v2179, %v2183
      %v2186 = vshrl.u32 %v1885, 16
      %v2188 = vrot.slane %v2186, 4
      %v2189 = vshll.u32 %v1885, 16
      %v2191 = vrot.slane %v2189, 5
      %v2192 = vor.u32 %v2188, %v2191
      %v2193 = vrot.slane %v2192, 4
      %v2195 = vshll.u32 %v1886, 16
      %v2197 = vrot.slane %v2195, 5
      %v2198 = vsel %vm285, %v2193, %v2197
      %v2199 = vshrl.u32 %v1886, 16
      %v2201 = vrot.slane %v2199, 4
      %v2202 = vor.u32 %v2201, %v2197
      %v2203 = vrot.slane %v2202, 4
      %v2205 = vshll.u32 %v1887, 16
      %v2207 = vrot.slane %v2205, 5
      %v2208 = vsel %vm285, %v2203, %v2207
      %v2210 = vshrl.u32 %v1888, 16
      %v2212 = vrot.slane %v2210, 4
      %v2213 = vshll.u32 %v1888, 16
      %v2215 = vrot.slane %v2213, 5
      %v2216 = vor.u32 %v2212, %v2215
      %v2217 = vrot.slane %v2216, 4
      %v2219 = vshll.u32 %v1889, 16
      %v2221 = vrot.slane %v2219, 5
      %v2222 = vsel %vm285, %v2217, %v2221
      %v2223 = vshrl.u32 %v1889, 16
      %v2225 = vrot.slane %v2223, 4
      %v2226 = vor.u32 %v2225, %v2221
      %v2227 = vrot.slane %v2226, 4
      %v2229 = vshll.u32 %v1890, 16
      %v2231 = vrot.slane %v2229, 5
      %v2232 = vsel %vm285, %v2227, %v2231
      %v2234 = vshrl.u32 %v1891, 16
      %v2236 = vrot.slane %v2234, 4
      %v2237 = vshll.u32 %v1891, 16
      %v2239 = vrot.slane %v2237, 5
      %v2240 = vor.u32 %v2236, %v2239
      %v2241 = vrot.slane %v2240, 4
      %v2243 = vshll.u32 %v1892, 16
      %v2245 = vrot.slane %v2243, 5
      %v2246 = vsel %vm285, %v2241, %v2245
      %v2247 = vshrl.u32 %v1892, 16
      %v2249 = vrot.slane %v2247, 4
      %v2250 = vor.u32 %v2249, %v2245
      %v2251 = vrot.slane %v2250, 4
      %v2253 = vshll.u32 %v1893, 16
      %v2255 = vrot.slane %v2253, 5
      %v2256 = vsel %vm285, %v2251, %v2255
      %v2258 = vshrl.u32 %v1894, 16
      %v2260 = vrot.slane %v2258, 4
      %v2261 = vshll.u32 %v1894, 16
      %v2263 = vrot.slane %v2261, 5
      %v2264 = vor.u32 %v2260, %v2263
      %v2265 = vrot.slane %v2264, 4
      %v2267 = vshll.u32 %v1895, 16
      %v2269 = vrot.slane %v2267, 5
      %v2270 = vsel %vm285, %v2265, %v2269
      %v2271 = vshrl.u32 %v1895, 16
      %v2273 = vrot.slane %v2271, 4
      %v2274 = vor.u32 %v2273, %v2269
      %v2275 = vrot.slane %v2274, 4
      %v2277 = vshll.u32 %v1896, 16
      %v2279 = vrot.slane %v2277, 5
      %v2280 = vsel %vm285, %v2275, %v2279
      %s2281 = scalar_lea.vmem %s1, 256
      %v2282 = vld [vmem:[%s2281] sm:$0xf]
      %v2283 = vld [vmem:[%s2281 + $0x4] sm:$0xf]
      %v2284 = vld [vmem:[%s2281 + $0x8] sm:$0xf]
      %v2285 = vld [vmem:[%s2281 + $0xc] sm:$0xf]
      %v2286 = vld [vmem:[%s2281 + $0x10] sm:$0xf]
      %v2287 = vld [vmem:[%s2281 + $0x14] sm:$0xf]
      %v2288 = vld [vmem:[%s2281 + $0x18] sm:$0xf]
      %v2289 = vld [vmem:[%s2281 + $0x1c] sm:$0xf]
      %v2290 = vld [vmem:[%s2281 + $0x20] sm:$0xf]
      %v2291 = vld [vmem:[%s2281 + $0x24] sm:$0xf]
      %v2292 = vld [vmem:[%s2281 + $0x28] sm:$0xf]
      %v2293 = vld [vmem:[%s2281 + $0x2c] sm:$0xf]
      %v2294 = vld [vmem:[%s2281 + $0x30] sm:$0xf]
      %v2295 = vld [vmem:[%s2281 + $0x34] sm:$0xf]
      %v2296 = vld [vmem:[%s2281 + $0x38] sm:$0xf]
      %v2297 = vld [vmem:[%s2281 + $0x3c] sm:$0xf]
      %v2298 = vunpack.c.l.b16 %v1910
      %v2299 = vunpack.c.l.b16 %v1920
      %v2300 = vunpack.c.l.b16 %v1934
      %v2301 = vunpack.c.l.b16 %v1944
      %v2302 = vunpack.c.l.b16 %v1958
      %v2303 = vunpack.c.l.b16 %v1968
      %v2304 = vunpack.c.l.b16 %v1982
      %v2305 = vunpack.c.l.b16 %v1992
      %v2306 = vunpack.c.l.b16 %v2006
      %v2307 = vunpack.c.l.b16 %v2016
      %v2308 = vunpack.c.l.b16 %v2030
      %v2309 = vunpack.c.l.b16 %v2040
      %v2310 = vunpack.c.l.b16 %v2054
      %v2311 = vunpack.c.l.b16 %v2064
      %v2312 = vunpack.c.l.b16 %v2078
      %v2313 = vunpack.c.l.b16 %v2088
      %v2314 = vunpack.c.l.b16 %v2102
      %v2315 = vunpack.c.l.b16 %v2112
      %v2316 = vunpack.c.l.b16 %v2126
      %v2317 = vunpack.c.l.b16 %v2136
      %v2318 = vunpack.c.l.b16 %v2150
      %v2319 = vunpack.c.l.b16 %v2160
      %v2320 = vunpack.c.l.b16 %v2174
      %v2321 = vunpack.c.l.b16 %v2184
      %v2322 = vunpack.c.l.b16 %v2198
      %v2323 = vunpack.c.l.b16 %v2208
      %v2324 = vunpack.c.l.b16 %v2222
      %v2325 = vunpack.c.l.b16 %v2232
      %v2326 = vunpack.c.l.b16 %v2246
      %v2327 = vunpack.c.l.b16 %v2256
      %v2328 = vunpack.c.l.b16 %v2270
      %v2329 = vunpack.c.l.b16 %v2280
      %v2330 = vpack.c.b16 %v2299, %v2298
      %v2331 = vpack.c.b16 %v2301, %v2300
      %v2332 = vpack.c.b16 %v2303, %v2302
      %v2333 = vpack.c.b16 %v2305, %v2304
      %v2334 = vpack.c.b16 %v2307, %v2306
      %v2335 = vpack.c.b16 %v2309, %v2308
      %v2336 = vpack.c.b16 %v2311, %v2310
      %v2337 = vpack.c.b16 %v2313, %v2312
      %v2338 = vpack.c.b16 %v2315, %v2314
      %v2339 = vpack.c.b16 %v2317, %v2316
      %v2340 = vpack.c.b16 %v2319, %v2318
      %v2341 = vpack.c.b16 %v2321, %v2320
      %v2342 = vpack.c.b16 %v2323, %v2322
      %v2343 = vpack.c.b16 %v2325, %v2324
      %v2344 = vpack.c.b16 %v2327, %v2326
      %v2345 = vpack.c.b16 %v2329, %v2328
      %v2378 = vunpack.c.l.b16 %v2282
      %v2379 = vunpack.c.l.b16 %v2283
      %v2380 = vunpack.c.l.b16 %v2284
      %v2381 = vunpack.c.l.b16 %v2285
      %v2382 = vunpack.c.l.b16 %v2286
      %v2383 = vunpack.c.l.b16 %v2287
      %v2384 = vunpack.c.l.b16 %v2288
      %v2385 = vunpack.c.l.b16 %v2289
      %v2386 = vunpack.c.l.b16 %v2290
      %v2387 = vunpack.c.l.b16 %v2291
      %v2388 = vunpack.c.l.b16 %v2292
      %v2389 = vunpack.c.l.b16 %v2293
      %v2390 = vunpack.c.l.b16 %v2294
      %v2391 = vunpack.c.l.b16 %v2295
      %v2392 = vunpack.c.l.b16 %v2296
      %v2393 = vunpack.c.l.b16 %v2297
      %v2394 = vpack.c.b16 %v2379, %v2378
      %v2395 = vpack.c.b16 %v2381, %v2380
      %v2396 = vpack.c.b16 %v2383, %v2382
      %v2397 = vpack.c.b16 %v2385, %v2384
      %v2398 = vpack.c.b16 %v2387, %v2386
      %v2399 = vpack.c.b16 %v2389, %v2388
      %v2400 = vpack.c.b16 %v2391, %v2390
      %v2401 = vpack.c.b16 %v2393, %v2392
      %2410 = vmatpush.bf16.msra.mxu0 %v2401
      %2411 = vmatpush.bf16.msra.mxu0 %v2400
      %2412 = vmatpush.bf16.msra.mxu0 %v2399
      %2413 = vmatpush.bf16.msra.mxu0 %v2398
      %2414 = vmatpush.bf16.msra.mxu0 %v2397
      %2415 = vmatpush.bf16.msra.mxu0 %v2396
      %2416 = vmatpush.bf16.msra.mxu0 %v2395
      %2417 = vmatpush.bf16.msra.mxu0 %v2394
      %2418 = vmatmul.bf16.gmra.mxu0 %v2330
      %v2419 = vpop.f32.mrf.mxu0
      %v2420 = vadd.f32 0.0, %v2419
      %v2421 = vpop.f32.mrf.mxu0
      %v2422 = vadd.f32 0.0, %v2421
      %2423 = vmatmul.bf16.gmra.mxu0 %v2331
      %v2424 = vpop.f32.mrf.mxu0
      %v2425 = vadd.f32 0.0, %v2424
      %v2426 = vpop.f32.mrf.mxu0
      %v2427 = vadd.f32 0.0, %v2426
      %2428 = vmatmul.bf16.gmra.mxu0 %v2332
      %v2429 = vpop.f32.mrf.mxu0
      %v2430 = vadd.f32 0.0, %v2429
      %v2431 = vpop.f32.mrf.mxu0
      %v2432 = vadd.f32 0.0, %v2431
      %2433 = vmatmul.bf16.gmra.mxu0 %v2333
      %v2434 = vpop.f32.mrf.mxu0
      %v2435 = vadd.f32 0.0, %v2434
      %v2436 = vpop.f32.mrf.mxu0
      %v2437 = vadd.f32 0.0, %v2436
      %2438 = vmatmul.bf16.gmra.mxu0 %v2334
      %v2439 = vpop.f32.mrf.mxu0
      %v2440 = vadd.f32 0.0, %v2439
      %v2441 = vpop.f32.mrf.mxu0
      %v2442 = vadd.f32 0.0, %v2441
      %2443 = vmatmul.bf16.gmra.mxu0 %v2335
      %v2444 = vpop.f32.mrf.mxu0
      %v2445 = vadd.f32 0.0, %v2444
      %v2446 = vpop.f32.mrf.mxu0
      %v2447 = vadd.f32 0.0, %v2446
      %2448 = vmatmul.bf16.gmra.mxu0 %v2336
      %v2449 = vpop.f32.mrf.mxu0
      %v2450 = vadd.f32 0.0, %v2449
      %v2451 = vpop.f32.mrf.mxu0
      %v2452 = vadd.f32 0.0, %v2451
      %2453 = vmatmul.bf16.gmra.mxu0 %v2337
      %v2454 = vpop.f32.mrf.mxu0
      %v2455 = vadd.f32 0.0, %v2454
      %v2456 = vpop.f32.mrf.mxu0
      %v2457 = vadd.f32 0.0, %v2456
      %2458 = vmatmul.bf16.gmra.mxu0 %v2338
      %v2459 = vpop.f32.mrf.mxu0
      %v2460 = vadd.f32 0.0, %v2459
      %v2461 = vpop.f32.mrf.mxu0
      %v2462 = vadd.f32 0.0, %v2461
      %2463 = vmatmul.bf16.gmra.mxu0 %v2339
      %v2464 = vpop.f32.mrf.mxu0
      %v2465 = vadd.f32 0.0, %v2464
      %v2466 = vpop.f32.mrf.mxu0
      %v2467 = vadd.f32 0.0, %v2466
      %2468 = vmatmul.bf16.gmra.mxu0 %v2340
      %v2469 = vpop.f32.mrf.mxu0
      %v2470 = vadd.f32 0.0, %v2469
      %v2471 = vpop.f32.mrf.mxu0
      %v2472 = vadd.f32 0.0, %v2471
      %2473 = vmatmul.bf16.gmra.mxu0 %v2341
      %v2474 = vpop.f32.mrf.mxu0
      %v2475 = vadd.f32 0.0, %v2474
      %v2476 = vpop.f32.mrf.mxu0
      %v2477 = vadd.f32 0.0, %v2476
      %2478 = vmatmul.bf16.gmra.mxu0 %v2342
      %v2479 = vpop.f32.mrf.mxu0
      %v2480 = vadd.f32 0.0, %v2479
      %v2481 = vpop.f32.mrf.mxu0
      %v2482 = vadd.f32 0.0, %v2481
      %2483 = vmatmul.bf16.gmra.mxu0 %v2343
      %v2484 = vpop.f32.mrf.mxu0
      %v2485 = vadd.f32 0.0, %v2484
      %v2486 = vpop.f32.mrf.mxu0
      %v2487 = vadd.f32 0.0, %v2486
      %2488 = vmatmul.bf16.gmra.mxu0 %v2344
      %v2489 = vpop.f32.mrf.mxu0
      %v2490 = vadd.f32 0.0, %v2489
      %v2491 = vpop.f32.mrf.mxu0
      %v2492 = vadd.f32 0.0, %v2491
      %2493 = vmatmul.bf16.gmra.mxu0 %v2345
      %v2494 = vpop.f32.mrf.mxu0
      %v2495 = vadd.f32 0.0, %v2494
      %v2496 = vpop.f32.mrf.mxu0
      %v2497 = vadd.f32 0.0, %v2496
      %2498 = vdwg.mxu0
      %v2499 = vadd.f32 %v1817, %v2420
      %v2500 = vadd.f32 %v1818, %v2422
      %v2501 = vadd.f32 %v1819, %v2425
      %v2502 = vadd.f32 %v1820, %v2427
      %v2503 = vadd.f32 %v1821, %v2430
      %v2504 = vadd.f32 %v1822, %v2432
      %v2505 = vadd.f32 %v1823, %v2435
      %v2506 = vadd.f32 %v1824, %v2437
      %v2507 = vadd.f32 %v1825, %v2440
      %v2508 = vadd.f32 %v1826, %v2442
      %v2509 = vadd.f32 %v1827, %v2445
      %v2510 = vadd.f32 %v1828, %v2447
      %v2511 = vadd.f32 %v1829, %v2450
      %v2512 = vadd.f32 %v1830, %v2452
      %v2513 = vadd.f32 %v1831, %v2455
      %v2514 = vadd.f32 %v1832, %v2457
      %v2515 = vadd.f32 %v1833, %v2460
      %v2516 = vadd.f32 %v1834, %v2462
      %v2517 = vadd.f32 %v1835, %v2465
      %v2518 = vadd.f32 %v1836, %v2467
      %v2519 = vadd.f32 %v1837, %v2470
      %v2520 = vadd.f32 %v1838, %v2472
      %v2521 = vadd.f32 %v1839, %v2475
      %v2522 = vadd.f32 %v1840, %v2477
      %v2523 = vadd.f32 %v1841, %v2480
      %v2524 = vadd.f32 %v1842, %v2482
      %v2525 = vadd.f32 %v1843, %v2485
      %v2526 = vadd.f32 %v1844, %v2487
      %v2527 = vadd.f32 %v1845, %v2490
      %v2528 = vadd.f32 %v1846, %v2492
      %v2529 = vadd.f32 %v1847, %v2495
      %v2530 = vadd.f32 %v1848, %v2497
      %v2531 = vld [vmem:[%s1534] sm:$0xe]
      %v2532 = vld [vmem:[%s1534 + $0xc] sm:$0xe]
      %v2533 = vld [vmem:[%s1534 + $0x18] sm:$0xe]
      %v2534 = vld [vmem:[%s1534 + $0x24] sm:$0xe]
      %v2535 = vld [vmem:[%s1534 + $0x30] sm:$0xe]
      %v2536 = vld [vmem:[%s1534 + $0x3c] sm:$0xe]
      %v2537 = vld [vmem:[%s1534 + $0x48] sm:$0xe]
      %v2538 = vld [vmem:[%s1534 + $0x54] sm:$0xe]
      %v2539 = vld [vmem:[%s1534 + $0x60] sm:$0xe]
      %v2540 = vld [vmem:[%s1534 + $0x6c] sm:$0xe]
      %v2541 = vld [vmem:[%s1534 + $0x78] sm:$0xe]
      %v2542 = vld [vmem:[%s1534 + $0x84] sm:$0xe]
      %v2543 = vld [vmem:[%s1534 + $0x90] sm:$0xe]
      %v2544 = vld [vmem:[%s1534 + $0x9c] sm:$0xe]
      %v2545 = vld [vmem:[%s1534 + $0xa8] sm:$0xe]
      %v2546 = vld [vmem:[%s1534 + $0xb4] sm:$0xe]
      %v2595 = vrot.slane %v2531, 5
      %v2596 = vrot.slane %v2595, 4
      %v2597 = vrot.slane %v1850, 5
      %v2598 = vsel %vm1171, %v2596, %v2597
      %v2599 = vrot.slane %v2597, 4
      %v2600 = vrot.slane %v1851, 5
      %v2601 = vsel %vm1171, %v2599, %v2600
      %v2602 = vrot.slane %v2532, 5
      %v2603 = vrot.slane %v2602, 4
      %v2604 = vrot.slane %v1853, 5
      %v2605 = vsel %vm1171, %v2603, %v2604
      %v2606 = vrot.slane %v2604, 4
      %v2607 = vrot.slane %v1854, 5
      %v2608 = vsel %vm1171, %v2606, %v2607
      %v2609 = vrot.slane %v2533, 5
      %v2610 = vrot.slane %v2609, 4
      %v2611 = vrot.slane %v1856, 5
      %v2612 = vsel %vm1171, %v2610, %v2611
      %v2613 = vrot.slane %v2611, 4
      %v2614 = vrot.slane %v1857, 5
      %v2615 = vsel %vm1171, %v2613, %v2614
      %v2616 = vrot.slane %v2534, 5
      %v2617 = vrot.slane %v2616, 4
      %v2618 = vrot.slane %v1859, 5
      %v2619 = vsel %vm1171, %v2617, %v2618
      %v2620 = vrot.slane %v2618, 4
      %v2621 = vrot.slane %v1860, 5
      %v2622 = vsel %vm1171, %v2620, %v2621
      %v2623 = vrot.slane %v2535, 5
      %v2624 = vrot.slane %v2623, 4
      %v2625 = vrot.slane %v1862, 5
      %v2626 = vsel %vm1171, %v2624, %v2625
      %v2627 = vrot.slane %v2625, 4
      %v2628 = vrot.slane %v1863, 5
      %v2629 = vsel %vm1171, %v2627, %v2628
      %v2630 = vrot.slane %v2536, 5
      %v2631 = vrot.slane %v2630, 4
      %v2632 = vrot.slane %v1865, 5
      %v2633 = vsel %vm1171, %v2631, %v2632
      %v2634 = vrot.slane %v2632, 4
      %v2635 = vrot.slane %v1866, 5
      %v2636 = vsel %vm1171, %v2634, %v2635
      %v2637 = vrot.slane %v2537, 5
      %v2638 = vrot.slane %v2637, 4
      %v2639 = vrot.slane %v1868, 5
      %v2640 = vsel %vm1171, %v2638, %v2639
      %v2641 = vrot.slane %v2639, 4
      %v2642 = vrot.slane %v1869, 5
      %v2643 = vsel %vm1171, %v2641, %v2642
      %v2644 = vrot.slane %v2538, 5
      %v2645 = vrot.slane %v2644, 4
      %v2646 = vrot.slane %v1871, 5
      %v2647 = vsel %vm1171, %v2645, %v2646
      %v2648 = vrot.slane %v2646, 4
      %v2649 = vrot.slane %v1872, 5
      %v2650 = vsel %vm1171, %v2648, %v2649
      %v2651 = vrot.slane %v2539, 5
      %v2652 = vrot.slane %v2651, 4
      %v2653 = vrot.slane %v1874, 5
      %v2654 = vsel %vm1171, %v2652, %v2653
      %v2655 = vrot.slane %v2653, 4
      %v2656 = vrot.slane %v1875, 5
      %v2657 = vsel %vm1171, %v2655, %v2656
      %v2658 = vrot.slane %v2540, 5
      %v2659 = vrot.slane %v2658, 4
      %v2660 = vrot.slane %v1877, 5
      %v2661 = vsel %vm1171, %v2659, %v2660
      %v2662 = vrot.slane %v2660, 4
      %v2663 = vrot.slane %v1878, 5
      %v2664 = vsel %vm1171, %v2662, %v2663
      %v2665 = vrot.slane %v2541, 5
      %v2666 = vrot.slane %v2665, 4
      %v2667 = vrot.slane %v1880, 5
      %v2668 = vsel %vm1171, %v2666, %v2667
      %v2669 = vrot.slane %v2667, 4
      %v2670 = vrot.slane %v1881, 5
      %v2671 = vsel %vm1171, %v2669, %v2670
      %v2672 = vrot.slane %v2542, 5
      %v2673 = vrot.slane %v2672, 4
      %v2674 = vrot.slane %v1883, 5
      %v2675 = vsel %vm1171, %v2673, %v2674
      %v2676 = vrot.slane %v2674, 4
      %v2677 = vrot.slane %v1884, 5
      %v2678 = vsel %vm1171, %v2676, %v2677
      %v2679 = vrot.slane %v2543, 5
      %v2680 = vrot.slane %v2679, 4
      %v2681 = vrot.slane %v1886, 5
      %v2682 = vsel %vm1171, %v2680, %v2681
      %v2683 = vrot.slane %v2681, 4
      %v2684 = vrot.slane %v1887, 5
      %v2685 = vsel %vm1171, %v2683, %v2684
      %v2686 = vrot.slane %v2544, 5
      %v2687 = vrot.slane %v2686, 4
      %v2688 = vrot.slane %v1889, 5
      %v2689 = vsel %vm1171, %v2687, %v2688
      %v2690 = vrot.slane %v2688, 4
      %v2691 = vrot.slane %v1890, 5
      %v2692 = vsel %vm1171, %v2690, %v2691
      %v2693 = vrot.slane %v2545, 5
      %v2694 = vrot.slane %v2693, 4
      %v2695 = vrot.slane %v1892, 5
      %v2696 = vsel %vm1171, %v2694, %v2695
      %v2697 = vrot.slane %v2695, 4
      %v2698 = vrot.slane %v1893, 5
      %v2699 = vsel %vm1171, %v2697, %v2698
      %v2700 = vrot.slane %v2546, 5
      %v2701 = vrot.slane %v2700, 4
      %v2702 = vrot.slane %v1895, 5
      %v2703 = vsel %vm1171, %v2701, %v2702
      %v2704 = vrot.slane %v2702, 4
      %v2705 = vrot.slane %v1896, 5
      %v2706 = vsel %vm1171, %v2704, %v2705
      %s2707 = scalar_lea.vmem %s1, 320
      %v2708 = vld [vmem:[%s2707] sm:$0xf]
      %v2709 = vld [vmem:[%s2707 + $0x4] sm:$0xf]
      %v2710 = vld [vmem:[%s2707 + $0x8] sm:$0xf]
      %v2711 = vld [vmem:[%s2707 + $0xc] sm:$0xf]
      %v2712 = vld [vmem:[%s2707 + $0x10] sm:$0xf]
      %v2713 = vld [vmem:[%s2707 + $0x14] sm:$0xf]
      %v2714 = vld [vmem:[%s2707 + $0x18] sm:$0xf]
      %v2715 = vld [vmem:[%s2707 + $0x1c] sm:$0xf]
      %v2716 = vld [vmem:[%s2707 + $0x20] sm:$0xf]
      %v2717 = vld [vmem:[%s2707 + $0x24] sm:$0xf]
      %v2718 = vld [vmem:[%s2707 + $0x28] sm:$0xf]
      %v2719 = vld [vmem:[%s2707 + $0x2c] sm:$0xf]
      %v2720 = vld [vmem:[%s2707 + $0x30] sm:$0xf]
      %v2721 = vld [vmem:[%s2707 + $0x34] sm:$0xf]
      %v2722 = vld [vmem:[%s2707 + $0x38] sm:$0xf]
      %v2723 = vld [vmem:[%s2707 + $0x3c] sm:$0xf]
      %v2724 = vunpack.c.l.b16 %v2598
      %v2725 = vunpack.c.l.b16 %v2601
      %v2726 = vunpack.c.l.b16 %v2605
      %v2727 = vunpack.c.l.b16 %v2608
      %v2728 = vunpack.c.l.b16 %v2612
      %v2729 = vunpack.c.l.b16 %v2615
      %v2730 = vunpack.c.l.b16 %v2619
      %v2731 = vunpack.c.l.b16 %v2622
      %v2732 = vunpack.c.l.b16 %v2626
      %v2733 = vunpack.c.l.b16 %v2629
      %v2734 = vunpack.c.l.b16 %v2633
      %v2735 = vunpack.c.l.b16 %v2636
      %v2736 = vunpack.c.l.b16 %v2640
      %v2737 = vunpack.c.l.b16 %v2643
      %v2738 = vunpack.c.l.b16 %v2647
      %v2739 = vunpack.c.l.b16 %v2650
      %v2740 = vunpack.c.l.b16 %v2654
      %v2741 = vunpack.c.l.b16 %v2657
      %v2742 = vunpack.c.l.b16 %v2661
      %v2743 = vunpack.c.l.b16 %v2664
      %v2744 = vunpack.c.l.b16 %v2668
      %v2745 = vunpack.c.l.b16 %v2671
      %v2746 = vunpack.c.l.b16 %v2675
      %v2747 = vunpack.c.l.b16 %v2678
      %v2748 = vunpack.c.l.b16 %v2682
      %v2749 = vunpack.c.l.b16 %v2685
      %v2750 = vunpack.c.l.b16 %v2689
      %v2751 = vunpack.c.l.b16 %v2692
      %v2752 = vunpack.c.l.b16 %v2696
      %v2753 = vunpack.c.l.b16 %v2699
      %v2754 = vunpack.c.l.b16 %v2703
      %v2755 = vunpack.c.l.b16 %v2706
      %v2756 = vpack.c.b16 %v2725, %v2724
      %v2757 = vpack.c.b16 %v2727, %v2726
      %v2758 = vpack.c.b16 %v2729, %v2728
      %v2759 = vpack.c.b16 %v2731, %v2730
      %v2760 = vpack.c.b16 %v2733, %v2732
      %v2761 = vpack.c.b16 %v2735, %v2734
      %v2762 = vpack.c.b16 %v2737, %v2736
      %v2763 = vpack.c.b16 %v2739, %v2738
      %v2764 = vpack.c.b16 %v2741, %v2740
      %v2765 = vpack.c.b16 %v2743, %v2742
      %v2766 = vpack.c.b16 %v2745, %v2744
      %v2767 = vpack.c.b16 %v2747, %v2746
      %v2768 = vpack.c.b16 %v2749, %v2748
      %v2769 = vpack.c.b16 %v2751, %v2750
      %v2770 = vpack.c.b16 %v2753, %v2752
      %v2771 = vpack.c.b16 %v2755, %v2754
      %v2804 = vunpack.c.l.b16 %v2708
      %v2805 = vunpack.c.l.b16 %v2709
      %v2806 = vunpack.c.l.b16 %v2710
      %v2807 = vunpack.c.l.b16 %v2711
      %v2808 = vunpack.c.l.b16 %v2712
      %v2809 = vunpack.c.l.b16 %v2713
      %v2810 = vunpack.c.l.b16 %v2714
      %v2811 = vunpack.c.l.b16 %v2715
      %v2812 = vunpack.c.l.b16 %v2716
      %v2813 = vunpack.c.l.b16 %v2717
      %v2814 = vunpack.c.l.b16 %v2718
      %v2815 = vunpack.c.l.b16 %v2719
      %v2816 = vunpack.c.l.b16 %v2720
      %v2817 = vunpack.c.l.b16 %v2721
      %v2818 = vunpack.c.l.b16 %v2722
      %v2819 = vunpack.c.l.b16 %v2723
      %v2820 = vpack.c.b16 %v2805, %v2804
      %v2821 = vpack.c.b16 %v2807, %v2806
      %v2822 = vpack.c.b16 %v2809, %v2808
      %v2823 = vpack.c.b16 %v2811, %v2810
      %v2824 = vpack.c.b16 %v2813, %v2812
      %v2825 = vpack.c.b16 %v2815, %v2814
      %v2826 = vpack.c.b16 %v2817, %v2816
      %v2827 = vpack.c.b16 %v2819, %v2818
      %2836 = vmatpush.bf16.msra.mxu0 %v2827
      %2837 = vmatpush.bf16.msra.mxu0 %v2826
      %2838 = vmatpush.bf16.msra.mxu0 %v2825
      %2839 = vmatpush.bf16.msra.mxu0 %v2824
      %2840 = vmatpush.bf16.msra.mxu0 %v2823
      %2841 = vmatpush.bf16.msra.mxu0 %v2822
      %2842 = vmatpush.bf16.msra.mxu0 %v2821
      %2843 = vmatpush.bf16.msra.mxu0 %v2820
      %2844 = vmatmul.bf16.gmra.mxu0 %v2756
      %v2845 = vpop.f32.mrf.mxu0
      %v2846 = vadd.f32 0.0, %v2845
      %v2847 = vpop.f32.mrf.mxu0
      %v2848 = vadd.f32 0.0, %v2847
      %2849 = vmatmul.bf16.gmra.mxu0 %v2757
      %v2850 = vpop.f32.mrf.mxu0
      %v2851 = vadd.f32 0.0, %v2850
      %v2852 = vpop.f32.mrf.mxu0
      %v2853 = vadd.f32 0.0, %v2852
      %2854 = vmatmul.bf16.gmra.mxu0 %v2758
      %v2855 = vpop.f32.mrf.mxu0
      %v2856 = vadd.f32 0.0, %v2855
      %v2857 = vpop.f32.mrf.mxu0
      %v2858 = vadd.f32 0.0, %v2857
      %2859 = vmatmul.bf16.gmra.mxu0 %v2759
      %v2860 = vpop.f32.mrf.mxu0
      %v2861 = vadd.f32 0.0, %v2860
      %v2862 = vpop.f32.mrf.mxu0
      %v2863 = vadd.f32 0.0, %v2862
      %2864 = vmatmul.bf16.gmra.mxu0 %v2760
      %v2865 = vpop.f32.mrf.mxu0
      %v2866 = vadd.f32 0.0, %v2865
      %v2867 = vpop.f32.mrf.mxu0
      %v2868 = vadd.f32 0.0, %v2867
      %2869 = vmatmul.bf16.gmra.mxu0 %v2761
      %v2870 = vpop.f32.mrf.mxu0
      %v2871 = vadd.f32 0.0, %v2870
      %v2872 = vpop.f32.mrf.mxu0
      %v2873 = vadd.f32 0.0, %v2872
      %2874 = vmatmul.bf16.gmra.mxu0 %v2762
      %v2875 = vpop.f32.mrf.mxu0
      %v2876 = vadd.f32 0.0, %v2875
      %v2877 = vpop.f32.mrf.mxu0
      %v2878 = vadd.f32 0.0, %v2877
      %2879 = vmatmul.bf16.gmra.mxu0 %v2763
      %v2880 = vpop.f32.mrf.mxu0
      %v2881 = vadd.f32 0.0, %v2880
      %v2882 = vpop.f32.mrf.mxu0
      %v2883 = vadd.f32 0.0, %v2882
      %2884 = vmatmul.bf16.gmra.mxu0 %v2764
      %v2885 = vpop.f32.mrf.mxu0
      %v2886 = vadd.f32 0.0, %v2885
      %v2887 = vpop.f32.mrf.mxu0
      %v2888 = vadd.f32 0.0, %v2887
      %2889 = vmatmul.bf16.gmra.mxu0 %v2765
      %v2890 = vpop.f32.mrf.mxu0
      %v2891 = vadd.f32 0.0, %v2890
      %v2892 = vpop.f32.mrf.mxu0
      %v2893 = vadd.f32 0.0, %v2892
      %2894 = vmatmul.bf16.gmra.mxu0 %v2766
      %v2895 = vpop.f32.mrf.mxu0
      %v2896 = vadd.f32 0.0, %v2895
      %v2897 = vpop.f32.mrf.mxu0
      %v2898 = vadd.f32 0.0, %v2897
      %2899 = vmatmul.bf16.gmra.mxu0 %v2767
      %v2900 = vpop.f32.mrf.mxu0
      %v2901 = vadd.f32 0.0, %v2900
      %v2902 = vpop.f32.mrf.mxu0
      %v2903 = vadd.f32 0.0, %v2902
      %2904 = vmatmul.bf16.gmra.mxu0 %v2768
      %v2905 = vpop.f32.mrf.mxu0
      %v2906 = vadd.f32 0.0, %v2905
      %v2907 = vpop.f32.mrf.mxu0
      %v2908 = vadd.f32 0.0, %v2907
      %2909 = vmatmul.bf16.gmra.mxu0 %v2769
      %v2910 = vpop.f32.mrf.mxu0
      %v2911 = vadd.f32 0.0, %v2910
      %v2912 = vpop.f32.mrf.mxu0
      %v2913 = vadd.f32 0.0, %v2912
      %2914 = vmatmul.bf16.gmra.mxu0 %v2770
      %v2915 = vpop.f32.mrf.mxu0
      %v2916 = vadd.f32 0.0, %v2915
      %v2917 = vpop.f32.mrf.mxu0
      %v2918 = vadd.f32 0.0, %v2917
      %2919 = vmatmul.bf16.gmra.mxu0 %v2771
      %v2920 = vpop.f32.mrf.mxu0
      %v2921 = vadd.f32 0.0, %v2920
      %v2922 = vpop.f32.mrf.mxu0
      %v2923 = vadd.f32 0.0, %v2922
      %2924 = vdwg.mxu0
      %v2925 = vadd.f32 %v2499, %v2846
      %v2926 = vadd.f32 %v2500, %v2848
      %v2927 = vadd.f32 %v2501, %v2851
      %v2928 = vadd.f32 %v2502, %v2853
      %v2929 = vadd.f32 %v2503, %v2856
      %v2930 = vadd.f32 %v2504, %v2858
      %v2931 = vadd.f32 %v2505, %v2861
      %v2932 = vadd.f32 %v2506, %v2863
      %v2933 = vadd.f32 %v2507, %v2866
      %v2934 = vadd.f32 %v2508, %v2868
      %v2935 = vadd.f32 %v2509, %v2871
      %v2936 = vadd.f32 %v2510, %v2873
      %v2937 = vadd.f32 %v2511, %v2876
      %v2938 = vadd.f32 %v2512, %v2878
      %v2939 = vadd.f32 %v2513, %v2881
      %v2940 = vadd.f32 %v2514, %v2883
      %v2941 = vadd.f32 %v2515, %v2886
      %v2942 = vadd.f32 %v2516, %v2888
      %v2943 = vadd.f32 %v2517, %v2891
      %v2944 = vadd.f32 %v2518, %v2893
      %v2945 = vadd.f32 %v2519, %v2896
      %v2946 = vadd.f32 %v2520, %v2898
      %v2947 = vadd.f32 %v2521, %v2901
      %v2948 = vadd.f32 %v2522, %v2903
      %v2949 = vadd.f32 %v2523, %v2906
      %v2950 = vadd.f32 %v2524, %v2908
      %v2951 = vadd.f32 %v2525, %v2911
      %v2952 = vadd.f32 %v2526, %v2913
      %v2953 = vadd.f32 %v2527, %v2916
      %v2954 = vadd.f32 %v2528, %v2918
      %v2955 = vadd.f32 %v2529, %v2921
      %v2956 = vadd.f32 %v2530, %v2923
      %s2957 = scalar_lea.vmem %s205, 24
      %v2958 = vld [vmem:[%s2957] sm:$0xf]
      %v2959 = vld [vmem:[%s2957 + $0x4] sm:$0xf]
      %v2960 = vld [vmem:[%s2957 + $0xc] sm:$0xf]
      %v2961 = vld [vmem:[%s2957 + $0x10] sm:$0xf]
      %v2962 = vld [vmem:[%s2957 + $0x18] sm:$0xf]
      %v2963 = vld [vmem:[%s2957 + $0x1c] sm:$0xf]
      %v2964 = vld [vmem:[%s2957 + $0x24] sm:$0xf]
      %v2965 = vld [vmem:[%s2957 + $0x28] sm:$0xf]
      %v2966 = vld [vmem:[%s2957 + $0x30] sm:$0xf]
      %v2967 = vld [vmem:[%s2957 + $0x34] sm:$0xf]
      %v2968 = vld [vmem:[%s2957 + $0x3c] sm:$0xf]
      %v2969 = vld [vmem:[%s2957 + $0x40] sm:$0xf]
      %v2970 = vld [vmem:[%s2957 + $0x48] sm:$0xf]
      %v2971 = vld [vmem:[%s2957 + $0x4c] sm:$0xf]
      %v2972 = vld [vmem:[%s2957 + $0x54] sm:$0xf]
      %v2973 = vld [vmem:[%s2957 + $0x58] sm:$0xf]
      %v2974 = vld [vmem:[%s2957 + $0x60] sm:$0xf]
      %v2975 = vld [vmem:[%s2957 + $0x64] sm:$0xf]
      %v2976 = vld [vmem:[%s2957 + $0x6c] sm:$0xf]
      %v2977 = vld [vmem:[%s2957 + $0x70] sm:$0xf]
      %v2978 = vld [vmem:[%s2957 + $0x78] sm:$0xf]
      %v2979 = vld [vmem:[%s2957 + $0x7c] sm:$0xf]
      %v2980 = vld [vmem:[%s2957 + $0x84] sm:$0xf]
      %v2981 = vld [vmem:[%s2957 + $0x88] sm:$0xf]
      %v2982 = vld [vmem:[%s2957 + $0x90] sm:$0xf]
      %v2983 = vld [vmem:[%s2957 + $0x94] sm:$0xf]
      %v2984 = vld [vmem:[%s2957 + $0x9c] sm:$0xf]
      %v2985 = vld [vmem:[%s2957 + $0xa0] sm:$0xf]
      %v2986 = vld [vmem:[%s2957 + $0xa8] sm:$0xf]
      %v2987 = vld [vmem:[%s2957 + $0xac] sm:$0xf]
      %v2988 = vld [vmem:[%s2957 + $0xb4] sm:$0xf]
      %v2989 = vld [vmem:[%s2957 + $0xb8] sm:$0xf]
      %s2990 = scalar_lea.vmem %s1, 384
      %v2991 = vld [vmem:[%s2990] sm:$0xf]
      %v2992 = vld [vmem:[%s2990 + $0x4] sm:$0xf]
      %v2993 = vld [vmem:[%s2990 + $0x8] sm:$0xf]
      %v2994 = vld [vmem:[%s2990 + $0xc] sm:$0xf]
      %v2995 = vld [vmem:[%s2990 + $0x10] sm:$0xf]
      %v2996 = vld [vmem:[%s2990 + $0x14] sm:$0xf]
      %v2997 = vld [vmem:[%s2990 + $0x18] sm:$0xf]
      %v2998 = vld [vmem:[%s2990 + $0x1c] sm:$0xf]
      %v2999 = vld [vmem:[%s2990 + $0x20] sm:$0xf]
      %v3000 = vld [vmem:[%s2990 + $0x24] sm:$0xf]
      %v3001 = vld [vmem:[%s2990 + $0x28] sm:$0xf]
      %v3002 = vld [vmem:[%s2990 + $0x2c] sm:$0xf]
      %v3003 = vld [vmem:[%s2990 + $0x30] sm:$0xf]
      %v3004 = vld [vmem:[%s2990 + $0x34] sm:$0xf]
      %v3005 = vld [vmem:[%s2990 + $0x38] sm:$0xf]
      %v3006 = vld [vmem:[%s2990 + $0x3c] sm:$0xf]
      %v3039 = vunpack.c.l.b16 %v2958
      %v3040 = vunpack.c.l.b16 %v2959
      %v3041 = vunpack.c.l.b16 %v2960
      %v3042 = vunpack.c.l.b16 %v2961
      %v3043 = vunpack.c.l.b16 %v2962
      %v3044 = vunpack.c.l.b16 %v2963
      %v3045 = vunpack.c.l.b16 %v2964
      %v3046 = vunpack.c.l.b16 %v2965
      %v3047 = vunpack.c.l.b16 %v2966
      %v3048 = vunpack.c.l.b16 %v2967
      %v3049 = vunpack.c.l.b16 %v2968
      %v3050 = vunpack.c.l.b16 %v2969
      %v3051 = vunpack.c.l.b16 %v2970
      %v3052 = vunpack.c.l.b16 %v2971
      %v3053 = vunpack.c.l.b16 %v2972
      %v3054 = vunpack.c.l.b16 %v2973
      %v3055 = vunpack.c.l.b16 %v2974
      %v3056 = vunpack.c.l.b16 %v2975
      %v3057 = vunpack.c.l.b16 %v2976
      %v3058 = vunpack.c.l.b16 %v2977
      %v3059 = vunpack.c.l.b16 %v2978
      %v3060 = vunpack.c.l.b16 %v2979
      %v3061 = vunpack.c.l.b16 %v2980
      %v3062 = vunpack.c.l.b16 %v2981
      %v3063 = vunpack.c.l.b16 %v2982
      %v3064 = vunpack.c.l.b16 %v2983
      %v3065 = vunpack.c.l.b16 %v2984
      %v3066 = vunpack.c.l.b16 %v2985
      %v3067 = vunpack.c.l.b16 %v2986
      %v3068 = vunpack.c.l.b16 %v2987
      %v3069 = vunpack.c.l.b16 %v2988
      %v3070 = vunpack.c.l.b16 %v2989
      %v3071 = vpack.c.b16 %v3040, %v3039
      %v3072 = vpack.c.b16 %v3042, %v3041
      %v3073 = vpack.c.b16 %v3044, %v3043
      %v3074 = vpack.c.b16 %v3046, %v3045
      %v3075 = vpack.c.b16 %v3048, %v3047
      %v3076 = vpack.c.b16 %v3050, %v3049
      %v3077 = vpack.c.b16 %v3052, %v3051
      %v3078 = vpack.c.b16 %v3054, %v3053
      %v3079 = vpack.c.b16 %v3056, %v3055
      %v3080 = vpack.c.b16 %v3058, %v3057
      %v3081 = vpack.c.b16 %v3060, %v3059
      %v3082 = vpack.c.b16 %v3062, %v3061
      %v3083 = vpack.c.b16 %v3064, %v3063
      %v3084 = vpack.c.b16 %v3066, %v3065
      %v3085 = vpack.c.b16 %v3068, %v3067
      %v3086 = vpack.c.b16 %v3070, %v3069
      %v3119 = vunpack.c.l.b16 %v2991
      %v3120 = vunpack.c.l.b16 %v2992
      %v3121 = vunpack.c.l.b16 %v2993
      %v3122 = vunpack.c.l.b16 %v2994
      %v3123 = vunpack.c.l.b16 %v2995
      %v3124 = vunpack.c.l.b16 %v2996
      %v3125 = vunpack.c.l.b16 %v2997
      %v3126 = vunpack.c.l.b16 %v2998
      %v3127 = vunpack.c.l.b16 %v2999
      %v3128 = vunpack.c.l.b16 %v3000
      %v3129 = vunpack.c.l.b16 %v3001
      %v3130 = vunpack.c.l.b16 %v3002
      %v3131 = vunpack.c.l.b16 %v3003
      %v3132 = vunpack.c.l.b16 %v3004
      %v3133 = vunpack.c.l.b16 %v3005
      %v3134 = vunpack.c.l.b16 %v3006
      %v3135 = vpack.c.b16 %v3120, %v3119
      %v3136 = vpack.c.b16 %v3122, %v3121
      %v3137 = vpack.c.b16 %v3124, %v3123
      %v3138 = vpack.c.b16 %v3126, %v3125
      %v3139 = vpack.c.b16 %v3128, %v3127
      %v3140 = vpack.c.b16 %v3130, %v3129
      %v3141 = vpack.c.b16 %v3132, %v3131
      %v3142 = vpack.c.b16 %v3134, %v3133
      %3151 = vmatpush.bf16.msra.mxu0 %v3142
      %3152 = vmatpush.bf16.msra.mxu0 %v3141
      %3153 = vmatpush.bf16.msra.mxu0 %v3140
      %3154 = vmatpush.bf16.msra.mxu0 %v3139
      %3155 = vmatpush.bf16.msra.mxu0 %v3138
      %3156 = vmatpush.bf16.msra.mxu0 %v3137
      %3157 = vmatpush.bf16.msra.mxu0 %v3136
      %3158 = vmatpush.bf16.msra.mxu0 %v3135
      %3159 = vmatmul.bf16.gmra.mxu0 %v3071
      %v3160 = vpop.f32.mrf.mxu0
      %v3161 = vadd.f32 0.0, %v3160
      %v3162 = vpop.f32.mrf.mxu0
      %v3163 = vadd.f32 0.0, %v3162
      %3164 = vmatmul.bf16.gmra.mxu0 %v3072
      %v3165 = vpop.f32.mrf.mxu0
      %v3166 = vadd.f32 0.0, %v3165
      %v3167 = vpop.f32.mrf.mxu0
      %v3168 = vadd.f32 0.0, %v3167
      %3169 = vmatmul.bf16.gmra.mxu0 %v3073
      %v3170 = vpop.f32.mrf.mxu0
      %v3171 = vadd.f32 0.0, %v3170
      %v3172 = vpop.f32.mrf.mxu0
      %v3173 = vadd.f32 0.0, %v3172
      %3174 = vmatmul.bf16.gmra.mxu0 %v3074
      %v3175 = vpop.f32.mrf.mxu0
      %v3176 = vadd.f32 0.0, %v3175
      %v3177 = vpop.f32.mrf.mxu0
      %v3178 = vadd.f32 0.0, %v3177
      %3179 = vmatmul.bf16.gmra.mxu0 %v3075
      %v3180 = vpop.f32.mrf.mxu0
      %v3181 = vadd.f32 0.0, %v3180
      %v3182 = vpop.f32.mrf.mxu0
      %v3183 = vadd.f32 0.0, %v3182
      %3184 = vmatmul.bf16.gmra.mxu0 %v3076
      %v3185 = vpop.f32.mrf.mxu0
      %v3186 = vadd.f32 0.0, %v3185
      %v3187 = vpop.f32.mrf.mxu0
      %v3188 = vadd.f32 0.0, %v3187
      %3189 = vmatmul.bf16.gmra.mxu0 %v3077
      %v3190 = vpop.f32.mrf.mxu0
      %v3191 = vadd.f32 0.0, %v3190
      %v3192 = vpop.f32.mrf.mxu0
      %v3193 = vadd.f32 0.0, %v3192
      %3194 = vmatmul.bf16.gmra.mxu0 %v3078
      %v3195 = vpop.f32.mrf.mxu0
      %v3196 = vadd.f32 0.0, %v3195
      %v3197 = vpop.f32.mrf.mxu0
      %v3198 = vadd.f32 0.0, %v3197
      %3199 = vmatmul.bf16.gmra.mxu0 %v3079
      %v3200 = vpop.f32.mrf.mxu0
      %v3201 = vadd.f32 0.0, %v3200
      %v3202 = vpop.f32.mrf.mxu0
      %v3203 = vadd.f32 0.0, %v3202
      %3204 = vmatmul.bf16.gmra.mxu0 %v3080
      %v3205 = vpop.f32.mrf.mxu0
      %v3206 = vadd.f32 0.0, %v3205
      %v3207 = vpop.f32.mrf.mxu0
      %v3208 = vadd.f32 0.0, %v3207
      %3209 = vmatmul.bf16.gmra.mxu0 %v3081
      %v3210 = vpop.f32.mrf.mxu0
      %v3211 = vadd.f32 0.0, %v3210
      %v3212 = vpop.f32.mrf.mxu0
      %v3213 = vadd.f32 0.0, %v3212
      %3214 = vmatmul.bf16.gmra.mxu0 %v3082
      %v3215 = vpop.f32.mrf.mxu0
      %v3216 = vadd.f32 0.0, %v3215
      %v3217 = vpop.f32.mrf.mxu0
      %v3218 = vadd.f32 0.0, %v3217
      %3219 = vmatmul.bf16.gmra.mxu0 %v3083
      %v3220 = vpop.f32.mrf.mxu0
      %v3221 = vadd.f32 0.0, %v3220
      %v3222 = vpop.f32.mrf.mxu0
      %v3223 = vadd.f32 0.0, %v3222
      %3224 = vmatmul.bf16.gmra.mxu0 %v3084
      %v3225 = vpop.f32.mrf.mxu0
      %v3226 = vadd.f32 0.0, %v3225
      %v3227 = vpop.f32.mrf.mxu0
      %v3228 = vadd.f32 0.0, %v3227
      %3229 = vmatmul.bf16.gmra.mxu0 %v3085
      %v3230 = vpop.f32.mrf.mxu0
      %v3231 = vadd.f32 0.0, %v3230
      %v3232 = vpop.f32.mrf.mxu0
      %v3233 = vadd.f32 0.0, %v3232
      %3234 = vmatmul.bf16.gmra.mxu0 %v3086
      %v3235 = vpop.f32.mrf.mxu0
      %v3236 = vadd.f32 0.0, %v3235
      %v3237 = vpop.f32.mrf.mxu0
      %v3238 = vadd.f32 0.0, %v3237
      %3239 = vdwg.mxu0
      %v3240 = vadd.f32 %v2925, %v3161
      %v3241 = vadd.f32 %v2926, %v3163
      %v3242 = vadd.f32 %v2927, %v3166
      %v3243 = vadd.f32 %v2928, %v3168
      %v3244 = vadd.f32 %v2929, %v3171
      %v3245 = vadd.f32 %v2930, %v3173
      %v3246 = vadd.f32 %v2931, %v3176
      %v3247 = vadd.f32 %v2932, %v3178
      %v3248 = vadd.f32 %v2933, %v3181
      %v3249 = vadd.f32 %v2934, %v3183
      %v3250 = vadd.f32 %v2935, %v3186
      %v3251 = vadd.f32 %v2936, %v3188
      %v3252 = vadd.f32 %v2937, %v3191
      %v3253 = vadd.f32 %v2938, %v3193
      %v3254 = vadd.f32 %v2939, %v3196
      %v3255 = vadd.f32 %v2940, %v3198
      %v3256 = vadd.f32 %v2941, %v3201
      %v3257 = vadd.f32 %v2942, %v3203
      %v3258 = vadd.f32 %v2943, %v3206
      %v3259 = vadd.f32 %v2944, %v3208
      %v3260 = vadd.f32 %v2945, %v3211
      %v3261 = vadd.f32 %v2946, %v3213
      %v3262 = vadd.f32 %v2947, %v3216
      %v3263 = vadd.f32 %v2948, %v3218
      %v3264 = vadd.f32 %v2949, %v3221
      %v3265 = vadd.f32 %v2950, %v3223
      %v3266 = vadd.f32 %v2951, %v3226
      %v3267 = vadd.f32 %v2952, %v3228
      %v3268 = vadd.f32 %v2953, %v3231
      %v3269 = vadd.f32 %v2954, %v3233
      %v3270 = vadd.f32 %v2955, %v3236
      %v3271 = vadd.f32 %v2956, %v3238
      %v3272 = vld [vmem:[%s2957] sm:$0xf]
      %v3273 = vld [vmem:[%s2957 + $0x4] sm:$0xf]
      %v3274 = vld [vmem:[%s2957 + $0x8] sm:$0x1]
      %v3275 = vld [vmem:[%s2957 + $0xc] sm:$0xf]
      %v3276 = vld [vmem:[%s2957 + $0x10] sm:$0xf]
      %v3277 = vld [vmem:[%s2957 + $0x14] sm:$0x1]
      %v3278 = vld [vmem:[%s2957 + $0x18] sm:$0xf]
      %v3279 = vld [vmem:[%s2957 + $0x1c] sm:$0xf]
      %v3280 = vld [vmem:[%s2957 + $0x20] sm:$0x1]
      %v3281 = vld [vmem:[%s2957 + $0x24] sm:$0xf]
      %v3282 = vld [vmem:[%s2957 + $0x28] sm:$0xf]
      %v3283 = vld [vmem:[%s2957 + $0x2c] sm:$0x1]
      %v3284 = vld [vmem:[%s2957 + $0x30] sm:$0xf]
      %v3285 = vld [vmem:[%s2957 + $0x34] sm:$0xf]
      %v3286 = vld [vmem:[%s2957 + $0x38] sm:$0x1]
      %v3287 = vld [vmem:[%s2957 + $0x3c] sm:$0xf]
      %v3288 = vld [vmem:[%s2957 + $0x40] sm:$0xf]
      %v3289 = vld [vmem:[%s2957 + $0x44] sm:$0x1]
      %v3290 = vld [vmem:[%s2957 + $0x48] sm:$0xf]
      %v3291 = vld [vmem:[%s2957 + $0x4c] sm:$0xf]
      %v3292 = vld [vmem:[%s2957 + $0x50] sm:$0x1]
      %v3293 = vld [vmem:[%s2957 + $0x54] sm:$0xf]
      %v3294 = vld [vmem:[%s2957 + $0x58] sm:$0xf]
      %v3295 = vld [vmem:[%s2957 + $0x5c] sm:$0x1]
      %v3296 = vld [vmem:[%s2957 + $0x60] sm:$0xf]
      %v3297 = vld [vmem:[%s2957 + $0x64] sm:$0xf]
      %v3298 = vld [vmem:[%s2957 + $0x68] sm:$0x1]
      %v3299 = vld [vmem:[%s2957 + $0x6c] sm:$0xf]
      %v3300 = vld [vmem:[%s2957 + $0x70] sm:$0xf]
      %v3301 = vld [vmem:[%s2957 + $0x74] sm:$0x1]
      %v3302 = vld [vmem:[%s2957 + $0x78] sm:$0xf]
      %v3303 = vld [vmem:[%s2957 + $0x7c] sm:$0xf]
      %v3304 = vld [vmem:[%s2957 + $0x80] sm:$0x1]
      %v3305 = vld [vmem:[%s2957 + $0x84] sm:$0xf]
      %v3306 = vld [vmem:[%s2957 + $0x88] sm:$0xf]
      %v3307 = vld [vmem:[%s2957 + $0x8c] sm:$0x1]
      %v3308 = vld [vmem:[%s2957 + $0x90] sm:$0xf]
      %v3309 = vld [vmem:[%s2957 + $0x94] sm:$0xf]
      %v3310 = vld [vmem:[%s2957 + $0x98] sm:$0x1]
      %v3311 = vld [vmem:[%s2957 + $0x9c] sm:$0xf]
      %v3312 = vld [vmem:[%s2957 + $0xa0] sm:$0xf]
      %v3313 = vld [vmem:[%s2957 + $0xa4] sm:$0x1]
      %v3314 = vld [vmem:[%s2957 + $0xa8] sm:$0xf]
      %v3315 = vld [vmem:[%s2957 + $0xac] sm:$0xf]
      %v3316 = vld [vmem:[%s2957 + $0xb0] sm:$0x1]
      %v3317 = vld [vmem:[%s2957 + $0xb4] sm:$0xf]
      %v3318 = vld [vmem:[%s2957 + $0xb8] sm:$0xf]
      %v3319 = vld [vmem:[%s2957 + $0xbc] sm:$0x1]
      %v3321 = vshrl.u32 %v3272, 16
      %v3323 = vrot.slane %v3321, 4
      %v3324 = vshll.u32 %v3272, 16
      %v3326 = vrot.slane %v3324, 5
      %v3327 = vor.u32 %v3323, %v3326
      %v3328 = vrot.slane %v3327, 4
      %v3330 = vshll.u32 %v3273, 16
      %v3332 = vrot.slane %v3330, 5
      %v3333 = vsel %vm285, %v3328, %v3332
      %v3334 = vshrl.u32 %v3273, 16
      %v3336 = vrot.slane %v3334, 4
      %v3337 = vor.u32 %v3336, %v3332
      %v3338 = vrot.slane %v3337, 4
      %v3340 = vshll.u32 %v3274, 16
      %v3342 = vrot.slane %v3340, 5
      %v3343 = vsel %vm285, %v3338, %v3342
      %v3345 = vshrl.u32 %v3275, 16
      %v3347 = vrot.slane %v3345, 4
      %v3348 = vshll.u32 %v3275, 16
      %v3350 = vrot.slane %v3348, 5
      %v3351 = vor.u32 %v3347, %v3350
      %v3352 = vrot.slane %v3351, 4
      %v3354 = vshll.u32 %v3276, 16
      %v3356 = vrot.slane %v3354, 5
      %v3357 = vsel %vm285, %v3352, %v3356
      %v3358 = vshrl.u32 %v3276, 16
      %v3360 = vrot.slane %v3358, 4
      %v3361 = vor.u32 %v3360, %v3356
      %v3362 = vrot.slane %v3361, 4
      %v3364 = vshll.u32 %v3277, 16
      %v3366 = vrot.slane %v3364, 5
      %v3367 = vsel %vm285, %v3362, %v3366
      %v3369 = vshrl.u32 %v3278, 16
      %v3371 = vrot.slane %v3369, 4
      %v3372 = vshll.u32 %v3278, 16
      %v3374 = vrot.slane %v3372, 5
      %v3375 = vor.u32 %v3371, %v3374
      %v3376 = vrot.slane %v3375, 4
      %v3378 = vshll.u32 %v3279, 16
      %v3380 = vrot.slane %v3378, 5
      %v3381 = vsel %vm285, %v3376, %v3380
      %v3382 = vshrl.u32 %v3279, 16
      %v3384 = vrot.slane %v3382, 4
      %v3385 = vor.u32 %v3384, %v3380
      %v3386 = vrot.slane %v3385, 4
      %v3388 = vshll.u32 %v3280, 16
      %v3390 = vrot.slane %v3388, 5
      %v3391 = vsel %vm285, %v3386, %v3390
      %v3393 = vshrl.u32 %v3281, 16
      %v3395 = vrot.slane %v3393, 4
      %v3396 = vshll.u32 %v3281, 16
      %v3398 = vrot.slane %v3396, 5
      %v3399 = vor.u32 %v3395, %v3398
      %v3400 = vrot.slane %v3399, 4
      %v3402 = vshll.u32 %v3282, 16
      %v3404 = vrot.slane %v3402, 5
      %v3405 = vsel %vm285, %v3400, %v3404
      %v3406 = vshrl.u32 %v3282, 16
      %v3408 = vrot.slane %v3406, 4
      %v3409 = vor.u32 %v3408, %v3404
      %v3410 = vrot.slane %v3409, 4
      %v3412 = vshll.u32 %v3283, 16
      %v3414 = vrot.slane %v3412, 5
      %v3415 = vsel %vm285, %v3410, %v3414
      %v3417 = vshrl.u32 %v3284, 16
      %v3419 = vrot.slane %v3417, 4
      %v3420 = vshll.u32 %v3284, 16
      %v3422 = vrot.slane %v3420, 5
      %v3423 = vor.u32 %v3419, %v3422
      %v3424 = vrot.slane %v3423, 4
      %v3426 = vshll.u32 %v3285, 16
      %v3428 = vrot.slane %v3426, 5
      %v3429 = vsel %vm285, %v3424, %v3428
      %v3430 = vshrl.u32 %v3285, 16
      %v3432 = vrot.slane %v3430, 4
      %v3433 = vor.u32 %v3432, %v3428
      %v3434 = vrot.slane %v3433, 4
      %v3436 = vshll.u32 %v3286, 16
      %v3438 = vrot.slane %v3436, 5
      %v3439 = vsel %vm285, %v3434, %v3438
      %v3441 = vshrl.u32 %v3287, 16
      %v3443 = vrot.slane %v3441, 4
      %v3444 = vshll.u32 %v3287, 16
      %v3446 = vrot.slane %v3444, 5
      %v3447 = vor.u32 %v3443, %v3446
      %v3448 = vrot.slane %v3447, 4
      %v3450 = vshll.u32 %v3288, 16
      %v3452 = vrot.slane %v3450, 5
      %v3453 = vsel %vm285, %v3448, %v3452
      %v3454 = vshrl.u32 %v3288, 16
      %v3456 = vrot.slane %v3454, 4
      %v3457 = vor.u32 %v3456, %v3452
      %v3458 = vrot.slane %v3457, 4
      %v3460 = vshll.u32 %v3289, 16
      %v3462 = vrot.slane %v3460, 5
      %v3463 = vsel %vm285, %v3458, %v3462
      %v3465 = vshrl.u32 %v3290, 16
      %v3467 = vrot.slane %v3465, 4
      %v3468 = vshll.u32 %v3290, 16
      %v3470 = vrot.slane %v3468, 5
      %v3471 = vor.u32 %v3467, %v3470
      %v3472 = vrot.slane %v3471, 4
      %v3474 = vshll.u32 %v3291, 16
      %v3476 = vrot.slane %v3474, 5
      %v3477 = vsel %vm285, %v3472, %v3476
      %v3478 = vshrl.u32 %v3291, 16
      %v3480 = vrot.slane %v3478, 4
      %v3481 = vor.u32 %v3480, %v3476
      %v3482 = vrot.slane %v3481, 4
      %v3484 = vshll.u32 %v3292, 16
      %v3486 = vrot.slane %v3484, 5
      %v3487 = vsel %vm285, %v3482, %v3486
      %v3489 = vshrl.u32 %v3293, 16
      %v3491 = vrot.slane %v3489, 4
      %v3492 = vshll.u32 %v3293, 16
      %v3494 = vrot.slane %v3492, 5
      %v3495 = vor.u32 %v3491, %v3494
      %v3496 = vrot.slane %v3495, 4
      %v3498 = vshll.u32 %v3294, 16
      %v3500 = vrot.slane %v3498, 5
      %v3501 = vsel %vm285, %v3496, %v3500
      %v3502 = vshrl.u32 %v3294, 16
      %v3504 = vrot.slane %v3502, 4
      %v3505 = vor.u32 %v3504, %v3500
      %v3506 = vrot.slane %v3505, 4
      %v3508 = vshll.u32 %v3295, 16
      %v3510 = vrot.slane %v3508, 5
      %v3511 = vsel %vm285, %v3506, %v3510
      %v3513 = vshrl.u32 %v3296, 16
      %v3515 = vrot.slane %v3513, 4
      %v3516 = vshll.u32 %v3296, 16
      %v3518 = vrot.slane %v3516, 5
      %v3519 = vor.u32 %v3515, %v3518
      %v3520 = vrot.slane %v3519, 4
      %v3522 = vshll.u32 %v3297, 16
      %v3524 = vrot.slane %v3522, 5
      %v3525 = vsel %vm285, %v3520, %v3524
      %v3526 = vshrl.u32 %v3297, 16
      %v3528 = vrot.slane %v3526, 4
      %v3529 = vor.u32 %v3528, %v3524
      %v3530 = vrot.slane %v3529, 4
      %v3532 = vshll.u32 %v3298, 16
      %v3534 = vrot.slane %v3532, 5
      %v3535 = vsel %vm285, %v3530, %v3534
      %v3537 = vshrl.u32 %v3299, 16
      %v3539 = vrot.slane %v3537, 4
      %v3540 = vshll.u32 %v3299, 16
      %v3542 = vrot.slane %v3540, 5
      %v3543 = vor.u32 %v3539, %v3542
      %v3544 = vrot.slane %v3543, 4
      %v3546 = vshll.u32 %v3300, 16
      %v3548 = vrot.slane %v3546, 5
      %v3549 = vsel %vm285, %v3544, %v3548
      %v3550 = vshrl.u32 %v3300, 16
      %v3552 = vrot.slane %v3550, 4
      %v3553 = vor.u32 %v3552, %v3548
      %v3554 = vrot.slane %v3553, 4
      %v3556 = vshll.u32 %v3301, 16
      %v3558 = vrot.slane %v3556, 5
      %v3559 = vsel %vm285, %v3554, %v3558
      %v3561 = vshrl.u32 %v3302, 16
      %v3563 = vrot.slane %v3561, 4
      %v3564 = vshll.u32 %v3302, 16
      %v3566 = vrot.slane %v3564, 5
      %v3567 = vor.u32 %v3563, %v3566
      %v3568 = vrot.slane %v3567, 4
      %v3570 = vshll.u32 %v3303, 16
      %v3572 = vrot.slane %v3570, 5
      %v3573 = vsel %vm285, %v3568, %v3572
      %v3574 = vshrl.u32 %v3303, 16
      %v3576 = vrot.slane %v3574, 4
      %v3577 = vor.u32 %v3576, %v3572
      %v3578 = vrot.slane %v3577, 4
      %v3580 = vshll.u32 %v3304, 16
      %v3582 = vrot.slane %v3580, 5
      %v3583 = vsel %vm285, %v3578, %v3582
      %v3585 = vshrl.u32 %v3305, 16
      %v3587 = vrot.slane %v3585, 4
      %v3588 = vshll.u32 %v3305, 16
      %v3590 = vrot.slane %v3588, 5
      %v3591 = vor.u32 %v3587, %v3590
      %v3592 = vrot.slane %v3591, 4
      %v3594 = vshll.u32 %v3306, 16
      %v3596 = vrot.slane %v3594, 5
      %v3597 = vsel %vm285, %v3592, %v3596
      %v3598 = vshrl.u32 %v3306, 16
      %v3600 = vrot.slane %v3598, 4
      %v3601 = vor.u32 %v3600, %v3596
      %v3602 = vrot.slane %v3601, 4
      %v3604 = vshll.u32 %v3307, 16
      %v3606 = vrot.slane %v3604, 5
      %v3607 = vsel %vm285, %v3602, %v3606
      %v3609 = vshrl.u32 %v3308, 16
      %v3611 = vrot.slane %v3609, 4
      %v3612 = vshll.u32 %v3308, 16
      %v3614 = vrot.slane %v3612, 5
      %v3615 = vor.u32 %v3611, %v3614
      %v3616 = vrot.slane %v3615, 4
      %v3618 = vshll.u32 %v3309, 16
      %v3620 = vrot.slane %v3618, 5
      %v3621 = vsel %vm285, %v3616, %v3620
      %v3622 = vshrl.u32 %v3309, 16
      %v3624 = vrot.slane %v3622, 4
      %v3625 = vor.u32 %v3624, %v3620
      %v3626 = vrot.slane %v3625, 4
      %v3628 = vshll.u32 %v3310, 16
      %v3630 = vrot.slane %v3628, 5
      %v3631 = vsel %vm285, %v3626, %v3630
      %v3633 = vshrl.u32 %v3311, 16
      %v3635 = vrot.slane %v3633, 4
      %v3636 = vshll.u32 %v3311, 16
      %v3638 = vrot.slane %v3636, 5
      %v3639 = vor.u32 %v3635, %v3638
      %v3640 = vrot.slane %v3639, 4
      %v3642 = vshll.u32 %v3312, 16
      %v3644 = vrot.slane %v3642, 5
      %v3645 = vsel %vm285, %v3640, %v3644
      %v3646 = vshrl.u32 %v3312, 16
      %v3648 = vrot.slane %v3646, 4
      %v3649 = vor.u32 %v3648, %v3644
      %v3650 = vrot.slane %v3649, 4
      %v3652 = vshll.u32 %v3313, 16
      %v3654 = vrot.slane %v3652, 5
      %v3655 = vsel %vm285, %v3650, %v3654
      %v3657 = vshrl.u32 %v3314, 16
      %v3659 = vrot.slane %v3657, 4
      %v3660 = vshll.u32 %v3314, 16
      %v3662 = vrot.slane %v3660, 5
      %v3663 = vor.u32 %v3659, %v3662
      %v3664 = vrot.slane %v3663, 4
      %v3666 = vshll.u32 %v3315, 16
      %v3668 = vrot.slane %v3666, 5
      %v3669 = vsel %vm285, %v3664, %v3668
      %v3670 = vshrl.u32 %v3315, 16
      %v3672 = vrot.slane %v3670, 4
      %v3673 = vor.u32 %v3672, %v3668
      %v3674 = vrot.slane %v3673, 4
      %v3676 = vshll.u32 %v3316, 16
      %v3678 = vrot.slane %v3676, 5
      %v3679 = vsel %vm285, %v3674, %v3678
      %v3681 = vshrl.u32 %v3317, 16
      %v3683 = vrot.slane %v3681, 4
      %v3684 = vshll.u32 %v3317, 16
      %v3686 = vrot.slane %v3684, 5
      %v3687 = vor.u32 %v3683, %v3686
      %v3688 = vrot.slane %v3687, 4
      %v3690 = vshll.u32 %v3318, 16
      %v3692 = vrot.slane %v3690, 5
      %v3693 = vsel %vm285, %v3688, %v3692
      %v3694 = vshrl.u32 %v3318, 16
      %v3696 = vrot.slane %v3694, 4
      %v3697 = vor.u32 %v3696, %v3692
      %v3698 = vrot.slane %v3697, 4
      %v3700 = vshll.u32 %v3319, 16
      %v3702 = vrot.slane %v3700, 5
      %v3703 = vsel %vm285, %v3698, %v3702
      %s3704 = scalar_lea.vmem %s1, 448
      %v3705 = vld [vmem:[%s3704] sm:$0xf]
      %v3706 = vld [vmem:[%s3704 + $0x4] sm:$0xf]
      %v3707 = vld [vmem:[%s3704 + $0x8] sm:$0xf]
      %v3708 = vld [vmem:[%s3704 + $0xc] sm:$0xf]
      %v3709 = vld [vmem:[%s3704 + $0x10] sm:$0xf]
      %v3710 = vld [vmem:[%s3704 + $0x14] sm:$0xf]
      %v3711 = vld [vmem:[%s3704 + $0x18] sm:$0xf]
      %v3712 = vld [vmem:[%s3704 + $0x1c] sm:$0xf]
      %v3713 = vld [vmem:[%s3704 + $0x20] sm:$0xf]
      %v3714 = vld [vmem:[%s3704 + $0x24] sm:$0xf]
      %v3715 = vld [vmem:[%s3704 + $0x28] sm:$0xf]
      %v3716 = vld [vmem:[%s3704 + $0x2c] sm:$0xf]
      %v3717 = vld [vmem:[%s3704 + $0x30] sm:$0xf]
      %v3718 = vld [vmem:[%s3704 + $0x34] sm:$0xf]
      %v3719 = vld [vmem:[%s3704 + $0x38] sm:$0xf]
      %v3720 = vld [vmem:[%s3704 + $0x3c] sm:$0xf]
      %v3721 = vunpack.c.l.b16 %v3333
      %v3722 = vunpack.c.l.b16 %v3343
      %v3723 = vunpack.c.l.b16 %v3357
      %v3724 = vunpack.c.l.b16 %v3367
      %v3725 = vunpack.c.l.b16 %v3381
      %v3726 = vunpack.c.l.b16 %v3391
      %v3727 = vunpack.c.l.b16 %v3405
      %v3728 = vunpack.c.l.b16 %v3415
      %v3729 = vunpack.c.l.b16 %v3429
      %v3730 = vunpack.c.l.b16 %v3439
      %v3731 = vunpack.c.l.b16 %v3453
      %v3732 = vunpack.c.l.b16 %v3463
      %v3733 = vunpack.c.l.b16 %v3477
      %v3734 = vunpack.c.l.b16 %v3487
      %v3735 = vunpack.c.l.b16 %v3501
      %v3736 = vunpack.c.l.b16 %v3511
      %v3737 = vunpack.c.l.b16 %v3525
      %v3738 = vunpack.c.l.b16 %v3535
      %v3739 = vunpack.c.l.b16 %v3549
      %v3740 = vunpack.c.l.b16 %v3559
      %v3741 = vunpack.c.l.b16 %v3573
      %v3742 = vunpack.c.l.b16 %v3583
      %v3743 = vunpack.c.l.b16 %v3597
      %v3744 = vunpack.c.l.b16 %v3607
      %v3745 = vunpack.c.l.b16 %v3621
      %v3746 = vunpack.c.l.b16 %v3631
      %v3747 = vunpack.c.l.b16 %v3645
      %v3748 = vunpack.c.l.b16 %v3655
      %v3749 = vunpack.c.l.b16 %v3669
      %v3750 = vunpack.c.l.b16 %v3679
      %v3751 = vunpack.c.l.b16 %v3693
      %v3752 = vunpack.c.l.b16 %v3703
      %v3753 = vpack.c.b16 %v3722, %v3721
      %v3754 = vpack.c.b16 %v3724, %v3723
      %v3755 = vpack.c.b16 %v3726, %v3725
      %v3756 = vpack.c.b16 %v3728, %v3727
      %v3757 = vpack.c.b16 %v3730, %v3729
      %v3758 = vpack.c.b16 %v3732, %v3731
      %v3759 = vpack.c.b16 %v3734, %v3733
      %v3760 = vpack.c.b16 %v3736, %v3735
      %v3761 = vpack.c.b16 %v3738, %v3737
      %v3762 = vpack.c.b16 %v3740, %v3739
      %v3763 = vpack.c.b16 %v3742, %v3741
      %v3764 = vpack.c.b16 %v3744, %v3743
      %v3765 = vpack.c.b16 %v3746, %v3745
      %v3766 = vpack.c.b16 %v3748, %v3747
      %v3767 = vpack.c.b16 %v3750, %v3749
      %v3768 = vpack.c.b16 %v3752, %v3751
      %v3801 = vunpack.c.l.b16 %v3705
      %v3802 = vunpack.c.l.b16 %v3706
      %v3803 = vunpack.c.l.b16 %v3707
      %v3804 = vunpack.c.l.b16 %v3708
      %v3805 = vunpack.c.l.b16 %v3709
      %v3806 = vunpack.c.l.b16 %v3710
      %v3807 = vunpack.c.l.b16 %v3711
      %v3808 = vunpack.c.l.b16 %v3712
      %v3809 = vunpack.c.l.b16 %v3713
      %v3810 = vunpack.c.l.b16 %v3714
      %v3811 = vunpack.c.l.b16 %v3715
      %v3812 = vunpack.c.l.b16 %v3716
      %v3813 = vunpack.c.l.b16 %v3717
      %v3814 = vunpack.c.l.b16 %v3718
      %v3815 = vunpack.c.l.b16 %v3719
      %v3816 = vunpack.c.l.b16 %v3720
      %v3817 = vpack.c.b16 %v3802, %v3801
      %v3818 = vpack.c.b16 %v3804, %v3803
      %v3819 = vpack.c.b16 %v3806, %v3805
      %v3820 = vpack.c.b16 %v3808, %v3807
      %v3821 = vpack.c.b16 %v3810, %v3809
      %v3822 = vpack.c.b16 %v3812, %v3811
      %v3823 = vpack.c.b16 %v3814, %v3813
      %v3824 = vpack.c.b16 %v3816, %v3815
      %3833 = vmatpush.bf16.msra.mxu0 %v3824
      %3834 = vmatpush.bf16.msra.mxu0 %v3823
      %3835 = vmatpush.bf16.msra.mxu0 %v3822
      %3836 = vmatpush.bf16.msra.mxu0 %v3821
      %3837 = vmatpush.bf16.msra.mxu0 %v3820
      %3838 = vmatpush.bf16.msra.mxu0 %v3819
      %3839 = vmatpush.bf16.msra.mxu0 %v3818
      %3840 = vmatpush.bf16.msra.mxu0 %v3817
      %3841 = vmatmul.bf16.gmra.mxu0 %v3753
      %v3842 = vpop.f32.mrf.mxu0
      %v3843 = vadd.f32 0.0, %v3842
      %v3844 = vpop.f32.mrf.mxu0
      %v3845 = vadd.f32 0.0, %v3844
      %3846 = vmatmul.bf16.gmra.mxu0 %v3754
      %v3847 = vpop.f32.mrf.mxu0
      %v3848 = vadd.f32 0.0, %v3847
      %v3849 = vpop.f32.mrf.mxu0
      %v3850 = vadd.f32 0.0, %v3849
      %3851 = vmatmul.bf16.gmra.mxu0 %v3755
      %v3852 = vpop.f32.mrf.mxu0
      %v3853 = vadd.f32 0.0, %v3852
      %v3854 = vpop.f32.mrf.mxu0
      %v3855 = vadd.f32 0.0, %v3854
      %3856 = vmatmul.bf16.gmra.mxu0 %v3756
      %v3857 = vpop.f32.mrf.mxu0
      %v3858 = vadd.f32 0.0, %v3857
      %v3859 = vpop.f32.mrf.mxu0
      %v3860 = vadd.f32 0.0, %v3859
      %3861 = vmatmul.bf16.gmra.mxu0 %v3757
      %v3862 = vpop.f32.mrf.mxu0
      %v3863 = vadd.f32 0.0, %v3862
      %v3864 = vpop.f32.mrf.mxu0
      %v3865 = vadd.f32 0.0, %v3864
      %3866 = vmatmul.bf16.gmra.mxu0 %v3758
      %v3867 = vpop.f32.mrf.mxu0
      %v3868 = vadd.f32 0.0, %v3867
      %v3869 = vpop.f32.mrf.mxu0
      %v3870 = vadd.f32 0.0, %v3869
      %3871 = vmatmul.bf16.gmra.mxu0 %v3759
      %v3872 = vpop.f32.mrf.mxu0
      %v3873 = vadd.f32 0.0, %v3872
      %v3874 = vpop.f32.mrf.mxu0
      %v3875 = vadd.f32 0.0, %v3874
      %3876 = vmatmul.bf16.gmra.mxu0 %v3760
      %v3877 = vpop.f32.mrf.mxu0
      %v3878 = vadd.f32 0.0, %v3877
      %v3879 = vpop.f32.mrf.mxu0
      %v3880 = vadd.f32 0.0, %v3879
      %3881 = vmatmul.bf16.gmra.mxu0 %v3761
      %v3882 = vpop.f32.mrf.mxu0
      %v3883 = vadd.f32 0.0, %v3882
      %v3884 = vpop.f32.mrf.mxu0
      %v3885 = vadd.f32 0.0, %v3884
      %3886 = vmatmul.bf16.gmra.mxu0 %v3762
      %v3887 = vpop.f32.mrf.mxu0
      %v3888 = vadd.f32 0.0, %v3887
      %v3889 = vpop.f32.mrf.mxu0
      %v3890 = vadd.f32 0.0, %v3889
      %3891 = vmatmul.bf16.gmra.mxu0 %v3763
      %v3892 = vpop.f32.mrf.mxu0
      %v3893 = vadd.f32 0.0, %v3892
      %v3894 = vpop.f32.mrf.mxu0
      %v3895 = vadd.f32 0.0, %v3894
      %3896 = vmatmul.bf16.gmra.mxu0 %v3764
      %v3897 = vpop.f32.mrf.mxu0
      %v3898 = vadd.f32 0.0, %v3897
      %v3899 = vpop.f32.mrf.mxu0
      %v3900 = vadd.f32 0.0, %v3899
      %3901 = vmatmul.bf16.gmra.mxu0 %v3765
      %v3902 = vpop.f32.mrf.mxu0
      %v3903 = vadd.f32 0.0, %v3902
      %v3904 = vpop.f32.mrf.mxu0
      %v3905 = vadd.f32 0.0, %v3904
      %3906 = vmatmul.bf16.gmra.mxu0 %v3766
      %v3907 = vpop.f32.mrf.mxu0
      %v3908 = vadd.f32 0.0, %v3907
      %v3909 = vpop.f32.mrf.mxu0
      %v3910 = vadd.f32 0.0, %v3909
      %3911 = vmatmul.bf16.gmra.mxu0 %v3767
      %v3912 = vpop.f32.mrf.mxu0
      %v3913 = vadd.f32 0.0, %v3912
      %v3914 = vpop.f32.mrf.mxu0
      %v3915 = vadd.f32 0.0, %v3914
      %3916 = vmatmul.bf16.gmra.mxu0 %v3768
      %v3917 = vpop.f32.mrf.mxu0
      %v3918 = vadd.f32 0.0, %v3917
      %v3919 = vpop.f32.mrf.mxu0
      %v3920 = vadd.f32 0.0, %v3919
      %3921 = vdwg.mxu0
      %v3922 = vadd.f32 %v3240, %v3843
      %v3923 = vadd.f32 %v3241, %v3845
      %v3924 = vadd.f32 %v3242, %v3848
      %v3925 = vadd.f32 %v3243, %v3850
      %v3926 = vadd.f32 %v3244, %v3853
      %v3927 = vadd.f32 %v3245, %v3855
      %v3928 = vadd.f32 %v3246, %v3858
      %v3929 = vadd.f32 %v3247, %v3860
      %v3930 = vadd.f32 %v3248, %v3863
      %v3931 = vadd.f32 %v3249, %v3865
      %v3932 = vadd.f32 %v3250, %v3868
      %v3933 = vadd.f32 %v3251, %v3870
      %v3934 = vadd.f32 %v3252, %v3873
      %v3935 = vadd.f32 %v3253, %v3875
      %v3936 = vadd.f32 %v3254, %v3878
      %v3937 = vadd.f32 %v3255, %v3880
      %v3938 = vadd.f32 %v3256, %v3883
      %v3939 = vadd.f32 %v3257, %v3885
      %v3940 = vadd.f32 %v3258, %v3888
      %v3941 = vadd.f32 %v3259, %v3890
      %v3942 = vadd.f32 %v3260, %v3893
      %v3943 = vadd.f32 %v3261, %v3895
      %v3944 = vadd.f32 %v3262, %v3898
      %v3945 = vadd.f32 %v3263, %v3900
      %v3946 = vadd.f32 %v3264, %v3903
      %v3947 = vadd.f32 %v3265, %v3905
      %v3948 = vadd.f32 %v3266, %v3908
      %v3949 = vadd.f32 %v3267, %v3910
      %v3950 = vadd.f32 %v3268, %v3913
      %v3951 = vadd.f32 %v3269, %v3915
      %v3952 = vadd.f32 %v3270, %v3918
      %v3953 = vadd.f32 %v3271, %v3920
      %v3954 = vld [vmem:[%s2957] sm:$0xe]
      %v3955 = vld [vmem:[%s2957 + $0xc] sm:$0xe]
      %v3956 = vld [vmem:[%s2957 + $0x18] sm:$0xe]
      %v3957 = vld [vmem:[%s2957 + $0x24] sm:$0xe]
      %v3958 = vld [vmem:[%s2957 + $0x30] sm:$0xe]
      %v3959 = vld [vmem:[%s2957 + $0x3c] sm:$0xe]
      %v3960 = vld [vmem:[%s2957 + $0x48] sm:$0xe]
      %v3961 = vld [vmem:[%s2957 + $0x54] sm:$0xe]
      %v3962 = vld [vmem:[%s2957 + $0x60] sm:$0xe]
      %v3963 = vld [vmem:[%s2957 + $0x6c] sm:$0xe]
      %v3964 = vld [vmem:[%s2957 + $0x78] sm:$0xe]
      %v3965 = vld [vmem:[%s2957 + $0x84] sm:$0xe]
      %v3966 = vld [vmem:[%s2957 + $0x90] sm:$0xe]
      %v3967 = vld [vmem:[%s2957 + $0x9c] sm:$0xe]
      %v3968 = vld [vmem:[%s2957 + $0xa8] sm:$0xe]
      %v3969 = vld [vmem:[%s2957 + $0xb4] sm:$0xe]
      %v4018 = vrot.slane %v3954, 5
      %v4019 = vrot.slane %v4018, 4
      %v4020 = vrot.slane %v3273, 5
      %v4021 = vsel %vm1171, %v4019, %v4020
      %v4022 = vrot.slane %v4020, 4
      %v4023 = vrot.slane %v3274, 5
      %v4024 = vsel %vm1171, %v4022, %v4023
      %v4025 = vrot.slane %v3955, 5
      %v4026 = vrot.slane %v4025, 4
      %v4027 = vrot.slane %v3276, 5
      %v4028 = vsel %vm1171, %v4026, %v4027
      %v4029 = vrot.slane %v4027, 4
      %v4030 = vrot.slane %v3277, 5
      %v4031 = vsel %vm1171, %v4029, %v4030
      %v4032 = vrot.slane %v3956, 5
      %v4033 = vrot.slane %v4032, 4
      %v4034 = vrot.slane %v3279, 5
      %v4035 = vsel %vm1171, %v4033, %v4034
      %v4036 = vrot.slane %v4034, 4
      %v4037 = vrot.slane %v3280, 5
      %v4038 = vsel %vm1171, %v4036, %v4037
      %v4039 = vrot.slane %v3957, 5
      %v4040 = vrot.slane %v4039, 4
      %v4041 = vrot.slane %v3282, 5
      %v4042 = vsel %vm1171, %v4040, %v4041
      %v4043 = vrot.slane %v4041, 4
      %v4044 = vrot.slane %v3283, 5
      %v4045 = vsel %vm1171, %v4043, %v4044
      %v4046 = vrot.slane %v3958, 5
      %v4047 = vrot.slane %v4046, 4
      %v4048 = vrot.slane %v3285, 5
      %v4049 = vsel %vm1171, %v4047, %v4048
      %v4050 = vrot.slane %v4048, 4
      %v4051 = vrot.slane %v3286, 5
      %v4052 = vsel %vm1171, %v4050, %v4051
      %v4053 = vrot.slane %v3959, 5
      %v4054 = vrot.slane %v4053, 4
      %v4055 = vrot.slane %v3288, 5
      %v4056 = vsel %vm1171, %v4054, %v4055
      %v4057 = vrot.slane %v4055, 4
      %v4058 = vrot.slane %v3289, 5
      %v4059 = vsel %vm1171, %v4057, %v4058
      %v4060 = vrot.slane %v3960, 5
      %v4061 = vrot.slane %v4060, 4
      %v4062 = vrot.slane %v3291, 5
      %v4063 = vsel %vm1171, %v4061, %v4062
      %v4064 = vrot.slane %v4062, 4
      %v4065 = vrot.slane %v3292, 5
      %v4066 = vsel %vm1171, %v4064, %v4065
      %v4067 = vrot.slane %v3961, 5
      %v4068 = vrot.slane %v4067, 4
      %v4069 = vrot.slane %v3294, 5
      %v4070 = vsel %vm1171, %v4068, %v4069
      %v4071 = vrot.slane %v4069, 4
      %v4072 = vrot.slane %v3295, 5
      %v4073 = vsel %vm1171, %v4071, %v4072
      %v4074 = vrot.slane %v3962, 5
      %v4075 = vrot.slane %v4074, 4
      %v4076 = vrot.slane %v3297, 5
      %v4077 = vsel %vm1171, %v4075, %v4076
      %v4078 = vrot.slane %v4076, 4
      %v4079 = vrot.slane %v3298, 5
      %v4080 = vsel %vm1171, %v4078, %v4079
      %v4081 = vrot.slane %v3963, 5
      %v4082 = vrot.slane %v4081, 4
      %v4083 = vrot.slane %v3300, 5
      %v4084 = vsel %vm1171, %v4082, %v4083
      %v4085 = vrot.slane %v4083, 4
      %v4086 = vrot.slane %v3301, 5
      %v4087 = vsel %vm1171, %v4085, %v4086
      %v4088 = vrot.slane %v3964, 5
      %v4089 = vrot.slane %v4088, 4
      %v4090 = vrot.slane %v3303, 5
      %v4091 = vsel %vm1171, %v4089, %v4090
      %v4092 = vrot.slane %v4090, 4
      %v4093 = vrot.slane %v3304, 5
      %v4094 = vsel %vm1171, %v4092, %v4093
      %v4095 = vrot.slane %v3965, 5
      %v4096 = vrot.slane %v4095, 4
      %v4097 = vrot.slane %v3306, 5
      %v4098 = vsel %vm1171, %v4096, %v4097
      %v4099 = vrot.slane %v4097, 4
      %v4100 = vrot.slane %v3307, 5
      %v4101 = vsel %vm1171, %v4099, %v4100
      %v4102 = vrot.slane %v3966, 5
      %v4103 = vrot.slane %v4102, 4
      %v4104 = vrot.slane %v3309, 5
      %v4105 = vsel %vm1171, %v4103, %v4104
      %v4106 = vrot.slane %v4104, 4
      %v4107 = vrot.slane %v3310, 5
      %v4108 = vsel %vm1171, %v4106, %v4107
      %v4109 = vrot.slane %v3967, 5
      %v4110 = vrot.slane %v4109, 4
      %v4111 = vrot.slane %v3312, 5
      %v4112 = vsel %vm1171, %v4110, %v4111
      %v4113 = vrot.slane %v4111, 4
      %v4114 = vrot.slane %v3313, 5
      %v4115 = vsel %vm1171, %v4113, %v4114
      %v4116 = vrot.slane %v3968, 5
      %v4117 = vrot.slane %v4116, 4
      %v4118 = vrot.slane %v3315, 5
      %v4119 = vsel %vm1171, %v4117, %v4118
      %v4120 = vrot.slane %v4118, 4
      %v4121 = vrot.slane %v3316, 5
      %v4122 = vsel %vm1171, %v4120, %v4121
      %v4123 = vrot.slane %v3969, 5
      %v4124 = vrot.slane %v4123, 4
      %v4125 = vrot.slane %v3318, 5
      %v4126 = vsel %vm1171, %v4124, %v4125
      %v4127 = vrot.slane %v4125, 4
      %v4128 = vrot.slane %v3319, 5
      %v4129 = vsel %vm1171, %v4127, %v4128
      %s4130 = scalar_lea.vmem %s1, 512
      %v4131 = vld [vmem:[%s4130] sm:$0xf]
      %v4132 = vld [vmem:[%s4130 + $0x4] sm:$0xf]
      %v4133 = vld [vmem:[%s4130 + $0x8] sm:$0xf]
      %v4134 = vld [vmem:[%s4130 + $0xc] sm:$0xf]
      %v4135 = vld [vmem:[%s4130 + $0x10] sm:$0xf]
      %v4136 = vld [vmem:[%s4130 + $0x14] sm:$0xf]
      %v4137 = vld [vmem:[%s4130 + $0x18] sm:$0xf]
      %v4138 = vld [vmem:[%s4130 + $0x1c] sm:$0xf]
      %v4139 = vld [vmem:[%s4130 + $0x20] sm:$0xf]
      %v4140 = vld [vmem:[%s4130 + $0x24] sm:$0xf]
      %v4141 = vld [vmem:[%s4130 + $0x28] sm:$0xf]
      %v4142 = vld [vmem:[%s4130 + $0x2c] sm:$0xf]
      %v4143 = vld [vmem:[%s4130 + $0x30] sm:$0xf]
      %v4144 = vld [vmem:[%s4130 + $0x34] sm:$0xf]
      %v4145 = vld [vmem:[%s4130 + $0x38] sm:$0xf]
      %v4146 = vld [vmem:[%s4130 + $0x3c] sm:$0xf]
      %v4147 = vunpack.c.l.b16 %v4021
      %v4148 = vunpack.c.l.b16 %v4024
      %v4149 = vunpack.c.l.b16 %v4028
      %v4150 = vunpack.c.l.b16 %v4031
      %v4151 = vunpack.c.l.b16 %v4035
      %v4152 = vunpack.c.l.b16 %v4038
      %v4153 = vunpack.c.l.b16 %v4042
      %v4154 = vunpack.c.l.b16 %v4045
      %v4155 = vunpack.c.l.b16 %v4049
      %v4156 = vunpack.c.l.b16 %v4052
      %v4157 = vunpack.c.l.b16 %v4056
      %v4158 = vunpack.c.l.b16 %v4059
      %v4159 = vunpack.c.l.b16 %v4063
      %v4160 = vunpack.c.l.b16 %v4066
      %v4161 = vunpack.c.l.b16 %v4070
      %v4162 = vunpack.c.l.b16 %v4073
      %v4163 = vunpack.c.l.b16 %v4077
      %v4164 = vunpack.c.l.b16 %v4080
      %v4165 = vunpack.c.l.b16 %v4084
      %v4166 = vunpack.c.l.b16 %v4087
      %v4167 = vunpack.c.l.b16 %v4091
      %v4168 = vunpack.c.l.b16 %v4094
      %v4169 = vunpack.c.l.b16 %v4098
      %v4170 = vunpack.c.l.b16 %v4101
      %v4171 = vunpack.c.l.b16 %v4105
      %v4172 = vunpack.c.l.b16 %v4108
      %v4173 = vunpack.c.l.b16 %v4112
      %v4174 = vunpack.c.l.b16 %v4115
      %v4175 = vunpack.c.l.b16 %v4119
      %v4176 = vunpack.c.l.b16 %v4122
      %v4177 = vunpack.c.l.b16 %v4126
      %v4178 = vunpack.c.l.b16 %v4129
      %v4179 = vpack.c.b16 %v4148, %v4147
      %v4180 = vpack.c.b16 %v4150, %v4149
      %v4181 = vpack.c.b16 %v4152, %v4151
      %v4182 = vpack.c.b16 %v4154, %v4153
      %v4183 = vpack.c.b16 %v4156, %v4155
      %v4184 = vpack.c.b16 %v4158, %v4157
      %v4185 = vpack.c.b16 %v4160, %v4159
      %v4186 = vpack.c.b16 %v4162, %v4161
      %v4187 = vpack.c.b16 %v4164, %v4163
      %v4188 = vpack.c.b16 %v4166, %v4165
      %v4189 = vpack.c.b16 %v4168, %v4167
      %v4190 = vpack.c.b16 %v4170, %v4169
      %v4191 = vpack.c.b16 %v4172, %v4171
      %v4192 = vpack.c.b16 %v4174, %v4173
      %v4193 = vpack.c.b16 %v4176, %v4175
      %v4194 = vpack.c.b16 %v4178, %v4177
      %v4227 = vunpack.c.l.b16 %v4131
      %v4228 = vunpack.c.l.b16 %v4132
      %v4229 = vunpack.c.l.b16 %v4133
      %v4230 = vunpack.c.l.b16 %v4134
      %v4231 = vunpack.c.l.b16 %v4135
      %v4232 = vunpack.c.l.b16 %v4136
      %v4233 = vunpack.c.l.b16 %v4137
      %v4234 = vunpack.c.l.b16 %v4138
      %v4235 = vunpack.c.l.b16 %v4139
      %v4236 = vunpack.c.l.b16 %v4140
      %v4237 = vunpack.c.l.b16 %v4141
      %v4238 = vunpack.c.l.b16 %v4142
      %v4239 = vunpack.c.l.b16 %v4143
      %v4240 = vunpack.c.l.b16 %v4144
      %v4241 = vunpack.c.l.b16 %v4145
      %v4242 = vunpack.c.l.b16 %v4146
      %v4243 = vpack.c.b16 %v4228, %v4227
      %v4244 = vpack.c.b16 %v4230, %v4229
      %v4245 = vpack.c.b16 %v4232, %v4231
      %v4246 = vpack.c.b16 %v4234, %v4233
      %v4247 = vpack.c.b16 %v4236, %v4235
      %v4248 = vpack.c.b16 %v4238, %v4237
      %v4249 = vpack.c.b16 %v4240, %v4239
      %v4250 = vpack.c.b16 %v4242, %v4241
      %4259 = vmatpush.bf16.msra.mxu0 %v4250
      %4260 = vmatpush.bf16.msra.mxu0 %v4249
      %4261 = vmatpush.bf16.msra.mxu0 %v4248
      %4262 = vmatpush.bf16.msra.mxu0 %v4247
      %4263 = vmatpush.bf16.msra.mxu0 %v4246
      %4264 = vmatpush.bf16.msra.mxu0 %v4245
      %4265 = vmatpush.bf16.msra.mxu0 %v4244
      %4266 = vmatpush.bf16.msra.mxu0 %v4243
      %4267 = vmatmul.bf16.gmra.mxu0 %v4179
      %v4268 = vpop.f32.mrf.mxu0
      %v4269 = vadd.f32 0.0, %v4268
      %v4270 = vpop.f32.mrf.mxu0
      %v4271 = vadd.f32 0.0, %v4270
      %4272 = vmatmul.bf16.gmra.mxu0 %v4180
      %v4273 = vpop.f32.mrf.mxu0
      %v4274 = vadd.f32 0.0, %v4273
      %v4275 = vpop.f32.mrf.mxu0
      %v4276 = vadd.f32 0.0, %v4275
      %4277 = vmatmul.bf16.gmra.mxu0 %v4181
      %v4278 = vpop.f32.mrf.mxu0
      %v4279 = vadd.f32 0.0, %v4278
      %v4280 = vpop.f32.mrf.mxu0
      %v4281 = vadd.f32 0.0, %v4280
      %4282 = vmatmul.bf16.gmra.mxu0 %v4182
      %v4283 = vpop.f32.mrf.mxu0
      %v4284 = vadd.f32 0.0, %v4283
      %v4285 = vpop.f32.mrf.mxu0
      %v4286 = vadd.f32 0.0, %v4285
      %4287 = vmatmul.bf16.gmra.mxu0 %v4183
      %v4288 = vpop.f32.mrf.mxu0
      %v4289 = vadd.f32 0.0, %v4288
      %v4290 = vpop.f32.mrf.mxu0
      %v4291 = vadd.f32 0.0, %v4290
      %4292 = vmatmul.bf16.gmra.mxu0 %v4184
      %v4293 = vpop.f32.mrf.mxu0
      %v4294 = vadd.f32 0.0, %v4293
      %v4295 = vpop.f32.mrf.mxu0
      %v4296 = vadd.f32 0.0, %v4295
      %4297 = vmatmul.bf16.gmra.mxu0 %v4185
      %v4298 = vpop.f32.mrf.mxu0
      %v4299 = vadd.f32 0.0, %v4298
      %v4300 = vpop.f32.mrf.mxu0
      %v4301 = vadd.f32 0.0, %v4300
      %4302 = vmatmul.bf16.gmra.mxu0 %v4186
      %v4303 = vpop.f32.mrf.mxu0
      %v4304 = vadd.f32 0.0, %v4303
      %v4305 = vpop.f32.mrf.mxu0
      %v4306 = vadd.f32 0.0, %v4305
      %4307 = vmatmul.bf16.gmra.mxu0 %v4187
      %v4308 = vpop.f32.mrf.mxu0
      %v4309 = vadd.f32 0.0, %v4308
      %v4310 = vpop.f32.mrf.mxu0
      %v4311 = vadd.f32 0.0, %v4310
      %4312 = vmatmul.bf16.gmra.mxu0 %v4188
      %v4313 = vpop.f32.mrf.mxu0
      %v4314 = vadd.f32 0.0, %v4313
      %v4315 = vpop.f32.mrf.mxu0
      %v4316 = vadd.f32 0.0, %v4315
      %4317 = vmatmul.bf16.gmra.mxu0 %v4189
      %v4318 = vpop.f32.mrf.mxu0
      %v4319 = vadd.f32 0.0, %v4318
      %v4320 = vpop.f32.mrf.mxu0
      %v4321 = vadd.f32 0.0, %v4320
      %4322 = vmatmul.bf16.gmra.mxu0 %v4190
      %v4323 = vpop.f32.mrf.mxu0
      %v4324 = vadd.f32 0.0, %v4323
      %v4325 = vpop.f32.mrf.mxu0
      %v4326 = vadd.f32 0.0, %v4325
      %4327 = vmatmul.bf16.gmra.mxu0 %v4191
      %v4328 = vpop.f32.mrf.mxu0
      %v4329 = vadd.f32 0.0, %v4328
      %v4330 = vpop.f32.mrf.mxu0
      %v4331 = vadd.f32 0.0, %v4330
      %4332 = vmatmul.bf16.gmra.mxu0 %v4192
      %v4333 = vpop.f32.mrf.mxu0
      %v4334 = vadd.f32 0.0, %v4333
      %v4335 = vpop.f32.mrf.mxu0
      %v4336 = vadd.f32 0.0, %v4335
      %4337 = vmatmul.bf16.gmra.mxu0 %v4193
      %v4338 = vpop.f32.mrf.mxu0
      %v4339 = vadd.f32 0.0, %v4338
      %v4340 = vpop.f32.mrf.mxu0
      %v4341 = vadd.f32 0.0, %v4340
      %4342 = vmatmul.bf16.gmra.mxu0 %v4194
      %v4343 = vpop.f32.mrf.mxu0
      %v4344 = vadd.f32 0.0, %v4343
      %v4345 = vpop.f32.mrf.mxu0
      %v4346 = vadd.f32 0.0, %v4345
      %4347 = vdwg.mxu0
      %v4348 = vadd.f32 %v3922, %v4269
      %v4349 = vadd.f32 %v3923, %v4271
      %v4350 = vadd.f32 %v3924, %v4274
      %v4351 = vadd.f32 %v3925, %v4276
      %v4352 = vadd.f32 %v3926, %v4279
      %v4353 = vadd.f32 %v3927, %v4281
      %v4354 = vadd.f32 %v3928, %v4284
      %v4355 = vadd.f32 %v3929, %v4286
      %v4356 = vadd.f32 %v3930, %v4289
      %v4357 = vadd.f32 %v3931, %v4291
      %v4358 = vadd.f32 %v3932, %v4294
      %v4359 = vadd.f32 %v3933, %v4296
      %v4360 = vadd.f32 %v3934, %v4299
      %v4361 = vadd.f32 %v3935, %v4301
      %v4362 = vadd.f32 %v3936, %v4304
      %v4363 = vadd.f32 %v3937, %v4306
      %v4364 = vadd.f32 %v3938, %v4309
      %v4365 = vadd.f32 %v3939, %v4311
      %v4366 = vadd.f32 %v3940, %v4314
      %v4367 = vadd.f32 %v3941, %v4316
      %v4368 = vadd.f32 %v3942, %v4319
      %v4369 = vadd.f32 %v3943, %v4321
      %v4370 = vadd.f32 %v3944, %v4324
      %v4371 = vadd.f32 %v3945, %v4326
      %v4372 = vadd.f32 %v3946, %v4329
      %v4373 = vadd.f32 %v3947, %v4331
      %v4374 = vadd.f32 %v3948, %v4334
      %v4375 = vadd.f32 %v3949, %v4336
      %v4376 = vadd.f32 %v3950, %v4339
      %v4377 = vadd.f32 %v3951, %v4341
      %v4378 = vadd.f32 %v3952, %v4344
      %v4379 = vadd.f32 %v3953, %v4346
      %v4380 = vpack.c.bf16 %v4348, %v4348
      %v4381 = vpack.c.bf16 %v4349, %v4349
      %v4382 = vpack.c.bf16 %v4350, %v4350
      %v4383 = vpack.c.bf16 %v4351, %v4351
      %v4384 = vpack.c.bf16 %v4352, %v4352
      %v4385 = vpack.c.bf16 %v4353, %v4353
      %v4386 = vpack.c.bf16 %v4354, %v4354
      %v4387 = vpack.c.bf16 %v4355, %v4355
      %v4388 = vpack.c.bf16 %v4356, %v4356
      %v4389 = vpack.c.bf16 %v4357, %v4357
      %v4390 = vpack.c.bf16 %v4358, %v4358
      %v4391 = vpack.c.bf16 %v4359, %v4359
      %v4392 = vpack.c.bf16 %v4360, %v4360
      %v4393 = vpack.c.bf16 %v4361, %v4361
      %v4394 = vpack.c.bf16 %v4362, %v4362
      %v4395 = vpack.c.bf16 %v4363, %v4363
      %v4396 = vpack.c.bf16 %v4364, %v4364
      %v4397 = vpack.c.bf16 %v4365, %v4365
      %v4398 = vpack.c.bf16 %v4366, %v4366
      %v4399 = vpack.c.bf16 %v4367, %v4367
      %v4400 = vpack.c.bf16 %v4368, %v4368
      %v4401 = vpack.c.bf16 %v4369, %v4369
      %v4402 = vpack.c.bf16 %v4370, %v4370
      %v4403 = vpack.c.bf16 %v4371, %v4371
      %v4404 = vpack.c.bf16 %v4372, %v4372
      %v4405 = vpack.c.bf16 %v4373, %v4373
      %v4406 = vpack.c.bf16 %v4374, %v4374
      %v4407 = vpack.c.bf16 %v4375, %v4375
      %v4408 = vpack.c.bf16 %v4376, %v4376
      %v4409 = vpack.c.bf16 %v4377, %v4377
      %v4410 = vpack.c.bf16 %v4378, %v4378
      %v4411 = vpack.c.bf16 %v4379, %v4379
      %4412 = vst [vmem:[%s210] sm:$0xf] %v4380
      %4413 = vst [vmem:[%s210 + $0x4] sm:$0xf] %v4381
      %4414 = vst [vmem:[%s210 + $0x8] sm:$0xf] %v4382
      %4415 = vst [vmem:[%s210 + $0xc] sm:$0xf] %v4383
      %4416 = vst [vmem:[%s210 + $0x10] sm:$0xf] %v4384
      %4417 = vst [vmem:[%s210 + $0x14] sm:$0xf] %v4385
      %4418 = vst [vmem:[%s210 + $0x18] sm:$0xf] %v4386
      %4419 = vst [vmem:[%s210 + $0x1c] sm:$0xf] %v4387
      %4420 = vst [vmem:[%s210 + $0x20] sm:$0xf] %v4388
      %4421 = vst [vmem:[%s210 + $0x24] sm:$0xf] %v4389
      %4422 = vst [vmem:[%s210 + $0x28] sm:$0xf] %v4390
      %4423 = vst [vmem:[%s210 + $0x2c] sm:$0xf] %v4391
      %4424 = vst [vmem:[%s210 + $0x30] sm:$0xf] %v4392
      %4425 = vst [vmem:[%s210 + $0x34] sm:$0xf] %v4393
      %4426 = vst [vmem:[%s210 + $0x38] sm:$0xf] %v4394
      %4427 = vst [vmem:[%s210 + $0x3c] sm:$0xf] %v4395
      %4428 = vst [vmem:[%s210 + $0x40] sm:$0xf] %v4396
      %4429 = vst [vmem:[%s210 + $0x44] sm:$0xf] %v4397
      %4430 = vst [vmem:[%s210 + $0x48] sm:$0xf] %v4398
      %4431 = vst [vmem:[%s210 + $0x4c] sm:$0xf] %v4399
      %4432 = vst [vmem:[%s210 + $0x50] sm:$0xf] %v4400
      %4433 = vst [vmem:[%s210 + $0x54] sm:$0xf] %v4401
      %4434 = vst [vmem:[%s210 + $0x58] sm:$0xf] %v4402
      %4435 = vst [vmem:[%s210 + $0x5c] sm:$0xf] %v4403
      %4436 = vst [vmem:[%s210 + $0x60] sm:$0xf] %v4404
      %4437 = vst [vmem:[%s210 + $0x64] sm:$0xf] %v4405
      %4438 = vst [vmem:[%s210 + $0x68] sm:$0xf] %v4406
      %4439 = vst [vmem:[%s210 + $0x6c] sm:$0xf] %v4407
      %4440 = vst [vmem:[%s210 + $0x70] sm:$0xf] %v4408
      %4441 = vst [vmem:[%s210 + $0x74] sm:$0xf] %v4409
      %4442 = vst [vmem:[%s210 + $0x78] sm:$0xf] %v4410
      %4443 = vst [vmem:[%s210 + $0x7c] sm:$0xf] %v4411
      %v4444 = vadd.f32 %v4348, %v4349
      %v4445 = vadd.f32 %v4444, %v4350
      %v4446 = vadd.f32 %v4445, %v4351
      %v4447 = vadd.f32 %v4446, %v4352
      %v4448 = vadd.f32 %v4447, %v4353
      %v4449 = vadd.f32 %v4448, %v4354
      %v4450 = vadd.f32 %v4449, %v4355
      %v4451 = vadd.f32 %v4450, %v4356
      %v4452 = vadd.f32 %v4451, %v4357
      %v4453 = vadd.f32 %v4452, %v4358
      %v4454 = vadd.f32 %v4453, %v4359
      %v4455 = vadd.f32 %v4454, %v4360
      %v4456 = vadd.f32 %v4455, %v4361
      %v4457 = vadd.f32 %v4456, %v4362
      %v4458 = vadd.f32 %v4457, %v4363
      %v4459 = vadd.f32 %v4458, %v4364
      %v4460 = vadd.f32 %v4459, %v4365
      %v4461 = vadd.f32 %v4460, %v4366
      %v4462 = vadd.f32 %v4461, %v4367
      %v4463 = vadd.f32 %v4462, %v4368
      %v4464 = vadd.f32 %v4463, %v4369
      %v4465 = vadd.f32 %v4464, %v4370
      %v4466 = vadd.f32 %v4465, %v4371
      %v4467 = vadd.f32 %v4466, %v4372
      %v4468 = vadd.f32 %v4467, %v4373
      %v4469 = vadd.f32 %v4468, %v4374
      %v4470 = vadd.f32 %v4469, %v4375
      %v4471 = vadd.f32 %v4470, %v4376
      %v4472 = vadd.f32 %v4471, %v4377
      %v4473 = vadd.f32 %v4472, %v4378
      %v4474 = vadd.f32 %v4473, %v4379
      %v4475 = vrot.slane %v4474, 4
      %v4476 = vadd.f32 %v4474, %v4475
      %v4477 = vrot.slane %v4476, 2
      %v4478 = vadd.f32 %v4476, %v4477
      %v4479 = vrot.slane %v4478, 1
      %v4480 = vadd.f32 %v4478, %v4479
      %v4481 = vmul.f32 %v4348, %v4348
      %v4482 = vmul.f32 %v4349, %v4349
      %v4483 = vmul.f32 %v4350, %v4350
      %v4484 = vmul.f32 %v4351, %v4351
      %v4485 = vmul.f32 %v4352, %v4352
      %v4486 = vmul.f32 %v4353, %v4353
      %v4487 = vmul.f32 %v4354, %v4354
      %v4488 = vmul.f32 %v4355, %v4355
      %v4489 = vmul.f32 %v4356, %v4356
      %v4490 = vmul.f32 %v4357, %v4357
      %v4491 = vmul.f32 %v4358, %v4358
      %v4492 = vmul.f32 %v4359, %v4359
      %v4493 = vmul.f32 %v4360, %v4360
      %v4494 = vmul.f32 %v4361, %v4361
      %v4495 = vmul.f32 %v4362, %v4362
      %v4496 = vmul.f32 %v4363, %v4363
      %v4497 = vmul.f32 %v4364, %v4364
      %v4498 = vmul.f32 %v4365, %v4365
      %v4499 = vmul.f32 %v4366, %v4366
      %v4500 = vmul.f32 %v4367, %v4367
      %v4501 = vmul.f32 %v4368, %v4368
      %v4502 = vmul.f32 %v4369, %v4369
      %v4503 = vmul.f32 %v4370, %v4370
      %v4504 = vmul.f32 %v4371, %v4371
      %v4505 = vmul.f32 %v4372, %v4372
      %v4506 = vmul.f32 %v4373, %v4373
      %v4507 = vmul.f32 %v4374, %v4374
      %v4508 = vmul.f32 %v4375, %v4375
      %v4509 = vmul.f32 %v4376, %v4376
      %v4510 = vmul.f32 %v4377, %v4377
      %v4511 = vmul.f32 %v4378, %v4378
      %v4512 = vmul.f32 %v4379, %v4379
      %v4513 = vadd.f32 %v4481, %v4482
      %v4514 = vadd.f32 %v4513, %v4483
      %v4515 = vadd.f32 %v4514, %v4484
      %v4516 = vadd.f32 %v4515, %v4485
      %v4517 = vadd.f32 %v4516, %v4486
      %v4518 = vadd.f32 %v4517, %v4487
      %v4519 = vadd.f32 %v4518, %v4488
      %v4520 = vadd.f32 %v4519, %v4489
      %v4521 = vadd.f32 %v4520, %v4490
      %v4522 = vadd.f32 %v4521, %v4491
      %v4523 = vadd.f32 %v4522, %v4492
      %v4524 = vadd.f32 %v4523, %v4493
      %v4525 = vadd.f32 %v4524, %v4494
      %v4526 = vadd.f32 %v4525, %v4495
      %v4527 = vadd.f32 %v4526, %v4496
      %v4528 = vadd.f32 %v4527, %v4497
      %v4529 = vadd.f32 %v4528, %v4498
      %v4530 = vadd.f32 %v4529, %v4499
      %v4531 = vadd.f32 %v4530, %v4500
      %v4532 = vadd.f32 %v4531, %v4501
      %v4533 = vadd.f32 %v4532, %v4502
      %v4534 = vadd.f32 %v4533, %v4503
      %v4535 = vadd.f32 %v4534, %v4504
      %v4536 = vadd.f32 %v4535, %v4505
      %v4537 = vadd.f32 %v4536, %v4506
      %v4538 = vadd.f32 %v4537, %v4507
      %v4539 = vadd.f32 %v4538, %v4508
      %v4540 = vadd.f32 %v4539, %v4509
      %v4541 = vadd.f32 %v4540, %v4510
      %v4542 = vadd.f32 %v4541, %v4511
      %v4543 = vadd.f32 %v4542, %v4512
      %v4544 = vrot.slane %v4543, 4
      %v4545 = vadd.f32 %v4543, %v4544
      %v4546 = vrot.slane %v4545, 2
      %v4547 = vadd.f32 %v4545, %v4546
      %v4548 = vrot.slane %v4547, 1
      %v4549 = vadd.f32 %v4547, %v4548
      %4550 = vst [vmem:[%s214] sm:$0xff] %v4480
      %4551 = vst [vmem:[%s218] sm:$0xff] %v4549
      %p4552 = scmp.lt.s32.totalorder %s16, 3
      %s4553 = scalar_select %p4552, %s16, 3
      %s4554 = smul.addr %s4553, 32
      %s4555 = smul.addr %s4554, 4
      %s4556 = scalar_lea.vmem %s2, %s4555
      %p4557 = scmp.lt.s32.totalorder %s16, 3
      %s4558 = scalar_select %p4557, %s16, 3
      %s4559 = smul.addr %s4558, 8
      %s4560 = scalar_lea.vmem %s3, %s4559
      %p4561 = scmp.lt.s32.totalorder %s16, 3
      %s4562 = scalar_select %p4561, %s16, 3
      %s4563 = smul.addr %s4562, 8
      %s4564 = scalar_lea.vmem %s4, %s4563
      // Predicated region
      $region29: #{bottleneck_forward.5} parent=27 // pred_check
        %p4565 = pneg %p81
      $region30: #{bottleneck_forward.5} parent=27 // pred_check_branch
        %4567 = sbr.rel (%p4565) target = $region32
      $region31: #{bottleneck_forward.5} parent=27 // pred_region
        _
      $region32: #{bottleneck_forward.5} parent=27 // pred_fallthru
        _
      // Predicated region
      $region33: #{bottleneck_forward.5} parent=27 // pred_check
        %p4568 = pneg %p107
      $region34: #{bottleneck_forward.5} parent=27 // pred_check_branch
        %4570 = sbr.rel (%p4568) target = $region36
      $region35: #{bottleneck_forward.5} parent=27 // pred_region
        _
      $region36: #{bottleneck_forward.5} parent=27 // pred_fallthru
        _
      // Predicated region
      $region37: #{bottleneck_forward.5} parent=27 // pred_check
        %p4571 = pneg %p133
      $region38: #{bottleneck_forward.5} parent=27 // pred_check_branch
        %4573 = sbr.rel (%p4571) target = $region40
      $region39: #{bottleneck_forward.5} parent=27 // pred_region
        _
      $region40: #{bottleneck_forward.5} parent=27 // pred_fallthru
        _
    $region28: #{bottleneck_forward.5} parent=5 // pred_fallthru
      _
    %p4574 = scmp.le.s32.totalorder 2, %s11
    // Predicated region
    $region41: #{bottleneck_forward.5} parent=5 // pred_check
      %p4575 = pneg %p4574
    $region42: #{bottleneck_forward.5} parent=5 // pred_check_branch
      %4577 = sbr.rel (%p4575) target = $region44
    $region43: #{bottleneck_forward.5} parent=5 // pred_region
      %s4578 = ssub.s32 %s11, 2
      // Predicated region
      $region45: #{bottleneck_forward.5} parent=43 // pred_check
        %p4579 = pneg %p87
      $region46: #{bottleneck_forward.5} parent=43 // pred_check_branch
        %4581 = sbr.rel (%p4579) target = $region48
      $region47: #{bottleneck_forward.5} parent=43 // pred_region
        %p4582 = scmp.lt.s32.totalorder %s17, 3
        %s4583 = scalar_select %p4582, %s17, 3
        %s4584 = smul.addr %s4583, 32
        %s4585 = smul.addr %s4584, 4
        %s4586 = scalar_lea.vmem %s2, %s4585
      $region48: #{bottleneck_forward.5} parent=43 // pred_fallthru
        _
      // Predicated region
      $region49: #{bottleneck_forward.5} parent=43 // pred_check
        %p4587 = pneg %p113
      $region50: #{bottleneck_forward.5} parent=43 // pred_check_branch
        %4589 = sbr.rel (%p4587) target = $region52
      $region51: #{bottleneck_forward.5} parent=43 // pred_region
        %p4590 = scmp.lt.s32.totalorder %s17, 3
        %s4591 = scalar_select %p4590, %s17, 3
        %s4592 = smul.addr %s4591, 8
        %s4593 = scalar_lea.vmem %s3, %s4592
      $region52: #{bottleneck_forward.5} parent=43 // pred_fallthru
        _
      // Predicated region
      $region53: #{bottleneck_forward.5} parent=43 // pred_check
        %p4594 = pneg %p139
      $region54: #{bottleneck_forward.5} parent=43 // pred_check_branch
        %4596 = sbr.rel (%p4594) target = $region56
      $region55: #{bottleneck_forward.5} parent=43 // pred_region
        %p4597 = scmp.lt.s32.totalorder %s17, 3
        %s4598 = scalar_select %p4597, %s17, 3
        %s4599 = smul.addr %s4598, 8
        %s4600 = scalar_lea.vmem %s4, %s4599
      $region56: #{bottleneck_forward.5} parent=43 // pred_fallthru
        _
    $region44: #{bottleneck_forward.5} parent=5 // pred_fallthru
      _
  $region6: #{bottleneck_forward.5} parent=0 // loop_footer
    %s15 = sadd.s32 1, %s11
  $region7: #{bottleneck_forward.5} parent=0 // loop_footer_branch
    %10 = sbr.rel target = $region3
  $region8: #{bottleneck_forward.5} parent=0 // loop_exit
    _

</llo_original>
